<compile_context>
chip_gen: v5e
topology: v5e:2x2
jax: 0.10.0
libtpu: 0.0.40
codegen_flags: <defaults>
</compile_context>

<pallas_src>
import functools

import jax
import jax.numpy as jnp
from jax import lax
from jax.experimental import pallas as pl
from jax.experimental.pallas import tpu as pltpu

# MXU operand dtype: bf16 runs the MXU at full rate on v5e/v6e/v7x.
MXU_DTYPE = jnp.bfloat16

# (sub-image parity, sub-image shift) keys of the 16 distinct conv3 source
# patches, and the map (output-pixel parity, conv3 tap) -> key.
_RK = ((0, 0), (0, 1), (1, -1), (1, 0))
_TAP = (((1, -1), (0, 0), (1, 0)),      # output parity 0
        ((0, 0), (1, 0), (0, 1)))       # output parity 1


# ------------------------------ Pallas kernel -------------------------------


def _up_project_kernel(x_ref, w1f_ref, w3f_ref, bnp_ref, o_ref,
                       xpad_ref, s1p_ref, *, H, W, Cin, C):
    """Whole UpProject forward for one batch element, entirely in VMEM.

    x_ref  : (1, H, W, Cin)        unpadded NHWC input (MXU dtype)
    w1f_ref: (9*Cin, 8*C)          fused im2col weight for all 8 stage-1 convs;
                                   columns = [branch1 sub1..4 | branch2 sub1..4]
    w3f_ref: (16*C, 4*C)           fused conv3 weight over the 16 shifted
                                   sub-image patches; columns = parity 2r+c
    bnp_ref: (6, 4*C) f32          [s11, sh11, s12, sh12, s2, sh2], per-sub
                                   tiled/concatenated, conv biases pre-folded
    o_ref  : (1, H*W, 4*C) f32     output, column block s = pixels (2h+s//2,
                                   2w+s%2)
    xpad_ref: (H+2, W+2, Cin)      zero-halo padded-input scratch (MXU dtype)
    s1p_ref : (2, 2, H+2, W+2, C)  branch-1 sub-images with zero halo (scratch)
    """
    f32 = jnp.float32
    HW = H * W
    C4 = 4 * C
    mdt = xpad_ref.dtype

    # ---- In-kernel symmetric (1,1) zero pad of the input: zero only the halo
    # strips (the interior is overwritten right below).  Done every grid step:
    # scratch is per-TensorCore, so gating this on program_id==0 would be
    # wrong under megacore ("parallel") grid sharding.
    xpad_ref[0:1, :, :] = jnp.zeros((1, W + 2, Cin), mdt)
    xpad_ref[H + 1:H + 2, :, :] = jnp.zeros((1, W + 2, Cin), mdt)
    xpad_ref[1:H + 1, 0:1, :] = jnp.zeros((H, 1, Cin), mdt)
    xpad_ref[1:H + 1, W + 1:W + 2, :] = jnp.zeros((H, 1, Cin), mdt)
    xpad_ref[1:H + 1, 1:W + 1, :] = x_ref[0]

    # Same halo-strip-only zeroing for the branch-1 sub-image scratch.
    # Invariant: interior is fully rewritten every step, halo is never written.
    for r in range(2):
        for c in range(2):
            s1p_ref[r, c, 0:1, :, :] = jnp.zeros((1, W + 2, C), mdt)
            s1p_ref[r, c, H + 1:H + 2, :, :] = jnp.zeros((1, W + 2, C), mdt)
            s1p_ref[r, c, 1:H + 1, 0:1, :] = jnp.zeros((H, 1, C), mdt)
            s1p_ref[r, c, 1:H + 1, W + 1:W + 2, :] = jnp.zeros((H, 1, C), mdt)

    bnp = bnp_ref[...]

    # ---- Stage 1: all 8 asymmetric-pad convs as ONE im2col matmul.
    x1 = jnp.concatenate(
        [xpad_ref[kh:kh + H, kw:kw + W, :].reshape(HW, Cin)
         for kh in range(3) for kw in range(3)], axis=-1)       # (HW, 9*Cin)
    acc1 = jnp.dot(x1, w1f_ref[...], preferred_element_type=f32)  # (HW, 8*C)

    # Fused BN epilogues over all 4 sub-images at once.
    y1 = jnp.maximum(acc1[:, :C4] * bnp[0:1] + bnp[1:2], 0.0)   # bn1_1 + ReLU
    y2 = acc1[:, C4:] * bnp[2:3] + bnp[3:4]                     # bn1_2 (live)

    for s in range(4):
        r, c = divmod(s, 2)        # sub s lands on output pixels (2h+r, 2w+c)
        s1p_ref[r, c, 1:H + 1, 1:W + 1, :] = (
            y1[:, s * C:(s + 1) * C].astype(mdt).reshape(H, W, C))

    # ---- Stage 2: conv3 on the virtually interleaved branch-1 image as ONE
    # matmul over the 16 distinct shifted sub-image patches (zero halo gives
    # the conv padding for free), then bn2 + branch-2 add + ReLU for all 4
    # output parities at once, stored with a single un-sliced write.
    x2 = jnp.concatenate(
        [s1p_ref[rp, cp, 1 + sh:1 + sh + H, 1 + sw:1 + sw + W, :]
         .reshape(HW, C)
         for (rp, sh) in _RK for (cp, sw) in _RK], axis=-1)     # (HW, 16*C)
    acc2 = jnp.dot(x2, w3f_ref[...], preferred_element_type=f32)  # (HW, 4*C)

    o_ref[0] = jnp.maximum(acc2 * bnp[4:5] + bnp[5:6] + y2, 0.0)


# --------------------------------- wrapper ----------------------------------


def _prep_weights(p, Cin, C, mdt):
    """Build the two fused weight matrices (rows = K, cols = N)."""
    f32 = jnp.float32

    # Stage 1: rows ordered (kh, kw, cin); cols ordered (branch*4 + sub, cout).
    # Taps outside a conv's 2x3 / 3x2 / 2x2 extent are statically zero.
    w1f = jnp.zeros((3, 3, Cin, 8, C), f32)
    for j in range(2):          # branch 1 / 2
        for s in range(4):      # sub-conv 1..4
            w = p[f'w{j + 1}_{s + 1}']
            w1f = w1f.at[:w.shape[0], :w.shape[1], :, 4 * j + s, :].set(w)
    w1f = w1f.reshape(9 * Cin, 8 * C).astype(mdt)

    # Stage 2: rows ordered (patch p = 4*rowkey + colkey, cin);
    # cols ordered (output parity s = 2r+c, cout).
    w3f = jnp.zeros((16, C, 4, C), f32)
    for r in range(2):
        for c in range(2):
            s = 2 * r + c
            for di in range(3):
                ri = _RK.index(_TAP[r][di])
                for dj in range(3):
                    ci = _RK.index(_TAP[c][dj])
                    w3f = w3f.at[4 * ri + ci, :, s, :].set(p['w3'][di, dj])
    w3f = w3f.reshape(16 * C, 4 * C).astype(mdt)
    return w1f, w3f


def up_project_forward(x_nchw, p):
    B, Cin, H, W = x_nchw.shape
    C = p['b3'].shape[-1]
    HW = H * W
    f32 = jnp.float32
    mdt = MXU_DTYPE

    # NCHW -> NHWC + MXU-dtype cast (pad happens inside the kernel).
    x = jnp.transpose(x_nchw, (0, 2, 3, 1)).astype(mdt)

    w1f, w3f = _prep_weights(p, Cin, C, mdt)

    # Eval-mode BN folded with the conv bias:  (conv+b)*s + o == conv*s + (b*s+o)
    s11, o11 = p['bn1_1_scale'], p['bn1_1_shift']
    s12, o12 = p['bn1_2_scale'], p['bn1_2_shift']
    s2, o2 = p['bn2_scale'], p['bn2_shift']
    bnp = jnp.stack([
        jnp.tile(s11, 4),
        jnp.concatenate([p[f'b1_{i}'] * s11 + o11 for i in range(1, 5)]),
        jnp.tile(s12, 4),
        jnp.concatenate([p[f'b2_{i}'] * s12 + o12 for i in range(1, 5)]),
        jnp.tile(s2, 4),
        jnp.tile(p['b3'] * s2 + o2, 4),
    ]).astype(f32)                                              # (6, 4*C)

    itemsize = jnp.dtype(mdt).itemsize
    flops = 2 * B * HW * C * (72 * Cin + 64 * C)
    bytes_accessed = int(B * HW * Cin * itemsize
                         + (w1f.size + w3f.size) * itemsize
                         + bnp.size * 4
                         + B * HW * 4 * C * 4)

    kernel = functools.partial(_up_project_kernel, H=H, W=W, Cin=Cin, C=C)
    out_subs = pl.pallas_call(
        kernel,
        out_shape=jax.ShapeDtypeStruct((B, HW, 4 * C), f32),
        grid=(B,),
        in_specs=[
            pl.BlockSpec((1, H, W, Cin), lambda b: (b, 0, 0, 0)),
            pl.BlockSpec((9 * Cin, 8 * C), lambda b: (0, 0)),
            pl.BlockSpec((16 * C, 4 * C), lambda b: (0, 0)),
            pl.BlockSpec((6, 4 * C), lambda b: (0, 0)),
        ],
        out_specs=pl.BlockSpec((1, HW, 4 * C), lambda b: (b, 0, 0)),
        scratch_shapes=[
            pltpu.VMEM((H + 2, W + 2, Cin), mdt),       # zero-halo padded input
            pltpu.VMEM((2, 2, H + 2, W + 2, C), mdt),   # branch-1, zero halo
        ],
        compiler_params=pltpu.CompilerParams(
            dimension_semantics=("parallel",)),
        cost_estimate=pl.CostEstimate(flops=int(flops), transcendentals=0,
                                      bytes_accessed=bytes_accessed),
    )(x, w1f, w3f, bnp)

    # out[b, ch, 2h+r, 2w+c] = out_subs[b, h*W+w, (2r+c)*C + ch]; the 2x2
    # pixel-shuffle is fused with the NHWC->NCHW transpose the interface needs.
    out = out_subs.reshape(B, H, W, 2, 2, C)
    out = jnp.transpose(out, (0, 5, 1, 3, 2, 4)).reshape(B, C, 2 * H, 2 * W)
    return out


# ----------------------- deterministic parameter init -----------------------


def _fold_bn(gamma, beta, mean, var, eps=1e-5):
    scale = gamma / jnp.sqrt(var + eps)
    return scale, beta - mean * scale


def init_params(key, Cin, Cout):
    ks = iter(jax.random.split(key, 32))
    f32 = jnp.float32
    p = {}
    kshapes = {'w1_1': (3, 3), 'w1_2': (2, 3), 'w1_3': (3, 2), 'w1_4': (2, 2),
               'w2_1': (3, 3), 'w2_2': (2, 3), 'w2_3': (3, 2), 'w2_4': (2, 2)}
    for name, (kh, kw) in kshapes.items():
        p[name] = 0.1 * jax.random.normal(next(ks), (kh, kw, Cin, Cout), f32)
        p['b' + name[1:]] = 0.1 * jax.random.normal(next(ks), (Cout,), f32)
    p['w3'] = 0.1 * jax.random.normal(next(ks), (3, 3, Cout, Cout), f32)
    p['b3'] = 0.1 * jax.random.normal(next(ks), (Cout,), f32)
    for name in ('bn1_1', 'bn1_2', 'bn2'):
        gamma = 1.0 + 0.1 * jax.random.normal(next(ks), (Cout,), f32)
        beta = 0.1 * jax.random.normal(next(ks), (Cout,), f32)
        mean = 0.1 * jax.random.normal(next(ks), (Cout,), f32)
        var = 0.5 + jax.random.uniform(next(ks), (Cout,), f32)
        s, o = _fold_bn(gamma, beta, mean, var)
        p[name + '_scale'] = s
        p[name + '_shift'] = o
    return p


# ------------------------------- pure-JAX ref --------------------------------


def _interleave4(subs):
    """subs: (B, 4, H, W, C) in order [TL, TR, BL, BR] -> (B, 2H, 2W, C)."""
    B, _, H, W, C = subs.shape
    top = jnp.stack([subs[:, 0], subs[:, 1]], axis=3).reshape(B, H, 2 * W, C)
    bot = jnp.stack([subs[:, 2], subs[:, 3]], axis=3).reshape(B, H, 2 * W, C)
    return jnp.stack([top, bot], axis=2).reshape(B, 2 * H, 2 * W, C)


def up_project_reference(x_nchw, p):
    x = jnp.transpose(x_nchw, (0, 2, 3, 1)).astype(jnp.float32)

    def conv(inp, w, b, pad):
        y = lax.conv_general_dilated(inp, w, (1, 1), pad,
                                     dimension_numbers=('NHWC', 'HWIO', 'NHWC'),
                                     precision=lax.Precision.HIGHEST)
        return y + b

    pads = {'1': ((1, 1), (1, 1)), '2': ((1, 0), (1, 1)),
            '3': ((1, 1), (1, 0)), '4': ((1, 0), (1, 0))}
    outs1 = [conv(x, p[f'w1_{i}'], p[f'b1_{i}'], pads[str(i)]) for i in range(1, 5)]
    outs2 = [conv(x, p[f'w2_{i}'], p[f'b2_{i}'], pads[str(i)]) for i in range(1, 5)]
    img1 = _interleave4(jnp.stack(outs1, axis=1))
    img2 = _interleave4(jnp.stack(outs2, axis=1))
    y1 = jnp.maximum(img1 * p['bn1_1_scale'] + p['bn1_1_shift'], 0.0)
    y2 = img2 * p['bn1_2_scale'] + p['bn1_2_shift']
    c3 = conv(y1, p['w3'], p['b3'], ((1, 1), (1, 1)))
    c3 = c3 * p['bn2_scale'] + p['bn2_shift']
    out = jnp.maximum(c3 + y2, 0.0)
    return jnp.transpose(out, (0, 3, 1, 2))


# ---------------------------------- main -------------------------------------


if __name__ == "__main__":
    B, Cin, Cout, H, W = 2, 8, 8, 16, 16
    key = jax.random.PRNGKey(0)
    kx, kp = jax.random.split(key)
    x = jax.random.normal(kx, (B, Cin, H, W), jnp.float32)   # NCHW, like PyTorch
    params = init_params(kp, Cin, Cout)

    out = jax.jit(up_project_forward)(x, params)
    out = jax.block_until_ready(out)

    ref = up_project_reference(x, params)
    assert out.shape == (B, Cout, 2 * H, 2 * W), out.shape
    # bf16 MXU operands (f32 accumulation) and bf16 branch-1 activations vs.
    # the f32/HIGHEST reference leave ~1e-2-level worst-case deviations, hence
    # the looser tolerance.  Set MXU_DTYPE = jnp.float32 for tight agreement.
    tol = 3e-2 if MXU_DTYPE == jnp.bfloat16 else 1e-2
    assert jnp.allclose(out, ref, atol=tol, rtol=tol), float(
        jnp.max(jnp.abs(out - ref)))

    print("KERNEL_OK")
</pallas_src>

<mosaic_0001>
module attributes {stable_mosaic.version = 11 : i64} {
  func.func @_up_project_kernel(%arg0: i32, %arg1: memref<1x16x16x8xbf16, #tpu.memory_space<vmem>>, %arg2: memref<72x64xbf16, #tpu.memory_space<vmem>>, %arg3: memref<128x32xbf16, #tpu.memory_space<vmem>>, %arg4: memref<6x32xf32, #tpu.memory_space<vmem>>, %arg5: memref<1x256x32xf32, #tpu.memory_space<vmem>>, %arg6: memref<18x18x8xbf16, #tpu.memory_space<vmem>>, %arg7: memref<2x2x18x18x8xbf16, #tpu.memory_space<vmem>>) attributes {dimension_semantics = [#tpu.dimension_semantics<parallel>], iteration_bounds = array<i64: 2>, scalar_prefetch = 0 : i64, scratch_operands = 2 : i64, tpu.core_type = #tpu.core_type<tc>, window_params = [{transform_indices = @transform_0, window_bounds = array<i64: 1, 16, 16, 8>}, {pipeline_mode = #tpu.pipeline_mode<synchronous>, transform_indices = @transform_1, window_bounds = array<i64: 72, 64>}, {pipeline_mode = #tpu.pipeline_mode<synchronous>, transform_indices = @transform_2, window_bounds = array<i64: 128, 32>}, {pipeline_mode = #tpu.pipeline_mode<synchronous>, transform_indices = @transform_3, window_bounds = array<i64: 6, 32>}, {transform_indices = @transform_4, window_bounds = array<i64: 1, 256, 32>}]} {
    %cst = arith.constant 0.000000e+00 : bf16
    %0 = vector.broadcast %cst : bf16 to vector<1x18x8xbf16>
    %c0 = arith.constant 0 : index
    %c0_0 = arith.constant 0 : index
    %c0_1 = arith.constant 0 : index
    %1 = vector.load %arg6[%c0, %c0_0, %c0_1] : memref<18x18x8xbf16, #tpu.memory_space<vmem>>, vector<1x18x8xbf16>
    tpu.vector_store %arg6[%c0, %c0_0, %c0_1], %0 {strides = array<i32>} : memref<18x18x8xbf16, #tpu.memory_space<vmem>>, vector<1x18x8xbf16>,
    %cst_2 = arith.constant 0.000000e+00 : bf16
    %2 = vector.broadcast %cst_2 : bf16 to vector<1x18x8xbf16>
    %c17 = arith.constant 17 : index
    %c0_3 = arith.constant 0 : index
    %c0_4 = arith.constant 0 : index
    %3 = vector.load %arg6[%c17, %c0_3, %c0_4] : memref<18x18x8xbf16, #tpu.memory_space<vmem>>, vector<1x18x8xbf16>
    tpu.vector_store %arg6[%c17, %c0_3, %c0_4], %2 {strides = array<i32>} : memref<18x18x8xbf16, #tpu.memory_space<vmem>>, vector<1x18x8xbf16>,
    %cst_5 = arith.constant 0.000000e+00 : bf16
    %4 = vector.broadcast %cst_5 : bf16 to vector<16x1x8xbf16>
    %c1 = arith.constant 1 : index
    %c0_6 = arith.constant 0 : index
    %c0_7 = arith.constant 0 : index
    %5 = vector.load %arg6[%c1, %c0_6, %c0_7] : memref<18x18x8xbf16, #tpu.memory_space<vmem>>, vector<16x1x8xbf16>
    tpu.vector_store %arg6[%c1, %c0_6, %c0_7], %4 {strides = array<i32>} : memref<18x18x8xbf16, #tpu.memory_space<vmem>>, vector<16x1x8xbf16>,
    %cst_8 = arith.constant 0.000000e+00 : bf16
    %6 = vector.broadcast %cst_8 : bf16 to vector<16x1x8xbf16>
    %c1_9 = arith.constant 1 : index
    %c17_10 = arith.constant 17 : index
    %c0_11 = arith.constant 0 : index
    %7 = vector.load %arg6[%c1_9, %c17_10, %c0_11] : memref<18x18x8xbf16, #tpu.memory_space<vmem>>, vector<16x1x8xbf16>
    tpu.vector_store %arg6[%c1_9, %c17_10, %c0_11], %6 {strides = array<i32>} : memref<18x18x8xbf16, #tpu.memory_space<vmem>>, vector<16x1x8xbf16>,
    %c0_12 = arith.constant 0 : index
    %c0_13 = arith.constant 0 : index
    %c0_14 = arith.constant 0 : index
    %c0_15 = arith.constant 0 : index
    %8 = vector.load %arg1[%c0_12, %c0_13, %c0_14, %c0_15] : memref<1x16x16x8xbf16, #tpu.memory_space<vmem>>, vector<1x16x16x8xbf16>
    %9 = vector.shape_cast %8 : vector<1x16x16x8xbf16> to vector<16x16x8xbf16>
    %c1_16 = arith.constant 1 : index
    %c1_17 = arith.constant 1 : index
    %c0_18 = arith.constant 0 : index
    %10 = vector.load %arg6[%c1_16, %c1_17, %c0_18] : memref<18x18x8xbf16, #tpu.memory_space<vmem>>, vector<16x16x8xbf16>
    tpu.vector_store %arg6[%c1_16, %c1_17, %c0_18], %9 {strides = array<i32>} : memref<18x18x8xbf16, #tpu.memory_space<vmem>>, vector<16x16x8xbf16>,
    %cst_19 = arith.constant 0.000000e+00 : bf16
    %11 = vector.broadcast %cst_19 : bf16 to vector<1x18x8xbf16>
    %c0_20 = arith.constant 0 : index
    %c0_21 = arith.constant 0 : index
    %c0_22 = arith.constant 0 : index
    %c0_23 = arith.constant 0 : index
    %c0_24 = arith.constant 0 : index
    %12 = vector.load %arg7[%c0_20, %c0_21, %c0_22, %c0_23, %c0_24] : memref<2x2x18x18x8xbf16, #tpu.memory_space<vmem>>, vector<1x1x1x18x8xbf16>
    %13 = vector.shape_cast %12 : vector<1x1x1x18x8xbf16> to vector<1x18x8xbf16>
    %14 = vector.shape_cast %11 : vector<1x18x8xbf16> to vector<1x1x1x18x8xbf16>
    tpu.vector_store %arg7[%c0_20, %c0_21, %c0_22, %c0_23, %c0_24], %14 {strides = array<i32>} : memref<2x2x18x18x8xbf16, #tpu.memory_space<vmem>>, vector<1x1x1x18x8xbf16>,
    %cst_25 = arith.constant 0.000000e+00 : bf16
    %15 = vector.broadcast %cst_25 : bf16 to vector<1x18x8xbf16>
    %c0_26 = arith.constant 0 : index
    %c0_27 = arith.constant 0 : index
    %c17_28 = arith.constant 17 : index
    %c0_29 = arith.constant 0 : index
    %c0_30 = arith.constant 0 : index
    %16 = vector.load %arg7[%c0_26, %c0_27, %c17_28, %c0_29, %c0_30] : memref<2x2x18x18x8xbf16, #tpu.memory_space<vmem>>, vector<1x1x1x18x8xbf16>
    %17 = vector.shape_cast %16 : vector<1x1x1x18x8xbf16> to vector<1x18x8xbf16>
    %18 = vector.shape_cast %15 : vector<1x18x8xbf16> to vector<1x1x1x18x8xbf16>
    tpu.vector_store %arg7[%c0_26, %c0_27, %c17_28, %c0_29, %c0_30], %18 {strides = array<i32>} : memref<2x2x18x18x8xbf16, #tpu.memory_space<vmem>>, vector<1x1x1x18x8xbf16>,
    %cst_31 = arith.constant 0.000000e+00 : bf16
    %19 = vector.broadcast %cst_31 : bf16 to vector<16x1x8xbf16>
    %c0_32 = arith.constant 0 : index
    %c0_33 = arith.constant 0 : index
    %c1_34 = arith.constant 1 : index
    %c0_35 = arith.constant 0 : index
    %c0_36 = arith.constant 0 : index
    %20 = vector.load %arg7[%c0_32, %c0_33, %c1_34, %c0_35, %c0_36] : memref<2x2x18x18x8xbf16, #tpu.memory_space<vmem>>, vector<1x1x16x1x8xbf16>
    %21 = vector.shape_cast %20 : vector<1x1x16x1x8xbf16> to vector<16x1x8xbf16>
    %22 = vector.shape_cast %19 : vector<16x1x8xbf16> to vector<1x1x16x1x8xbf16>
    tpu.vector_store %arg7[%c0_32, %c0_33, %c1_34, %c0_35, %c0_36], %22 {strides = array<i32>} : memref<2x2x18x18x8xbf16, #tpu.memory_space<vmem>>, vector<1x1x16x1x8xbf16>,
    %cst_37 = arith.constant 0.000000e+00 : bf16
    %23 = vector.broadcast %cst_37 : bf16 to vector<16x1x8xbf16>
    %c0_38 = arith.constant 0 : index
    %c0_39 = arith.constant 0 : index
    %c1_40 = arith.constant 1 : index
    %c17_41 = arith.constant 17 : index
    %c0_42 = arith.constant 0 : index
    %24 = vector.load %arg7[%c0_38, %c0_39, %c1_40, %c17_41, %c0_42] : memref<2x2x18x18x8xbf16, #tpu.memory_space<vmem>>, vector<1x1x16x1x8xbf16>
    %25 = vector.shape_cast %24 : vector<1x1x16x1x8xbf16> to vector<16x1x8xbf16>
    %26 = vector.shape_cast %23 : vector<16x1x8xbf16> to vector<1x1x16x1x8xbf16>
    tpu.vector_store %arg7[%c0_38, %c0_39, %c1_40, %c17_41, %c0_42], %26 {strides = array<i32>} : memref<2x2x18x18x8xbf16, #tpu.memory_space<vmem>>, vector<1x1x16x1x8xbf16>,
    %cst_43 = arith.constant 0.000000e+00 : bf16
    %27 = vector.broadcast %cst_43 : bf16 to vector<1x18x8xbf16>
    %c0_44 = arith.constant 0 : index
    %c1_45 = arith.constant 1 : index
    %c0_46 = arith.constant 0 : index
    %c0_47 = arith.constant 0 : index
    %c0_48 = arith.constant 0 : index
    %28 = vector.load %arg7[%c0_44, %c1_45, %c0_46, %c0_47, %c0_48] : memref<2x2x18x18x8xbf16, #tpu.memory_space<vmem>>, vector<1x1x1x18x8xbf16>
    %29 = vector.shape_cast %28 : vector<1x1x1x18x8xbf16> to vector<1x18x8xbf16>
    %30 = vector.shape_cast %27 : vector<1x18x8xbf16> to vector<1x1x1x18x8xbf16>
    tpu.vector_store %arg7[%c0_44, %c1_45, %c0_46, %c0_47, %c0_48], %30 {strides = array<i32>} : memref<2x2x18x18x8xbf16, #tpu.memory_space<vmem>>, vector<1x1x1x18x8xbf16>,
    %cst_49 = arith.constant 0.000000e+00 : bf16
    %31 = vector.broadcast %cst_49 : bf16 to vector<1x18x8xbf16>
    %c0_50 = arith.constant 0 : index
    %c1_51 = arith.constant 1 : index
    %c17_52 = arith.constant 17 : index
    %c0_53 = arith.constant 0 : index
    %c0_54 = arith.constant 0 : index
    %32 = vector.load %arg7[%c0_50, %c1_51, %c17_52, %c0_53, %c0_54] : memref<2x2x18x18x8xbf16, #tpu.memory_space<vmem>>, vector<1x1x1x18x8xbf16>
    %33 = vector.shape_cast %32 : vector<1x1x1x18x8xbf16> to vector<1x18x8xbf16>
    %34 = vector.shape_cast %31 : vector<1x18x8xbf16> to vector<1x1x1x18x8xbf16>
    tpu.vector_store %arg7[%c0_50, %c1_51, %c17_52, %c0_53, %c0_54], %34 {strides = array<i32>} : memref<2x2x18x18x8xbf16, #tpu.memory_space<vmem>>, vector<1x1x1x18x8xbf16>,
    %cst_55 = arith.constant 0.000000e+00 : bf16
    %35 = vector.broadcast %cst_55 : bf16 to vector<16x1x8xbf16>
    %c0_56 = arith.constant 0 : index
    %c1_57 = arith.constant 1 : index
    %c1_58 = arith.constant 1 : index
    %c0_59 = arith.constant 0 : index
    %c0_60 = arith.constant 0 : index
    %36 = vector.load %arg7[%c0_56, %c1_57, %c1_58, %c0_59, %c0_60] : memref<2x2x18x18x8xbf16, #tpu.memory_space<vmem>>, vector<1x1x16x1x8xbf16>
    %37 = vector.shape_cast %36 : vector<1x1x16x1x8xbf16> to vector<16x1x8xbf16>
    %38 = vector.shape_cast %35 : vector<16x1x8xbf16> to vector<1x1x16x1x8xbf16>
    tpu.vector_store %arg7[%c0_56, %c1_57, %c1_58, %c0_59, %c0_60], %38 {strides = array<i32>} : memref<2x2x18x18x8xbf16, #tpu.memory_space<vmem>>, vector<1x1x16x1x8xbf16>,
    %cst_61 = arith.constant 0.000000e+00 : bf16
    %39 = vector.broadcast %cst_61 : bf16 to vector<16x1x8xbf16>
    %c0_62 = arith.constant 0 : index
    %c1_63 = arith.constant 1 : index
    %c1_64 = arith.constant 1 : index
    %c17_65 = arith.constant 17 : index
    %c0_66 = arith.constant 0 : index
    %40 = vector.load %arg7[%c0_62, %c1_63, %c1_64, %c17_65, %c0_66] : memref<2x2x18x18x8xbf16, #tpu.memory_space<vmem>>, vector<1x1x16x1x8xbf16>
    %41 = vector.shape_cast %40 : vector<1x1x16x1x8xbf16> to vector<16x1x8xbf16>
    %42 = vector.shape_cast %39 : vector<16x1x8xbf16> to vector<1x1x16x1x8xbf16>
    tpu.vector_store %arg7[%c0_62, %c1_63, %c1_64, %c17_65, %c0_66], %42 {strides = array<i32>} : memref<2x2x18x18x8xbf16, #tpu.memory_space<vmem>>, vector<1x1x16x1x8xbf16>,
    %cst_67 = arith.constant 0.000000e+00 : bf16
    %43 = vector.broadcast %cst_67 : bf16 to vector<1x18x8xbf16>
    %c1_68 = arith.constant 1 : index
    %c0_69 = arith.constant 0 : index
    %c0_70 = arith.constant 0 : index
    %c0_71 = arith.constant 0 : index
    %c0_72 = arith.constant 0 : index
    %44 = vector.load %arg7[%c1_68, %c0_69, %c0_70, %c0_71, %c0_72] : memref<2x2x18x18x8xbf16, #tpu.memory_space<vmem>>, vector<1x1x1x18x8xbf16>
    %45 = vector.shape_cast %44 : vector<1x1x1x18x8xbf16> to vector<1x18x8xbf16>
    %46 = vector.shape_cast %43 : vector<1x18x8xbf16> to vector<1x1x1x18x8xbf16>
    tpu.vector_store %arg7[%c1_68, %c0_69, %c0_70, %c0_71, %c0_72], %46 {strides = array<i32>} : memref<2x2x18x18x8xbf16, #tpu.memory_space<vmem>>, vector<1x1x1x18x8xbf16>,
    %cst_73 = arith.constant 0.000000e+00 : bf16
    %47 = vector.broadcast %cst_73 : bf16 to vector<1x18x8xbf16>
    %c1_74 = arith.constant 1 : index
    %c0_75 = arith.constant 0 : index
    %c17_76 = arith.constant 17 : index
    %c0_77 = arith.constant 0 : index
    %c0_78 = arith.constant 0 : index
    %48 = vector.load %arg7[%c1_74, %c0_75, %c17_76, %c0_77, %c0_78] : memref<2x2x18x18x8xbf16, #tpu.memory_space<vmem>>, vector<1x1x1x18x8xbf16>
    %49 = vector.shape_cast %48 : vector<1x1x1x18x8xbf16> to vector<1x18x8xbf16>
    %50 = vector.shape_cast %47 : vector<1x18x8xbf16> to vector<1x1x1x18x8xbf16>
    tpu.vector_store %arg7[%c1_74, %c0_75, %c17_76, %c0_77, %c0_78], %50 {strides = array<i32>} : memref<2x2x18x18x8xbf16, #tpu.memory_space<vmem>>, vector<1x1x1x18x8xbf16>,
    %cst_79 = arith.constant 0.000000e+00 : bf16
    %51 = vector.broadcast %cst_79 : bf16 to vector<16x1x8xbf16>
    %c1_80 = arith.constant 1 : index
    %c0_81 = arith.constant 0 : index
    %c1_82 = arith.constant 1 : index
    %c0_83 = arith.constant 0 : index
    %c0_84 = arith.constant 0 : index
    %52 = vector.load %arg7[%c1_80, %c0_81, %c1_82, %c0_83, %c0_84] : memref<2x2x18x18x8xbf16, #tpu.memory_space<vmem>>, vector<1x1x16x1x8xbf16>
    %53 = vector.shape_cast %52 : vector<1x1x16x1x8xbf16> to vector<16x1x8xbf16>
    %54 = vector.shape_cast %51 : vector<16x1x8xbf16> to vector<1x1x16x1x8xbf16>
    tpu.vector_store %arg7[%c1_80, %c0_81, %c1_82, %c0_83, %c0_84], %54 {strides = array<i32>} : memref<2x2x18x18x8xbf16, #tpu.memory_space<vmem>>, vector<1x1x16x1x8xbf16>,
    %cst_85 = arith.constant 0.000000e+00 : bf16
    %55 = vector.broadcast %cst_85 : bf16 to vector<16x1x8xbf16>
    %c1_86 = arith.constant 1 : index
    %c0_87 = arith.constant 0 : index
    %c1_88 = arith.constant 1 : index
    %c17_89 = arith.constant 17 : index
    %c0_90 = arith.constant 0 : index
    %56 = vector.load %arg7[%c1_86, %c0_87, %c1_88, %c17_89, %c0_90] : memref<2x2x18x18x8xbf16, #tpu.memory_space<vmem>>, vector<1x1x16x1x8xbf16>
    %57 = vector.shape_cast %56 : vector<1x1x16x1x8xbf16> to vector<16x1x8xbf16>
    %58 = vector.shape_cast %55 : vector<16x1x8xbf16> to vector<1x1x16x1x8xbf16>
    tpu.vector_store %arg7[%c1_86, %c0_87, %c1_88, %c17_89, %c0_90], %58 {strides = array<i32>} : memref<2x2x18x18x8xbf16, #tpu.memory_space<vmem>>, vector<1x1x16x1x8xbf16>,
    %cst_91 = arith.constant 0.000000e+00 : bf16
    %59 = vector.broadcast %cst_91 : bf16 to vector<1x18x8xbf16>
    %c1_92 = arith.constant 1 : index
    %c1_93 = arith.constant 1 : index
    %c0_94 = arith.constant 0 : index
    %c0_95 = arith.constant 0 : index
    %c0_96 = arith.constant 0 : index
    %60 = vector.load %arg7[%c1_92, %c1_93, %c0_94, %c0_95, %c0_96] : memref<2x2x18x18x8xbf16, #tpu.memory_space<vmem>>, vector<1x1x1x18x8xbf16>
    %61 = vector.shape_cast %60 : vector<1x1x1x18x8xbf16> to vector<1x18x8xbf16>
    %62 = vector.shape_cast %59 : vector<1x18x8xbf16> to vector<1x1x1x18x8xbf16>
    tpu.vector_store %arg7[%c1_92, %c1_93, %c0_94, %c0_95, %c0_96], %62 {strides = array<i32>} : memref<2x2x18x18x8xbf16, #tpu.memory_space<vmem>>, vector<1x1x1x18x8xbf16>,
    %cst_97 = arith.constant 0.000000e+00 : bf16
    %63 = vector.broadcast %cst_97 : bf16 to vector<1x18x8xbf16>
    %c1_98 = arith.constant 1 : index
    %c1_99 = arith.constant 1 : index
    %c17_100 = arith.constant 17 : index
    %c0_101 = arith.constant 0 : index
    %c0_102 = arith.constant 0 : index
    %64 = vector.load %arg7[%c1_98, %c1_99, %c17_100, %c0_101, %c0_102] : memref<2x2x18x18x8xbf16, #tpu.memory_space<vmem>>, vector<1x1x1x18x8xbf16>
    %65 = vector.shape_cast %64 : vector<1x1x1x18x8xbf16> to vector<1x18x8xbf16>
    %66 = vector.shape_cast %63 : vector<1x18x8xbf16> to vector<1x1x1x18x8xbf16>
    tpu.vector_store %arg7[%c1_98, %c1_99, %c17_100, %c0_101, %c0_102], %66 {strides = array<i32>} : memref<2x2x18x18x8xbf16, #tpu.memory_space<vmem>>, vector<1x1x1x18x8xbf16>,
    %cst_103 = arith.constant 0.000000e+00 : bf16
    %67 = vector.broadcast %cst_103 : bf16 to vector<16x1x8xbf16>
    %c1_104 = arith.constant 1 : index
    %c1_105 = arith.constant 1 : index
    %c1_106 = arith.constant 1 : index
    %c0_107 = arith.constant 0 : index
    %c0_108 = arith.constant 0 : index
    %68 = vector.load %arg7[%c1_104, %c1_105, %c1_106, %c0_107, %c0_108] : memref<2x2x18x18x8xbf16, #tpu.memory_space<vmem>>, vector<1x1x16x1x8xbf16>
    %69 = vector.shape_cast %68 : vector<1x1x16x1x8xbf16> to vector<16x1x8xbf16>
    %70 = vector.shape_cast %67 : vector<16x1x8xbf16> to vector<1x1x16x1x8xbf16>
    tpu.vector_store %arg7[%c1_104, %c1_105, %c1_106, %c0_107, %c0_108], %70 {strides = array<i32>} : memref<2x2x18x18x8xbf16, #tpu.memory_space<vmem>>, vector<1x1x16x1x8xbf16>,
    %cst_109 = arith.constant 0.000000e+00 : bf16
    %71 = vector.broadcast %cst_109 : bf16 to vector<16x1x8xbf16>
    %c1_110 = arith.constant 1 : index
    %c1_111 = arith.constant 1 : index
    %c1_112 = arith.constant 1 : index
    %c17_113 = arith.constant 17 : index
    %c0_114 = arith.constant 0 : index
    %72 = vector.load %arg7[%c1_110, %c1_111, %c1_112, %c17_113, %c0_114] : memref<2x2x18x18x8xbf16, #tpu.memory_space<vmem>>, vector<1x1x16x1x8xbf16>
    %73 = vector.shape_cast %72 : vector<1x1x16x1x8xbf16> to vector<16x1x8xbf16>
    %74 = vector.shape_cast %71 : vector<16x1x8xbf16> to vector<1x1x16x1x8xbf16>
    tpu.vector_store %arg7[%c1_110, %c1_111, %c1_112, %c17_113, %c0_114], %74 {strides = array<i32>} : memref<2x2x18x18x8xbf16, #tpu.memory_space<vmem>>, vector<1x1x16x1x8xbf16>,
    %c0_115 = arith.constant 0 : index
    %c0_116 = arith.constant 0 : index
    %75 = vector.load %arg4[%c0_115, %c0_116] : memref<6x32xf32, #tpu.memory_space<vmem>>, vector<6x32xf32>
    %c0_117 = arith.constant 0 : index
    %c0_118 = arith.constant 0 : index
    %c0_119 = arith.constant 0 : index
    %76 = vector.load %arg6[%c0_117, %c0_118, %c0_119] : memref<18x18x8xbf16, #tpu.memory_space<vmem>>, vector<16x16x8xbf16>
    %77 = vector.shape_cast %76 : vector<16x16x8xbf16> to vector<256x8xbf16>
    %c0_120 = arith.constant 0 : index
    %c1_121 = arith.constant 1 : index
    %c0_122 = arith.constant 0 : index
    %78 = vector.load %arg6[%c0_120, %c1_121, %c0_122] : memref<18x18x8xbf16, #tpu.memory_space<vmem>>, vector<16x16x8xbf16>
    %79 = vector.shape_cast %78 : vector<16x16x8xbf16> to vector<256x8xbf16>
    %c0_123 = arith.constant 0 : index
    %c2 = arith.constant 2 : index
    %c0_124 = arith.constant 0 : index
    %80 = vector.load %arg6[%c0_123, %c2, %c0_124] : memref<18x18x8xbf16, #tpu.memory_space<vmem>>, vector<16x16x8xbf16>
    %81 = vector.shape_cast %80 : vector<16x16x8xbf16> to vector<256x8xbf16>
    %c1_125 = arith.constant 1 : index
    %c0_126 = arith.constant 0 : index
    %c0_127 = arith.constant 0 : index
    %82 = vector.load %arg6[%c1_125, %c0_126, %c0_127] : memref<18x18x8xbf16, #tpu.memory_space<vmem>>, vector<16x16x8xbf16>
    %83 = vector.shape_cast %82 : vector<16x16x8xbf16> to vector<256x8xbf16>
    %c1_128 = arith.constant 1 : index
    %c1_129 = arith.constant 1 : index
    %c0_130 = arith.constant 0 : index
    %84 = vector.load %arg6[%c1_128, %c1_129, %c0_130] : memref<18x18x8xbf16, #tpu.memory_space<vmem>>, vector<16x16x8xbf16>
    %85 = vector.shape_cast %84 : vector<16x16x8xbf16> to vector<256x8xbf16>
    %c1_131 = arith.constant 1 : index
    %c2_132 = arith.constant 2 : index
    %c0_133 = arith.constant 0 : index
    %86 = vector.load %arg6[%c1_131, %c2_132, %c0_133] : memref<18x18x8xbf16, #tpu.memory_space<vmem>>, vector<16x16x8xbf16>
    %87 = vector.shape_cast %86 : vector<16x16x8xbf16> to vector<256x8xbf16>
    %c2_134 = arith.constant 2 : index
    %c0_135 = arith.constant 0 : index
    %c0_136 = arith.constant 0 : index
    %88 = vector.load %arg6[%c2_134, %c0_135, %c0_136] : memref<18x18x8xbf16, #tpu.memory_space<vmem>>, vector<16x16x8xbf16>
    %89 = vector.shape_cast %88 : vector<16x16x8xbf16> to vector<256x8xbf16>
    %c2_137 = arith.constant 2 : index
    %c1_138 = arith.constant 1 : index
    %c0_139 = arith.constant 0 : index
    %90 = vector.load %arg6[%c2_137, %c1_138, %c0_139] : memref<18x18x8xbf16, #tpu.memory_space<vmem>>, vector<16x16x8xbf16>
    %91 = vector.shape_cast %90 : vector<16x16x8xbf16> to vector<256x8xbf16>
    %c2_140 = arith.constant 2 : index
    %c2_141 = arith.constant 2 : index
    %c0_142 = arith.constant 0 : index
    %92 = vector.load %arg6[%c2_140, %c2_141, %c0_142] : memref<18x18x8xbf16, #tpu.memory_space<vmem>>, vector<16x16x8xbf16>
    %93 = vector.shape_cast %92 : vector<16x16x8xbf16> to vector<256x8xbf16>
    %94 = tpu.concatenate %77, %79, %81, %83, %85, %87, %89, %91, %93 in 1 : vector<256x8xbf16>, vector<256x8xbf16>, vector<256x8xbf16>, vector<256x8xbf16>, vector<256x8xbf16>, vector<256x8xbf16>, vector<256x8xbf16>, vector<256x8xbf16>, vector<256x8xbf16> -> vector<256x72xbf16>
    %c0_143 = arith.constant 0 : index
    %c0_144 = arith.constant 0 : index
    %95 = vector.load %arg2[%c0_143, %c0_144] : memref<72x64xbf16, #tpu.memory_space<vmem>>, vector<72x64xbf16>
    %cst_145 = arith.constant dense<0.000000e+00> : vector<256x64xf32>
    %96 = tpu.matmul %94, %95, %cst_145 {dimension_numbers = #tpu.dot_dimension_numbers<[1], [0], [0], [1], [0, 0, 1, 1], [], []>} : vector<256x72xbf16>, vector<72x64xbf16>, vector<256x64xf32> -> vector<256x64xf32>
    %97 = vector.extract_strided_slice %96 {offsets = [0, 0], sizes = [256, 32], strides = [1, 1]} : vector<256x64xf32> to vector<256x32xf32>
    %98 = vector.extract_strided_slice %75 {offsets = [0, 0], sizes = [1, 32], strides = [1, 1]} : vector<6x32xf32> to vector<1x32xf32>
    %99 = vector.broadcast %98 : vector<1x32xf32> to vector<256x32xf32>
    %100 = arith.mulf %97, %99 : vector<256x32xf32>
    %101 = vector.extract_strided_slice %75 {offsets = [1, 0], sizes = [1, 32], strides = [1, 1]} : vector<6x32xf32> to vector<1x32xf32>
    %102 = vector.broadcast %101 : vector<1x32xf32> to vector<256x32xf32>
    %103 = arith.addf %100, %102 : vector<256x32xf32>
    %cst_146 = arith.constant 0.000000e+00 : f32
    %104 = vector.broadcast %cst_146 : f32 to vector<256x32xf32>
    %105 = arith.maximumf %103, %104 : vector<256x32xf32>
    %106 = vector.extract_strided_slice %96 {offsets = [0, 32], sizes = [256, 32], strides = [1, 1]} : vector<256x64xf32> to vector<256x32xf32>
    %107 = vector.extract_strided_slice %75 {offsets = [2, 0], sizes = [1, 32], strides = [1, 1]} : vector<6x32xf32> to vector<1x32xf32>
    %108 = vector.broadcast %107 : vector<1x32xf32> to vector<256x32xf32>
    %109 = arith.mulf %106, %108 : vector<256x32xf32>
    %110 = vector.extract_strided_slice %75 {offsets = [3, 0], sizes = [1, 32], strides = [1, 1]} : vector<6x32xf32> to vector<1x32xf32>
    %111 = vector.broadcast %110 : vector<1x32xf32> to vector<256x32xf32>
    %112 = arith.addf %109, %111 : vector<256x32xf32>
    %113 = vector.extract_strided_slice %105 {offsets = [0, 0], sizes = [256, 8], strides = [1, 1]} : vector<256x32xf32> to vector<256x8xf32>
    %114 = arith.truncf %113 : vector<256x8xf32> to vector<256x8xbf16>
    %115 = vector.shape_cast %114 : vector<256x8xbf16> to vector<16x16x8xbf16>
    %c0_147 = arith.constant 0 : index
    %c0_148 = arith.constant 0 : index
    %c1_149 = arith.constant 1 : index
    %c1_150 = arith.constant 1 : index
    %c0_151 = arith.constant 0 : index
    %116 = vector.load %arg7[%c0_147, %c0_148, %c1_149, %c1_150, %c0_151] : memref<2x2x18x18x8xbf16, #tpu.memory_space<vmem>>, vector<1x1x16x16x8xbf16>
    %117 = vector.shape_cast %116 : vector<1x1x16x16x8xbf16> to vector<16x16x8xbf16>
    %118 = vector.shape_cast %115 : vector<16x16x8xbf16> to vector<1x1x16x16x8xbf16>
    tpu.vector_store %arg7[%c0_147, %c0_148, %c1_149, %c1_150, %c0_151], %118 {strides = array<i32>} : memref<2x2x18x18x8xbf16, #tpu.memory_space<vmem>>, vector<1x1x16x16x8xbf16>,
    %119 = vector.extract_strided_slice %105 {offsets = [0, 8], sizes = [256, 8], strides = [1, 1]} : vector<256x32xf32> to vector<256x8xf32>
    %120 = arith.truncf %119 : vector<256x8xf32> to vector<256x8xbf16>
    %121 = vector.shape_cast %120 : vector<256x8xbf16> to vector<16x16x8xbf16>
    %c0_152 = arith.constant 0 : index
    %c1_153 = arith.constant 1 : index
    %c1_154 = arith.constant 1 : index
    %c1_155 = arith.constant 1 : index
    %c0_156 = arith.constant 0 : index
    %122 = vector.load %arg7[%c0_152, %c1_153, %c1_154, %c1_155, %c0_156] : memref<2x2x18x18x8xbf16, #tpu.memory_space<vmem>>, vector<1x1x16x16x8xbf16>
    %123 = vector.shape_cast %122 : vector<1x1x16x16x8xbf16> to vector<16x16x8xbf16>
    %124 = vector.shape_cast %121 : vector<16x16x8xbf16> to vector<1x1x16x16x8xbf16>
    tpu.vector_store %arg7[%c0_152, %c1_153, %c1_154, %c1_155, %c0_156], %124 {strides = array<i32>} : memref<2x2x18x18x8xbf16, #tpu.memory_space<vmem>>, vector<1x1x16x16x8xbf16>,
    %125 = vector.extract_strided_slice %105 {offsets = [0, 16], sizes = [256, 8], strides = [1, 1]} : vector<256x32xf32> to vector<256x8xf32>
    %126 = arith.truncf %125 : vector<256x8xf32> to vector<256x8xbf16>
    %127 = vector.shape_cast %126 : vector<256x8xbf16> to vector<16x16x8xbf16>
    %c1_157 = arith.constant 1 : index
    %c0_158 = arith.constant 0 : index
    %c1_159 = arith.constant 1 : index
    %c1_160 = arith.constant 1 : index
    %c0_161 = arith.constant 0 : index
    %128 = vector.load %arg7[%c1_157, %c0_158, %c1_159, %c1_160, %c0_161] : memref<2x2x18x18x8xbf16, #tpu.memory_space<vmem>>, vector<1x1x16x16x8xbf16>
    %129 = vector.shape_cast %128 : vector<1x1x16x16x8xbf16> to vector<16x16x8xbf16>
    %130 = vector.shape_cast %127 : vector<16x16x8xbf16> to vector<1x1x16x16x8xbf16>
    tpu.vector_store %arg7[%c1_157, %c0_158, %c1_159, %c1_160, %c0_161], %130 {strides = array<i32>} : memref<2x2x18x18x8xbf16, #tpu.memory_space<vmem>>, vector<1x1x16x16x8xbf16>,
    %131 = vector.extract_strided_slice %105 {offsets = [0, 24], sizes = [256, 8], strides = [1, 1]} : vector<256x32xf32> to vector<256x8xf32>
    %132 = arith.truncf %131 : vector<256x8xf32> to vector<256x8xbf16>
    %133 = vector.shape_cast %132 : vector<256x8xbf16> to vector<16x16x8xbf16>
    %c1_162 = arith.constant 1 : index
    %c1_163 = arith.constant 1 : index
    %c1_164 = arith.constant 1 : index
    %c1_165 = arith.constant 1 : index
    %c0_166 = arith.constant 0 : index
    %134 = vector.load %arg7[%c1_162, %c1_163, %c1_164, %c1_165, %c0_166] : memref<2x2x18x18x8xbf16, #tpu.memory_space<vmem>>, vector<1x1x16x16x8xbf16>
    %135 = vector.shape_cast %134 : vector<1x1x16x16x8xbf16> to vector<16x16x8xbf16>
    %136 = vector.shape_cast %133 : vector<16x16x8xbf16> to vector<1x1x16x16x8xbf16>
    tpu.vector_store %arg7[%c1_162, %c1_163, %c1_164, %c1_165, %c0_166], %136 {strides = array<i32>} : memref<2x2x18x18x8xbf16, #tpu.memory_space<vmem>>, vector<1x1x16x16x8xbf16>,
    %c0_167 = arith.constant 0 : index
    %c0_168 = arith.constant 0 : index
    %c1_169 = arith.constant 1 : index
    %c1_170 = arith.constant 1 : index
    %c0_171 = arith.constant 0 : index
    %137 = vector.load %arg7[%c0_167, %c0_168, %c1_169, %c1_170, %c0_171] : memref<2x2x18x18x8xbf16, #tpu.memory_space<vmem>>, vector<1x1x16x16x8xbf16>
    %138 = vector.shape_cast %137 : vector<1x1x16x16x8xbf16> to vector<16x16x8xbf16>
    %139 = vector.shape_cast %138 : vector<16x16x8xbf16> to vector<256x8xbf16>
    %c0_172 = arith.constant 0 : index
    %c0_173 = arith.constant 0 : index
    %c1_174 = arith.constant 1 : index
    %c2_175 = arith.constant 2 : index
    %c0_176 = arith.constant 0 : index
    %140 = vector.load %arg7[%c0_172, %c0_173, %c1_174, %c2_175, %c0_176] : memref<2x2x18x18x8xbf16, #tpu.memory_space<vmem>>, vector<1x1x16x16x8xbf16>
    %141 = vector.shape_cast %140 : vector<1x1x16x16x8xbf16> to vector<16x16x8xbf16>
    %142 = vector.shape_cast %141 : vector<16x16x8xbf16> to vector<256x8xbf16>
    %c0_177 = arith.constant 0 : index
    %c1_178 = arith.constant 1 : index
    %c1_179 = arith.constant 1 : index
    %c0_180 = arith.constant 0 : index
    %c0_181 = arith.constant 0 : index
    %143 = vector.load %arg7[%c0_177, %c1_178, %c1_179, %c0_180, %c0_181] : memref<2x2x18x18x8xbf16, #tpu.memory_space<vmem>>, vector<1x1x16x16x8xbf16>
    %144 = vector.shape_cast %143 : vector<1x1x16x16x8xbf16> to vector<16x16x8xbf16>
    %145 = vector.shape_cast %144 : vector<16x16x8xbf16> to vector<256x8xbf16>
    %c0_182 = arith.constant 0 : index
    %c1_183 = arith.constant 1 : index
    %c1_184 = arith.constant 1 : index
    %c1_185 = arith.constant 1 : index
    %c0_186 = arith.constant 0 : index
    %146 = vector.load %arg7[%c0_182, %c1_183, %c1_184, %c1_185, %c0_186] : memref<2x2x18x18x8xbf16, #tpu.memory_space<vmem>>, vector<1x1x16x16x8xbf16>
    %147 = vector.shape_cast %146 : vector<1x1x16x16x8xbf16> to vector<16x16x8xbf16>
    %148 = vector.shape_cast %147 : vector<16x16x8xbf16> to vector<256x8xbf16>
    %c0_187 = arith.constant 0 : index
    %c0_188 = arith.constant 0 : index
    %c2_189 = arith.constant 2 : index
    %c1_190 = arith.constant 1 : index
    %c0_191 = arith.constant 0 : index
    %149 = vector.load %arg7[%c0_187, %c0_188, %c2_189, %c1_190, %c0_191] : memref<2x2x18x18x8xbf16, #tpu.memory_space<vmem>>, vector<1x1x16x16x8xbf16>
    %150 = vector.shape_cast %149 : vector<1x1x16x16x8xbf16> to vector<16x16x8xbf16>
    %151 = vector.shape_cast %150 : vector<16x16x8xbf16> to vector<256x8xbf16>
    %c0_192 = arith.constant 0 : index
    %c0_193 = arith.constant 0 : index
    %c2_194 = arith.constant 2 : index
    %c2_195 = arith.constant 2 : index
    %c0_196 = arith.constant 0 : index
    %152 = vector.load %arg7[%c0_192, %c0_193, %c2_194, %c2_195, %c0_196] : memref<2x2x18x18x8xbf16, #tpu.memory_space<vmem>>, vector<1x1x16x16x8xbf16>
    %153 = vector.shape_cast %152 : vector<1x1x16x16x8xbf16> to vector<16x16x8xbf16>
    %154 = vector.shape_cast %153 : vector<16x16x8xbf16> to vector<256x8xbf16>
    %c0_197 = arith.constant 0 : index
    %c1_198 = arith.constant 1 : index
    %c2_199 = arith.constant 2 : index
    %c0_200 = arith.constant 0 : index
    %c0_201 = arith.constant 0 : index
    %155 = vector.load %arg7[%c0_197, %c1_198, %c2_199, %c0_200, %c0_201] : memref<2x2x18x18x8xbf16, #tpu.memory_space<vmem>>, vector<1x1x16x16x8xbf16>
    %156 = vector.shape_cast %155 : vector<1x1x16x16x8xbf16> to vector<16x16x8xbf16>
    %157 = vector.shape_cast %156 : vector<16x16x8xbf16> to vector<256x8xbf16>
    %c0_202 = arith.constant 0 : index
    %c1_203 = arith.constant 1 : index
    %c2_204 = arith.constant 2 : index
    %c1_205 = arith.constant 1 : index
    %c0_206 = arith.constant 0 : index
    %158 = vector.load %arg7[%c0_202, %c1_203, %c2_204, %c1_205, %c0_206] : memref<2x2x18x18x8xbf16, #tpu.memory_space<vmem>>, vector<1x1x16x16x8xbf16>
    %159 = vector.shape_cast %158 : vector<1x1x16x16x8xbf16> to vector<16x16x8xbf16>
    %160 = vector.shape_cast %159 : vector<16x16x8xbf16> to vector<256x8xbf16>
    %c1_207 = arith.constant 1 : index
    %c0_208 = arith.constant 0 : index
    %c0_209 = arith.constant 0 : index
    %c1_210 = arith.constant 1 : index
    %c0_211 = arith.constant 0 : index
    %161 = vector.load %arg7[%c1_207, %c0_208, %c0_209, %c1_210, %c0_211] : memref<2x2x18x18x8xbf16, #tpu.memory_space<vmem>>, vector<1x1x16x16x8xbf16>
    %162 = vector.shape_cast %161 : vector<1x1x16x16x8xbf16> to vector<16x16x8xbf16>
    %163 = vector.shape_cast %162 : vector<16x16x8xbf16> to vector<256x8xbf16>
    %c1_212 = arith.constant 1 : index
    %c0_213 = arith.constant 0 : index
    %c0_214 = arith.constant 0 : index
    %c2_215 = arith.constant 2 : index
    %c0_216 = arith.constant 0 : index
    %164 = vector.load %arg7[%c1_212, %c0_213, %c0_214, %c2_215, %c0_216] : memref<2x2x18x18x8xbf16, #tpu.memory_space<vmem>>, vector<1x1x16x16x8xbf16>
    %165 = vector.shape_cast %164 : vector<1x1x16x16x8xbf16> to vector<16x16x8xbf16>
    %166 = vector.shape_cast %165 : vector<16x16x8xbf16> to vector<256x8xbf16>
    %c1_217 = arith.constant 1 : index
    %c1_218 = arith.constant 1 : index
    %c0_219 = arith.constant 0 : index
    %c0_220 = arith.constant 0 : index
    %c0_221 = arith.constant 0 : index
    %167 = vector.load %arg7[%c1_217, %c1_218, %c0_219, %c0_220, %c0_221] : memref<2x2x18x18x8xbf16, #tpu.memory_space<vmem>>, vector<1x1x16x16x8xbf16>
    %168 = vector.shape_cast %167 : vector<1x1x16x16x8xbf16> to vector<16x16x8xbf16>
    %169 = vector.shape_cast %168 : vector<16x16x8xbf16> to vector<256x8xbf16>
    %c1_222 = arith.constant 1 : index
    %c1_223 = arith.constant 1 : index
    %c0_224 = arith.constant 0 : index
    %c1_225 = arith.constant 1 : index
    %c0_226 = arith.constant 0 : index
    %170 = vector.load %arg7[%c1_222, %c1_223, %c0_224, %c1_225, %c0_226] : memref<2x2x18x18x8xbf16, #tpu.memory_space<vmem>>, vector<1x1x16x16x8xbf16>
    %171 = vector.shape_cast %170 : vector<1x1x16x16x8xbf16> to vector<16x16x8xbf16>
    %172 = vector.shape_cast %171 : vector<16x16x8xbf16> to vector<256x8xbf16>
    %c1_227 = arith.constant 1 : index
    %c0_228 = arith.constant 0 : index
    %c1_229 = arith.constant 1 : index
    %c1_230 = arith.constant 1 : index
    %c0_231 = arith.constant 0 : index
    %173 = vector.load %arg7[%c1_227, %c0_228, %c1_229, %c1_230, %c0_231] : memref<2x2x18x18x8xbf16, #tpu.memory_space<vmem>>, vector<1x1x16x16x8xbf16>
    %174 = vector.shape_cast %173 : vector<1x1x16x16x8xbf16> to vector<16x16x8xbf16>
    %175 = vector.shape_cast %174 : vector<16x16x8xbf16> to vector<256x8xbf16>
    %c1_232 = arith.constant 1 : index
    %c0_233 = arith.constant 0 : index
    %c1_234 = arith.constant 1 : index
    %c2_235 = arith.constant 2 : index
    %c0_236 = arith.constant 0 : index
    %176 = vector.load %arg7[%c1_232, %c0_233, %c1_234, %c2_235, %c0_236] : memref<2x2x18x18x8xbf16, #tpu.memory_space<vmem>>, vector<1x1x16x16x8xbf16>
    %177 = vector.shape_cast %176 : vector<1x1x16x16x8xbf16> to vector<16x16x8xbf16>
    %178 = vector.shape_cast %177 : vector<16x16x8xbf16> to vector<256x8xbf16>
    %c1_237 = arith.constant 1 : index
    %c1_238 = arith.constant 1 : index
    %c1_239 = arith.constant 1 : index
    %c0_240 = arith.constant 0 : index
    %c0_241 = arith.constant 0 : index
    %179 = vector.load %arg7[%c1_237, %c1_238, %c1_239, %c0_240, %c0_241] : memref<2x2x18x18x8xbf16, #tpu.memory_space<vmem>>, vector<1x1x16x16x8xbf16>
    %180 = vector.shape_cast %179 : vector<1x1x16x16x8xbf16> to vector<16x16x8xbf16>
    %181 = vector.shape_cast %180 : vector<16x16x8xbf16> to vector<256x8xbf16>
    %c1_242 = arith.constant 1 : index
    %c1_243 = arith.constant 1 : index
    %c1_244 = arith.constant 1 : index
    %c1_245 = arith.constant 1 : index
    %c0_246 = arith.constant 0 : index
    %182 = vector.load %arg7[%c1_242, %c1_243, %c1_244, %c1_245, %c0_246] : memref<2x2x18x18x8xbf16, #tpu.memory_space<vmem>>, vector<1x1x16x16x8xbf16>
    %183 = vector.shape_cast %182 : vector<1x1x16x16x8xbf16> to vector<16x16x8xbf16>
    %184 = vector.shape_cast %183 : vector<16x16x8xbf16> to vector<256x8xbf16>
    %185 = tpu.concatenate %139, %142, %145, %148, %151, %154, %157, %160, %163, %166, %169, %172, %175, %178, %181, %184 in 1 : vector<256x8xbf16>, vector<256x8xbf16>, vector<256x8xbf16>, vector<256x8xbf16>, vector<256x8xbf16>, vector<256x8xbf16>, vector<256x8xbf16>, vector<256x8xbf16>, vector<256x8xbf16>, vector<256x8xbf16>, vector<256x8xbf16>, vector<256x8xbf16>, vector<256x8xbf16>, vector<256x8xbf16>, vector<256x8xbf16>, vector<256x8xbf16> -> vector<256x128xbf16>
    %c0_247 = arith.constant 0 : index
    %c0_248 = arith.constant 0 : index
    %186 = vector.load %arg3[%c0_247, %c0_248] : memref<128x32xbf16, #tpu.memory_space<vmem>>, vector<128x32xbf16>
    %cst_249 = arith.constant dense<0.000000e+00> : vector<256x32xf32>
    %187 = tpu.matmul %185, %186, %cst_249 {dimension_numbers = #tpu.dot_dimension_numbers<[1], [0], [0], [1], [0, 0, 1, 1], [], []>} : vector<256x128xbf16>, vector<128x32xbf16>, vector<256x32xf32> -> vector<256x32xf32>
    %188 = vector.extract_strided_slice %75 {offsets = [4, 0], sizes = [1, 32], strides = [1, 1]} : vector<6x32xf32> to vector<1x32xf32>
    %189 = vector.broadcast %188 : vector<1x32xf32> to vector<256x32xf32>
    %190 = arith.mulf %187, %189 : vector<256x32xf32>
    %191 = vector.extract_strided_slice %75 {offsets = [5, 0], sizes = [1, 32], strides = [1, 1]} : vector<6x32xf32> to vector<1x32xf32>
    %192 = vector.broadcast %191 : vector<1x32xf32> to vector<256x32xf32>
    %193 = arith.addf %190, %192 : vector<256x32xf32>
    %194 = arith.addf %193, %112 : vector<256x32xf32>
    %cst_250 = arith.constant 0.000000e+00 : f32
    %195 = vector.broadcast %cst_250 : f32 to vector<256x32xf32>
    %196 = arith.maximumf %194, %195 : vector<256x32xf32>
    %c0_251 = arith.constant 0 : index
    %c0_252 = arith.constant 0 : index
    %c0_253 = arith.constant 0 : index
    %197 = vector.load %arg5[%c0_251, %c0_252, %c0_253] : memref<1x256x32xf32, #tpu.memory_space<vmem>>, vector<1x256x32xf32>
    %198 = vector.shape_cast %197 : vector<1x256x32xf32> to vector<256x32xf32>
    %199 = vector.shape_cast %196 : vector<256x32xf32> to vector<1x256x32xf32>
    tpu.vector_store %arg5[%c0_251, %c0_252, %c0_253], %199 {strides = array<i32>} : memref<1x256x32xf32, #tpu.memory_space<vmem>>, vector<1x256x32xf32>,
    return
  }
  func.func @transform_0(%arg0: i32) -> (i32, i32, i32, i32) {
    %c0_i32 = arith.constant 0 : i32
    %c0_i32_0 = arith.constant 0 : i32
    %c0_i32_1 = arith.constant 0 : i32
    %c0_i32_2 = arith.constant 0 : i32
    return %arg0, %c0_i32, %c0_i32_0, %c0_i32_1 : i32, i32, i32, i32
  }
  func.func @transform_1(%arg0: i32) -> (i32, i32) {
    %c0_i32 = arith.constant 0 : i32
    %c0_i32_0 = arith.constant 0 : i32
    %c0_i32_1 = arith.constant 0 : i32
    return %c0_i32, %c0_i32_0 : i32, i32
  }
  func.func @transform_2(%arg0: i32) -> (i32, i32) {
    %c0_i32 = arith.constant 0 : i32
    %c0_i32_0 = arith.constant 0 : i32
    %c0_i32_1 = arith.constant 0 : i32
    return %c0_i32, %c0_i32_0 : i32, i32
  }
  func.func @transform_3(%arg0: i32) -> (i32, i32) {
    %c0_i32 = arith.constant 0 : i32
    %c0_i32_0 = arith.constant 0 : i32
    %c0_i32_1 = arith.constant 0 : i32
    return %c0_i32, %c0_i32_0 : i32, i32
  }
  func.func @transform_4(%arg0: i32) -> (i32, i32, i32) {
    %c0_i32 = arith.constant 0 : i32
    %c0_i32_0 = arith.constant 0 : i32
    %c0_i32_1 = arith.constant 0 : i32
    return %arg0, %c0_i32, %c0_i32_0 : i32, i32, i32
  }
}

</mosaic_0001>

<llo_original>
// kernel: tile.35
$region0: #{tile.35}
  #allocation0 [shape = 's32[1]{0}', space=sflag, size = 0x4, scoped, tag = 'scoped memory for tile.35']
  %s0 = inlined_call_operand.vmem [shape: f32[8], index: 0, kind: input, shape index: {}]
  %s1 = inlined_call_operand.vmem [shape: f32[4,8], index: 1, kind: output, shape index: {}]
  // Predicated region
  $region2: #{tile.35} parent=0 // pred_check
    _
  $region3: #{tile.35} parent=0 // pred_check_branch
    %3 = sbr.rel (0) target = $region5
  $region4: #{tile.35} parent=0 // pred_region
    _
  $region5: #{tile.35} parent=0 // pred_fallthru
    _
  %v4 = vld [vmem:[%s0] ss:$0 sm:$0xff]
  %5 = vst [vmem:[%s1] sm:$0xf] %v4

// kernel: tile.39
$region0: #{tile.39}
  %s0 = inlined_call_operand.vmem [shape: f32[4,8], index: 0, kind: input, shape index: {}]
  %s1 = inlined_call_operand.vmem [shape: f32[1,32], index: 1, kind: output, shape index: {}]
  $region1: #{tile.39} parent=0
    #allocation0 [shape = 'u8[4096]{0}', space=vmem, size = 0x1000, scoped, tag = 'scoped mem for output reshape']
    #allocation1 [shape = 'u8[4096]{0}', space=vmem, size = 0x1000, scoped, tag = 'scoped mem for input reshape']
    %s3 = ssub.s32 16, 1
    %v4 = vld [vmem:[%s0] sm:%s3]
    %5 = vst [vmem:[#allocation1] sm:%s3] %v4
    %v6 = vld [vmem:[#allocation1] sm:$0x1]
    %vm7 = vcmask 64512
    %8 = vst.msk [vmem:[#allocation0] sm:$0x1] %vm7, %v6
    %s9 = scalar_lea.vmem [#allocation1], 3
    %v10 = vld [vmem:[%s9] sm:$0x1]
    %11 = vrot.lane.b32.xlu0 %v10, 24
    %v12 = vpop.permute.xlu0 %11
    %vm13 = vcmask 261312
    %14 = vst.msk [vmem:[#allocation0] sm:$0x1] %vm13, %v12
    %s15 = scalar_lea.vmem [#allocation1], 2
    %v16 = vld [vmem:[%s15] sm:$0x1]
    %17 = vrot.lane.b32.xlu0 %v16, 16
    %v18 = vpop.permute.xlu0 %17
    %vm19 = vcmask 195712
    %20 = vst.msk [vmem:[#allocation0] sm:$0x1] %vm19, %v18
    %s21 = scalar_lea.vmem [#allocation1], 1
    %v22 = vld [vmem:[%s21] sm:$0x1]
    %23 = vrot.lane.b32.xlu0 %v22, 8
    %v24 = vpop.permute.xlu0 %23
    %vm25 = vcmask 130112
    %26 = vst.msk [vmem:[#allocation0] sm:$0x1] %vm25, %v24
    %s28 = ssub.s32 2, 1
    %v29 = vld [vmem:[#allocation0] sm:%s28]
    %s31 = ssub.s32 2, 1
    %32 = vst [vmem:[%s1] sm:%s31] %v29

// kernel: up_project_forward.1
$region0: #{up_project_forward.1}
  #allocation0 [shape = 'u32[]', space=smem, size = 0x4, offset = 0x4, fixed_abs, tag = 'smem constant byte address 0x4 - core index']
  #allocation1 [shape = 'u32[72,128]{1,0:T(1,128)}', space=vmem, size = 0x9000, scoped, tag = 'internal scratch']
  #allocation2 [shape = 'bf16[18,18,8]{2,1,0:T(8,128)(2,1)}', space=vmem, size = 0x1b000, scoped, tag = 'scratch operand']
  #allocation3 [shape = 'bf16[2,2,18,18,8]{4,3,2,1,0:T(8,128)(2,1)}', space=vmem, size = 0x6c000, scoped, tag = 'scratch operand']
  %s0 = inlined_call_operand.vmem [shape: bf16[2,16,16,8], index: 0, kind: input, shape index: {}]
  %s1 = inlined_call_operand.vmem [shape: bf16[72,64], index: 1, kind: input, shape index: {}]
  %s2 = inlined_call_operand.vmem [shape: bf16[128,32], index: 2, kind: input, shape index: {}]
  %s3 = inlined_call_operand.vmem [shape: f32[6,32], index: 3, kind: input, shape index: {}]
  %s4 = inlined_call_operand.vmem [shape: f32[2,256,32], index: 4, kind: output, shape index: {}]
  %s5 = sld [smem:[#allocation0]]
  $region49: #{up_project_forward.1} parent=0
    _
  %s7 = ssub.s32 1, %s5
  %s8 = scalar_select 0, %s7, %s5
  loop: start=0, step=1, limit=4
  $region2: #{up_project_forward.1} parent=0 // loop_pre_header
    _
  $region3: #{up_project_forward.1} parent=0 // loop_header
    %s10 = sphi 0, %s14
    %p11 = scmp.ge.s32.totalorder %s10, 4
    %s20 = sphi 0, %s22
    %s23 = sphi 0, %s20
    %s24 = sphi 0, %s23
    %s40 = sphi 0, %s24
    %s44 = sphi 0, %s44
    %s46 = sphi 0, %s44
    %s47 = sphi 0, %s46
    %s61 = sphi 0, %s47
    %s65 = sphi 0, %s65
    %s67 = sphi 0, %s65
    %s68 = sphi 0, %s67
    %s82 = sphi 0, %s68
    %s86 = sphi 0, %s86
    %s88 = sphi 0, %s86
    %s89 = sphi 0, %s88
    %s103 = sphi 0, %s89
    %s109 = sphi 0, %s111
    %s112 = sphi 0, %s109
    %s113 = sphi 0, %s112
    %s129 = sphi 0, %s113
  $region4: #{up_project_forward.1} parent=0 // loop_header_branch
    %13 = sbr.rel (%p11) target = $region8
  $region5: #{up_project_forward.1} parent=0 // loop_body
    %s15 = ssub.s32 %s10, 1
    %s16 = ssub.s32 %s10, 2
    %s17 = sadd.s32 %s10, 1
    %s18 = ssub.s32 %s10, %s17
    %p19 = scmp.eq.s32.totalorder %s18, 0
    %s21 = sadd.s32 %s20, 1
    %s22 = scalar_select %p19, %s20, %s21
    %p25 = pneg %p19
    %p26 = scmp.eq.s32.totalorder %s10, 1
    %p27 = por %p25, %p26
    %p28 = scmp.ne.s32.totalorder %s20, %s23
    %p29 = scmp.eq.s32.totalorder %s10, 0
    %p30 = por %p28, %p29
    %p31 = scmp.ne.s32.totalorder %s20, %s23
    %p32 = scmp.eq.s32.totalorder %s15, 1
    %p33 = por %p31, %p32
    %p34 = scmp.ne.s32.totalorder %s23, %s24
    %p35 = scmp.eq.s32.totalorder %s15, 0
    %p36 = por %p34, %p35
    %p37 = scmp.ne.s32.totalorder %s23, %s24
    %p38 = scmp.eq.s32.totalorder %s16, 1
    %p39 = por %p37, %p38
    %p41 = scmp.ne.s32.totalorder %s24, %s40
    %p42 = scmp.eq.s32.totalorder %s16, 0
    %p43 = por %p41, %p42
    %s45 = sadd.s32 %s44, 1
    %p48 = scmp.eq.s32.totalorder %s10, 1
    %p49 = scmp.ne.s32.totalorder %s44, %s46
    %p50 = scmp.eq.s32.totalorder %s10, 0
    %p51 = por %p49, %p50
    %p52 = scmp.ne.s32.totalorder %s44, %s46
    %p53 = scmp.eq.s32.totalorder %s15, 1
    %p54 = por %p52, %p53
    %p55 = scmp.ne.s32.totalorder %s46, %s47
    %p56 = scmp.eq.s32.totalorder %s15, 0
    %p57 = por %p55, %p56
    %p58 = scmp.ne.s32.totalorder %s46, %s47
    %p59 = scmp.eq.s32.totalorder %s16, 1
    %p60 = por %p58, %p59
    %p62 = scmp.ne.s32.totalorder %s47, %s61
    %p63 = scmp.eq.s32.totalorder %s16, 0
    %p64 = por %p62, %p63
    %s66 = sadd.s32 %s65, 1
    %p69 = scmp.eq.s32.totalorder %s10, 1
    %p70 = scmp.ne.s32.totalorder %s65, %s67
    %p71 = scmp.eq.s32.totalorder %s10, 0
    %p72 = por %p70, %p71
    %p73 = scmp.ne.s32.totalorder %s65, %s67
    %p74 = scmp.eq.s32.totalorder %s15, 1
    %p75 = por %p73, %p74
    %p76 = scmp.ne.s32.totalorder %s67, %s68
    %p77 = scmp.eq.s32.totalorder %s15, 0
    %p78 = por %p76, %p77
    %p79 = scmp.ne.s32.totalorder %s67, %s68
    %p80 = scmp.eq.s32.totalorder %s16, 1
    %p81 = por %p79, %p80
    %p83 = scmp.ne.s32.totalorder %s68, %s82
    %p84 = scmp.eq.s32.totalorder %s16, 0
    %p85 = por %p83, %p84
    %s87 = sadd.s32 %s86, 1
    %p90 = scmp.eq.s32.totalorder %s10, 1
    %p91 = scmp.ne.s32.totalorder %s86, %s88
    %p92 = scmp.eq.s32.totalorder %s10, 0
    %p93 = por %p91, %p92
    %p94 = scmp.ne.s32.totalorder %s86, %s88
    %p95 = scmp.eq.s32.totalorder %s15, 1
    %p96 = por %p94, %p95
    %p97 = scmp.ne.s32.totalorder %s88, %s89
    %p98 = scmp.eq.s32.totalorder %s15, 0
    %p99 = por %p97, %p98
    %p100 = scmp.ne.s32.totalorder %s88, %s89
    %p101 = scmp.eq.s32.totalorder %s16, 1
    %p102 = por %p100, %p101
    %p104 = scmp.ne.s32.totalorder %s89, %s103
    %p105 = scmp.eq.s32.totalorder %s16, 0
    %p106 = por %p104, %p105
    %s107 = ssub.s32 %s10, %s17
    %p108 = scmp.eq.s32.totalorder %s107, 0
    %s110 = sadd.s32 %s109, 1
    %s111 = scalar_select %p108, %s109, %s110
    %p114 = pneg %p108
    %p115 = scmp.eq.s32.totalorder %s10, 1
    %p116 = por %p114, %p115
    %p117 = scmp.ne.s32.totalorder %s109, %s112
    %p118 = scmp.eq.s32.totalorder %s10, 0
    %p119 = por %p117, %p118
    %p120 = scmp.ne.s32.totalorder %s109, %s112
    %p121 = scmp.eq.s32.totalorder %s15, 1
    %p122 = por %p120, %p121
    %p123 = scmp.ne.s32.totalorder %s112, %s113
    %p124 = scmp.eq.s32.totalorder %s15, 0
    %p125 = por %p123, %p124
    %p126 = scmp.ne.s32.totalorder %s112, %s113
    %p127 = scmp.eq.s32.totalorder %s16, 1
    %p128 = por %p126, %p127
    %p130 = scmp.ne.s32.totalorder %s113, %s129
    %p131 = scmp.eq.s32.totalorder %s16, 0
    %p132 = por %p130, %p131
    %p133 = scmp.le.s32.totalorder 1, %s10
    %p134 = scmp.lt.s32.totalorder %s10, 3
    %p135 = pnand %p133, %p134
    %p136 = pneg %p135
    // Predicated region
    $region9: #{up_project_forward.1} parent=5 // pred_check
      _
    $region10: #{up_project_forward.1} parent=5 // pred_check_branch
      %138 = sbr.rel (%p135) target = $region12
    $region11: #{up_project_forward.1} parent=5 // pred_region
      %s139 = ssub.s32 %s10, 1
      // Predicated region
      $region13: #{up_project_forward.1} parent=11 // pred_check
        %p140 = pneg %p57
      $region14: #{up_project_forward.1} parent=11 // pred_check_branch
        %142 = sbr.rel (%p140) target = $region16
      $region15: #{up_project_forward.1} parent=11 // pred_region
        _
      $region16: #{up_project_forward.1} parent=11 // pred_fallthru
        _
      // Predicated region
      $region17: #{up_project_forward.1} parent=11 // pred_check
        %p143 = pneg %p78
      $region18: #{up_project_forward.1} parent=11 // pred_check_branch
        %145 = sbr.rel (%p143) target = $region20
      $region19: #{up_project_forward.1} parent=11 // pred_region
        _
      $region20: #{up_project_forward.1} parent=11 // pred_fallthru
        _
      // Predicated region
      $region21: #{up_project_forward.1} parent=11 // pred_check
        %p146 = pneg %p99
      $region22: #{up_project_forward.1} parent=11 // pred_check_branch
        %148 = sbr.rel (%p146) target = $region24
      $region23: #{up_project_forward.1} parent=11 // pred_region
        _
      $region24: #{up_project_forward.1} parent=11 // pred_fallthru
        _
    $region12: #{up_project_forward.1} parent=5 // pred_fallthru
      _
    %p149 = scmp.lt.s32.totalorder %s10, 2
    // Predicated region
    $region25: #{up_project_forward.1} parent=5 // pred_check
      %p150 = pneg %p149
    $region26: #{up_project_forward.1} parent=5 // pred_check_branch
      %152 = sbr.rel (%p150) target = $region28
    $region27: #{up_project_forward.1} parent=5 // pred_region
      // Predicated region
      $region29: #{up_project_forward.1} parent=27 // pred_check
        %p153 = pneg %p30
      $region30: #{up_project_forward.1} parent=27 // pred_check_branch
        %155 = sbr.rel (%p153) target = $region32
      $region31: #{up_project_forward.1} parent=27 // pred_region
        %p156 = scmp.lt.s32.totalorder %s10, 1
        %s157 = scalar_select %p156, %s10, 1
        %s158 = smul.addr %s157, 32
        %s159 = smul.addr %s158, 4
        %s160 = scalar_lea.vmem %s0, %s159
      $region32: #{up_project_forward.1} parent=27 // pred_fallthru
        _
    $region28: #{up_project_forward.1} parent=5 // pred_fallthru
      _
    %p161 = scmp.le.s32.totalorder 1, %s10
    %p162 = scmp.lt.s32.totalorder %s10, 3
    %p163 = pnand %p161, %p162
    %p164 = pneg %p163
    // Predicated region
    $region33: #{up_project_forward.1} parent=5 // pred_check
      _
    $region34: #{up_project_forward.1} parent=5 // pred_check_branch
      %166 = sbr.rel (%p163) target = $region36
    $region35: #{up_project_forward.1} parent=5 // pred_region
      %s167 = ssub.s32 %s10, 1
      %p168 = scmp.lt.s32.totalorder %s15, 1
      %s169 = scalar_select %p168, %s15, 1
      %s170 = smul.addr %s169, 32
      %s171 = smul.addr %s170, 4
      %s172 = scalar_lea.vmem %s0, %s171
      %p173 = pneg %p36
      %p174 = pneg %p33
      %p175 = pneg %p57
      %p176 = pneg %p54
      %p177 = pneg %p78
      %p178 = pneg %p75
      %p179 = pneg %p99
      %p180 = pneg %p96
      %p181 = pneg %p125
      %p182 = pneg %p122
      %p183 = scmp.lt.s32.totalorder %s15, 1
      %s184 = scalar_select %p183, %s15, 1
      %s185 = smul.addr %s184, 32
      %s186 = smul.addr %s185, 8
      %s187 = scalar_lea.vmem %s4, %s186
      %p188 = scmp.lt.s32.totalorder %s15, 1
      %s189 = scalar_select %p188, %s15, 1
      %s190 = smul.addr %s189, 32
      %s191 = smul.addr %s190, 4
      %s192 = scalar_lea.vmem %s0, %s191
      %p193 = scmp.lt.s32.totalorder %s15, 1
      %s194 = scalar_select %p193, %s15, 1
      %s195 = smul.addr %s194, 32
      %s196 = smul.addr %s195, 8
      %s197 = scalar_lea.vmem %s4, %s196
      %vm199 = vcmask 60416
      %200 = vst.msk [vmem:[#allocation2] sm:$0xf] %vm199, 0
      %201 = vst.msk [vmem:[#allocation2 + $0x4] sm:$0xf] %vm199, 0
      %vm202 = vcmask 57344
      %203 = vst.msk [vmem:[#allocation2 + $0x8] sm:$0x1] %vm202, 0
      %s204 = scalar_lea.vmem [#allocation2], 204
      %205 = vst.msk [vmem:[%s204] sm:$0xf] %vm199, 0
      %206 = vst.msk [vmem:[%s204 + $0x4] sm:$0xf] %vm199, 0
      %207 = vst.msk [vmem:[%s204 + $0x8] sm:$0x1] %vm202, 0
      %s208 = scalar_lea.vmem [#allocation2], 12
      %vm209 = vcmask 57344
      %vm210 = vsmask.f32 256
      %vm211 = vmand %vm209, %vm210
      %v212 = vld [vmem:[%s208] sm:$0x1]
      %v213 = vsel %vm211, 0, %v212
      %214 = vst [vmem:[%s208] sm:$0x1] %v213
      %v215 = vld [vmem:[%s208 + $0xc] sm:$0x1]
      %v216 = vsel %vm211, 0, %v215
      %217 = vst [vmem:[%s208 + $0xc] sm:$0x1] %v216
      %v218 = vld [vmem:[%s208 + $0x18] sm:$0x1]
      %v219 = vsel %vm211, 0, %v218
      %220 = vst [vmem:[%s208 + $0x18] sm:$0x1] %v219
      %v221 = vld [vmem:[%s208 + $0x24] sm:$0x1]
      %v222 = vsel %vm211, 0, %v221
      %223 = vst [vmem:[%s208 + $0x24] sm:$0x1] %v222
      %v224 = vld [vmem:[%s208 + $0x30] sm:$0x1]
      %v225 = vsel %vm211, 0, %v224
      %226 = vst [vmem:[%s208 + $0x30] sm:$0x1] %v225
      %v227 = vld [vmem:[%s208 + $0x3c] sm:$0x1]
      %v228 = vsel %vm211, 0, %v227
      %229 = vst [vmem:[%s208 + $0x3c] sm:$0x1] %v228
      %v230 = vld [vmem:[%s208 + $0x48] sm:$0x1]
      %v231 = vsel %vm211, 0, %v230
      %232 = vst [vmem:[%s208 + $0x48] sm:$0x1] %v231
      %v233 = vld [vmem:[%s208 + $0x54] sm:$0x1]
      %v234 = vsel %vm211, 0, %v233
      %235 = vst [vmem:[%s208 + $0x54] sm:$0x1] %v234
      %v236 = vld [vmem:[%s208 + $0x60] sm:$0x1]
      %v237 = vsel %vm211, 0, %v236
      %238 = vst [vmem:[%s208 + $0x60] sm:$0x1] %v237
      %v239 = vld [vmem:[%s208 + $0x6c] sm:$0x1]
      %v240 = vsel %vm211, 0, %v239
      %241 = vst [vmem:[%s208 + $0x6c] sm:$0x1] %v240
      %v242 = vld [vmem:[%s208 + $0x78] sm:$0x1]
      %v243 = vsel %vm211, 0, %v242
      %244 = vst [vmem:[%s208 + $0x78] sm:$0x1] %v243
      %v245 = vld [vmem:[%s208 + $0x84] sm:$0x1]
      %v246 = vsel %vm211, 0, %v245
      %247 = vst [vmem:[%s208 + $0x84] sm:$0x1] %v246
      %v248 = vld [vmem:[%s208 + $0x90] sm:$0x1]
      %v249 = vsel %vm211, 0, %v248
      %250 = vst [vmem:[%s208 + $0x90] sm:$0x1] %v249
      %v251 = vld [vmem:[%s208 + $0x9c] sm:$0x1]
      %v252 = vsel %vm211, 0, %v251
      %253 = vst [vmem:[%s208 + $0x9c] sm:$0x1] %v252
      %v254 = vld [vmem:[%s208 + $0xa8] sm:$0x1]
      %v255 = vsel %vm211, 0, %v254
      %256 = vst [vmem:[%s208 + $0xa8] sm:$0x1] %v255
      %v257 = vld [vmem:[%s208 + $0xb4] sm:$0x1]
      %v258 = vsel %vm211, 0, %v257
      %259 = vst [vmem:[%s208 + $0xb4] sm:$0x1] %v258
      %vm260 = vsmask.f32 7938
      %vm261 = vmand %vm209, %vm260
      %v262 = vld [vmem:[%s208 + $0x8] sm:$0x1]
      %v263 = vsel %vm261, 0, %v262
      %264 = vst [vmem:[%s208 + $0x8] sm:$0x1] %v263
      %v265 = vld [vmem:[%s208 + $0x14] sm:$0x1]
      %v266 = vsel %vm261, 0, %v265
      %267 = vst [vmem:[%s208 + $0x14] sm:$0x1] %v266
      %v268 = vld [vmem:[%s208 + $0x20] sm:$0x1]
      %v269 = vsel %vm261, 0, %v268
      %270 = vst [vmem:[%s208 + $0x20] sm:$0x1] %v269
      %v271 = vld [vmem:[%s208 + $0x2c] sm:$0x1]
      %v272 = vsel %vm261, 0, %v271
      %273 = vst [vmem:[%s208 + $0x2c] sm:$0x1] %v272
      %v274 = vld [vmem:[%s208 + $0x38] sm:$0x1]
      %v275 = vsel %vm261, 0, %v274
      %276 = vst [vmem:[%s208 + $0x38] sm:$0x1] %v275
      %v277 = vld [vmem:[%s208 + $0x44] sm:$0x1]
      %v278 = vsel %vm261, 0, %v277
      %279 = vst [vmem:[%s208 + $0x44] sm:$0x1] %v278
      %v280 = vld [vmem:[%s208 + $0x50] sm:$0x1]
      %v281 = vsel %vm261, 0, %v280
      %282 = vst [vmem:[%s208 + $0x50] sm:$0x1] %v281
      %v283 = vld [vmem:[%s208 + $0x5c] sm:$0x1]
      %v284 = vsel %vm261, 0, %v283
      %285 = vst [vmem:[%s208 + $0x5c] sm:$0x1] %v284
      %v286 = vld [vmem:[%s208 + $0x68] sm:$0x1]
      %v287 = vsel %vm261, 0, %v286
      %288 = vst [vmem:[%s208 + $0x68] sm:$0x1] %v287
      %v289 = vld [vmem:[%s208 + $0x74] sm:$0x1]
      %v290 = vsel %vm261, 0, %v289
      %291 = vst [vmem:[%s208 + $0x74] sm:$0x1] %v290
      %v292 = vld [vmem:[%s208 + $0x80] sm:$0x1]
      %v293 = vsel %vm261, 0, %v292
      %294 = vst [vmem:[%s208 + $0x80] sm:$0x1] %v293
      %v295 = vld [vmem:[%s208 + $0x8c] sm:$0x1]
      %v296 = vsel %vm261, 0, %v295
      %297 = vst [vmem:[%s208 + $0x8c] sm:$0x1] %v296
      %v298 = vld [vmem:[%s208 + $0x98] sm:$0x1]
      %v299 = vsel %vm261, 0, %v298
      %300 = vst [vmem:[%s208 + $0x98] sm:$0x1] %v299
      %v301 = vld [vmem:[%s208 + $0xa4] sm:$0x1]
      %v302 = vsel %vm261, 0, %v301
      %303 = vst [vmem:[%s208 + $0xa4] sm:$0x1] %v302
      %v304 = vld [vmem:[%s208 + $0xb0] sm:$0x1]
      %v305 = vsel %vm261, 0, %v304
      %306 = vst [vmem:[%s208 + $0xb0] sm:$0x1] %v305
      %v307 = vld [vmem:[%s208 + $0xbc] sm:$0x1]
      %v308 = vsel %vm261, 0, %v307
      %309 = vst [vmem:[%s208 + $0xbc] sm:$0x1] %v308
      %v310 = vld [vmem:[%s192] sm:$0xf]
      %v311 = vld [vmem:[%s192 + $0x4] sm:$0xf]
      %v312 = vld [vmem:[%s192 + $0x8] sm:$0xf]
      %v313 = vld [vmem:[%s192 + $0xc] sm:$0xf]
      %v314 = vld [vmem:[%s192 + $0x10] sm:$0xf]
      %v315 = vld [vmem:[%s192 + $0x14] sm:$0xf]
      %v316 = vld [vmem:[%s192 + $0x18] sm:$0xf]
      %v317 = vld [vmem:[%s192 + $0x1c] sm:$0xf]
      %v318 = vld [vmem:[%s192 + $0x20] sm:$0xf]
      %v319 = vld [vmem:[%s192 + $0x24] sm:$0xf]
      %v320 = vld [vmem:[%s192 + $0x28] sm:$0xf]
      %v321 = vld [vmem:[%s192 + $0x2c] sm:$0xf]
      %v322 = vld [vmem:[%s192 + $0x30] sm:$0xf]
      %v323 = vld [vmem:[%s192 + $0x34] sm:$0xf]
      %v324 = vld [vmem:[%s192 + $0x38] sm:$0xf]
      %v325 = vld [vmem:[%s192 + $0x3c] sm:$0xf]
      %v326 = vld [vmem:[%s192 + $0x40] sm:$0xf]
      %v327 = vld [vmem:[%s192 + $0x44] sm:$0xf]
      %v328 = vld [vmem:[%s192 + $0x48] sm:$0xf]
      %v329 = vld [vmem:[%s192 + $0x4c] sm:$0xf]
      %v330 = vld [vmem:[%s192 + $0x50] sm:$0xf]
      %v331 = vld [vmem:[%s192 + $0x54] sm:$0xf]
      %v332 = vld [vmem:[%s192 + $0x58] sm:$0xf]
      %v333 = vld [vmem:[%s192 + $0x5c] sm:$0xf]
      %v334 = vld [vmem:[%s192 + $0x60] sm:$0xf]
      %v335 = vld [vmem:[%s192 + $0x64] sm:$0xf]
      %v336 = vld [vmem:[%s192 + $0x68] sm:$0xf]
      %v337 = vld [vmem:[%s192 + $0x6c] sm:$0xf]
      %v338 = vld [vmem:[%s192 + $0x70] sm:$0xf]
      %v339 = vld [vmem:[%s192 + $0x74] sm:$0xf]
      %v340 = vld [vmem:[%s192 + $0x78] sm:$0xf]
      %v341 = vld [vmem:[%s192 + $0x7c] sm:$0xf]
      %vm342 = vsmask.f32 4368
      %vm343 = vmor %vm210, %vm342
      %v345 = vshrl.u32 %v310, 16
      %v347 = vrot.slane %v345, 7
      %v348 = vshll.u32 %v310, 16
      %v350 = vor.u32 %v347, %v348
      %v351 = vrot.slane %v347, 4
      %v353 = vshrl.u32 %v311, 16
      %v355 = vrot.slane %v353, 7
      %v356 = vshll.u32 %v311, 16
      %v358 = vor.u32 %v355, %v356
      %v359 = vsel %vm343, %v351, %v358
      %v360 = vrot.slane %v355, 4
      %v362 = vshrl.u32 %v312, 16
      %v364 = vrot.slane %v362, 7
      %v365 = vshll.u32 %v312, 16
      %v367 = vor.u32 %v364, %v365
      %v368 = vrot.slane %v364, 4
      %v370 = vshrl.u32 %v313, 16
      %v372 = vrot.slane %v370, 7
      %v373 = vshll.u32 %v313, 16
      %v375 = vor.u32 %v372, %v373
      %v376 = vsel %vm343, %v368, %v375
      %v377 = vrot.slane %v372, 4
      %v379 = vshrl.u32 %v314, 16
      %v381 = vrot.slane %v379, 7
      %v382 = vshll.u32 %v314, 16
      %v384 = vor.u32 %v381, %v382
      %v385 = vrot.slane %v381, 4
      %v387 = vshrl.u32 %v315, 16
      %v389 = vrot.slane %v387, 7
      %v390 = vshll.u32 %v315, 16
      %v392 = vor.u32 %v389, %v390
      %v393 = vsel %vm343, %v385, %v392
      %v394 = vrot.slane %v389, 4
      %v396 = vshrl.u32 %v316, 16
      %v398 = vrot.slane %v396, 7
      %v399 = vshll.u32 %v316, 16
      %v401 = vor.u32 %v398, %v399
      %v402 = vrot.slane %v398, 4
      %v404 = vshrl.u32 %v317, 16
      %v406 = vrot.slane %v404, 7
      %v407 = vshll.u32 %v317, 16
      %v409 = vor.u32 %v406, %v407
      %v410 = vsel %vm343, %v402, %v409
      %v411 = vrot.slane %v406, 4
      %v413 = vshrl.u32 %v318, 16
      %v415 = vrot.slane %v413, 7
      %v416 = vshll.u32 %v318, 16
      %v418 = vor.u32 %v415, %v416
      %v419 = vrot.slane %v415, 4
      %v421 = vshrl.u32 %v319, 16
      %v423 = vrot.slane %v421, 7
      %v424 = vshll.u32 %v319, 16
      %v426 = vor.u32 %v423, %v424
      %v427 = vsel %vm343, %v419, %v426
      %v428 = vrot.slane %v423, 4
      %v430 = vshrl.u32 %v320, 16
      %v432 = vrot.slane %v430, 7
      %v433 = vshll.u32 %v320, 16
      %v435 = vor.u32 %v432, %v433
      %v436 = vrot.slane %v432, 4
      %v438 = vshrl.u32 %v321, 16
      %v440 = vrot.slane %v438, 7
      %v441 = vshll.u32 %v321, 16
      %v443 = vor.u32 %v440, %v441
      %v444 = vsel %vm343, %v436, %v443
      %v445 = vrot.slane %v440, 4
      %v447 = vshrl.u32 %v322, 16
      %v449 = vrot.slane %v447, 7
      %v450 = vshll.u32 %v322, 16
      %v452 = vor.u32 %v449, %v450
      %v453 = vrot.slane %v449, 4
      %v455 = vshrl.u32 %v323, 16
      %v457 = vrot.slane %v455, 7
      %v458 = vshll.u32 %v323, 16
      %v460 = vor.u32 %v457, %v458
      %v461 = vsel %vm343, %v453, %v460
      %v462 = vrot.slane %v457, 4
      %v464 = vshrl.u32 %v324, 16
      %v466 = vrot.slane %v464, 7
      %v467 = vshll.u32 %v324, 16
      %v469 = vor.u32 %v466, %v467
      %v470 = vrot.slane %v466, 4
      %v472 = vshrl.u32 %v325, 16
      %v474 = vrot.slane %v472, 7
      %v475 = vshll.u32 %v325, 16
      %v477 = vor.u32 %v474, %v475
      %v478 = vsel %vm343, %v470, %v477
      %v479 = vrot.slane %v474, 4
      %v481 = vshrl.u32 %v326, 16
      %v483 = vrot.slane %v481, 7
      %v484 = vshll.u32 %v326, 16
      %v486 = vor.u32 %v483, %v484
      %v487 = vrot.slane %v483, 4
      %v489 = vshrl.u32 %v327, 16
      %v491 = vrot.slane %v489, 7
      %v492 = vshll.u32 %v327, 16
      %v494 = vor.u32 %v491, %v492
      %v495 = vsel %vm343, %v487, %v494
      %v496 = vrot.slane %v491, 4
      %v498 = vshrl.u32 %v328, 16
      %v500 = vrot.slane %v498, 7
      %v501 = vshll.u32 %v328, 16
      %v503 = vor.u32 %v500, %v501
      %v504 = vrot.slane %v500, 4
      %v506 = vshrl.u32 %v329, 16
      %v508 = vrot.slane %v506, 7
      %v509 = vshll.u32 %v329, 16
      %v511 = vor.u32 %v508, %v509
      %v512 = vsel %vm343, %v504, %v511
      %v513 = vrot.slane %v508, 4
      %v515 = vshrl.u32 %v330, 16
      %v517 = vrot.slane %v515, 7
      %v518 = vshll.u32 %v330, 16
      %v520 = vor.u32 %v517, %v518
      %v521 = vrot.slane %v517, 4
      %v523 = vshrl.u32 %v331, 16
      %v525 = vrot.slane %v523, 7
      %v526 = vshll.u32 %v331, 16
      %v528 = vor.u32 %v525, %v526
      %v529 = vsel %vm343, %v521, %v528
      %v530 = vrot.slane %v525, 4
      %v532 = vshrl.u32 %v332, 16
      %v534 = vrot.slane %v532, 7
      %v535 = vshll.u32 %v332, 16
      %v537 = vor.u32 %v534, %v535
      %v538 = vrot.slane %v534, 4
      %v540 = vshrl.u32 %v333, 16
      %v542 = vrot.slane %v540, 7
      %v543 = vshll.u32 %v333, 16
      %v545 = vor.u32 %v542, %v543
      %v546 = vsel %vm343, %v538, %v545
      %v547 = vrot.slane %v542, 4
      %v549 = vshrl.u32 %v334, 16
      %v551 = vrot.slane %v549, 7
      %v552 = vshll.u32 %v334, 16
      %v554 = vor.u32 %v551, %v552
      %v555 = vrot.slane %v551, 4
      %v557 = vshrl.u32 %v335, 16
      %v559 = vrot.slane %v557, 7
      %v560 = vshll.u32 %v335, 16
      %v562 = vor.u32 %v559, %v560
      %v563 = vsel %vm343, %v555, %v562
      %v564 = vrot.slane %v559, 4
      %v566 = vshrl.u32 %v336, 16
      %v568 = vrot.slane %v566, 7
      %v569 = vshll.u32 %v336, 16
      %v571 = vor.u32 %v568, %v569
      %v572 = vrot.slane %v568, 4
      %v574 = vshrl.u32 %v337, 16
      %v576 = vrot.slane %v574, 7
      %v577 = vshll.u32 %v337, 16
      %v579 = vor.u32 %v576, %v577
      %v580 = vsel %vm343, %v572, %v579
      %v581 = vrot.slane %v576, 4
      %v583 = vshrl.u32 %v338, 16
      %v585 = vrot.slane %v583, 7
      %v586 = vshll.u32 %v338, 16
      %v588 = vor.u32 %v585, %v586
      %v589 = vrot.slane %v585, 4
      %v591 = vshrl.u32 %v339, 16
      %v593 = vrot.slane %v591, 7
      %v594 = vshll.u32 %v339, 16
      %v596 = vor.u32 %v593, %v594
      %v597 = vsel %vm343, %v589, %v596
      %v598 = vrot.slane %v593, 4
      %v600 = vshrl.u32 %v340, 16
      %v602 = vrot.slane %v600, 7
      %v603 = vshll.u32 %v340, 16
      %v605 = vor.u32 %v602, %v603
      %v606 = vrot.slane %v602, 4
      %v608 = vshrl.u32 %v341, 16
      %v610 = vrot.slane %v608, 7
      %v611 = vshll.u32 %v341, 16
      %v613 = vor.u32 %v610, %v611
      %v614 = vsel %vm343, %v606, %v613
      %v615 = vrot.slane %v610, 4
      %vm664 = vcmask 60416
      %vm665 = vmand %vm664, %vm260
      %v666 = vld [vmem:[%s208] sm:$0xf]
      %v667 = vsel %vm665, %v350, %v666
      %668 = vst [vmem:[%s208] sm:$0xf] %v667
      %669 = vst.msk [vmem:[%s208 + $0x4] sm:$0xf] %vm199, %v359
      %v670 = vld [vmem:[%s208 + $0x8] sm:$0x1]
      %v671 = vsel %vm211, %v360, %v670
      %672 = vst [vmem:[%s208 + $0x8] sm:$0x1] %v671
      %v673 = vld [vmem:[%s208 + $0xc] sm:$0xf]
      %v674 = vsel %vm665, %v367, %v673
      %675 = vst [vmem:[%s208 + $0xc] sm:$0xf] %v674
      %676 = vst.msk [vmem:[%s208 + $0x10] sm:$0xf] %vm199, %v376
      %v677 = vld [vmem:[%s208 + $0x14] sm:$0x1]
      %v678 = vsel %vm211, %v377, %v677
      %679 = vst [vmem:[%s208 + $0x14] sm:$0x1] %v678
      %v680 = vld [vmem:[%s208 + $0x18] sm:$0xf]
      %v681 = vsel %vm665, %v384, %v680
      %682 = vst [vmem:[%s208 + $0x18] sm:$0xf] %v681
      %683 = vst.msk [vmem:[%s208 + $0x1c] sm:$0xf] %vm199, %v393
      %v684 = vld [vmem:[%s208 + $0x20] sm:$0x1]
      %v685 = vsel %vm211, %v394, %v684
      %686 = vst [vmem:[%s208 + $0x20] sm:$0x1] %v685
      %v687 = vld [vmem:[%s208 + $0x24] sm:$0xf]
      %v688 = vsel %vm665, %v401, %v687
      %689 = vst [vmem:[%s208 + $0x24] sm:$0xf] %v688
      %690 = vst.msk [vmem:[%s208 + $0x28] sm:$0xf] %vm199, %v410
      %v691 = vld [vmem:[%s208 + $0x2c] sm:$0x1]
      %v692 = vsel %vm211, %v411, %v691
      %693 = vst [vmem:[%s208 + $0x2c] sm:$0x1] %v692
      %v694 = vld [vmem:[%s208 + $0x30] sm:$0xf]
      %v695 = vsel %vm665, %v418, %v694
      %696 = vst [vmem:[%s208 + $0x30] sm:$0xf] %v695
      %697 = vst.msk [vmem:[%s208 + $0x34] sm:$0xf] %vm199, %v427
      %v698 = vld [vmem:[%s208 + $0x38] sm:$0x1]
      %v699 = vsel %vm211, %v428, %v698
      %700 = vst [vmem:[%s208 + $0x38] sm:$0x1] %v699
      %v701 = vld [vmem:[%s208 + $0x3c] sm:$0xf]
      %v702 = vsel %vm665, %v435, %v701
      %703 = vst [vmem:[%s208 + $0x3c] sm:$0xf] %v702
      %704 = vst.msk [vmem:[%s208 + $0x40] sm:$0xf] %vm199, %v444
      %v705 = vld [vmem:[%s208 + $0x44] sm:$0x1]
      %v706 = vsel %vm211, %v445, %v705
      %707 = vst [vmem:[%s208 + $0x44] sm:$0x1] %v706
      %v708 = vld [vmem:[%s208 + $0x48] sm:$0xf]
      %v709 = vsel %vm665, %v452, %v708
      %710 = vst [vmem:[%s208 + $0x48] sm:$0xf] %v709
      %711 = vst.msk [vmem:[%s208 + $0x4c] sm:$0xf] %vm199, %v461
      %v712 = vld [vmem:[%s208 + $0x50] sm:$0x1]
      %v713 = vsel %vm211, %v462, %v712
      %714 = vst [vmem:[%s208 + $0x50] sm:$0x1] %v713
      %v715 = vld [vmem:[%s208 + $0x54] sm:$0xf]
      %v716 = vsel %vm665, %v469, %v715
      %717 = vst [vmem:[%s208 + $0x54] sm:$0xf] %v716
      %718 = vst.msk [vmem:[%s208 + $0x58] sm:$0xf] %vm199, %v478
      %v719 = vld [vmem:[%s208 + $0x5c] sm:$0x1]
      %v720 = vsel %vm211, %v479, %v719
      %721 = vst [vmem:[%s208 + $0x5c] sm:$0x1] %v720
      %v722 = vld [vmem:[%s208 + $0x60] sm:$0xf]
      %v723 = vsel %vm665, %v486, %v722
      %724 = vst [vmem:[%s208 + $0x60] sm:$0xf] %v723
      %725 = vst.msk [vmem:[%s208 + $0x64] sm:$0xf] %vm199, %v495
      %v726 = vld [vmem:[%s208 + $0x68] sm:$0x1]
      %v727 = vsel %vm211, %v496, %v726
      %728 = vst [vmem:[%s208 + $0x68] sm:$0x1] %v727
      %v729 = vld [vmem:[%s208 + $0x6c] sm:$0xf]
      %v730 = vsel %vm665, %v503, %v729
      %731 = vst [vmem:[%s208 + $0x6c] sm:$0xf] %v730
      %732 = vst.msk [vmem:[%s208 + $0x70] sm:$0xf] %vm199, %v512
      %v733 = vld [vmem:[%s208 + $0x74] sm:$0x1]
      %v734 = vsel %vm211, %v513, %v733
      %735 = vst [vmem:[%s208 + $0x74] sm:$0x1] %v734
      %v736 = vld [vmem:[%s208 + $0x78] sm:$0xf]
      %v737 = vsel %vm665, %v520, %v736
      %738 = vst [vmem:[%s208 + $0x78] sm:$0xf] %v737
      %739 = vst.msk [vmem:[%s208 + $0x7c] sm:$0xf] %vm199, %v529
      %v740 = vld [vmem:[%s208 + $0x80] sm:$0x1]
      %v741 = vsel %vm211, %v530, %v740
      %742 = vst [vmem:[%s208 + $0x80] sm:$0x1] %v741
      %v743 = vld [vmem:[%s208 + $0x84] sm:$0xf]
      %v744 = vsel %vm665, %v537, %v743
      %745 = vst [vmem:[%s208 + $0x84] sm:$0xf] %v744
      %746 = vst.msk [vmem:[%s208 + $0x88] sm:$0xf] %vm199, %v546
      %v747 = vld [vmem:[%s208 + $0x8c] sm:$0x1]
      %v748 = vsel %vm211, %v547, %v747
      %749 = vst [vmem:[%s208 + $0x8c] sm:$0x1] %v748
      %v750 = vld [vmem:[%s208 + $0x90] sm:$0xf]
      %v751 = vsel %vm665, %v554, %v750
      %752 = vst [vmem:[%s208 + $0x90] sm:$0xf] %v751
      %753 = vst.msk [vmem:[%s208 + $0x94] sm:$0xf] %vm199, %v563
      %v754 = vld [vmem:[%s208 + $0x98] sm:$0x1]
      %v755 = vsel %vm211, %v564, %v754
      %756 = vst [vmem:[%s208 + $0x98] sm:$0x1] %v755
      %v757 = vld [vmem:[%s208 + $0x9c] sm:$0xf]
      %v758 = vsel %vm665, %v571, %v757
      %759 = vst [vmem:[%s208 + $0x9c] sm:$0xf] %v758
      %760 = vst.msk [vmem:[%s208 + $0xa0] sm:$0xf] %vm199, %v580
      %v761 = vld [vmem:[%s208 + $0xa4] sm:$0x1]
      %v762 = vsel %vm211, %v581, %v761
      %763 = vst [vmem:[%s208 + $0xa4] sm:$0x1] %v762
      %v764 = vld [vmem:[%s208 + $0xa8] sm:$0xf]
      %v765 = vsel %vm665, %v588, %v764
      %766 = vst [vmem:[%s208 + $0xa8] sm:$0xf] %v765
      %767 = vst.msk [vmem:[%s208 + $0xac] sm:$0xf] %vm199, %v597
      %v768 = vld [vmem:[%s208 + $0xb0] sm:$0x1]
      %v769 = vsel %vm211, %v598, %v768
      %770 = vst [vmem:[%s208 + $0xb0] sm:$0x1] %v769
      %v771 = vld [vmem:[%s208 + $0xb4] sm:$0xf]
      %v772 = vsel %vm665, %v605, %v771
      %773 = vst [vmem:[%s208 + $0xb4] sm:$0xf] %v772
      %774 = vst.msk [vmem:[%s208 + $0xb8] sm:$0xf] %vm199, %v614
      %v775 = vld [vmem:[%s208 + $0xbc] sm:$0x1]
      %v776 = vsel %vm211, %v615, %v775
      %777 = vst [vmem:[%s208 + $0xbc] sm:$0x1] %v776
      %778 = vst.msk [vmem:[#allocation3] sm:$0xf] %vm199, 0
      %779 = vst.msk [vmem:[#allocation3 + $0x4] sm:$0xf] %vm199, 0
      %780 = vst.msk [vmem:[#allocation3 + $0x8] sm:$0x1] %vm202, 0
      %s781 = scalar_lea.vmem [#allocation3], 204
      %782 = vst.msk [vmem:[%s781] sm:$0xf] %vm199, 0
      %783 = vst.msk [vmem:[%s781 + $0x4] sm:$0xf] %vm199, 0
      %784 = vst.msk [vmem:[%s781 + $0x8] sm:$0x1] %vm202, 0
      %s785 = scalar_lea.vmem [#allocation3], 12
      %v786 = vld [vmem:[%s785] sm:$0x1]
      %v787 = vsel %vm211, 0, %v786
      %788 = vst [vmem:[%s785] sm:$0x1] %v787
      %v789 = vld [vmem:[%s785 + $0xc] sm:$0x1]
      %v790 = vsel %vm211, 0, %v789
      %791 = vst [vmem:[%s785 + $0xc] sm:$0x1] %v790
      %v792 = vld [vmem:[%s785 + $0x18] sm:$0x1]
      %v793 = vsel %vm211, 0, %v792
      %794 = vst [vmem:[%s785 + $0x18] sm:$0x1] %v793
      %v795 = vld [vmem:[%s785 + $0x24] sm:$0x1]
      %v796 = vsel %vm211, 0, %v795
      %797 = vst [vmem:[%s785 + $0x24] sm:$0x1] %v796
      %v798 = vld [vmem:[%s785 + $0x30] sm:$0x1]
      %v799 = vsel %vm211, 0, %v798
      %800 = vst [vmem:[%s785 + $0x30] sm:$0x1] %v799
      %v801 = vld [vmem:[%s785 + $0x3c] sm:$0x1]
      %v802 = vsel %vm211, 0, %v801
      %803 = vst [vmem:[%s785 + $0x3c] sm:$0x1] %v802
      %v804 = vld [vmem:[%s785 + $0x48] sm:$0x1]
      %v805 = vsel %vm211, 0, %v804
      %806 = vst [vmem:[%s785 + $0x48] sm:$0x1] %v805
      %v807 = vld [vmem:[%s785 + $0x54] sm:$0x1]
      %v808 = vsel %vm211, 0, %v807
      %809 = vst [vmem:[%s785 + $0x54] sm:$0x1] %v808
      %v810 = vld [vmem:[%s785 + $0x60] sm:$0x1]
      %v811 = vsel %vm211, 0, %v810
      %812 = vst [vmem:[%s785 + $0x60] sm:$0x1] %v811
      %v813 = vld [vmem:[%s785 + $0x6c] sm:$0x1]
      %v814 = vsel %vm211, 0, %v813
      %815 = vst [vmem:[%s785 + $0x6c] sm:$0x1] %v814
      %v816 = vld [vmem:[%s785 + $0x78] sm:$0x1]
      %v817 = vsel %vm211, 0, %v816
      %818 = vst [vmem:[%s785 + $0x78] sm:$0x1] %v817
      %v819 = vld [vmem:[%s785 + $0x84] sm:$0x1]
      %v820 = vsel %vm211, 0, %v819
      %821 = vst [vmem:[%s785 + $0x84] sm:$0x1] %v820
      %v822 = vld [vmem:[%s785 + $0x90] sm:$0x1]
      %v823 = vsel %vm211, 0, %v822
      %824 = vst [vmem:[%s785 + $0x90] sm:$0x1] %v823
      %v825 = vld [vmem:[%s785 + $0x9c] sm:$0x1]
      %v826 = vsel %vm211, 0, %v825
      %827 = vst [vmem:[%s785 + $0x9c] sm:$0x1] %v826
      %v828 = vld [vmem:[%s785 + $0xa8] sm:$0x1]
      %v829 = vsel %vm211, 0, %v828
      %830 = vst [vmem:[%s785 + $0xa8] sm:$0x1] %v829
      %v831 = vld [vmem:[%s785 + $0xb4] sm:$0x1]
      %v832 = vsel %vm211, 0, %v831
      %833 = vst [vmem:[%s785 + $0xb4] sm:$0x1] %v832
      %v834 = vld [vmem:[%s785 + $0x8] sm:$0x1]
      %v835 = vsel %vm261, 0, %v834
      %836 = vst [vmem:[%s785 + $0x8] sm:$0x1] %v835
      %v837 = vld [vmem:[%s785 + $0x14] sm:$0x1]
      %v838 = vsel %vm261, 0, %v837
      %839 = vst [vmem:[%s785 + $0x14] sm:$0x1] %v838
      %v840 = vld [vmem:[%s785 + $0x20] sm:$0x1]
      %v841 = vsel %vm261, 0, %v840
      %842 = vst [vmem:[%s785 + $0x20] sm:$0x1] %v841
      %v843 = vld [vmem:[%s785 + $0x2c] sm:$0x1]
      %v844 = vsel %vm261, 0, %v843
      %845 = vst [vmem:[%s785 + $0x2c] sm:$0x1] %v844
      %v846 = vld [vmem:[%s785 + $0x38] sm:$0x1]
      %v847 = vsel %vm261, 0, %v846
      %848 = vst [vmem:[%s785 + $0x38] sm:$0x1] %v847
      %v849 = vld [vmem:[%s785 + $0x44] sm:$0x1]
      %v850 = vsel %vm261, 0, %v849
      %851 = vst [vmem:[%s785 + $0x44] sm:$0x1] %v850
      %v852 = vld [vmem:[%s785 + $0x50] sm:$0x1]
      %v853 = vsel %vm261, 0, %v852
      %854 = vst [vmem:[%s785 + $0x50] sm:$0x1] %v853
      %v855 = vld [vmem:[%s785 + $0x5c] sm:$0x1]
      %v856 = vsel %vm261, 0, %v855
      %857 = vst [vmem:[%s785 + $0x5c] sm:$0x1] %v856
      %v858 = vld [vmem:[%s785 + $0x68] sm:$0x1]
      %v859 = vsel %vm261, 0, %v858
      %860 = vst [vmem:[%s785 + $0x68] sm:$0x1] %v859
      %v861 = vld [vmem:[%s785 + $0x74] sm:$0x1]
      %v862 = vsel %vm261, 0, %v861
      %863 = vst [vmem:[%s785 + $0x74] sm:$0x1] %v862
      %v864 = vld [vmem:[%s785 + $0x80] sm:$0x1]
      %v865 = vsel %vm261, 0, %v864
      %866 = vst [vmem:[%s785 + $0x80] sm:$0x1] %v865
      %v867 = vld [vmem:[%s785 + $0x8c] sm:$0x1]
      %v868 = vsel %vm261, 0, %v867
      %869 = vst [vmem:[%s785 + $0x8c] sm:$0x1] %v868
      %v870 = vld [vmem:[%s785 + $0x98] sm:$0x1]
      %v871 = vsel %vm261, 0, %v870
      %872 = vst [vmem:[%s785 + $0x98] sm:$0x1] %v871
      %v873 = vld [vmem:[%s785 + $0xa4] sm:$0x1]
      %v874 = vsel %vm261, 0, %v873
      %875 = vst [vmem:[%s785 + $0xa4] sm:$0x1] %v874
      %v876 = vld [vmem:[%s785 + $0xb0] sm:$0x1]
      %v877 = vsel %vm261, 0, %v876
      %878 = vst [vmem:[%s785 + $0xb0] sm:$0x1] %v877
      %v879 = vld [vmem:[%s785 + $0xbc] sm:$0x1]
      %v880 = vsel %vm261, 0, %v879
      %881 = vst [vmem:[%s785 + $0xbc] sm:$0x1] %v880
      %s882 = scalar_lea.vmem [#allocation3], 216
      %883 = vst.msk [vmem:[%s882] sm:$0xf] %vm199, 0
      %884 = vst.msk [vmem:[%s882 + $0x4] sm:$0xf] %vm199, 0
      %885 = vst.msk [vmem:[%s882 + $0x8] sm:$0x1] %vm202, 0
      %s886 = scalar_lea.vmem [#allocation3], 420
      %887 = vst.msk [vmem:[%s886] sm:$0xf] %vm199, 0
      %888 = vst.msk [vmem:[%s886 + $0x4] sm:$0xf] %vm199, 0
      %889 = vst.msk [vmem:[%s886 + $0x8] sm:$0x1] %vm202, 0
      %s890 = scalar_lea.vmem [#allocation3], 228
      %v891 = vld [vmem:[%s890] sm:$0x1]
      %v892 = vsel %vm211, 0, %v891
      %893 = vst [vmem:[%s890] sm:$0x1] %v892
      %v894 = vld [vmem:[%s890 + $0xc] sm:$0x1]
      %v895 = vsel %vm211, 0, %v894
      %896 = vst [vmem:[%s890 + $0xc] sm:$0x1] %v895
      %v897 = vld [vmem:[%s890 + $0x18] sm:$0x1]
      %v898 = vsel %vm211, 0, %v897
      %899 = vst [vmem:[%s890 + $0x18] sm:$0x1] %v898
      %v900 = vld [vmem:[%s890 + $0x24] sm:$0x1]
      %v901 = vsel %vm211, 0, %v900
      %902 = vst [vmem:[%s890 + $0x24] sm:$0x1] %v901
      %v903 = vld [vmem:[%s890 + $0x30] sm:$0x1]
      %v904 = vsel %vm211, 0, %v903
      %905 = vst [vmem:[%s890 + $0x30] sm:$0x1] %v904
      %v906 = vld [vmem:[%s890 + $0x3c] sm:$0x1]
      %v907 = vsel %vm211, 0, %v906
      %908 = vst [vmem:[%s890 + $0x3c] sm:$0x1] %v907
      %v909 = vld [vmem:[%s890 + $0x48] sm:$0x1]
      %v910 = vsel %vm211, 0, %v909
      %911 = vst [vmem:[%s890 + $0x48] sm:$0x1] %v910
      %v912 = vld [vmem:[%s890 + $0x54] sm:$0x1]
      %v913 = vsel %vm211, 0, %v912
      %914 = vst [vmem:[%s890 + $0x54] sm:$0x1] %v913
      %v915 = vld [vmem:[%s890 + $0x60] sm:$0x1]
      %v916 = vsel %vm211, 0, %v915
      %917 = vst [vmem:[%s890 + $0x60] sm:$0x1] %v916
      %v918 = vld [vmem:[%s890 + $0x6c] sm:$0x1]
      %v919 = vsel %vm211, 0, %v918
      %920 = vst [vmem:[%s890 + $0x6c] sm:$0x1] %v919
      %v921 = vld [vmem:[%s890 + $0x78] sm:$0x1]
      %v922 = vsel %vm211, 0, %v921
      %923 = vst [vmem:[%s890 + $0x78] sm:$0x1] %v922
      %v924 = vld [vmem:[%s890 + $0x84] sm:$0x1]
      %v925 = vsel %vm211, 0, %v924
      %926 = vst [vmem:[%s890 + $0x84] sm:$0x1] %v925
      %v927 = vld [vmem:[%s890 + $0x90] sm:$0x1]
      %v928 = vsel %vm211, 0, %v927
      %929 = vst [vmem:[%s890 + $0x90] sm:$0x1] %v928
      %v930 = vld [vmem:[%s890 + $0x9c] sm:$0x1]
      %v931 = vsel %vm211, 0, %v930
      %932 = vst [vmem:[%s890 + $0x9c] sm:$0x1] %v931
      %v933 = vld [vmem:[%s890 + $0xa8] sm:$0x1]
      %v934 = vsel %vm211, 0, %v933
      %935 = vst [vmem:[%s890 + $0xa8] sm:$0x1] %v934
      %v936 = vld [vmem:[%s890 + $0xb4] sm:$0x1]
      %v937 = vsel %vm211, 0, %v936
      %938 = vst [vmem:[%s890 + $0xb4] sm:$0x1] %v937
      %v939 = vld [vmem:[%s890 + $0x8] sm:$0x1]
      %v940 = vsel %vm261, 0, %v939
      %941 = vst [vmem:[%s890 + $0x8] sm:$0x1] %v940
      %v942 = vld [vmem:[%s890 + $0x14] sm:$0x1]
      %v943 = vsel %vm261, 0, %v942
      %944 = vst [vmem:[%s890 + $0x14] sm:$0x1] %v943
      %v945 = vld [vmem:[%s890 + $0x20] sm:$0x1]
      %v946 = vsel %vm261, 0, %v945
      %947 = vst [vmem:[%s890 + $0x20] sm:$0x1] %v946
      %v948 = vld [vmem:[%s890 + $0x2c] sm:$0x1]
      %v949 = vsel %vm261, 0, %v948
      %950 = vst [vmem:[%s890 + $0x2c] sm:$0x1] %v949
      %v951 = vld [vmem:[%s890 + $0x38] sm:$0x1]
      %v952 = vsel %vm261, 0, %v951
      %953 = vst [vmem:[%s890 + $0x38] sm:$0x1] %v952
      %v954 = vld [vmem:[%s890 + $0x44] sm:$0x1]
      %v955 = vsel %vm261, 0, %v954
      %956 = vst [vmem:[%s890 + $0x44] sm:$0x1] %v955
      %v957 = vld [vmem:[%s890 + $0x50] sm:$0x1]
      %v958 = vsel %vm261, 0, %v957
      %959 = vst [vmem:[%s890 + $0x50] sm:$0x1] %v958
      %v960 = vld [vmem:[%s890 + $0x5c] sm:$0x1]
      %v961 = vsel %vm261, 0, %v960
      %962 = vst [vmem:[%s890 + $0x5c] sm:$0x1] %v961
      %v963 = vld [vmem:[%s890 + $0x68] sm:$0x1]
      %v964 = vsel %vm261, 0, %v963
      %965 = vst [vmem:[%s890 + $0x68] sm:$0x1] %v964
      %v966 = vld [vmem:[%s890 + $0x74] sm:$0x1]
      %v967 = vsel %vm261, 0, %v966
      %968 = vst [vmem:[%s890 + $0x74] sm:$0x1] %v967
      %v969 = vld [vmem:[%s890 + $0x80] sm:$0x1]
      %v970 = vsel %vm261, 0, %v969
      %971 = vst [vmem:[%s890 + $0x80] sm:$0x1] %v970
      %v972 = vld [vmem:[%s890 + $0x8c] sm:$0x1]
      %v973 = vsel %vm261, 0, %v972
      %974 = vst [vmem:[%s890 + $0x8c] sm:$0x1] %v973
      %v975 = vld [vmem:[%s890 + $0x98] sm:$0x1]
      %v976 = vsel %vm261, 0, %v975
      %977 = vst [vmem:[%s890 + $0x98] sm:$0x1] %v976
      %v978 = vld [vmem:[%s890 + $0xa4] sm:$0x1]
      %v979 = vsel %vm261, 0, %v978
      %980 = vst [vmem:[%s890 + $0xa4] sm:$0x1] %v979
      %v981 = vld [vmem:[%s890 + $0xb0] sm:$0x1]
      %v982 = vsel %vm261, 0, %v981
      %983 = vst [vmem:[%s890 + $0xb0] sm:$0x1] %v982
      %v984 = vld [vmem:[%s890 + $0xbc] sm:$0x1]
      %v985 = vsel %vm261, 0, %v984
      %986 = vst [vmem:[%s890 + $0xbc] sm:$0x1] %v985
      %s987 = scalar_lea.vmem [#allocation3], 432
      %988 = vst.msk [vmem:[%s987] sm:$0xf] %vm199, 0
      %989 = vst.msk [vmem:[%s987 + $0x4] sm:$0xf] %vm199, 0
      %990 = vst.msk [vmem:[%s987 + $0x8] sm:$0x1] %vm202, 0
      %s991 = scalar_lea.vmem [#allocation3], 636
      %992 = vst.msk [vmem:[%s991] sm:$0xf] %vm199, 0
      %993 = vst.msk [vmem:[%s991 + $0x4] sm:$0xf] %vm199, 0
      %994 = vst.msk [vmem:[%s991 + $0x8] sm:$0x1] %vm202, 0
      %s995 = scalar_lea.vmem [#allocation3], 444
      %v996 = vld [vmem:[%s995] sm:$0x1]
      %v997 = vsel %vm211, 0, %v996
      %998 = vst [vmem:[%s995] sm:$0x1] %v997
      %v999 = vld [vmem:[%s995 + $0xc] sm:$0x1]
      %v1000 = vsel %vm211, 0, %v999
      %1001 = vst [vmem:[%s995 + $0xc] sm:$0x1] %v1000
      %v1002 = vld [vmem:[%s995 + $0x18] sm:$0x1]
      %v1003 = vsel %vm211, 0, %v1002
      %1004 = vst [vmem:[%s995 + $0x18] sm:$0x1] %v1003
      %v1005 = vld [vmem:[%s995 + $0x24] sm:$0x1]
      %v1006 = vsel %vm211, 0, %v1005
      %1007 = vst [vmem:[%s995 + $0x24] sm:$0x1] %v1006
      %v1008 = vld [vmem:[%s995 + $0x30] sm:$0x1]
      %v1009 = vsel %vm211, 0, %v1008
      %1010 = vst [vmem:[%s995 + $0x30] sm:$0x1] %v1009
      %v1011 = vld [vmem:[%s995 + $0x3c] sm:$0x1]
      %v1012 = vsel %vm211, 0, %v1011
      %1013 = vst [vmem:[%s995 + $0x3c] sm:$0x1] %v1012
      %v1014 = vld [vmem:[%s995 + $0x48] sm:$0x1]
      %v1015 = vsel %vm211, 0, %v1014
      %1016 = vst [vmem:[%s995 + $0x48] sm:$0x1] %v1015
      %v1017 = vld [vmem:[%s995 + $0x54] sm:$0x1]
      %v1018 = vsel %vm211, 0, %v1017
      %1019 = vst [vmem:[%s995 + $0x54] sm:$0x1] %v1018
      %v1020 = vld [vmem:[%s995 + $0x60] sm:$0x1]
      %v1021 = vsel %vm211, 0, %v1020
      %1022 = vst [vmem:[%s995 + $0x60] sm:$0x1] %v1021
      %v1023 = vld [vmem:[%s995 + $0x6c] sm:$0x1]
      %v1024 = vsel %vm211, 0, %v1023
      %1025 = vst [vmem:[%s995 + $0x6c] sm:$0x1] %v1024
      %v1026 = vld [vmem:[%s995 + $0x78] sm:$0x1]
      %v1027 = vsel %vm211, 0, %v1026
      %1028 = vst [vmem:[%s995 + $0x78] sm:$0x1] %v1027
      %v1029 = vld [vmem:[%s995 + $0x84] sm:$0x1]
      %v1030 = vsel %vm211, 0, %v1029
      %1031 = vst [vmem:[%s995 + $0x84] sm:$0x1] %v1030
      %v1032 = vld [vmem:[%s995 + $0x90] sm:$0x1]
      %v1033 = vsel %vm211, 0, %v1032
      %1034 = vst [vmem:[%s995 + $0x90] sm:$0x1] %v1033
      %v1035 = vld [vmem:[%s995 + $0x9c] sm:$0x1]
      %v1036 = vsel %vm211, 0, %v1035
      %1037 = vst [vmem:[%s995 + $0x9c] sm:$0x1] %v1036
      %v1038 = vld [vmem:[%s995 + $0xa8] sm:$0x1]
      %v1039 = vsel %vm211, 0, %v1038
      %1040 = vst [vmem:[%s995 + $0xa8] sm:$0x1] %v1039
      %v1041 = vld [vmem:[%s995 + $0xb4] sm:$0x1]
      %v1042 = vsel %vm211, 0, %v1041
      %1043 = vst [vmem:[%s995 + $0xb4] sm:$0x1] %v1042
      %v1044 = vld [vmem:[%s995 + $0x8] sm:$0x1]
      %v1045 = vsel %vm261, 0, %v1044
      %1046 = vst [vmem:[%s995 + $0x8] sm:$0x1] %v1045
      %v1047 = vld [vmem:[%s995 + $0x14] sm:$0x1]
      %v1048 = vsel %vm261, 0, %v1047
      %1049 = vst [vmem:[%s995 + $0x14] sm:$0x1] %v1048
      %v1050 = vld [vmem:[%s995 + $0x20] sm:$0x1]
      %v1051 = vsel %vm261, 0, %v1050
      %1052 = vst [vmem:[%s995 + $0x20] sm:$0x1] %v1051
      %v1053 = vld [vmem:[%s995 + $0x2c] sm:$0x1]
      %v1054 = vsel %vm261, 0, %v1053
      %1055 = vst [vmem:[%s995 + $0x2c] sm:$0x1] %v1054
      %v1056 = vld [vmem:[%s995 + $0x38] sm:$0x1]
      %v1057 = vsel %vm261, 0, %v1056
      %1058 = vst [vmem:[%s995 + $0x38] sm:$0x1] %v1057
      %v1059 = vld [vmem:[%s995 + $0x44] sm:$0x1]
      %v1060 = vsel %vm261, 0, %v1059
      %1061 = vst [vmem:[%s995 + $0x44] sm:$0x1] %v1060
      %v1062 = vld [vmem:[%s995 + $0x50] sm:$0x1]
      %v1063 = vsel %vm261, 0, %v1062
      %1064 = vst [vmem:[%s995 + $0x50] sm:$0x1] %v1063
      %v1065 = vld [vmem:[%s995 + $0x5c] sm:$0x1]
      %v1066 = vsel %vm261, 0, %v1065
      %1067 = vst [vmem:[%s995 + $0x5c] sm:$0x1] %v1066
      %v1068 = vld [vmem:[%s995 + $0x68] sm:$0x1]
      %v1069 = vsel %vm261, 0, %v1068
      %1070 = vst [vmem:[%s995 + $0x68] sm:$0x1] %v1069
      %v1071 = vld [vmem:[%s995 + $0x74] sm:$0x1]
      %v1072 = vsel %vm261, 0, %v1071
      %1073 = vst [vmem:[%s995 + $0x74] sm:$0x1] %v1072
      %v1074 = vld [vmem:[%s995 + $0x80] sm:$0x1]
      %v1075 = vsel %vm261, 0, %v1074
      %1076 = vst [vmem:[%s995 + $0x80] sm:$0x1] %v1075
      %v1077 = vld [vmem:[%s995 + $0x8c] sm:$0x1]
      %v1078 = vsel %vm261, 0, %v1077
      %1079 = vst [vmem:[%s995 + $0x8c] sm:$0x1] %v1078
      %v1080 = vld [vmem:[%s995 + $0x98] sm:$0x1]
      %v1081 = vsel %vm261, 0, %v1080
      %1082 = vst [vmem:[%s995 + $0x98] sm:$0x1] %v1081
      %v1083 = vld [vmem:[%s995 + $0xa4] sm:$0x1]
      %v1084 = vsel %vm261, 0, %v1083
      %1085 = vst [vmem:[%s995 + $0xa4] sm:$0x1] %v1084
      %v1086 = vld [vmem:[%s995 + $0xb0] sm:$0x1]
      %v1087 = vsel %vm261, 0, %v1086
      %1088 = vst [vmem:[%s995 + $0xb0] sm:$0x1] %v1087
      %v1089 = vld [vmem:[%s995 + $0xbc] sm:$0x1]
      %v1090 = vsel %vm261, 0, %v1089
      %1091 = vst [vmem:[%s995 + $0xbc] sm:$0x1] %v1090
      %s1092 = scalar_lea.vmem [#allocation3], 648
      %1093 = vst.msk [vmem:[%s1092] sm:$0xf] %vm199, 0
      %1094 = vst.msk [vmem:[%s1092 + $0x4] sm:$0xf] %vm199, 0
      %1095 = vst.msk [vmem:[%s1092 + $0x8] sm:$0x1] %vm202, 0
      %s1096 = scalar_lea.vmem [#allocation3], 852
      %1097 = vst.msk [vmem:[%s1096] sm:$0xf] %vm199, 0
      %1098 = vst.msk [vmem:[%s1096 + $0x4] sm:$0xf] %vm199, 0
      %1099 = vst.msk [vmem:[%s1096 + $0x8] sm:$0x1] %vm202, 0
      %s1100 = scalar_lea.vmem [#allocation3], 660
      %v1101 = vld [vmem:[%s1100] sm:$0x1]
      %v1102 = vsel %vm211, 0, %v1101
      %1103 = vst [vmem:[%s1100] sm:$0x1] %v1102
      %v1104 = vld [vmem:[%s1100 + $0xc] sm:$0x1]
      %v1105 = vsel %vm211, 0, %v1104
      %1106 = vst [vmem:[%s1100 + $0xc] sm:$0x1] %v1105
      %v1107 = vld [vmem:[%s1100 + $0x18] sm:$0x1]
      %v1108 = vsel %vm211, 0, %v1107
      %1109 = vst [vmem:[%s1100 + $0x18] sm:$0x1] %v1108
      %v1110 = vld [vmem:[%s1100 + $0x24] sm:$0x1]
      %v1111 = vsel %vm211, 0, %v1110
      %1112 = vst [vmem:[%s1100 + $0x24] sm:$0x1] %v1111
      %v1113 = vld [vmem:[%s1100 + $0x30] sm:$0x1]
      %v1114 = vsel %vm211, 0, %v1113
      %1115 = vst [vmem:[%s1100 + $0x30] sm:$0x1] %v1114
      %v1116 = vld [vmem:[%s1100 + $0x3c] sm:$0x1]
      %v1117 = vsel %vm211, 0, %v1116
      %1118 = vst [vmem:[%s1100 + $0x3c] sm:$0x1] %v1117
      %v1119 = vld [vmem:[%s1100 + $0x48] sm:$0x1]
      %v1120 = vsel %vm211, 0, %v1119
      %1121 = vst [vmem:[%s1100 + $0x48] sm:$0x1] %v1120
      %v1122 = vld [vmem:[%s1100 + $0x54] sm:$0x1]
      %v1123 = vsel %vm211, 0, %v1122
      %1124 = vst [vmem:[%s1100 + $0x54] sm:$0x1] %v1123
      %v1125 = vld [vmem:[%s1100 + $0x60] sm:$0x1]
      %v1126 = vsel %vm211, 0, %v1125
      %1127 = vst [vmem:[%s1100 + $0x60] sm:$0x1] %v1126
      %v1128 = vld [vmem:[%s1100 + $0x6c] sm:$0x1]
      %v1129 = vsel %vm211, 0, %v1128
      %1130 = vst [vmem:[%s1100 + $0x6c] sm:$0x1] %v1129
      %v1131 = vld [vmem:[%s1100 + $0x78] sm:$0x1]
      %v1132 = vsel %vm211, 0, %v1131
      %1133 = vst [vmem:[%s1100 + $0x78] sm:$0x1] %v1132
      %v1134 = vld [vmem:[%s1100 + $0x84] sm:$0x1]
      %v1135 = vsel %vm211, 0, %v1134
      %1136 = vst [vmem:[%s1100 + $0x84] sm:$0x1] %v1135
      %v1137 = vld [vmem:[%s1100 + $0x90] sm:$0x1]
      %v1138 = vsel %vm211, 0, %v1137
      %1139 = vst [vmem:[%s1100 + $0x90] sm:$0x1] %v1138
      %v1140 = vld [vmem:[%s1100 + $0x9c] sm:$0x1]
      %v1141 = vsel %vm211, 0, %v1140
      %1142 = vst [vmem:[%s1100 + $0x9c] sm:$0x1] %v1141
      %v1143 = vld [vmem:[%s1100 + $0xa8] sm:$0x1]
      %v1144 = vsel %vm211, 0, %v1143
      %1145 = vst [vmem:[%s1100 + $0xa8] sm:$0x1] %v1144
      %v1146 = vld [vmem:[%s1100 + $0xb4] sm:$0x1]
      %v1147 = vsel %vm211, 0, %v1146
      %1148 = vst [vmem:[%s1100 + $0xb4] sm:$0x1] %v1147
      %v1149 = vld [vmem:[%s1100 + $0x8] sm:$0x1]
      %v1150 = vsel %vm261, 0, %v1149
      %1151 = vst [vmem:[%s1100 + $0x8] sm:$0x1] %v1150
      %v1152 = vld [vmem:[%s1100 + $0x14] sm:$0x1]
      %v1153 = vsel %vm261, 0, %v1152
      %1154 = vst [vmem:[%s1100 + $0x14] sm:$0x1] %v1153
      %v1155 = vld [vmem:[%s1100 + $0x20] sm:$0x1]
      %v1156 = vsel %vm261, 0, %v1155
      %1157 = vst [vmem:[%s1100 + $0x20] sm:$0x1] %v1156
      %v1158 = vld [vmem:[%s1100 + $0x2c] sm:$0x1]
      %v1159 = vsel %vm261, 0, %v1158
      %1160 = vst [vmem:[%s1100 + $0x2c] sm:$0x1] %v1159
      %v1161 = vld [vmem:[%s1100 + $0x38] sm:$0x1]
      %v1162 = vsel %vm261, 0, %v1161
      %1163 = vst [vmem:[%s1100 + $0x38] sm:$0x1] %v1162
      %v1164 = vld [vmem:[%s1100 + $0x44] sm:$0x1]
      %v1165 = vsel %vm261, 0, %v1164
      %1166 = vst [vmem:[%s1100 + $0x44] sm:$0x1] %v1165
      %v1167 = vld [vmem:[%s1100 + $0x50] sm:$0x1]
      %v1168 = vsel %vm261, 0, %v1167
      %1169 = vst [vmem:[%s1100 + $0x50] sm:$0x1] %v1168
      %v1170 = vld [vmem:[%s1100 + $0x5c] sm:$0x1]
      %v1171 = vsel %vm261, 0, %v1170
      %1172 = vst [vmem:[%s1100 + $0x5c] sm:$0x1] %v1171
      %v1173 = vld [vmem:[%s1100 + $0x68] sm:$0x1]
      %v1174 = vsel %vm261, 0, %v1173
      %1175 = vst [vmem:[%s1100 + $0x68] sm:$0x1] %v1174
      %v1176 = vld [vmem:[%s1100 + $0x74] sm:$0x1]
      %v1177 = vsel %vm261, 0, %v1176
      %1178 = vst [vmem:[%s1100 + $0x74] sm:$0x1] %v1177
      %v1179 = vld [vmem:[%s1100 + $0x80] sm:$0x1]
      %v1180 = vsel %vm261, 0, %v1179
      %1181 = vst [vmem:[%s1100 + $0x80] sm:$0x1] %v1180
      %v1182 = vld [vmem:[%s1100 + $0x8c] sm:$0x1]
      %v1183 = vsel %vm261, 0, %v1182
      %1184 = vst [vmem:[%s1100 + $0x8c] sm:$0x1] %v1183
      %v1185 = vld [vmem:[%s1100 + $0x98] sm:$0x1]
      %v1186 = vsel %vm261, 0, %v1185
      %1187 = vst [vmem:[%s1100 + $0x98] sm:$0x1] %v1186
      %v1188 = vld [vmem:[%s1100 + $0xa4] sm:$0x1]
      %v1189 = vsel %vm261, 0, %v1188
      %1190 = vst [vmem:[%s1100 + $0xa4] sm:$0x1] %v1189
      %v1191 = vld [vmem:[%s1100 + $0xb0] sm:$0x1]
      %v1192 = vsel %vm261, 0, %v1191
      %1193 = vst [vmem:[%s1100 + $0xb0] sm:$0x1] %v1192
      %v1194 = vld [vmem:[%s1100 + $0xbc] sm:$0x1]
      %v1195 = vsel %vm261, 0, %v1194
      %1196 = vst [vmem:[%s1100 + $0xbc] sm:$0x1] %v1195
      %v1197 = vld [vmem:[%s3] sm:$0x3f]
      %v1198 = vld [vmem:[#allocation2] sm:$0xf]
      %v1199 = vld [vmem:[#allocation2 + $0x4] sm:$0xf]
      %v1200 = vld [vmem:[#allocation2 + $0xc] sm:$0xf]
      %v1201 = vld [vmem:[#allocation2 + $0x10] sm:$0xf]
      %v1202 = vld [vmem:[#allocation2 + $0x18] sm:$0xf]
      %v1203 = vld [vmem:[#allocation2 + $0x1c] sm:$0xf]
      %v1204 = vld [vmem:[#allocation2 + $0x24] sm:$0xf]
      %v1205 = vld [vmem:[#allocation2 + $0x28] sm:$0xf]
      %v1206 = vld [vmem:[#allocation2 + $0x30] sm:$0xf]
      %v1207 = vld [vmem:[#allocation2 + $0x34] sm:$0xf]
      %v1208 = vld [vmem:[#allocation2 + $0x3c] sm:$0xf]
      %v1209 = vld [vmem:[#allocation2 + $0x40] sm:$0xf]
      %v1210 = vld [vmem:[#allocation2 + $0x48] sm:$0xf]
      %v1211 = vld [vmem:[#allocation2 + $0x4c] sm:$0xf]
      %v1212 = vld [vmem:[#allocation2 + $0x54] sm:$0xf]
      %v1213 = vld [vmem:[#allocation2 + $0x58] sm:$0xf]
      %v1214 = vld [vmem:[#allocation2 + $0x60] sm:$0xf]
      %v1215 = vld [vmem:[#allocation2 + $0x64] sm:$0xf]
      %v1216 = vld [vmem:[#allocation2 + $0x6c] sm:$0xf]
      %v1217 = vld [vmem:[#allocation2 + $0x70] sm:$0xf]
      %v1218 = vld [vmem:[#allocation2 + $0x78] sm:$0xf]
      %v1219 = vld [vmem:[#allocation2 + $0x7c] sm:$0xf]
      %v1220 = vld [vmem:[#allocation2 + $0x84] sm:$0xf]
      %v1221 = vld [vmem:[#allocation2 + $0x88] sm:$0xf]
      %v1222 = vld [vmem:[#allocation2 + $0x90] sm:$0xf]
      %v1223 = vld [vmem:[#allocation2 + $0x94] sm:$0xf]
      %v1224 = vld [vmem:[#allocation2 + $0x9c] sm:$0xf]
      %v1225 = vld [vmem:[#allocation2 + $0xa0] sm:$0xf]
      %v1226 = vld [vmem:[#allocation2 + $0xa8] sm:$0xf]
      %v1227 = vld [vmem:[#allocation2 + $0xac] sm:$0xf]
      %v1228 = vld [vmem:[#allocation2 + $0xb4] sm:$0xf]
      %v1229 = vld [vmem:[#allocation2 + $0xb8] sm:$0xf]
      %v1230 = vld [vmem:[#allocation2 + $0x8] sm:$0x1]
      %v1231 = vld [vmem:[#allocation2 + $0x14] sm:$0x1]
      %v1232 = vld [vmem:[#allocation2 + $0x20] sm:$0x1]
      %v1233 = vld [vmem:[#allocation2 + $0x2c] sm:$0x1]
      %v1234 = vld [vmem:[#allocation2 + $0x38] sm:$0x1]
      %v1235 = vld [vmem:[#allocation2 + $0x44] sm:$0x1]
      %v1236 = vld [vmem:[#allocation2 + $0x50] sm:$0x1]
      %v1237 = vld [vmem:[#allocation2 + $0x5c] sm:$0x1]
      %v1238 = vld [vmem:[#allocation2 + $0x68] sm:$0x1]
      %v1239 = vld [vmem:[#allocation2 + $0x74] sm:$0x1]
      %v1240 = vld [vmem:[#allocation2 + $0x80] sm:$0x1]
      %v1241 = vld [vmem:[#allocation2 + $0x8c] sm:$0x1]
      %v1242 = vld [vmem:[#allocation2 + $0x98] sm:$0x1]
      %v1243 = vld [vmem:[#allocation2 + $0xa4] sm:$0x1]
      %v1244 = vld [vmem:[#allocation2 + $0xb0] sm:$0x1]
      %v1245 = vld [vmem:[#allocation2 + $0xbc] sm:$0x1]
      %vm1246 = vsmask.f32 3328
      %vm1247 = vsmask.f32 7440
      %vm1248 = vmor %vm1246, %vm1247
      %v1250 = vshrl.u32 %v1198, 16
      %v1252 = vrot.slane %v1250, 4
      %v1253 = vshll.u32 %v1198, 16
      %v1255 = vrot.slane %v1253, 5
      %v1256 = vor.u32 %v1252, %v1255
      %v1257 = vrot.slane %v1256, 4
      %v1259 = vshll.u32 %v1199, 16
      %v1261 = vrot.slane %v1259, 5
      %v1262 = vsel %vm1248, %v1257, %v1261
      %v1263 = vshrl.u32 %v1199, 16
      %v1265 = vrot.slane %v1263, 4
      %v1266 = vor.u32 %v1265, %v1261
      %v1267 = vrot.slane %v1266, 4
      %v1269 = vshll.u32 %v1230, 16
      %v1271 = vrot.slane %v1269, 5
      %v1272 = vsel %vm1248, %v1267, %v1271
      %v1274 = vshrl.u32 %v1200, 16
      %v1276 = vrot.slane %v1274, 4
      %v1277 = vshll.u32 %v1200, 16
      %v1279 = vrot.slane %v1277, 5
      %v1280 = vor.u32 %v1276, %v1279
      %v1281 = vrot.slane %v1280, 4
      %v1283 = vshll.u32 %v1201, 16
      %v1285 = vrot.slane %v1283, 5
      %v1286 = vsel %vm1248, %v1281, %v1285
      %v1287 = vshrl.u32 %v1201, 16
      %v1289 = vrot.slane %v1287, 4
      %v1290 = vor.u32 %v1289, %v1285
      %v1291 = vrot.slane %v1290, 4
      %v1293 = vshll.u32 %v1231, 16
      %v1295 = vrot.slane %v1293, 5
      %v1296 = vsel %vm1248, %v1291, %v1295
      %v1298 = vshrl.u32 %v1202, 16
      %v1300 = vrot.slane %v1298, 4
      %v1301 = vshll.u32 %v1202, 16
      %v1303 = vrot.slane %v1301, 5
      %v1304 = vor.u32 %v1300, %v1303
      %v1305 = vrot.slane %v1304, 4
      %v1307 = vshll.u32 %v1203, 16
      %v1309 = vrot.slane %v1307, 5
      %v1310 = vsel %vm1248, %v1305, %v1309
      %v1311 = vshrl.u32 %v1203, 16
      %v1313 = vrot.slane %v1311, 4
      %v1314 = vor.u32 %v1313, %v1309
      %v1315 = vrot.slane %v1314, 4
      %v1317 = vshll.u32 %v1232, 16
      %v1319 = vrot.slane %v1317, 5
      %v1320 = vsel %vm1248, %v1315, %v1319
      %v1322 = vshrl.u32 %v1204, 16
      %v1324 = vrot.slane %v1322, 4
      %v1325 = vshll.u32 %v1204, 16
      %v1327 = vrot.slane %v1325, 5
      %v1328 = vor.u32 %v1324, %v1327
      %v1329 = vrot.slane %v1328, 4
      %v1331 = vshll.u32 %v1205, 16
      %v1333 = vrot.slane %v1331, 5
      %v1334 = vsel %vm1248, %v1329, %v1333
      %v1335 = vshrl.u32 %v1205, 16
      %v1337 = vrot.slane %v1335, 4
      %v1338 = vor.u32 %v1337, %v1333
      %v1339 = vrot.slane %v1338, 4
      %v1341 = vshll.u32 %v1233, 16
      %v1343 = vrot.slane %v1341, 5
      %v1344 = vsel %vm1248, %v1339, %v1343
      %v1346 = vshrl.u32 %v1206, 16
      %v1348 = vrot.slane %v1346, 4
      %v1349 = vshll.u32 %v1206, 16
      %v1351 = vrot.slane %v1349, 5
      %v1352 = vor.u32 %v1348, %v1351
      %v1353 = vrot.slane %v1352, 4
      %v1355 = vshll.u32 %v1207, 16
      %v1357 = vrot.slane %v1355, 5
      %v1358 = vsel %vm1248, %v1353, %v1357
      %v1359 = vshrl.u32 %v1207, 16
      %v1361 = vrot.slane %v1359, 4
      %v1362 = vor.u32 %v1361, %v1357
      %v1363 = vrot.slane %v1362, 4
      %v1365 = vshll.u32 %v1234, 16
      %v1367 = vrot.slane %v1365, 5
      %v1368 = vsel %vm1248, %v1363, %v1367
      %v1370 = vshrl.u32 %v1208, 16
      %v1372 = vrot.slane %v1370, 4
      %v1373 = vshll.u32 %v1208, 16
      %v1375 = vrot.slane %v1373, 5
      %v1376 = vor.u32 %v1372, %v1375
      %v1377 = vrot.slane %v1376, 4
      %v1379 = vshll.u32 %v1209, 16
      %v1381 = vrot.slane %v1379, 5
      %v1382 = vsel %vm1248, %v1377, %v1381
      %v1383 = vshrl.u32 %v1209, 16
      %v1385 = vrot.slane %v1383, 4
      %v1386 = vor.u32 %v1385, %v1381
      %v1387 = vrot.slane %v1386, 4
      %v1389 = vshll.u32 %v1235, 16
      %v1391 = vrot.slane %v1389, 5
      %v1392 = vsel %vm1248, %v1387, %v1391
      %v1394 = vshrl.u32 %v1210, 16
      %v1396 = vrot.slane %v1394, 4
      %v1397 = vshll.u32 %v1210, 16
      %v1399 = vrot.slane %v1397, 5
      %v1400 = vor.u32 %v1396, %v1399
      %v1401 = vrot.slane %v1400, 4
      %v1403 = vshll.u32 %v1211, 16
      %v1405 = vrot.slane %v1403, 5
      %v1406 = vsel %vm1248, %v1401, %v1405
      %v1407 = vshrl.u32 %v1211, 16
      %v1409 = vrot.slane %v1407, 4
      %v1410 = vor.u32 %v1409, %v1405
      %v1411 = vrot.slane %v1410, 4
      %v1413 = vshll.u32 %v1236, 16
      %v1415 = vrot.slane %v1413, 5
      %v1416 = vsel %vm1248, %v1411, %v1415
      %v1418 = vshrl.u32 %v1212, 16
      %v1420 = vrot.slane %v1418, 4
      %v1421 = vshll.u32 %v1212, 16
      %v1423 = vrot.slane %v1421, 5
      %v1424 = vor.u32 %v1420, %v1423
      %v1425 = vrot.slane %v1424, 4
      %v1427 = vshll.u32 %v1213, 16
      %v1429 = vrot.slane %v1427, 5
      %v1430 = vsel %vm1248, %v1425, %v1429
      %v1431 = vshrl.u32 %v1213, 16
      %v1433 = vrot.slane %v1431, 4
      %v1434 = vor.u32 %v1433, %v1429
      %v1435 = vrot.slane %v1434, 4
      %v1437 = vshll.u32 %v1237, 16
      %v1439 = vrot.slane %v1437, 5
      %v1440 = vsel %vm1248, %v1435, %v1439
      %v1442 = vshrl.u32 %v1214, 16
      %v1444 = vrot.slane %v1442, 4
      %v1445 = vshll.u32 %v1214, 16
      %v1447 = vrot.slane %v1445, 5
      %v1448 = vor.u32 %v1444, %v1447
      %v1449 = vrot.slane %v1448, 4
      %v1451 = vshll.u32 %v1215, 16
      %v1453 = vrot.slane %v1451, 5
      %v1454 = vsel %vm1248, %v1449, %v1453
      %v1455 = vshrl.u32 %v1215, 16
      %v1457 = vrot.slane %v1455, 4
      %v1458 = vor.u32 %v1457, %v1453
      %v1459 = vrot.slane %v1458, 4
      %v1461 = vshll.u32 %v1238, 16
      %v1463 = vrot.slane %v1461, 5
      %v1464 = vsel %vm1248, %v1459, %v1463
      %v1466 = vshrl.u32 %v1216, 16
      %v1468 = vrot.slane %v1466, 4
      %v1469 = vshll.u32 %v1216, 16
      %v1471 = vrot.slane %v1469, 5
      %v1472 = vor.u32 %v1468, %v1471
      %v1473 = vrot.slane %v1472, 4
      %v1475 = vshll.u32 %v1217, 16
      %v1477 = vrot.slane %v1475, 5
      %v1478 = vsel %vm1248, %v1473, %v1477
      %v1479 = vshrl.u32 %v1217, 16
      %v1481 = vrot.slane %v1479, 4
      %v1482 = vor.u32 %v1481, %v1477
      %v1483 = vrot.slane %v1482, 4
      %v1485 = vshll.u32 %v1239, 16
      %v1487 = vrot.slane %v1485, 5
      %v1488 = vsel %vm1248, %v1483, %v1487
      %v1490 = vshrl.u32 %v1218, 16
      %v1492 = vrot.slane %v1490, 4
      %v1493 = vshll.u32 %v1218, 16
      %v1495 = vrot.slane %v1493, 5
      %v1496 = vor.u32 %v1492, %v1495
      %v1497 = vrot.slane %v1496, 4
      %v1499 = vshll.u32 %v1219, 16
      %v1501 = vrot.slane %v1499, 5
      %v1502 = vsel %vm1248, %v1497, %v1501
      %v1503 = vshrl.u32 %v1219, 16
      %v1505 = vrot.slane %v1503, 4
      %v1506 = vor.u32 %v1505, %v1501
      %v1507 = vrot.slane %v1506, 4
      %v1509 = vshll.u32 %v1240, 16
      %v1511 = vrot.slane %v1509, 5
      %v1512 = vsel %vm1248, %v1507, %v1511
      %v1514 = vshrl.u32 %v1220, 16
      %v1516 = vrot.slane %v1514, 4
      %v1517 = vshll.u32 %v1220, 16
      %v1519 = vrot.slane %v1517, 5
      %v1520 = vor.u32 %v1516, %v1519
      %v1521 = vrot.slane %v1520, 4
      %v1523 = vshll.u32 %v1221, 16
      %v1525 = vrot.slane %v1523, 5
      %v1526 = vsel %vm1248, %v1521, %v1525
      %v1527 = vshrl.u32 %v1221, 16
      %v1529 = vrot.slane %v1527, 4
      %v1530 = vor.u32 %v1529, %v1525
      %v1531 = vrot.slane %v1530, 4
      %v1533 = vshll.u32 %v1241, 16
      %v1535 = vrot.slane %v1533, 5
      %v1536 = vsel %vm1248, %v1531, %v1535
      %v1538 = vshrl.u32 %v1222, 16
      %v1540 = vrot.slane %v1538, 4
      %v1541 = vshll.u32 %v1222, 16
      %v1543 = vrot.slane %v1541, 5
      %v1544 = vor.u32 %v1540, %v1543
      %v1545 = vrot.slane %v1544, 4
      %v1547 = vshll.u32 %v1223, 16
      %v1549 = vrot.slane %v1547, 5
      %v1550 = vsel %vm1248, %v1545, %v1549
      %v1551 = vshrl.u32 %v1223, 16
      %v1553 = vrot.slane %v1551, 4
      %v1554 = vor.u32 %v1553, %v1549
      %v1555 = vrot.slane %v1554, 4
      %v1557 = vshll.u32 %v1242, 16
      %v1559 = vrot.slane %v1557, 5
      %v1560 = vsel %vm1248, %v1555, %v1559
      %v1562 = vshrl.u32 %v1224, 16
      %v1564 = vrot.slane %v1562, 4
      %v1565 = vshll.u32 %v1224, 16
      %v1567 = vrot.slane %v1565, 5
      %v1568 = vor.u32 %v1564, %v1567
      %v1569 = vrot.slane %v1568, 4
      %v1571 = vshll.u32 %v1225, 16
      %v1573 = vrot.slane %v1571, 5
      %v1574 = vsel %vm1248, %v1569, %v1573
      %v1575 = vshrl.u32 %v1225, 16
      %v1577 = vrot.slane %v1575, 4
      %v1578 = vor.u32 %v1577, %v1573
      %v1579 = vrot.slane %v1578, 4
      %v1581 = vshll.u32 %v1243, 16
      %v1583 = vrot.slane %v1581, 5
      %v1584 = vsel %vm1248, %v1579, %v1583
      %v1586 = vshrl.u32 %v1226, 16
      %v1588 = vrot.slane %v1586, 4
      %v1589 = vshll.u32 %v1226, 16
      %v1591 = vrot.slane %v1589, 5
      %v1592 = vor.u32 %v1588, %v1591
      %v1593 = vrot.slane %v1592, 4
      %v1595 = vshll.u32 %v1227, 16
      %v1597 = vrot.slane %v1595, 5
      %v1598 = vsel %vm1248, %v1593, %v1597
      %v1599 = vshrl.u32 %v1227, 16
      %v1601 = vrot.slane %v1599, 4
      %v1602 = vor.u32 %v1601, %v1597
      %v1603 = vrot.slane %v1602, 4
      %v1605 = vshll.u32 %v1244, 16
      %v1607 = vrot.slane %v1605, 5
      %v1608 = vsel %vm1248, %v1603, %v1607
      %v1610 = vshrl.u32 %v1228, 16
      %v1612 = vrot.slane %v1610, 4
      %v1613 = vshll.u32 %v1228, 16
      %v1615 = vrot.slane %v1613, 5
      %v1616 = vor.u32 %v1612, %v1615
      %v1617 = vrot.slane %v1616, 4
      %v1619 = vshll.u32 %v1229, 16
      %v1621 = vrot.slane %v1619, 5
      %v1622 = vsel %vm1248, %v1617, %v1621
      %v1623 = vshrl.u32 %v1229, 16
      %v1625 = vrot.slane %v1623, 4
      %v1626 = vor.u32 %v1625, %v1621
      %v1627 = vrot.slane %v1626, 4
      %v1629 = vshll.u32 %v1245, 16
      %v1631 = vrot.slane %v1629, 5
      %v1632 = vsel %vm1248, %v1627, %v1631
      %v1633 = vld [vmem:[#allocation2] sm:$0xe]
      %v1634 = vld [vmem:[#allocation2 + $0xc] sm:$0xe]
      %v1635 = vld [vmem:[#allocation2 + $0x18] sm:$0xe]
      %v1636 = vld [vmem:[#allocation2 + $0x24] sm:$0xe]
      %v1637 = vld [vmem:[#allocation2 + $0x30] sm:$0xe]
      %v1638 = vld [vmem:[#allocation2 + $0x3c] sm:$0xe]
      %v1639 = vld [vmem:[#allocation2 + $0x48] sm:$0xe]
      %v1640 = vld [vmem:[#allocation2 + $0x54] sm:$0xe]
      %v1641 = vld [vmem:[#allocation2 + $0x60] sm:$0xe]
      %v1642 = vld [vmem:[#allocation2 + $0x6c] sm:$0xe]
      %v1643 = vld [vmem:[#allocation2 + $0x78] sm:$0xe]
      %v1644 = vld [vmem:[#allocation2 + $0x84] sm:$0xe]
      %v1645 = vld [vmem:[#allocation2 + $0x90] sm:$0xe]
      %v1646 = vld [vmem:[#allocation2 + $0x9c] sm:$0xe]
      %v1647 = vld [vmem:[#allocation2 + $0xa8] sm:$0xe]
      %v1648 = vld [vmem:[#allocation2 + $0xb4] sm:$0xe]
      %vm1697 = vcmask 1042432
      %vm1698 = vcmask 1046532
      %vm1699 = vmor %vm1697, %vm1698
      %v1700 = vrot.slane %v1633, 5
      %v1701 = vrot.slane %v1700, 4
      %v1702 = vrot.slane %v1199, 5
      %v1703 = vsel %vm1699, %v1701, %v1702
      %v1704 = vrot.slane %v1702, 4
      %v1705 = vrot.slane %v1230, 5
      %v1706 = vsel %vm1699, %v1704, %v1705
      %v1707 = vrot.slane %v1634, 5
      %v1708 = vrot.slane %v1707, 4
      %v1709 = vrot.slane %v1201, 5
      %v1710 = vsel %vm1699, %v1708, %v1709
      %v1711 = vrot.slane %v1709, 4
      %v1712 = vrot.slane %v1231, 5
      %v1713 = vsel %vm1699, %v1711, %v1712
      %v1714 = vrot.slane %v1635, 5
      %v1715 = vrot.slane %v1714, 4
      %v1716 = vrot.slane %v1203, 5
      %v1717 = vsel %vm1699, %v1715, %v1716
      %v1718 = vrot.slane %v1716, 4
      %v1719 = vrot.slane %v1232, 5
      %v1720 = vsel %vm1699, %v1718, %v1719
      %v1721 = vrot.slane %v1636, 5
      %v1722 = vrot.slane %v1721, 4
      %v1723 = vrot.slane %v1205, 5
      %v1724 = vsel %vm1699, %v1722, %v1723
      %v1725 = vrot.slane %v1723, 4
      %v1726 = vrot.slane %v1233, 5
      %v1727 = vsel %vm1699, %v1725, %v1726
      %v1728 = vrot.slane %v1637, 5
      %v1729 = vrot.slane %v1728, 4
      %v1730 = vrot.slane %v1207, 5
      %v1731 = vsel %vm1699, %v1729, %v1730
      %v1732 = vrot.slane %v1730, 4
      %v1733 = vrot.slane %v1234, 5
      %v1734 = vsel %vm1699, %v1732, %v1733
      %v1735 = vrot.slane %v1638, 5
      %v1736 = vrot.slane %v1735, 4
      %v1737 = vrot.slane %v1209, 5
      %v1738 = vsel %vm1699, %v1736, %v1737
      %v1739 = vrot.slane %v1737, 4
      %v1740 = vrot.slane %v1235, 5
      %v1741 = vsel %vm1699, %v1739, %v1740
      %v1742 = vrot.slane %v1639, 5
      %v1743 = vrot.slane %v1742, 4
      %v1744 = vrot.slane %v1211, 5
      %v1745 = vsel %vm1699, %v1743, %v1744
      %v1746 = vrot.slane %v1744, 4
      %v1747 = vrot.slane %v1236, 5
      %v1748 = vsel %vm1699, %v1746, %v1747
      %v1749 = vrot.slane %v1640, 5
      %v1750 = vrot.slane %v1749, 4
      %v1751 = vrot.slane %v1213, 5
      %v1752 = vsel %vm1699, %v1750, %v1751
      %v1753 = vrot.slane %v1751, 4
      %v1754 = vrot.slane %v1237, 5
      %v1755 = vsel %vm1699, %v1753, %v1754
      %v1756 = vrot.slane %v1641, 5
      %v1757 = vrot.slane %v1756, 4
      %v1758 = vrot.slane %v1215, 5
      %v1759 = vsel %vm1699, %v1757, %v1758
      %v1760 = vrot.slane %v1758, 4
      %v1761 = vrot.slane %v1238, 5
      %v1762 = vsel %vm1699, %v1760, %v1761
      %v1763 = vrot.slane %v1642, 5
      %v1764 = vrot.slane %v1763, 4
      %v1765 = vrot.slane %v1217, 5
      %v1766 = vsel %vm1699, %v1764, %v1765
      %v1767 = vrot.slane %v1765, 4
      %v1768 = vrot.slane %v1239, 5
      %v1769 = vsel %vm1699, %v1767, %v1768
      %v1770 = vrot.slane %v1643, 5
      %v1771 = vrot.slane %v1770, 4
      %v1772 = vrot.slane %v1219, 5
      %v1773 = vsel %vm1699, %v1771, %v1772
      %v1774 = vrot.slane %v1772, 4
      %v1775 = vrot.slane %v1240, 5
      %v1776 = vsel %vm1699, %v1774, %v1775
      %v1777 = vrot.slane %v1644, 5
      %v1778 = vrot.slane %v1777, 4
      %v1779 = vrot.slane %v1221, 5
      %v1780 = vsel %vm1699, %v1778, %v1779
      %v1781 = vrot.slane %v1779, 4
      %v1782 = vrot.slane %v1241, 5
      %v1783 = vsel %vm1699, %v1781, %v1782
      %v1784 = vrot.slane %v1645, 5
      %v1785 = vrot.slane %v1784, 4
      %v1786 = vrot.slane %v1223, 5
      %v1787 = vsel %vm1699, %v1785, %v1786
      %v1788 = vrot.slane %v1786, 4
      %v1789 = vrot.slane %v1242, 5
      %v1790 = vsel %vm1699, %v1788, %v1789
      %v1791 = vrot.slane %v1646, 5
      %v1792 = vrot.slane %v1791, 4
      %v1793 = vrot.slane %v1225, 5
      %v1794 = vsel %vm1699, %v1792, %v1793
      %v1795 = vrot.slane %v1793, 4
      %v1796 = vrot.slane %v1243, 5
      %v1797 = vsel %vm1699, %v1795, %v1796
      %v1798 = vrot.slane %v1647, 5
      %v1799 = vrot.slane %v1798, 4
      %v1800 = vrot.slane %v1227, 5
      %v1801 = vsel %vm1699, %v1799, %v1800
      %v1802 = vrot.slane %v1800, 4
      %v1803 = vrot.slane %v1244, 5
      %v1804 = vsel %vm1699, %v1802, %v1803
      %v1805 = vrot.slane %v1648, 5
      %v1806 = vrot.slane %v1805, 4
      %v1807 = vrot.slane %v1229, 5
      %v1808 = vsel %vm1699, %v1806, %v1807
      %v1809 = vrot.slane %v1807, 4
      %v1810 = vrot.slane %v1245, 5
      %v1811 = vsel %vm1699, %v1809, %v1810
      %v1812 = vld [vmem:[%s208] sm:$0xf]
      %v1813 = vld [vmem:[%s208 + $0x4] sm:$0xf]
      %v1814 = vld [vmem:[%s208 + $0xc] sm:$0xf]
      %v1815 = vld [vmem:[%s208 + $0x10] sm:$0xf]
      %v1816 = vld [vmem:[%s208 + $0x18] sm:$0xf]
      %v1817 = vld [vmem:[%s208 + $0x1c] sm:$0xf]
      %v1818 = vld [vmem:[%s208 + $0x24] sm:$0xf]
      %v1819 = vld [vmem:[%s208 + $0x28] sm:$0xf]
      %v1820 = vld [vmem:[%s208 + $0x30] sm:$0xf]
      %v1821 = vld [vmem:[%s208 + $0x34] sm:$0xf]
      %v1822 = vld [vmem:[%s208 + $0x3c] sm:$0xf]
      %v1823 = vld [vmem:[%s208 + $0x40] sm:$0xf]
      %v1824 = vld [vmem:[%s208 + $0x48] sm:$0xf]
      %v1825 = vld [vmem:[%s208 + $0x4c] sm:$0xf]
      %v1826 = vld [vmem:[%s208 + $0x54] sm:$0xf]
      %v1827 = vld [vmem:[%s208 + $0x58] sm:$0xf]
      %v1828 = vld [vmem:[%s208 + $0x60] sm:$0xf]
      %v1829 = vld [vmem:[%s208 + $0x64] sm:$0xf]
      %v1830 = vld [vmem:[%s208 + $0x6c] sm:$0xf]
      %v1831 = vld [vmem:[%s208 + $0x70] sm:$0xf]
      %v1832 = vld [vmem:[%s208 + $0x78] sm:$0xf]
      %v1833 = vld [vmem:[%s208 + $0x7c] sm:$0xf]
      %v1834 = vld [vmem:[%s208 + $0x84] sm:$0xf]
      %v1835 = vld [vmem:[%s208 + $0x88] sm:$0xf]
      %v1836 = vld [vmem:[%s208 + $0x90] sm:$0xf]
      %v1837 = vld [vmem:[%s208 + $0x94] sm:$0xf]
      %v1838 = vld [vmem:[%s208 + $0x9c] sm:$0xf]
      %v1839 = vld [vmem:[%s208 + $0xa0] sm:$0xf]
      %v1840 = vld [vmem:[%s208 + $0xa8] sm:$0xf]
      %v1841 = vld [vmem:[%s208 + $0xac] sm:$0xf]
      %v1842 = vld [vmem:[%s208 + $0xb4] sm:$0xf]
      %v1843 = vld [vmem:[%s208 + $0xb8] sm:$0xf]
      %v1844 = vld [vmem:[%s208 + $0x8] sm:$0x1]
      %v1845 = vld [vmem:[%s208 + $0x14] sm:$0x1]
      %v1846 = vld [vmem:[%s208 + $0x20] sm:$0x1]
      %v1847 = vld [vmem:[%s208 + $0x2c] sm:$0x1]
      %v1848 = vld [vmem:[%s208 + $0x38] sm:$0x1]
      %v1849 = vld [vmem:[%s208 + $0x44] sm:$0x1]
      %v1850 = vld [vmem:[%s208 + $0x50] sm:$0x1]
      %v1851 = vld [vmem:[%s208 + $0x5c] sm:$0x1]
      %v1852 = vld [vmem:[%s208 + $0x68] sm:$0x1]
      %v1853 = vld [vmem:[%s208 + $0x74] sm:$0x1]
      %v1854 = vld [vmem:[%s208 + $0x80] sm:$0x1]
      %v1855 = vld [vmem:[%s208 + $0x8c] sm:$0x1]
      %v1856 = vld [vmem:[%s208 + $0x98] sm:$0x1]
      %v1857 = vld [vmem:[%s208 + $0xa4] sm:$0x1]
      %v1858 = vld [vmem:[%s208 + $0xb0] sm:$0x1]
      %v1859 = vld [vmem:[%s208 + $0xbc] sm:$0x1]
      %v1861 = vshrl.u32 %v1812, 16
      %v1863 = vrot.slane %v1861, 4
      %v1864 = vshll.u32 %v1812, 16
      %v1866 = vrot.slane %v1864, 5
      %v1867 = vor.u32 %v1863, %v1866
      %v1868 = vrot.slane %v1867, 4
      %v1870 = vshll.u32 %v1813, 16
      %v1872 = vrot.slane %v1870, 5
      %v1873 = vsel %vm1248, %v1868, %v1872
      %v1874 = vshrl.u32 %v1813, 16
      %v1876 = vrot.slane %v1874, 4
      %v1877 = vor.u32 %v1876, %v1872
      %v1878 = vrot.slane %v1877, 4
      %v1880 = vshll.u32 %v1844, 16
      %v1882 = vrot.slane %v1880, 5
      %v1883 = vsel %vm1248, %v1878, %v1882
      %v1885 = vshrl.u32 %v1814, 16
      %v1887 = vrot.slane %v1885, 4
      %v1888 = vshll.u32 %v1814, 16
      %v1890 = vrot.slane %v1888, 5
      %v1891 = vor.u32 %v1887, %v1890
      %v1892 = vrot.slane %v1891, 4
      %v1894 = vshll.u32 %v1815, 16
      %v1896 = vrot.slane %v1894, 5
      %v1897 = vsel %vm1248, %v1892, %v1896
      %v1898 = vshrl.u32 %v1815, 16
      %v1900 = vrot.slane %v1898, 4
      %v1901 = vor.u32 %v1900, %v1896
      %v1902 = vrot.slane %v1901, 4
      %v1904 = vshll.u32 %v1845, 16
      %v1906 = vrot.slane %v1904, 5
      %v1907 = vsel %vm1248, %v1902, %v1906
      %v1909 = vshrl.u32 %v1816, 16
      %v1911 = vrot.slane %v1909, 4
      %v1912 = vshll.u32 %v1816, 16
      %v1914 = vrot.slane %v1912, 5
      %v1915 = vor.u32 %v1911, %v1914
      %v1916 = vrot.slane %v1915, 4
      %v1918 = vshll.u32 %v1817, 16
      %v1920 = vrot.slane %v1918, 5
      %v1921 = vsel %vm1248, %v1916, %v1920
      %v1922 = vshrl.u32 %v1817, 16
      %v1924 = vrot.slane %v1922, 4
      %v1925 = vor.u32 %v1924, %v1920
      %v1926 = vrot.slane %v1925, 4
      %v1928 = vshll.u32 %v1846, 16
      %v1930 = vrot.slane %v1928, 5
      %v1931 = vsel %vm1248, %v1926, %v1930
      %v1933 = vshrl.u32 %v1818, 16
      %v1935 = vrot.slane %v1933, 4
      %v1936 = vshll.u32 %v1818, 16
      %v1938 = vrot.slane %v1936, 5
      %v1939 = vor.u32 %v1935, %v1938
      %v1940 = vrot.slane %v1939, 4
      %v1942 = vshll.u32 %v1819, 16
      %v1944 = vrot.slane %v1942, 5
      %v1945 = vsel %vm1248, %v1940, %v1944
      %v1946 = vshrl.u32 %v1819, 16
      %v1948 = vrot.slane %v1946, 4
      %v1949 = vor.u32 %v1948, %v1944
      %v1950 = vrot.slane %v1949, 4
      %v1952 = vshll.u32 %v1847, 16
      %v1954 = vrot.slane %v1952, 5
      %v1955 = vsel %vm1248, %v1950, %v1954
      %v1957 = vshrl.u32 %v1820, 16
      %v1959 = vrot.slane %v1957, 4
      %v1960 = vshll.u32 %v1820, 16
      %v1962 = vrot.slane %v1960, 5
      %v1963 = vor.u32 %v1959, %v1962
      %v1964 = vrot.slane %v1963, 4
      %v1966 = vshll.u32 %v1821, 16
      %v1968 = vrot.slane %v1966, 5
      %v1969 = vsel %vm1248, %v1964, %v1968
      %v1970 = vshrl.u32 %v1821, 16
      %v1972 = vrot.slane %v1970, 4
      %v1973 = vor.u32 %v1972, %v1968
      %v1974 = vrot.slane %v1973, 4
      %v1976 = vshll.u32 %v1848, 16
      %v1978 = vrot.slane %v1976, 5
      %v1979 = vsel %vm1248, %v1974, %v1978
      %v1981 = vshrl.u32 %v1822, 16
      %v1983 = vrot.slane %v1981, 4
      %v1984 = vshll.u32 %v1822, 16
      %v1986 = vrot.slane %v1984, 5
      %v1987 = vor.u32 %v1983, %v1986
      %v1988 = vrot.slane %v1987, 4
      %v1990 = vshll.u32 %v1823, 16
      %v1992 = vrot.slane %v1990, 5
      %v1993 = vsel %vm1248, %v1988, %v1992
      %v1994 = vshrl.u32 %v1823, 16
      %v1996 = vrot.slane %v1994, 4
      %v1997 = vor.u32 %v1996, %v1992
      %v1998 = vrot.slane %v1997, 4
      %v2000 = vshll.u32 %v1849, 16
      %v2002 = vrot.slane %v2000, 5
      %v2003 = vsel %vm1248, %v1998, %v2002
      %v2005 = vshrl.u32 %v1824, 16
      %v2007 = vrot.slane %v2005, 4
      %v2008 = vshll.u32 %v1824, 16
      %v2010 = vrot.slane %v2008, 5
      %v2011 = vor.u32 %v2007, %v2010
      %v2012 = vrot.slane %v2011, 4
      %v2014 = vshll.u32 %v1825, 16
      %v2016 = vrot.slane %v2014, 5
      %v2017 = vsel %vm1248, %v2012, %v2016
      %v2018 = vshrl.u32 %v1825, 16
      %v2020 = vrot.slane %v2018, 4
      %v2021 = vor.u32 %v2020, %v2016
      %v2022 = vrot.slane %v2021, 4
      %v2024 = vshll.u32 %v1850, 16
      %v2026 = vrot.slane %v2024, 5
      %v2027 = vsel %vm1248, %v2022, %v2026
      %v2029 = vshrl.u32 %v1826, 16
      %v2031 = vrot.slane %v2029, 4
      %v2032 = vshll.u32 %v1826, 16
      %v2034 = vrot.slane %v2032, 5
      %v2035 = vor.u32 %v2031, %v2034
      %v2036 = vrot.slane %v2035, 4
      %v2038 = vshll.u32 %v1827, 16
      %v2040 = vrot.slane %v2038, 5
      %v2041 = vsel %vm1248, %v2036, %v2040
      %v2042 = vshrl.u32 %v1827, 16
      %v2044 = vrot.slane %v2042, 4
      %v2045 = vor.u32 %v2044, %v2040
      %v2046 = vrot.slane %v2045, 4
      %v2048 = vshll.u32 %v1851, 16
      %v2050 = vrot.slane %v2048, 5
      %v2051 = vsel %vm1248, %v2046, %v2050
      %v2053 = vshrl.u32 %v1828, 16
      %v2055 = vrot.slane %v2053, 4
      %v2056 = vshll.u32 %v1828, 16
      %v2058 = vrot.slane %v2056, 5
      %v2059 = vor.u32 %v2055, %v2058
      %v2060 = vrot.slane %v2059, 4
      %v2062 = vshll.u32 %v1829, 16
      %v2064 = vrot.slane %v2062, 5
      %v2065 = vsel %vm1248, %v2060, %v2064
      %v2066 = vshrl.u32 %v1829, 16
      %v2068 = vrot.slane %v2066, 4
      %v2069 = vor.u32 %v2068, %v2064
      %v2070 = vrot.slane %v2069, 4
      %v2072 = vshll.u32 %v1852, 16
      %v2074 = vrot.slane %v2072, 5
      %v2075 = vsel %vm1248, %v2070, %v2074
      %v2077 = vshrl.u32 %v1830, 16
      %v2079 = vrot.slane %v2077, 4
      %v2080 = vshll.u32 %v1830, 16
      %v2082 = vrot.slane %v2080, 5
      %v2083 = vor.u32 %v2079, %v2082
      %v2084 = vrot.slane %v2083, 4
      %v2086 = vshll.u32 %v1831, 16
      %v2088 = vrot.slane %v2086, 5
      %v2089 = vsel %vm1248, %v2084, %v2088
      %v2090 = vshrl.u32 %v1831, 16
      %v2092 = vrot.slane %v2090, 4
      %v2093 = vor.u32 %v2092, %v2088
      %v2094 = vrot.slane %v2093, 4
      %v2096 = vshll.u32 %v1853, 16
      %v2098 = vrot.slane %v2096, 5
      %v2099 = vsel %vm1248, %v2094, %v2098
      %v2101 = vshrl.u32 %v1832, 16
      %v2103 = vrot.slane %v2101, 4
      %v2104 = vshll.u32 %v1832, 16
      %v2106 = vrot.slane %v2104, 5
      %v2107 = vor.u32 %v2103, %v2106
      %v2108 = vrot.slane %v2107, 4
      %v2110 = vshll.u32 %v1833, 16
      %v2112 = vrot.slane %v2110, 5
      %v2113 = vsel %vm1248, %v2108, %v2112
      %v2114 = vshrl.u32 %v1833, 16
      %v2116 = vrot.slane %v2114, 4
      %v2117 = vor.u32 %v2116, %v2112
      %v2118 = vrot.slane %v2117, 4
      %v2120 = vshll.u32 %v1854, 16
      %v2122 = vrot.slane %v2120, 5
      %v2123 = vsel %vm1248, %v2118, %v2122
      %v2125 = vshrl.u32 %v1834, 16
      %v2127 = vrot.slane %v2125, 4
      %v2128 = vshll.u32 %v1834, 16
      %v2130 = vrot.slane %v2128, 5
      %v2131 = vor.u32 %v2127, %v2130
      %v2132 = vrot.slane %v2131, 4
      %v2134 = vshll.u32 %v1835, 16
      %v2136 = vrot.slane %v2134, 5
      %v2137 = vsel %vm1248, %v2132, %v2136
      %v2138 = vshrl.u32 %v1835, 16
      %v2140 = vrot.slane %v2138, 4
      %v2141 = vor.u32 %v2140, %v2136
      %v2142 = vrot.slane %v2141, 4
      %v2144 = vshll.u32 %v1855, 16
      %v2146 = vrot.slane %v2144, 5
      %v2147 = vsel %vm1248, %v2142, %v2146
      %v2149 = vshrl.u32 %v1836, 16
      %v2151 = vrot.slane %v2149, 4
      %v2152 = vshll.u32 %v1836, 16
      %v2154 = vrot.slane %v2152, 5
      %v2155 = vor.u32 %v2151, %v2154
      %v2156 = vrot.slane %v2155, 4
      %v2158 = vshll.u32 %v1837, 16
      %v2160 = vrot.slane %v2158, 5
      %v2161 = vsel %vm1248, %v2156, %v2160
      %v2162 = vshrl.u32 %v1837, 16
      %v2164 = vrot.slane %v2162, 4
      %v2165 = vor.u32 %v2164, %v2160
      %v2166 = vrot.slane %v2165, 4
      %v2168 = vshll.u32 %v1856, 16
      %v2170 = vrot.slane %v2168, 5
      %v2171 = vsel %vm1248, %v2166, %v2170
      %v2173 = vshrl.u32 %v1838, 16
      %v2175 = vrot.slane %v2173, 4
      %v2176 = vshll.u32 %v1838, 16
      %v2178 = vrot.slane %v2176, 5
      %v2179 = vor.u32 %v2175, %v2178
      %v2180 = vrot.slane %v2179, 4
      %v2182 = vshll.u32 %v1839, 16
      %v2184 = vrot.slane %v2182, 5
      %v2185 = vsel %vm1248, %v2180, %v2184
      %v2186 = vshrl.u32 %v1839, 16
      %v2188 = vrot.slane %v2186, 4
      %v2189 = vor.u32 %v2188, %v2184
      %v2190 = vrot.slane %v2189, 4
      %v2192 = vshll.u32 %v1857, 16
      %v2194 = vrot.slane %v2192, 5
      %v2195 = vsel %vm1248, %v2190, %v2194
      %v2197 = vshrl.u32 %v1840, 16
      %v2199 = vrot.slane %v2197, 4
      %v2200 = vshll.u32 %v1840, 16
      %v2202 = vrot.slane %v2200, 5
      %v2203 = vor.u32 %v2199, %v2202
      %v2204 = vrot.slane %v2203, 4
      %v2206 = vshll.u32 %v1841, 16
      %v2208 = vrot.slane %v2206, 5
      %v2209 = vsel %vm1248, %v2204, %v2208
      %v2210 = vshrl.u32 %v1841, 16
      %v2212 = vrot.slane %v2210, 4
      %v2213 = vor.u32 %v2212, %v2208
      %v2214 = vrot.slane %v2213, 4
      %v2216 = vshll.u32 %v1858, 16
      %v2218 = vrot.slane %v2216, 5
      %v2219 = vsel %vm1248, %v2214, %v2218
      %v2221 = vshrl.u32 %v1842, 16
      %v2223 = vrot.slane %v2221, 4
      %v2224 = vshll.u32 %v1842, 16
      %v2226 = vrot.slane %v2224, 5
      %v2227 = vor.u32 %v2223, %v2226
      %v2228 = vrot.slane %v2227, 4
      %v2230 = vshll.u32 %v1843, 16
      %v2232 = vrot.slane %v2230, 5
      %v2233 = vsel %vm1248, %v2228, %v2232
      %v2234 = vshrl.u32 %v1843, 16
      %v2236 = vrot.slane %v2234, 4
      %v2237 = vor.u32 %v2236, %v2232
      %v2238 = vrot.slane %v2237, 4
      %v2240 = vshll.u32 %v1859, 16
      %v2242 = vrot.slane %v2240, 5
      %v2243 = vsel %vm1248, %v2238, %v2242
      %v2244 = vld [vmem:[%s208] sm:$0xe]
      %v2245 = vld [vmem:[%s208 + $0xc] sm:$0xe]
      %v2246 = vld [vmem:[%s208 + $0x18] sm:$0xe]
      %v2247 = vld [vmem:[%s208 + $0x24] sm:$0xe]
      %v2248 = vld [vmem:[%s208 + $0x30] sm:$0xe]
      %v2249 = vld [vmem:[%s208 + $0x3c] sm:$0xe]
      %v2250 = vld [vmem:[%s208 + $0x48] sm:$0xe]
      %v2251 = vld [vmem:[%s208 + $0x54] sm:$0xe]
      %v2252 = vld [vmem:[%s208 + $0x60] sm:$0xe]
      %v2253 = vld [vmem:[%s208 + $0x6c] sm:$0xe]
      %v2254 = vld [vmem:[%s208 + $0x78] sm:$0xe]
      %v2255 = vld [vmem:[%s208 + $0x84] sm:$0xe]
      %v2256 = vld [vmem:[%s208 + $0x90] sm:$0xe]
      %v2257 = vld [vmem:[%s208 + $0x9c] sm:$0xe]
      %v2258 = vld [vmem:[%s208 + $0xa8] sm:$0xe]
      %v2259 = vld [vmem:[%s208 + $0xb4] sm:$0xe]
      %v2308 = vrot.slane %v2244, 5
      %v2309 = vrot.slane %v2308, 4
      %v2310 = vrot.slane %v1813, 5
      %v2311 = vsel %vm1699, %v2309, %v2310
      %v2312 = vrot.slane %v2310, 4
      %v2313 = vrot.slane %v1844, 5
      %v2314 = vsel %vm1699, %v2312, %v2313
      %v2315 = vrot.slane %v2245, 5
      %v2316 = vrot.slane %v2315, 4
      %v2317 = vrot.slane %v1815, 5
      %v2318 = vsel %vm1699, %v2316, %v2317
      %v2319 = vrot.slane %v2317, 4
      %v2320 = vrot.slane %v1845, 5
      %v2321 = vsel %vm1699, %v2319, %v2320
      %v2322 = vrot.slane %v2246, 5
      %v2323 = vrot.slane %v2322, 4
      %v2324 = vrot.slane %v1817, 5
      %v2325 = vsel %vm1699, %v2323, %v2324
      %v2326 = vrot.slane %v2324, 4
      %v2327 = vrot.slane %v1846, 5
      %v2328 = vsel %vm1699, %v2326, %v2327
      %v2329 = vrot.slane %v2247, 5
      %v2330 = vrot.slane %v2329, 4
      %v2331 = vrot.slane %v1819, 5
      %v2332 = vsel %vm1699, %v2330, %v2331
      %v2333 = vrot.slane %v2331, 4
      %v2334 = vrot.slane %v1847, 5
      %v2335 = vsel %vm1699, %v2333, %v2334
      %v2336 = vrot.slane %v2248, 5
      %v2337 = vrot.slane %v2336, 4
      %v2338 = vrot.slane %v1821, 5
      %v2339 = vsel %vm1699, %v2337, %v2338
      %v2340 = vrot.slane %v2338, 4
      %v2341 = vrot.slane %v1848, 5
      %v2342 = vsel %vm1699, %v2340, %v2341
      %v2343 = vrot.slane %v2249, 5
      %v2344 = vrot.slane %v2343, 4
      %v2345 = vrot.slane %v1823, 5
      %v2346 = vsel %vm1699, %v2344, %v2345
      %v2347 = vrot.slane %v2345, 4
      %v2348 = vrot.slane %v1849, 5
      %v2349 = vsel %vm1699, %v2347, %v2348
      %v2350 = vrot.slane %v2250, 5
      %v2351 = vrot.slane %v2350, 4
      %v2352 = vrot.slane %v1825, 5
      %v2353 = vsel %vm1699, %v2351, %v2352
      %v2354 = vrot.slane %v2352, 4
      %v2355 = vrot.slane %v1850, 5
      %v2356 = vsel %vm1699, %v2354, %v2355
      %v2357 = vrot.slane %v2251, 5
      %v2358 = vrot.slane %v2357, 4
      %v2359 = vrot.slane %v1827, 5
      %v2360 = vsel %vm1699, %v2358, %v2359
      %v2361 = vrot.slane %v2359, 4
      %v2362 = vrot.slane %v1851, 5
      %v2363 = vsel %vm1699, %v2361, %v2362
      %v2364 = vrot.slane %v2252, 5
      %v2365 = vrot.slane %v2364, 4
      %v2366 = vrot.slane %v1829, 5
      %v2367 = vsel %vm1699, %v2365, %v2366
      %v2368 = vrot.slane %v2366, 4
      %v2369 = vrot.slane %v1852, 5
      %v2370 = vsel %vm1699, %v2368, %v2369
      %v2371 = vrot.slane %v2253, 5
      %v2372 = vrot.slane %v2371, 4
      %v2373 = vrot.slane %v1831, 5
      %v2374 = vsel %vm1699, %v2372, %v2373
      %v2375 = vrot.slane %v2373, 4
      %v2376 = vrot.slane %v1853, 5
      %v2377 = vsel %vm1699, %v2375, %v2376
      %v2378 = vrot.slane %v2254, 5
      %v2379 = vrot.slane %v2378, 4
      %v2380 = vrot.slane %v1833, 5
      %v2381 = vsel %vm1699, %v2379, %v2380
      %v2382 = vrot.slane %v2380, 4
      %v2383 = vrot.slane %v1854, 5
      %v2384 = vsel %vm1699, %v2382, %v2383
      %v2385 = vrot.slane %v2255, 5
      %v2386 = vrot.slane %v2385, 4
      %v2387 = vrot.slane %v1835, 5
      %v2388 = vsel %vm1699, %v2386, %v2387
      %v2389 = vrot.slane %v2387, 4
      %v2390 = vrot.slane %v1855, 5
      %v2391 = vsel %vm1699, %v2389, %v2390
      %v2392 = vrot.slane %v2256, 5
      %v2393 = vrot.slane %v2392, 4
      %v2394 = vrot.slane %v1837, 5
      %v2395 = vsel %vm1699, %v2393, %v2394
      %v2396 = vrot.slane %v2394, 4
      %v2397 = vrot.slane %v1856, 5
      %v2398 = vsel %vm1699, %v2396, %v2397
      %v2399 = vrot.slane %v2257, 5
      %v2400 = vrot.slane %v2399, 4
      %v2401 = vrot.slane %v1839, 5
      %v2402 = vsel %vm1699, %v2400, %v2401
      %v2403 = vrot.slane %v2401, 4
      %v2404 = vrot.slane %v1857, 5
      %v2405 = vsel %vm1699, %v2403, %v2404
      %v2406 = vrot.slane %v2258, 5
      %v2407 = vrot.slane %v2406, 4
      %v2408 = vrot.slane %v1841, 5
      %v2409 = vsel %vm1699, %v2407, %v2408
      %v2410 = vrot.slane %v2408, 4
      %v2411 = vrot.slane %v1858, 5
      %v2412 = vsel %vm1699, %v2410, %v2411
      %v2413 = vrot.slane %v2259, 5
      %v2414 = vrot.slane %v2413, 4
      %v2415 = vrot.slane %v1843, 5
      %v2416 = vsel %vm1699, %v2414, %v2415
      %v2417 = vrot.slane %v2415, 4
      %v2418 = vrot.slane %v1859, 5
      %v2419 = vsel %vm1699, %v2417, %v2418
      %s2420 = scalar_lea.vmem [#allocation2], 24
      %v2421 = vld [vmem:[%s2420] sm:$0xf]
      %v2422 = vld [vmem:[%s2420 + $0x4] sm:$0xf]
      %v2423 = vld [vmem:[%s2420 + $0xc] sm:$0xf]
      %v2424 = vld [vmem:[%s2420 + $0x10] sm:$0xf]
      %v2425 = vld [vmem:[%s2420 + $0x18] sm:$0xf]
      %v2426 = vld [vmem:[%s2420 + $0x1c] sm:$0xf]
      %v2427 = vld [vmem:[%s2420 + $0x24] sm:$0xf]
      %v2428 = vld [vmem:[%s2420 + $0x28] sm:$0xf]
      %v2429 = vld [vmem:[%s2420 + $0x30] sm:$0xf]
      %v2430 = vld [vmem:[%s2420 + $0x34] sm:$0xf]
      %v2431 = vld [vmem:[%s2420 + $0x3c] sm:$0xf]
      %v2432 = vld [vmem:[%s2420 + $0x40] sm:$0xf]
      %v2433 = vld [vmem:[%s2420 + $0x48] sm:$0xf]
      %v2434 = vld [vmem:[%s2420 + $0x4c] sm:$0xf]
      %v2435 = vld [vmem:[%s2420 + $0x54] sm:$0xf]
      %v2436 = vld [vmem:[%s2420 + $0x58] sm:$0xf]
      %v2437 = vld [vmem:[%s2420 + $0x60] sm:$0xf]
      %v2438 = vld [vmem:[%s2420 + $0x64] sm:$0xf]
      %v2439 = vld [vmem:[%s2420 + $0x6c] sm:$0xf]
      %v2440 = vld [vmem:[%s2420 + $0x70] sm:$0xf]
      %v2441 = vld [vmem:[%s2420 + $0x78] sm:$0xf]
      %v2442 = vld [vmem:[%s2420 + $0x7c] sm:$0xf]
      %v2443 = vld [vmem:[%s2420 + $0x84] sm:$0xf]
      %v2444 = vld [vmem:[%s2420 + $0x88] sm:$0xf]
      %v2445 = vld [vmem:[%s2420 + $0x90] sm:$0xf]
      %v2446 = vld [vmem:[%s2420 + $0x94] sm:$0xf]
      %v2447 = vld [vmem:[%s2420 + $0x9c] sm:$0xf]
      %v2448 = vld [vmem:[%s2420 + $0xa0] sm:$0xf]
      %v2449 = vld [vmem:[%s2420 + $0xa8] sm:$0xf]
      %v2450 = vld [vmem:[%s2420 + $0xac] sm:$0xf]
      %v2451 = vld [vmem:[%s2420 + $0xb4] sm:$0xf]
      %v2452 = vld [vmem:[%s2420 + $0xb8] sm:$0xf]
      %v2453 = vld [vmem:[%s2420 + $0x8] sm:$0x1]
      %v2454 = vld [vmem:[%s2420 + $0x14] sm:$0x1]
      %v2455 = vld [vmem:[%s2420 + $0x20] sm:$0x1]
      %v2456 = vld [vmem:[%s2420 + $0x2c] sm:$0x1]
      %v2457 = vld [vmem:[%s2420 + $0x38] sm:$0x1]
      %v2458 = vld [vmem:[%s2420 + $0x44] sm:$0x1]
      %v2459 = vld [vmem:[%s2420 + $0x50] sm:$0x1]
      %v2460 = vld [vmem:[%s2420 + $0x5c] sm:$0x1]
      %v2461 = vld [vmem:[%s2420 + $0x68] sm:$0x1]
      %v2462 = vld [vmem:[%s2420 + $0x74] sm:$0x1]
      %v2463 = vld [vmem:[%s2420 + $0x80] sm:$0x1]
      %v2464 = vld [vmem:[%s2420 + $0x8c] sm:$0x1]
      %v2465 = vld [vmem:[%s2420 + $0x98] sm:$0x1]
      %v2466 = vld [vmem:[%s2420 + $0xa4] sm:$0x1]
      %v2467 = vld [vmem:[%s2420 + $0xb0] sm:$0x1]
      %v2468 = vld [vmem:[%s2420 + $0xbc] sm:$0x1]
      %v2470 = vshrl.u32 %v2421, 16
      %v2472 = vrot.slane %v2470, 4
      %v2473 = vshll.u32 %v2421, 16
      %v2475 = vrot.slane %v2473, 5
      %v2476 = vor.u32 %v2472, %v2475
      %v2477 = vrot.slane %v2476, 4
      %v2479 = vshll.u32 %v2422, 16
      %v2481 = vrot.slane %v2479, 5
      %v2482 = vsel %vm1248, %v2477, %v2481
      %v2483 = vshrl.u32 %v2422, 16
      %v2485 = vrot.slane %v2483, 4
      %v2486 = vor.u32 %v2485, %v2481
      %v2487 = vrot.slane %v2486, 4
      %v2489 = vshll.u32 %v2453, 16
      %v2491 = vrot.slane %v2489, 5
      %v2492 = vsel %vm1248, %v2487, %v2491
      %v2494 = vshrl.u32 %v2423, 16
      %v2496 = vrot.slane %v2494, 4
      %v2497 = vshll.u32 %v2423, 16
      %v2499 = vrot.slane %v2497, 5
      %v2500 = vor.u32 %v2496, %v2499
      %v2501 = vrot.slane %v2500, 4
      %v2503 = vshll.u32 %v2424, 16
      %v2505 = vrot.slane %v2503, 5
      %v2506 = vsel %vm1248, %v2501, %v2505
      %v2507 = vshrl.u32 %v2424, 16
      %v2509 = vrot.slane %v2507, 4
      %v2510 = vor.u32 %v2509, %v2505
      %v2511 = vrot.slane %v2510, 4
      %v2513 = vshll.u32 %v2454, 16
      %v2515 = vrot.slane %v2513, 5
      %v2516 = vsel %vm1248, %v2511, %v2515
      %v2518 = vshrl.u32 %v2425, 16
      %v2520 = vrot.slane %v2518, 4
      %v2521 = vshll.u32 %v2425, 16
      %v2523 = vrot.slane %v2521, 5
      %v2524 = vor.u32 %v2520, %v2523
      %v2525 = vrot.slane %v2524, 4
      %v2527 = vshll.u32 %v2426, 16
      %v2529 = vrot.slane %v2527, 5
      %v2530 = vsel %vm1248, %v2525, %v2529
      %v2531 = vshrl.u32 %v2426, 16
      %v2533 = vrot.slane %v2531, 4
      %v2534 = vor.u32 %v2533, %v2529
      %v2535 = vrot.slane %v2534, 4
      %v2537 = vshll.u32 %v2455, 16
      %v2539 = vrot.slane %v2537, 5
      %v2540 = vsel %vm1248, %v2535, %v2539
      %v2542 = vshrl.u32 %v2427, 16
      %v2544 = vrot.slane %v2542, 4
      %v2545 = vshll.u32 %v2427, 16
      %v2547 = vrot.slane %v2545, 5
      %v2548 = vor.u32 %v2544, %v2547
      %v2549 = vrot.slane %v2548, 4
      %v2551 = vshll.u32 %v2428, 16
      %v2553 = vrot.slane %v2551, 5
      %v2554 = vsel %vm1248, %v2549, %v2553
      %v2555 = vshrl.u32 %v2428, 16
      %v2557 = vrot.slane %v2555, 4
      %v2558 = vor.u32 %v2557, %v2553
      %v2559 = vrot.slane %v2558, 4
      %v2561 = vshll.u32 %v2456, 16
      %v2563 = vrot.slane %v2561, 5
      %v2564 = vsel %vm1248, %v2559, %v2563
      %v2566 = vshrl.u32 %v2429, 16
      %v2568 = vrot.slane %v2566, 4
      %v2569 = vshll.u32 %v2429, 16
      %v2571 = vrot.slane %v2569, 5
      %v2572 = vor.u32 %v2568, %v2571
      %v2573 = vrot.slane %v2572, 4
      %v2575 = vshll.u32 %v2430, 16
      %v2577 = vrot.slane %v2575, 5
      %v2578 = vsel %vm1248, %v2573, %v2577
      %v2579 = vshrl.u32 %v2430, 16
      %v2581 = vrot.slane %v2579, 4
      %v2582 = vor.u32 %v2581, %v2577
      %v2583 = vrot.slane %v2582, 4
      %v2585 = vshll.u32 %v2457, 16
      %v2587 = vrot.slane %v2585, 5
      %v2588 = vsel %vm1248, %v2583, %v2587
      %v2590 = vshrl.u32 %v2431, 16
      %v2592 = vrot.slane %v2590, 4
      %v2593 = vshll.u32 %v2431, 16
      %v2595 = vrot.slane %v2593, 5
      %v2596 = vor.u32 %v2592, %v2595
      %v2597 = vrot.slane %v2596, 4
      %v2599 = vshll.u32 %v2432, 16
      %v2601 = vrot.slane %v2599, 5
      %v2602 = vsel %vm1248, %v2597, %v2601
      %v2603 = vshrl.u32 %v2432, 16
      %v2605 = vrot.slane %v2603, 4
      %v2606 = vor.u32 %v2605, %v2601
      %v2607 = vrot.slane %v2606, 4
      %v2609 = vshll.u32 %v2458, 16
      %v2611 = vrot.slane %v2609, 5
      %v2612 = vsel %vm1248, %v2607, %v2611
      %v2614 = vshrl.u32 %v2433, 16
      %v2616 = vrot.slane %v2614, 4
      %v2617 = vshll.u32 %v2433, 16
      %v2619 = vrot.slane %v2617, 5
      %v2620 = vor.u32 %v2616, %v2619
      %v2621 = vrot.slane %v2620, 4
      %v2623 = vshll.u32 %v2434, 16
      %v2625 = vrot.slane %v2623, 5
      %v2626 = vsel %vm1248, %v2621, %v2625
      %v2627 = vshrl.u32 %v2434, 16
      %v2629 = vrot.slane %v2627, 4
      %v2630 = vor.u32 %v2629, %v2625
      %v2631 = vrot.slane %v2630, 4
      %v2633 = vshll.u32 %v2459, 16
      %v2635 = vrot.slane %v2633, 5
      %v2636 = vsel %vm1248, %v2631, %v2635
      %v2638 = vshrl.u32 %v2435, 16
      %v2640 = vrot.slane %v2638, 4
      %v2641 = vshll.u32 %v2435, 16
      %v2643 = vrot.slane %v2641, 5
      %v2644 = vor.u32 %v2640, %v2643
      %v2645 = vrot.slane %v2644, 4
      %v2647 = vshll.u32 %v2436, 16
      %v2649 = vrot.slane %v2647, 5
      %v2650 = vsel %vm1248, %v2645, %v2649
      %v2651 = vshrl.u32 %v2436, 16
      %v2653 = vrot.slane %v2651, 4
      %v2654 = vor.u32 %v2653, %v2649
      %v2655 = vrot.slane %v2654, 4
      %v2657 = vshll.u32 %v2460, 16
      %v2659 = vrot.slane %v2657, 5
      %v2660 = vsel %vm1248, %v2655, %v2659
      %v2662 = vshrl.u32 %v2437, 16
      %v2664 = vrot.slane %v2662, 4
      %v2665 = vshll.u32 %v2437, 16
      %v2667 = vrot.slane %v2665, 5
      %v2668 = vor.u32 %v2664, %v2667
      %v2669 = vrot.slane %v2668, 4
      %v2671 = vshll.u32 %v2438, 16
      %v2673 = vrot.slane %v2671, 5
      %v2674 = vsel %vm1248, %v2669, %v2673
      %v2675 = vshrl.u32 %v2438, 16
      %v2677 = vrot.slane %v2675, 4
      %v2678 = vor.u32 %v2677, %v2673
      %v2679 = vrot.slane %v2678, 4
      %v2681 = vshll.u32 %v2461, 16
      %v2683 = vrot.slane %v2681, 5
      %v2684 = vsel %vm1248, %v2679, %v2683
      %v2686 = vshrl.u32 %v2439, 16
      %v2688 = vrot.slane %v2686, 4
      %v2689 = vshll.u32 %v2439, 16
      %v2691 = vrot.slane %v2689, 5
      %v2692 = vor.u32 %v2688, %v2691
      %v2693 = vrot.slane %v2692, 4
      %v2695 = vshll.u32 %v2440, 16
      %v2697 = vrot.slane %v2695, 5
      %v2698 = vsel %vm1248, %v2693, %v2697
      %v2699 = vshrl.u32 %v2440, 16
      %v2701 = vrot.slane %v2699, 4
      %v2702 = vor.u32 %v2701, %v2697
      %v2703 = vrot.slane %v2702, 4
      %v2705 = vshll.u32 %v2462, 16
      %v2707 = vrot.slane %v2705, 5
      %v2708 = vsel %vm1248, %v2703, %v2707
      %v2710 = vshrl.u32 %v2441, 16
      %v2712 = vrot.slane %v2710, 4
      %v2713 = vshll.u32 %v2441, 16
      %v2715 = vrot.slane %v2713, 5
      %v2716 = vor.u32 %v2712, %v2715
      %v2717 = vrot.slane %v2716, 4
      %v2719 = vshll.u32 %v2442, 16
      %v2721 = vrot.slane %v2719, 5
      %v2722 = vsel %vm1248, %v2717, %v2721
      %v2723 = vshrl.u32 %v2442, 16
      %v2725 = vrot.slane %v2723, 4
      %v2726 = vor.u32 %v2725, %v2721
      %v2727 = vrot.slane %v2726, 4
      %v2729 = vshll.u32 %v2463, 16
      %v2731 = vrot.slane %v2729, 5
      %v2732 = vsel %vm1248, %v2727, %v2731
      %v2734 = vshrl.u32 %v2443, 16
      %v2736 = vrot.slane %v2734, 4
      %v2737 = vshll.u32 %v2443, 16
      %v2739 = vrot.slane %v2737, 5
      %v2740 = vor.u32 %v2736, %v2739
      %v2741 = vrot.slane %v2740, 4
      %v2743 = vshll.u32 %v2444, 16
      %v2745 = vrot.slane %v2743, 5
      %v2746 = vsel %vm1248, %v2741, %v2745
      %v2747 = vshrl.u32 %v2444, 16
      %v2749 = vrot.slane %v2747, 4
      %v2750 = vor.u32 %v2749, %v2745
      %v2751 = vrot.slane %v2750, 4
      %v2753 = vshll.u32 %v2464, 16
      %v2755 = vrot.slane %v2753, 5
      %v2756 = vsel %vm1248, %v2751, %v2755
      %v2758 = vshrl.u32 %v2445, 16
      %v2760 = vrot.slane %v2758, 4
      %v2761 = vshll.u32 %v2445, 16
      %v2763 = vrot.slane %v2761, 5
      %v2764 = vor.u32 %v2760, %v2763
      %v2765 = vrot.slane %v2764, 4
      %v2767 = vshll.u32 %v2446, 16
      %v2769 = vrot.slane %v2767, 5
      %v2770 = vsel %vm1248, %v2765, %v2769
      %v2771 = vshrl.u32 %v2446, 16
      %v2773 = vrot.slane %v2771, 4
      %v2774 = vor.u32 %v2773, %v2769
      %v2775 = vrot.slane %v2774, 4
      %v2777 = vshll.u32 %v2465, 16
      %v2779 = vrot.slane %v2777, 5
      %v2780 = vsel %vm1248, %v2775, %v2779
      %v2782 = vshrl.u32 %v2447, 16
      %v2784 = vrot.slane %v2782, 4
      %v2785 = vshll.u32 %v2447, 16
      %v2787 = vrot.slane %v2785, 5
      %v2788 = vor.u32 %v2784, %v2787
      %v2789 = vrot.slane %v2788, 4
      %v2791 = vshll.u32 %v2448, 16
      %v2793 = vrot.slane %v2791, 5
      %v2794 = vsel %vm1248, %v2789, %v2793
      %v2795 = vshrl.u32 %v2448, 16
      %v2797 = vrot.slane %v2795, 4
      %v2798 = vor.u32 %v2797, %v2793
      %v2799 = vrot.slane %v2798, 4
      %v2801 = vshll.u32 %v2466, 16
      %v2803 = vrot.slane %v2801, 5
      %v2804 = vsel %vm1248, %v2799, %v2803
      %v2806 = vshrl.u32 %v2449, 16
      %v2808 = vrot.slane %v2806, 4
      %v2809 = vshll.u32 %v2449, 16
      %v2811 = vrot.slane %v2809, 5
      %v2812 = vor.u32 %v2808, %v2811
      %v2813 = vrot.slane %v2812, 4
      %v2815 = vshll.u32 %v2450, 16
      %v2817 = vrot.slane %v2815, 5
      %v2818 = vsel %vm1248, %v2813, %v2817
      %v2819 = vshrl.u32 %v2450, 16
      %v2821 = vrot.slane %v2819, 4
      %v2822 = vor.u32 %v2821, %v2817
      %v2823 = vrot.slane %v2822, 4
      %v2825 = vshll.u32 %v2467, 16
      %v2827 = vrot.slane %v2825, 5
      %v2828 = vsel %vm1248, %v2823, %v2827
      %v2830 = vshrl.u32 %v2451, 16
      %v2832 = vrot.slane %v2830, 4
      %v2833 = vshll.u32 %v2451, 16
      %v2835 = vrot.slane %v2833, 5
      %v2836 = vor.u32 %v2832, %v2835
      %v2837 = vrot.slane %v2836, 4
      %v2839 = vshll.u32 %v2452, 16
      %v2841 = vrot.slane %v2839, 5
      %v2842 = vsel %vm1248, %v2837, %v2841
      %v2843 = vshrl.u32 %v2452, 16
      %v2845 = vrot.slane %v2843, 4
      %v2846 = vor.u32 %v2845, %v2841
      %v2847 = vrot.slane %v2846, 4
      %v2849 = vshll.u32 %v2468, 16
      %v2851 = vrot.slane %v2849, 5
      %v2852 = vsel %vm1248, %v2847, %v2851
      %v2853 = vld [vmem:[%s2420] sm:$0xe]
      %v2854 = vld [vmem:[%s2420 + $0xc] sm:$0xe]
      %v2855 = vld [vmem:[%s2420 + $0x18] sm:$0xe]
      %v2856 = vld [vmem:[%s2420 + $0x24] sm:$0xe]
      %v2857 = vld [vmem:[%s2420 + $0x30] sm:$0xe]
      %v2858 = vld [vmem:[%s2420 + $0x3c] sm:$0xe]
      %v2859 = vld [vmem:[%s2420 + $0x48] sm:$0xe]
      %v2860 = vld [vmem:[%s2420 + $0x54] sm:$0xe]
      %v2861 = vld [vmem:[%s2420 + $0x60] sm:$0xe]
      %v2862 = vld [vmem:[%s2420 + $0x6c] sm:$0xe]
      %v2863 = vld [vmem:[%s2420 + $0x78] sm:$0xe]
      %v2864 = vld [vmem:[%s2420 + $0x84] sm:$0xe]
      %v2865 = vld [vmem:[%s2420 + $0x90] sm:$0xe]
      %v2866 = vld [vmem:[%s2420 + $0x9c] sm:$0xe]
      %v2867 = vld [vmem:[%s2420 + $0xa8] sm:$0xe]
      %v2868 = vld [vmem:[%s2420 + $0xb4] sm:$0xe]
      %v2917 = vrot.slane %v2853, 5
      %v2918 = vrot.slane %v2917, 4
      %v2919 = vrot.slane %v2422, 5
      %v2920 = vsel %vm1699, %v2918, %v2919
      %v2921 = vrot.slane %v2919, 4
      %v2922 = vrot.slane %v2453, 5
      %v2923 = vsel %vm1699, %v2921, %v2922
      %v2924 = vrot.slane %v2854, 5
      %v2925 = vrot.slane %v2924, 4
      %v2926 = vrot.slane %v2424, 5
      %v2927 = vsel %vm1699, %v2925, %v2926
      %v2928 = vrot.slane %v2926, 4
      %v2929 = vrot.slane %v2454, 5
      %v2930 = vsel %vm1699, %v2928, %v2929
      %v2931 = vrot.slane %v2855, 5
      %v2932 = vrot.slane %v2931, 4
      %v2933 = vrot.slane %v2426, 5
      %v2934 = vsel %vm1699, %v2932, %v2933
      %v2935 = vrot.slane %v2933, 4
      %v2936 = vrot.slane %v2455, 5
      %v2937 = vsel %vm1699, %v2935, %v2936
      %v2938 = vrot.slane %v2856, 5
      %v2939 = vrot.slane %v2938, 4
      %v2940 = vrot.slane %v2428, 5
      %v2941 = vsel %vm1699, %v2939, %v2940
      %v2942 = vrot.slane %v2940, 4
      %v2943 = vrot.slane %v2456, 5
      %v2944 = vsel %vm1699, %v2942, %v2943
      %v2945 = vrot.slane %v2857, 5
      %v2946 = vrot.slane %v2945, 4
      %v2947 = vrot.slane %v2430, 5
      %v2948 = vsel %vm1699, %v2946, %v2947
      %v2949 = vrot.slane %v2947, 4
      %v2950 = vrot.slane %v2457, 5
      %v2951 = vsel %vm1699, %v2949, %v2950
      %v2952 = vrot.slane %v2858, 5
      %v2953 = vrot.slane %v2952, 4
      %v2954 = vrot.slane %v2432, 5
      %v2955 = vsel %vm1699, %v2953, %v2954
      %v2956 = vrot.slane %v2954, 4
      %v2957 = vrot.slane %v2458, 5
      %v2958 = vsel %vm1699, %v2956, %v2957
      %v2959 = vrot.slane %v2859, 5
      %v2960 = vrot.slane %v2959, 4
      %v2961 = vrot.slane %v2434, 5
      %v2962 = vsel %vm1699, %v2960, %v2961
      %v2963 = vrot.slane %v2961, 4
      %v2964 = vrot.slane %v2459, 5
      %v2965 = vsel %vm1699, %v2963, %v2964
      %v2966 = vrot.slane %v2860, 5
      %v2967 = vrot.slane %v2966, 4
      %v2968 = vrot.slane %v2436, 5
      %v2969 = vsel %vm1699, %v2967, %v2968
      %v2970 = vrot.slane %v2968, 4
      %v2971 = vrot.slane %v2460, 5
      %v2972 = vsel %vm1699, %v2970, %v2971
      %v2973 = vrot.slane %v2861, 5
      %v2974 = vrot.slane %v2973, 4
      %v2975 = vrot.slane %v2438, 5
      %v2976 = vsel %vm1699, %v2974, %v2975
      %v2977 = vrot.slane %v2975, 4
      %v2978 = vrot.slane %v2461, 5
      %v2979 = vsel %vm1699, %v2977, %v2978
      %v2980 = vrot.slane %v2862, 5
      %v2981 = vrot.slane %v2980, 4
      %v2982 = vrot.slane %v2440, 5
      %v2983 = vsel %vm1699, %v2981, %v2982
      %v2984 = vrot.slane %v2982, 4
      %v2985 = vrot.slane %v2462, 5
      %v2986 = vsel %vm1699, %v2984, %v2985
      %v2987 = vrot.slane %v2863, 5
      %v2988 = vrot.slane %v2987, 4
      %v2989 = vrot.slane %v2442, 5
      %v2990 = vsel %vm1699, %v2988, %v2989
      %v2991 = vrot.slane %v2989, 4
      %v2992 = vrot.slane %v2463, 5
      %v2993 = vsel %vm1699, %v2991, %v2992
      %v2994 = vrot.slane %v2864, 5
      %v2995 = vrot.slane %v2994, 4
      %v2996 = vrot.slane %v2444, 5
      %v2997 = vsel %vm1699, %v2995, %v2996
      %v2998 = vrot.slane %v2996, 4
      %v2999 = vrot.slane %v2464, 5
      %v3000 = vsel %vm1699, %v2998, %v2999
      %v3001 = vrot.slane %v2865, 5
      %v3002 = vrot.slane %v3001, 4
      %v3003 = vrot.slane %v2446, 5
      %v3004 = vsel %vm1699, %v3002, %v3003
      %v3005 = vrot.slane %v3003, 4
      %v3006 = vrot.slane %v2465, 5
      %v3007 = vsel %vm1699, %v3005, %v3006
      %v3008 = vrot.slane %v2866, 5
      %v3009 = vrot.slane %v3008, 4
      %v3010 = vrot.slane %v2448, 5
      %v3011 = vsel %vm1699, %v3009, %v3010
      %v3012 = vrot.slane %v3010, 4
      %v3013 = vrot.slane %v2466, 5
      %v3014 = vsel %vm1699, %v3012, %v3013
      %v3015 = vrot.slane %v2867, 5
      %v3016 = vrot.slane %v3015, 4
      %v3017 = vrot.slane %v2450, 5
      %v3018 = vsel %vm1699, %v3016, %v3017
      %v3019 = vrot.slane %v3017, 4
      %v3020 = vrot.slane %v2467, 5
      %v3021 = vsel %vm1699, %v3019, %v3020
      %v3022 = vrot.slane %v2868, 5
      %v3023 = vrot.slane %v3022, 4
      %v3024 = vrot.slane %v2452, 5
      %v3025 = vsel %vm1699, %v3023, %v3024
      %v3026 = vrot.slane %v3024, 4
      %v3027 = vrot.slane %v2468, 5
      %v3028 = vsel %vm1699, %v3026, %v3027
      %v3045 = vunpack.c.l.b16 %v1198
      %v3046 = vunpack.c.l.b16 %v1199
      %v3047 = vunpack.c.l.b16 %v1200
      %v3048 = vunpack.c.l.b16 %v1201
      %v3049 = vunpack.c.l.b16 %v1202
      %v3050 = vunpack.c.l.b16 %v1203
      %v3051 = vunpack.c.l.b16 %v1204
      %v3052 = vunpack.c.l.b16 %v1205
      %v3053 = vunpack.c.l.b16 %v1206
      %v3054 = vunpack.c.l.b16 %v1207
      %v3055 = vunpack.c.l.b16 %v1208
      %v3056 = vunpack.c.l.b16 %v1209
      %v3057 = vunpack.c.l.b16 %v1210
      %v3058 = vunpack.c.l.b16 %v1211
      %v3059 = vunpack.c.l.b16 %v1212
      %v3060 = vunpack.c.l.b16 %v1213
      %v3061 = vunpack.c.l.b16 %v1214
      %v3062 = vunpack.c.l.b16 %v1215
      %v3063 = vunpack.c.l.b16 %v1216
      %v3064 = vunpack.c.l.b16 %v1217
      %v3065 = vunpack.c.l.b16 %v1218
      %v3066 = vunpack.c.l.b16 %v1219
      %v3067 = vunpack.c.l.b16 %v1220
      %v3068 = vunpack.c.l.b16 %v1221
      %v3069 = vunpack.c.l.b16 %v1222
      %v3070 = vunpack.c.l.b16 %v1223
      %v3071 = vunpack.c.l.b16 %v1224
      %v3072 = vunpack.c.l.b16 %v1225
      %v3073 = vunpack.c.l.b16 %v1226
      %v3074 = vunpack.c.l.b16 %v1227
      %v3075 = vunpack.c.l.b16 %v1228
      %v3076 = vunpack.c.l.b16 %v1229
      %v3077 = vpack.c.b16 %v3046, %v3045
      %v3078 = vpack.c.b16 %v3048, %v3047
      %v3079 = vpack.c.b16 %v3050, %v3049
      %v3080 = vpack.c.b16 %v3052, %v3051
      %v3081 = vpack.c.b16 %v3054, %v3053
      %v3082 = vpack.c.b16 %v3056, %v3055
      %v3083 = vpack.c.b16 %v3058, %v3057
      %v3084 = vpack.c.b16 %v3060, %v3059
      %v3085 = vpack.c.b16 %v3062, %v3061
      %v3086 = vpack.c.b16 %v3064, %v3063
      %v3087 = vpack.c.b16 %v3066, %v3065
      %v3088 = vpack.c.b16 %v3068, %v3067
      %v3089 = vpack.c.b16 %v3070, %v3069
      %v3090 = vpack.c.b16 %v3072, %v3071
      %v3091 = vpack.c.b16 %v3074, %v3073
      %v3092 = vpack.c.b16 %v3076, %v3075
      %v3093 = vunpack.c.l.b16 %v1262
      %v3094 = vunpack.c.l.b16 %v1272
      %v3095 = vunpack.c.l.b16 %v1286
      %v3096 = vunpack.c.l.b16 %v1296
      %v3097 = vunpack.c.l.b16 %v1310
      %v3098 = vunpack.c.l.b16 %v1320
      %v3099 = vunpack.c.l.b16 %v1334
      %v3100 = vunpack.c.l.b16 %v1344
      %v3101 = vunpack.c.l.b16 %v1358
      %v3102 = vunpack.c.l.b16 %v1368
      %v3103 = vunpack.c.l.b16 %v1382
      %v3104 = vunpack.c.l.b16 %v1392
      %v3105 = vunpack.c.l.b16 %v1406
      %v3106 = vunpack.c.l.b16 %v1416
      %v3107 = vunpack.c.l.b16 %v1430
      %v3108 = vunpack.c.l.b16 %v1440
      %v3109 = vunpack.c.l.b16 %v1454
      %v3110 = vunpack.c.l.b16 %v1464
      %v3111 = vunpack.c.l.b16 %v1478
      %v3112 = vunpack.c.l.b16 %v1488
      %v3113 = vunpack.c.l.b16 %v1502
      %v3114 = vunpack.c.l.b16 %v1512
      %v3115 = vunpack.c.l.b16 %v1526
      %v3116 = vunpack.c.l.b16 %v1536
      %v3117 = vunpack.c.l.b16 %v1550
      %v3118 = vunpack.c.l.b16 %v1560
      %v3119 = vunpack.c.l.b16 %v1574
      %v3120 = vunpack.c.l.b16 %v1584
      %v3121 = vunpack.c.l.b16 %v1598
      %v3122 = vunpack.c.l.b16 %v1608
      %v3123 = vunpack.c.l.b16 %v1622
      %v3124 = vunpack.c.l.b16 %v1632
      %v3125 = vpack.c.b16 %v3094, %v3093
      %v3126 = vpack.c.b16 %v3096, %v3095
      %v3127 = vpack.c.b16 %v3098, %v3097
      %v3128 = vpack.c.b16 %v3100, %v3099
      %v3129 = vpack.c.b16 %v3102, %v3101
      %v3130 = vpack.c.b16 %v3104, %v3103
      %v3131 = vpack.c.b16 %v3106, %v3105
      %v3132 = vpack.c.b16 %v3108, %v3107
      %v3133 = vpack.c.b16 %v3110, %v3109
      %v3134 = vpack.c.b16 %v3112, %v3111
      %v3135 = vpack.c.b16 %v3114, %v3113
      %v3136 = vpack.c.b16 %v3116, %v3115
      %v3137 = vpack.c.b16 %v3118, %v3117
      %v3138 = vpack.c.b16 %v3120, %v3119
      %v3139 = vpack.c.b16 %v3122, %v3121
      %v3140 = vpack.c.b16 %v3124, %v3123
      %3141 = vrot.lane.b32.xlu0 %v3125, 8
      %v3142 = vpop.permute.xlu0 %3141
      %3143 = vrot.lane.b32.xlu0 %v3126, 8
      %v3144 = vpop.permute.xlu0 %3143
      %3145 = vrot.lane.b32.xlu0 %v3127, 8
      %v3146 = vpop.permute.xlu0 %3145
      %3147 = vrot.lane.b32.xlu0 %v3128, 8
      %v3148 = vpop.permute.xlu0 %3147
      %3149 = vrot.lane.b32.xlu0 %v3129, 8
      %v3150 = vpop.permute.xlu0 %3149
      %3151 = vrot.lane.b32.xlu0 %v3130, 8
      %v3152 = vpop.permute.xlu0 %3151
      %3153 = vrot.lane.b32.xlu0 %v3131, 8
      %v3154 = vpop.permute.xlu0 %3153
      %3155 = vrot.lane.b32.xlu0 %v3132, 8
      %v3156 = vpop.permute.xlu0 %3155
      %3157 = vrot.lane.b32.xlu0 %v3133, 8
      %v3158 = vpop.permute.xlu0 %3157
      %3159 = vrot.lane.b32.xlu0 %v3134, 8
      %v3160 = vpop.permute.xlu0 %3159
      %3161 = vrot.lane.b32.xlu0 %v3135, 8
      %v3162 = vpop.permute.xlu0 %3161
      %3163 = vrot.lane.b32.xlu0 %v3136, 8
      %v3164 = vpop.permute.xlu0 %3163
      %3165 = vrot.lane.b32.xlu0 %v3137, 8
      %v3166 = vpop.permute.xlu0 %3165
      %3167 = vrot.lane.b32.xlu0 %v3138, 8
      %v3168 = vpop.permute.xlu0 %3167
      %3169 = vrot.lane.b32.xlu0 %v3139, 8
      %v3170 = vpop.permute.xlu0 %3169
      %3171 = vrot.lane.b32.xlu0 %v3140, 8
      %v3172 = vpop.permute.xlu0 %3171
      %v3173 = vunpack.c.l.b16 %v1703
      %v3174 = vunpack.c.l.b16 %v1706
      %v3175 = vunpack.c.l.b16 %v1710
      %v3176 = vunpack.c.l.b16 %v1713
      %v3177 = vunpack.c.l.b16 %v1717
      %v3178 = vunpack.c.l.b16 %v1720
      %v3179 = vunpack.c.l.b16 %v1724
      %v3180 = vunpack.c.l.b16 %v1727
      %v3181 = vunpack.c.l.b16 %v1731
      %v3182 = vunpack.c.l.b16 %v1734
      %v3183 = vunpack.c.l.b16 %v1738
      %v3184 = vunpack.c.l.b16 %v1741
      %v3185 = vunpack.c.l.b16 %v1745
      %v3186 = vunpack.c.l.b16 %v1748
      %v3187 = vunpack.c.l.b16 %v1752
      %v3188 = vunpack.c.l.b16 %v1755
      %v3189 = vunpack.c.l.b16 %v1759
      %v3190 = vunpack.c.l.b16 %v1762
      %v3191 = vunpack.c.l.b16 %v1766
      %v3192 = vunpack.c.l.b16 %v1769
      %v3193 = vunpack.c.l.b16 %v1773
      %v3194 = vunpack.c.l.b16 %v1776
      %v3195 = vunpack.c.l.b16 %v1780
      %v3196 = vunpack.c.l.b16 %v1783
      %v3197 = vunpack.c.l.b16 %v1787
      %v3198 = vunpack.c.l.b16 %v1790
      %v3199 = vunpack.c.l.b16 %v1794
      %v3200 = vunpack.c.l.b16 %v1797
      %v3201 = vunpack.c.l.b16 %v1801
      %v3202 = vunpack.c.l.b16 %v1804
      %v3203 = vunpack.c.l.b16 %v1808
      %v3204 = vunpack.c.l.b16 %v1811
      %v3205 = vpack.c.b16 %v3174, %v3173
      %v3206 = vpack.c.b16 %v3176, %v3175
      %v3207 = vpack.c.b16 %v3178, %v3177
      %v3208 = vpack.c.b16 %v3180, %v3179
      %v3209 = vpack.c.b16 %v3182, %v3181
      %v3210 = vpack.c.b16 %v3184, %v3183
      %v3211 = vpack.c.b16 %v3186, %v3185
      %v3212 = vpack.c.b16 %v3188, %v3187
      %v3213 = vpack.c.b16 %v3190, %v3189
      %v3214 = vpack.c.b16 %v3192, %v3191
      %v3215 = vpack.c.b16 %v3194, %v3193
      %v3216 = vpack.c.b16 %v3196, %v3195
      %v3217 = vpack.c.b16 %v3198, %v3197
      %v3218 = vpack.c.b16 %v3200, %v3199
      %v3219 = vpack.c.b16 %v3202, %v3201
      %v3220 = vpack.c.b16 %v3204, %v3203
      %3221 = vrot.lane.b32.xlu0 %v3205, 16
      %v3222 = vpop.permute.xlu0 %3221
      %3223 = vrot.lane.b32.xlu0 %v3206, 16
      %v3224 = vpop.permute.xlu0 %3223
      %3225 = vrot.lane.b32.xlu0 %v3207, 16
      %v3226 = vpop.permute.xlu0 %3225
      %3227 = vrot.lane.b32.xlu0 %v3208, 16
      %v3228 = vpop.permute.xlu0 %3227
      %3229 = vrot.lane.b32.xlu0 %v3209, 16
      %v3230 = vpop.permute.xlu0 %3229
      %3231 = vrot.lane.b32.xlu0 %v3210, 16
      %v3232 = vpop.permute.xlu0 %3231
      %3233 = vrot.lane.b32.xlu0 %v3211, 16
      %v3234 = vpop.permute.xlu0 %3233
      %3235 = vrot.lane.b32.xlu0 %v3212, 16
      %v3236 = vpop.permute.xlu0 %3235
      %3237 = vrot.lane.b32.xlu0 %v3213, 16
      %v3238 = vpop.permute.xlu0 %3237
      %3239 = vrot.lane.b32.xlu0 %v3214, 16
      %v3240 = vpop.permute.xlu0 %3239
      %3241 = vrot.lane.b32.xlu0 %v3215, 16
      %v3242 = vpop.permute.xlu0 %3241
      %3243 = vrot.lane.b32.xlu0 %v3216, 16
      %v3244 = vpop.permute.xlu0 %3243
      %3245 = vrot.lane.b32.xlu0 %v3217, 16
      %v3246 = vpop.permute.xlu0 %3245
      %3247 = vrot.lane.b32.xlu0 %v3218, 16
      %v3248 = vpop.permute.xlu0 %3247
      %3249 = vrot.lane.b32.xlu0 %v3219, 16
      %v3250 = vpop.permute.xlu0 %3249
      %3251 = vrot.lane.b32.xlu0 %v3220, 16
      %v3252 = vpop.permute.xlu0 %3251
      %v3269 = vunpack.c.l.b16 %v1812
      %v3270 = vunpack.c.l.b16 %v1813
      %v3271 = vunpack.c.l.b16 %v1814
      %v3272 = vunpack.c.l.b16 %v1815
      %v3273 = vunpack.c.l.b16 %v1816
      %v3274 = vunpack.c.l.b16 %v1817
      %v3275 = vunpack.c.l.b16 %v1818
      %v3276 = vunpack.c.l.b16 %v1819
      %v3277 = vunpack.c.l.b16 %v1820
      %v3278 = vunpack.c.l.b16 %v1821
      %v3279 = vunpack.c.l.b16 %v1822
      %v3280 = vunpack.c.l.b16 %v1823
      %v3281 = vunpack.c.l.b16 %v1824
      %v3282 = vunpack.c.l.b16 %v1825
      %v3283 = vunpack.c.l.b16 %v1826
      %v3284 = vunpack.c.l.b16 %v1827
      %v3285 = vunpack.c.l.b16 %v1828
      %v3286 = vunpack.c.l.b16 %v1829
      %v3287 = vunpack.c.l.b16 %v1830
      %v3288 = vunpack.c.l.b16 %v1831
      %v3289 = vunpack.c.l.b16 %v1832
      %v3290 = vunpack.c.l.b16 %v1833
      %v3291 = vunpack.c.l.b16 %v1834
      %v3292 = vunpack.c.l.b16 %v1835
      %v3293 = vunpack.c.l.b16 %v1836
      %v3294 = vunpack.c.l.b16 %v1837
      %v3295 = vunpack.c.l.b16 %v1838
      %v3296 = vunpack.c.l.b16 %v1839
      %v3297 = vunpack.c.l.b16 %v1840
      %v3298 = vunpack.c.l.b16 %v1841
      %v3299 = vunpack.c.l.b16 %v1842
      %v3300 = vunpack.c.l.b16 %v1843
      %v3301 = vpack.c.b16 %v3270, %v3269
      %v3302 = vpack.c.b16 %v3272, %v3271
      %v3303 = vpack.c.b16 %v3274, %v3273
      %v3304 = vpack.c.b16 %v3276, %v3275
      %v3305 = vpack.c.b16 %v3278, %v3277
      %v3306 = vpack.c.b16 %v3280, %v3279
      %v3307 = vpack.c.b16 %v3282, %v3281
      %v3308 = vpack.c.b16 %v3284, %v3283
      %v3309 = vpack.c.b16 %v3286, %v3285
      %v3310 = vpack.c.b16 %v3288, %v3287
      %v3311 = vpack.c.b16 %v3290, %v3289
      %v3312 = vpack.c.b16 %v3292, %v3291
      %v3313 = vpack.c.b16 %v3294, %v3293
      %v3314 = vpack.c.b16 %v3296, %v3295
      %v3315 = vpack.c.b16 %v3298, %v3297
      %v3316 = vpack.c.b16 %v3300, %v3299
      %3317 = vrot.lane.b32.xlu0 %v3301, 24
      %v3318 = vpop.permute.xlu0 %3317
      %3319 = vrot.lane.b32.xlu0 %v3302, 24
      %v3320 = vpop.permute.xlu0 %3319
      %3321 = vrot.lane.b32.xlu0 %v3303, 24
      %v3322 = vpop.permute.xlu0 %3321
      %3323 = vrot.lane.b32.xlu0 %v3304, 24
      %v3324 = vpop.permute.xlu0 %3323
      %3325 = vrot.lane.b32.xlu0 %v3305, 24
      %v3326 = vpop.permute.xlu0 %3325
      %3327 = vrot.lane.b32.xlu0 %v3306, 24
      %v3328 = vpop.permute.xlu0 %3327
      %3329 = vrot.lane.b32.xlu0 %v3307, 24
      %v3330 = vpop.permute.xlu0 %3329
      %3331 = vrot.lane.b32.xlu0 %v3308, 24
      %v3332 = vpop.permute.xlu0 %3331
      %3333 = vrot.lane.b32.xlu0 %v3309, 24
      %v3334 = vpop.permute.xlu0 %3333
      %3335 = vrot.lane.b32.xlu0 %v3310, 24
      %v3336 = vpop.permute.xlu0 %3335
      %3337 = vrot.lane.b32.xlu0 %v3311, 24
      %v3338 = vpop.permute.xlu0 %3337
      %3339 = vrot.lane.b32.xlu0 %v3312, 24
      %v3340 = vpop.permute.xlu0 %3339
      %3341 = vrot.lane.b32.xlu0 %v3313, 24
      %v3342 = vpop.permute.xlu0 %3341
      %3343 = vrot.lane.b32.xlu0 %v3314, 24
      %v3344 = vpop.permute.xlu0 %3343
      %3345 = vrot.lane.b32.xlu0 %v3315, 24
      %v3346 = vpop.permute.xlu0 %3345
      %3347 = vrot.lane.b32.xlu0 %v3316, 24
      %v3348 = vpop.permute.xlu0 %3347
      %v3349 = vunpack.c.l.b16 %v1873
      %v3350 = vunpack.c.l.b16 %v1883
      %v3351 = vunpack.c.l.b16 %v1897
      %v3352 = vunpack.c.l.b16 %v1907
      %v3353 = vunpack.c.l.b16 %v1921
      %v3354 = vunpack.c.l.b16 %v1931
      %v3355 = vunpack.c.l.b16 %v1945
      %v3356 = vunpack.c.l.b16 %v1955
      %v3357 = vunpack.c.l.b16 %v1969
      %v3358 = vunpack.c.l.b16 %v1979
      %v3359 = vunpack.c.l.b16 %v1993
      %v3360 = vunpack.c.l.b16 %v2003
      %v3361 = vunpack.c.l.b16 %v2017
      %v3362 = vunpack.c.l.b16 %v2027
      %v3363 = vunpack.c.l.b16 %v2041
      %v3364 = vunpack.c.l.b16 %v2051
      %v3365 = vunpack.c.l.b16 %v2065
      %v3366 = vunpack.c.l.b16 %v2075
      %v3367 = vunpack.c.l.b16 %v2089
      %v3368 = vunpack.c.l.b16 %v2099
      %v3369 = vunpack.c.l.b16 %v2113
      %v3370 = vunpack.c.l.b16 %v2123
      %v3371 = vunpack.c.l.b16 %v2137
      %v3372 = vunpack.c.l.b16 %v2147
      %v3373 = vunpack.c.l.b16 %v2161
      %v3374 = vunpack.c.l.b16 %v2171
      %v3375 = vunpack.c.l.b16 %v2185
      %v3376 = vunpack.c.l.b16 %v2195
      %v3377 = vunpack.c.l.b16 %v2209
      %v3378 = vunpack.c.l.b16 %v2219
      %v3379 = vunpack.c.l.b16 %v2233
      %v3380 = vunpack.c.l.b16 %v2243
      %v3381 = vpack.c.b16 %v3350, %v3349
      %v3382 = vpack.c.b16 %v3352, %v3351
      %v3383 = vpack.c.b16 %v3354, %v3353
      %v3384 = vpack.c.b16 %v3356, %v3355
      %v3385 = vpack.c.b16 %v3358, %v3357
      %v3386 = vpack.c.b16 %v3360, %v3359
      %v3387 = vpack.c.b16 %v3362, %v3361
      %v3388 = vpack.c.b16 %v3364, %v3363
      %v3389 = vpack.c.b16 %v3366, %v3365
      %v3390 = vpack.c.b16 %v3368, %v3367
      %v3391 = vpack.c.b16 %v3370, %v3369
      %v3392 = vpack.c.b16 %v3372, %v3371
      %v3393 = vpack.c.b16 %v3374, %v3373
      %v3394 = vpack.c.b16 %v3376, %v3375
      %v3395 = vpack.c.b16 %v3378, %v3377
      %v3396 = vpack.c.b16 %v3380, %v3379
      %3397 = vrot.lane.b32.xlu0 %v3381, 32
      %v3398 = vpop.permute.xlu0 %3397
      %3399 = vrot.lane.b32.xlu0 %v3382, 32
      %v3400 = vpop.permute.xlu0 %3399
      %3401 = vrot.lane.b32.xlu0 %v3383, 32
      %v3402 = vpop.permute.xlu0 %3401
      %3403 = vrot.lane.b32.xlu0 %v3384, 32
      %v3404 = vpop.permute.xlu0 %3403
      %3405 = vrot.lane.b32.xlu0 %v3385, 32
      %v3406 = vpop.permute.xlu0 %3405
      %3407 = vrot.lane.b32.xlu0 %v3386, 32
      %v3408 = vpop.permute.xlu0 %3407
      %3409 = vrot.lane.b32.xlu0 %v3387, 32
      %v3410 = vpop.permute.xlu0 %3409
      %3411 = vrot.lane.b32.xlu0 %v3388, 32
      %v3412 = vpop.permute.xlu0 %3411
      %3413 = vrot.lane.b32.xlu0 %v3389, 32
      %v3414 = vpop.permute.xlu0 %3413
      %3415 = vrot.lane.b32.xlu0 %v3390, 32
      %v3416 = vpop.permute.xlu0 %3415
      %3417 = vrot.lane.b32.xlu0 %v3391, 32
      %v3418 = vpop.permute.xlu0 %3417
      %3419 = vrot.lane.b32.xlu0 %v3392, 32
      %v3420 = vpop.permute.xlu0 %3419
      %3421 = vrot.lane.b32.xlu0 %v3393, 32
      %v3422 = vpop.permute.xlu0 %3421
      %3423 = vrot.lane.b32.xlu0 %v3394, 32
      %v3424 = vpop.permute.xlu0 %3423
      %3425 = vrot.lane.b32.xlu0 %v3395, 32
      %v3426 = vpop.permute.xlu0 %3425
      %3427 = vrot.lane.b32.xlu0 %v3396, 32
      %v3428 = vpop.permute.xlu0 %3427
      %v3429 = vunpack.c.l.b16 %v2311
      %v3430 = vunpack.c.l.b16 %v2314
      %v3431 = vunpack.c.l.b16 %v2318
      %v3432 = vunpack.c.l.b16 %v2321
      %v3433 = vunpack.c.l.b16 %v2325
      %v3434 = vunpack.c.l.b16 %v2328
      %v3435 = vunpack.c.l.b16 %v2332
      %v3436 = vunpack.c.l.b16 %v2335
      %v3437 = vunpack.c.l.b16 %v2339
      %v3438 = vunpack.c.l.b16 %v2342
      %v3439 = vunpack.c.l.b16 %v2346
      %v3440 = vunpack.c.l.b16 %v2349
      %v3441 = vunpack.c.l.b16 %v2353
      %v3442 = vunpack.c.l.b16 %v2356
      %v3443 = vunpack.c.l.b16 %v2360
      %v3444 = vunpack.c.l.b16 %v2363
      %v3445 = vunpack.c.l.b16 %v2367
      %v3446 = vunpack.c.l.b16 %v2370
      %v3447 = vunpack.c.l.b16 %v2374
      %v3448 = vunpack.c.l.b16 %v2377
      %v3449 = vunpack.c.l.b16 %v2381
      %v3450 = vunpack.c.l.b16 %v2384
      %v3451 = vunpack.c.l.b16 %v2388
      %v3452 = vunpack.c.l.b16 %v2391
      %v3453 = vunpack.c.l.b16 %v2395
      %v3454 = vunpack.c.l.b16 %v2398
      %v3455 = vunpack.c.l.b16 %v2402
      %v3456 = vunpack.c.l.b16 %v2405
      %v3457 = vunpack.c.l.b16 %v2409
      %v3458 = vunpack.c.l.b16 %v2412
      %v3459 = vunpack.c.l.b16 %v2416
      %v3460 = vunpack.c.l.b16 %v2419
      %v3461 = vpack.c.b16 %v3430, %v3429
      %v3462 = vpack.c.b16 %v3432, %v3431
      %v3463 = vpack.c.b16 %v3434, %v3433
      %v3464 = vpack.c.b16 %v3436, %v3435
      %v3465 = vpack.c.b16 %v3438, %v3437
      %v3466 = vpack.c.b16 %v3440, %v3439
      %v3467 = vpack.c.b16 %v3442, %v3441
      %v3468 = vpack.c.b16 %v3444, %v3443
      %v3469 = vpack.c.b16 %v3446, %v3445
      %v3470 = vpack.c.b16 %v3448, %v3447
      %v3471 = vpack.c.b16 %v3450, %v3449
      %v3472 = vpack.c.b16 %v3452, %v3451
      %v3473 = vpack.c.b16 %v3454, %v3453
      %v3474 = vpack.c.b16 %v3456, %v3455
      %v3475 = vpack.c.b16 %v3458, %v3457
      %v3476 = vpack.c.b16 %v3460, %v3459
      %3477 = vrot.lane.b32.xlu0 %v3461, 40
      %v3478 = vpop.permute.xlu0 %3477
      %3479 = vrot.lane.b32.xlu0 %v3462, 40
      %v3480 = vpop.permute.xlu0 %3479
      %3481 = vrot.lane.b32.xlu0 %v3463, 40
      %v3482 = vpop.permute.xlu0 %3481
      %3483 = vrot.lane.b32.xlu0 %v3464, 40
      %v3484 = vpop.permute.xlu0 %3483
      %3485 = vrot.lane.b32.xlu0 %v3465, 40
      %v3486 = vpop.permute.xlu0 %3485
      %3487 = vrot.lane.b32.xlu0 %v3466, 40
      %v3488 = vpop.permute.xlu0 %3487
      %3489 = vrot.lane.b32.xlu0 %v3467, 40
      %v3490 = vpop.permute.xlu0 %3489
      %3491 = vrot.lane.b32.xlu0 %v3468, 40
      %v3492 = vpop.permute.xlu0 %3491
      %3493 = vrot.lane.b32.xlu0 %v3469, 40
      %v3494 = vpop.permute.xlu0 %3493
      %3495 = vrot.lane.b32.xlu0 %v3470, 40
      %v3496 = vpop.permute.xlu0 %3495
      %3497 = vrot.lane.b32.xlu0 %v3471, 40
      %v3498 = vpop.permute.xlu0 %3497
      %3499 = vrot.lane.b32.xlu0 %v3472, 40
      %v3500 = vpop.permute.xlu0 %3499
      %3501 = vrot.lane.b32.xlu0 %v3473, 40
      %v3502 = vpop.permute.xlu0 %3501
      %3503 = vrot.lane.b32.xlu0 %v3474, 40
      %v3504 = vpop.permute.xlu0 %3503
      %3505 = vrot.lane.b32.xlu0 %v3475, 40
      %v3506 = vpop.permute.xlu0 %3505
      %3507 = vrot.lane.b32.xlu0 %v3476, 40
      %v3508 = vpop.permute.xlu0 %3507
      %v3525 = vunpack.c.l.b16 %v2421
      %v3526 = vunpack.c.l.b16 %v2422
      %v3527 = vunpack.c.l.b16 %v2423
      %v3528 = vunpack.c.l.b16 %v2424
      %v3529 = vunpack.c.l.b16 %v2425
      %v3530 = vunpack.c.l.b16 %v2426
      %v3531 = vunpack.c.l.b16 %v2427
      %v3532 = vunpack.c.l.b16 %v2428
      %v3533 = vunpack.c.l.b16 %v2429
      %v3534 = vunpack.c.l.b16 %v2430
      %v3535 = vunpack.c.l.b16 %v2431
      %v3536 = vunpack.c.l.b16 %v2432
      %v3537 = vunpack.c.l.b16 %v2433
      %v3538 = vunpack.c.l.b16 %v2434
      %v3539 = vunpack.c.l.b16 %v2435
      %v3540 = vunpack.c.l.b16 %v2436
      %v3541 = vunpack.c.l.b16 %v2437
      %v3542 = vunpack.c.l.b16 %v2438
      %v3543 = vunpack.c.l.b16 %v2439
      %v3544 = vunpack.c.l.b16 %v2440
      %v3545 = vunpack.c.l.b16 %v2441
      %v3546 = vunpack.c.l.b16 %v2442
      %v3547 = vunpack.c.l.b16 %v2443
      %v3548 = vunpack.c.l.b16 %v2444
      %v3549 = vunpack.c.l.b16 %v2445
      %v3550 = vunpack.c.l.b16 %v2446
      %v3551 = vunpack.c.l.b16 %v2447
      %v3552 = vunpack.c.l.b16 %v2448
      %v3553 = vunpack.c.l.b16 %v2449
      %v3554 = vunpack.c.l.b16 %v2450
      %v3555 = vunpack.c.l.b16 %v2451
      %v3556 = vunpack.c.l.b16 %v2452
      %v3557 = vpack.c.b16 %v3526, %v3525
      %v3558 = vpack.c.b16 %v3528, %v3527
      %v3559 = vpack.c.b16 %v3530, %v3529
      %v3560 = vpack.c.b16 %v3532, %v3531
      %v3561 = vpack.c.b16 %v3534, %v3533
      %v3562 = vpack.c.b16 %v3536, %v3535
      %v3563 = vpack.c.b16 %v3538, %v3537
      %v3564 = vpack.c.b16 %v3540, %v3539
      %v3565 = vpack.c.b16 %v3542, %v3541
      %v3566 = vpack.c.b16 %v3544, %v3543
      %v3567 = vpack.c.b16 %v3546, %v3545
      %v3568 = vpack.c.b16 %v3548, %v3547
      %v3569 = vpack.c.b16 %v3550, %v3549
      %v3570 = vpack.c.b16 %v3552, %v3551
      %v3571 = vpack.c.b16 %v3554, %v3553
      %v3572 = vpack.c.b16 %v3556, %v3555
      %3573 = vrot.lane.b32.xlu0 %v3557, 48
      %v3574 = vpop.permute.xlu0 %3573
      %3575 = vrot.lane.b32.xlu0 %v3558, 48
      %v3576 = vpop.permute.xlu0 %3575
      %3577 = vrot.lane.b32.xlu0 %v3559, 48
      %v3578 = vpop.permute.xlu0 %3577
      %3579 = vrot.lane.b32.xlu0 %v3560, 48
      %v3580 = vpop.permute.xlu0 %3579
      %3581 = vrot.lane.b32.xlu0 %v3561, 48
      %v3582 = vpop.permute.xlu0 %3581
      %3583 = vrot.lane.b32.xlu0 %v3562, 48
      %v3584 = vpop.permute.xlu0 %3583
      %3585 = vrot.lane.b32.xlu0 %v3563, 48
      %v3586 = vpop.permute.xlu0 %3585
      %3587 = vrot.lane.b32.xlu0 %v3564, 48
      %v3588 = vpop.permute.xlu0 %3587
      %3589 = vrot.lane.b32.xlu0 %v3565, 48
      %v3590 = vpop.permute.xlu0 %3589
      %3591 = vrot.lane.b32.xlu0 %v3566, 48
      %v3592 = vpop.permute.xlu0 %3591
      %3593 = vrot.lane.b32.xlu0 %v3567, 48
      %v3594 = vpop.permute.xlu0 %3593
      %3595 = vrot.lane.b32.xlu0 %v3568, 48
      %v3596 = vpop.permute.xlu0 %3595
      %3597 = vrot.lane.b32.xlu0 %v3569, 48
      %v3598 = vpop.permute.xlu0 %3597
      %3599 = vrot.lane.b32.xlu0 %v3570, 48
      %v3600 = vpop.permute.xlu0 %3599
      %3601 = vrot.lane.b32.xlu0 %v3571, 48
      %v3602 = vpop.permute.xlu0 %3601
      %3603 = vrot.lane.b32.xlu0 %v3572, 48
      %v3604 = vpop.permute.xlu0 %3603
      %v3605 = vunpack.c.l.b16 %v2482
      %v3606 = vunpack.c.l.b16 %v2492
      %v3607 = vunpack.c.l.b16 %v2506
      %v3608 = vunpack.c.l.b16 %v2516
      %v3609 = vunpack.c.l.b16 %v2530
      %v3610 = vunpack.c.l.b16 %v2540
      %v3611 = vunpack.c.l.b16 %v2554
      %v3612 = vunpack.c.l.b16 %v2564
      %v3613 = vunpack.c.l.b16 %v2578
      %v3614 = vunpack.c.l.b16 %v2588
      %v3615 = vunpack.c.l.b16 %v2602
      %v3616 = vunpack.c.l.b16 %v2612
      %v3617 = vunpack.c.l.b16 %v2626
      %v3618 = vunpack.c.l.b16 %v2636
      %v3619 = vunpack.c.l.b16 %v2650
      %v3620 = vunpack.c.l.b16 %v2660
      %v3621 = vunpack.c.l.b16 %v2674
      %v3622 = vunpack.c.l.b16 %v2684
      %v3623 = vunpack.c.l.b16 %v2698
      %v3624 = vunpack.c.l.b16 %v2708
      %v3625 = vunpack.c.l.b16 %v2722
      %v3626 = vunpack.c.l.b16 %v2732
      %v3627 = vunpack.c.l.b16 %v2746
      %v3628 = vunpack.c.l.b16 %v2756
      %v3629 = vunpack.c.l.b16 %v2770
      %v3630 = vunpack.c.l.b16 %v2780
      %v3631 = vunpack.c.l.b16 %v2794
      %v3632 = vunpack.c.l.b16 %v2804
      %v3633 = vunpack.c.l.b16 %v2818
      %v3634 = vunpack.c.l.b16 %v2828
      %v3635 = vunpack.c.l.b16 %v2842
      %v3636 = vunpack.c.l.b16 %v2852
      %v3637 = vpack.c.b16 %v3606, %v3605
      %v3638 = vpack.c.b16 %v3608, %v3607
      %v3639 = vpack.c.b16 %v3610, %v3609
      %v3640 = vpack.c.b16 %v3612, %v3611
      %v3641 = vpack.c.b16 %v3614, %v3613
      %v3642 = vpack.c.b16 %v3616, %v3615
      %v3643 = vpack.c.b16 %v3618, %v3617
      %v3644 = vpack.c.b16 %v3620, %v3619
      %v3645 = vpack.c.b16 %v3622, %v3621
      %v3646 = vpack.c.b16 %v3624, %v3623
      %v3647 = vpack.c.b16 %v3626, %v3625
      %v3648 = vpack.c.b16 %v3628, %v3627
      %v3649 = vpack.c.b16 %v3630, %v3629
      %v3650 = vpack.c.b16 %v3632, %v3631
      %v3651 = vpack.c.b16 %v3634, %v3633
      %v3652 = vpack.c.b16 %v3636, %v3635
      %3653 = vrot.lane.b32.xlu0 %v3637, 56
      %v3654 = vpop.permute.xlu0 %3653
      %3655 = vrot.lane.b32.xlu0 %v3638, 56
      %v3656 = vpop.permute.xlu0 %3655
      %3657 = vrot.lane.b32.xlu0 %v3639, 56
      %v3658 = vpop.permute.xlu0 %3657
      %3659 = vrot.lane.b32.xlu0 %v3640, 56
      %v3660 = vpop.permute.xlu0 %3659
      %3661 = vrot.lane.b32.xlu0 %v3641, 56
      %v3662 = vpop.permute.xlu0 %3661
      %3663 = vrot.lane.b32.xlu0 %v3642, 56
      %v3664 = vpop.permute.xlu0 %3663
      %3665 = vrot.lane.b32.xlu0 %v3643, 56
      %v3666 = vpop.permute.xlu0 %3665
      %3667 = vrot.lane.b32.xlu0 %v3644, 56
      %v3668 = vpop.permute.xlu0 %3667
      %3669 = vrot.lane.b32.xlu0 %v3645, 56
      %v3670 = vpop.permute.xlu0 %3669
      %3671 = vrot.lane.b32.xlu0 %v3646, 56
      %v3672 = vpop.permute.xlu0 %3671
      %3673 = vrot.lane.b32.xlu0 %v3647, 56
      %v3674 = vpop.permute.xlu0 %3673
      %3675 = vrot.lane.b32.xlu0 %v3648, 56
      %v3676 = vpop.permute.xlu0 %3675
      %3677 = vrot.lane.b32.xlu0 %v3649, 56
      %v3678 = vpop.permute.xlu0 %3677
      %3679 = vrot.lane.b32.xlu0 %v3650, 56
      %v3680 = vpop.permute.xlu0 %3679
      %3681 = vrot.lane.b32.xlu0 %v3651, 56
      %v3682 = vpop.permute.xlu0 %3681
      %3683 = vrot.lane.b32.xlu0 %v3652, 56
      %v3684 = vpop.permute.xlu0 %3683
      %v3685 = vunpack.c.l.b16 %v2920
      %v3686 = vunpack.c.l.b16 %v2923
      %v3687 = vunpack.c.l.b16 %v2927
      %v3688 = vunpack.c.l.b16 %v2930
      %v3689 = vunpack.c.l.b16 %v2934
      %v3690 = vunpack.c.l.b16 %v2937
      %v3691 = vunpack.c.l.b16 %v2941
      %v3692 = vunpack.c.l.b16 %v2944
      %v3693 = vunpack.c.l.b16 %v2948
      %v3694 = vunpack.c.l.b16 %v2951
      %v3695 = vunpack.c.l.b16 %v2955
      %v3696 = vunpack.c.l.b16 %v2958
      %v3697 = vunpack.c.l.b16 %v2962
      %v3698 = vunpack.c.l.b16 %v2965
      %v3699 = vunpack.c.l.b16 %v2969
      %v3700 = vunpack.c.l.b16 %v2972
      %v3701 = vunpack.c.l.b16 %v2976
      %v3702 = vunpack.c.l.b16 %v2979
      %v3703 = vunpack.c.l.b16 %v2983
      %v3704 = vunpack.c.l.b16 %v2986
      %v3705 = vunpack.c.l.b16 %v2990
      %v3706 = vunpack.c.l.b16 %v2993
      %v3707 = vunpack.c.l.b16 %v2997
      %v3708 = vunpack.c.l.b16 %v3000
      %v3709 = vunpack.c.l.b16 %v3004
      %v3710 = vunpack.c.l.b16 %v3007
      %v3711 = vunpack.c.l.b16 %v3011
      %v3712 = vunpack.c.l.b16 %v3014
      %v3713 = vunpack.c.l.b16 %v3018
      %v3714 = vunpack.c.l.b16 %v3021
      %v3715 = vunpack.c.l.b16 %v3025
      %v3716 = vunpack.c.l.b16 %v3028
      %v3717 = vpack.c.b16 %v3686, %v3685
      %v3718 = vpack.c.b16 %v3688, %v3687
      %v3719 = vpack.c.b16 %v3690, %v3689
      %v3720 = vpack.c.b16 %v3692, %v3691
      %v3721 = vpack.c.b16 %v3694, %v3693
      %v3722 = vpack.c.b16 %v3696, %v3695
      %v3723 = vpack.c.b16 %v3698, %v3697
      %v3724 = vpack.c.b16 %v3700, %v3699
      %v3725 = vpack.c.b16 %v3702, %v3701
      %v3726 = vpack.c.b16 %v3704, %v3703
      %v3727 = vpack.c.b16 %v3706, %v3705
      %v3728 = vpack.c.b16 %v3708, %v3707
      %v3729 = vpack.c.b16 %v3710, %v3709
      %v3730 = vpack.c.b16 %v3712, %v3711
      %v3731 = vpack.c.b16 %v3714, %v3713
      %v3732 = vpack.c.b16 %v3716, %v3715
      %3733 = vrot.lane.b32.xlu0 %v3717, 64
      %v3734 = vpop.permute.xlu0 %3733
      %3735 = vrot.lane.b32.xlu0 %v3718, 64
      %v3736 = vpop.permute.xlu0 %3735
      %3737 = vrot.lane.b32.xlu0 %v3719, 64
      %v3738 = vpop.permute.xlu0 %3737
      %3739 = vrot.lane.b32.xlu0 %v3720, 64
      %v3740 = vpop.permute.xlu0 %3739
      %3741 = vrot.lane.b32.xlu0 %v3721, 64
      %v3742 = vpop.permute.xlu0 %3741
      %3743 = vrot.lane.b32.xlu0 %v3722, 64
      %v3744 = vpop.permute.xlu0 %3743
      %3745 = vrot.lane.b32.xlu0 %v3723, 64
      %v3746 = vpop.permute.xlu0 %3745
      %3747 = vrot.lane.b32.xlu0 %v3724, 64
      %v3748 = vpop.permute.xlu0 %3747
      %3749 = vrot.lane.b32.xlu0 %v3725, 64
      %v3750 = vpop.permute.xlu0 %3749
      %3751 = vrot.lane.b32.xlu0 %v3726, 64
      %v3752 = vpop.permute.xlu0 %3751
      %3753 = vrot.lane.b32.xlu0 %v3727, 64
      %v3754 = vpop.permute.xlu0 %3753
      %3755 = vrot.lane.b32.xlu0 %v3728, 64
      %v3756 = vpop.permute.xlu0 %3755
      %3757 = vrot.lane.b32.xlu0 %v3729, 64
      %v3758 = vpop.permute.xlu0 %3757
      %3759 = vrot.lane.b32.xlu0 %v3730, 64
      %v3760 = vpop.permute.xlu0 %3759
      %3761 = vrot.lane.b32.xlu0 %v3731, 64
      %v3762 = vpop.permute.xlu0 %3761
      %3763 = vrot.lane.b32.xlu0 %v3732, 64
      %v3764 = vpop.permute.xlu0 %3763
      %vm3765 = vcmask 64512
      %v3768 = vsel %vm3765, %v3077, %v3142
      %v3771 = vsel %vm3765, %v3078, %v3144
      %v3774 = vsel %vm3765, %v3079, %v3146
      %v3777 = vsel %vm3765, %v3080, %v3148
      %v3780 = vsel %vm3765, %v3081, %v3150
      %v3783 = vsel %vm3765, %v3082, %v3152
      %v3786 = vsel %vm3765, %v3083, %v3154
      %v3789 = vsel %vm3765, %v3084, %v3156
      %v3792 = vsel %vm3765, %v3085, %v3158
      %v3795 = vsel %vm3765, %v3086, %v3160
      %v3798 = vsel %vm3765, %v3087, %v3162
      %v3801 = vsel %vm3765, %v3088, %v3164
      %v3804 = vsel %vm3765, %v3089, %v3166
      %v3807 = vsel %vm3765, %v3090, %v3168
      %v3810 = vsel %vm3765, %v3091, %v3170
      %v3813 = vsel %vm3765, %v3092, %v3172
      %vm3814 = vcmask 130048
      %v3816 = vsel %vm3814, %v3768, %v3222
      %v3818 = vsel %vm3814, %v3771, %v3224
      %v3820 = vsel %vm3814, %v3774, %v3226
      %v3822 = vsel %vm3814, %v3777, %v3228
      %v3824 = vsel %vm3814, %v3780, %v3230
      %v3826 = vsel %vm3814, %v3783, %v3232
      %v3828 = vsel %vm3814, %v3786, %v3234
      %v3830 = vsel %vm3814, %v3789, %v3236
      %v3832 = vsel %vm3814, %v3792, %v3238
      %v3834 = vsel %vm3814, %v3795, %v3240
      %v3836 = vsel %vm3814, %v3798, %v3242
      %v3838 = vsel %vm3814, %v3801, %v3244
      %v3840 = vsel %vm3814, %v3804, %v3246
      %v3842 = vsel %vm3814, %v3807, %v3248
      %v3844 = vsel %vm3814, %v3810, %v3250
      %v3846 = vsel %vm3814, %v3813, %v3252
      %vm3847 = vcmask 195584
      %v3849 = vsel %vm3847, %v3816, %v3318
      %v3851 = vsel %vm3847, %v3818, %v3320
      %v3853 = vsel %vm3847, %v3820, %v3322
      %v3855 = vsel %vm3847, %v3822, %v3324
      %v3857 = vsel %vm3847, %v3824, %v3326
      %v3859 = vsel %vm3847, %v3826, %v3328
      %v3861 = vsel %vm3847, %v3828, %v3330
      %v3863 = vsel %vm3847, %v3830, %v3332
      %v3865 = vsel %vm3847, %v3832, %v3334
      %v3867 = vsel %vm3847, %v3834, %v3336
      %v3869 = vsel %vm3847, %v3836, %v3338
      %v3871 = vsel %vm3847, %v3838, %v3340
      %v3873 = vsel %vm3847, %v3840, %v3342
      %v3875 = vsel %vm3847, %v3842, %v3344
      %v3877 = vsel %vm3847, %v3844, %v3346
      %v3879 = vsel %vm3847, %v3846, %v3348
      %vm3880 = vcmask 261120
      %v3882 = vsel %vm3880, %v3849, %v3398
      %v3884 = vsel %vm3880, %v3851, %v3400
      %v3886 = vsel %vm3880, %v3853, %v3402
      %v3888 = vsel %vm3880, %v3855, %v3404
      %v3890 = vsel %vm3880, %v3857, %v3406
      %v3892 = vsel %vm3880, %v3859, %v3408
      %v3894 = vsel %vm3880, %v3861, %v3410
      %v3896 = vsel %vm3880, %v3863, %v3412
      %v3898 = vsel %vm3880, %v3865, %v3414
      %v3900 = vsel %vm3880, %v3867, %v3416
      %v3902 = vsel %vm3880, %v3869, %v3418
      %v3904 = vsel %vm3880, %v3871, %v3420
      %v3906 = vsel %vm3880, %v3873, %v3422
      %v3908 = vsel %vm3880, %v3875, %v3424
      %v3910 = vsel %vm3880, %v3877, %v3426
      %v3912 = vsel %vm3880, %v3879, %v3428
      %vm3913 = vcmask 326656
      %v3915 = vsel %vm3913, %v3882, %v3478
      %v3917 = vsel %vm3913, %v3884, %v3480
      %v3919 = vsel %vm3913, %v3886, %v3482
      %v3921 = vsel %vm3913, %v3888, %v3484
      %v3923 = vsel %vm3913, %v3890, %v3486
      %v3925 = vsel %vm3913, %v3892, %v3488
      %v3927 = vsel %vm3913, %v3894, %v3490
      %v3929 = vsel %vm3913, %v3896, %v3492
      %v3931 = vsel %vm3913, %v3898, %v3494
      %v3933 = vsel %vm3913, %v3900, %v3496
      %v3935 = vsel %vm3913, %v3902, %v3498
      %v3937 = vsel %vm3913, %v3904, %v3500
      %v3939 = vsel %vm3913, %v3906, %v3502
      %v3941 = vsel %vm3913, %v3908, %v3504
      %v3943 = vsel %vm3913, %v3910, %v3506
      %v3945 = vsel %vm3913, %v3912, %v3508
      %vm3946 = vcmask 392192
      %v3948 = vsel %vm3946, %v3915, %v3574
      %v3950 = vsel %vm3946, %v3917, %v3576
      %v3952 = vsel %vm3946, %v3919, %v3578
      %v3954 = vsel %vm3946, %v3921, %v3580
      %v3956 = vsel %vm3946, %v3923, %v3582
      %v3958 = vsel %vm3946, %v3925, %v3584
      %v3960 = vsel %vm3946, %v3927, %v3586
      %v3962 = vsel %vm3946, %v3929, %v3588
      %v3964 = vsel %vm3946, %v3931, %v3590
      %v3966 = vsel %vm3946, %v3933, %v3592
      %v3968 = vsel %vm3946, %v3935, %v3594
      %v3970 = vsel %vm3946, %v3937, %v3596
      %v3972 = vsel %vm3946, %v3939, %v3598
      %v3974 = vsel %vm3946, %v3941, %v3600
      %v3976 = vsel %vm3946, %v3943, %v3602
      %v3978 = vsel %vm3946, %v3945, %v3604
      %vm3979 = vcmask 457728
      %v3981 = vsel %vm3979, %v3948, %v3654
      %v3983 = vsel %vm3979, %v3950, %v3656
      %v3985 = vsel %vm3979, %v3952, %v3658
      %v3987 = vsel %vm3979, %v3954, %v3660
      %v3989 = vsel %vm3979, %v3956, %v3662
      %v3991 = vsel %vm3979, %v3958, %v3664
      %v3993 = vsel %vm3979, %v3960, %v3666
      %v3995 = vsel %vm3979, %v3962, %v3668
      %v3997 = vsel %vm3979, %v3964, %v3670
      %v3999 = vsel %vm3979, %v3966, %v3672
      %v4001 = vsel %vm3979, %v3968, %v3674
      %v4003 = vsel %vm3979, %v3970, %v3676
      %v4005 = vsel %vm3979, %v3972, %v3678
      %v4007 = vsel %vm3979, %v3974, %v3680
      %v4009 = vsel %vm3979, %v3976, %v3682
      %v4011 = vsel %vm3979, %v3978, %v3684
      %vm4012 = vcmask 523264
      %v4014 = vsel %vm4012, %v3981, %v3734
      %v4016 = vsel %vm4012, %v3983, %v3736
      %v4018 = vsel %vm4012, %v3985, %v3738
      %v4020 = vsel %vm4012, %v3987, %v3740
      %v4022 = vsel %vm4012, %v3989, %v3742
      %v4024 = vsel %vm4012, %v3991, %v3744
      %v4026 = vsel %vm4012, %v3993, %v3746
      %v4028 = vsel %vm4012, %v3995, %v3748
      %v4030 = vsel %vm4012, %v3997, %v3750
      %v4032 = vsel %vm4012, %v3999, %v3752
      %v4034 = vsel %vm4012, %v4001, %v3754
      %v4036 = vsel %vm4012, %v4003, %v3756
      %v4038 = vsel %vm4012, %v4005, %v3758
      %v4040 = vsel %vm4012, %v4007, %v3760
      %v4042 = vsel %vm4012, %v4009, %v3762
      %v4044 = vsel %vm4012, %v4011, %v3764
      %v4045 = vld [vmem:[%s1] sm:$0xf]
      %v4046 = vld [vmem:[%s1 + $0x4] sm:$0xf]
      %v4047 = vld [vmem:[%s1 + $0x8] sm:$0xf]
      %v4048 = vld [vmem:[%s1 + $0xc] sm:$0xf]
      %v4049 = vld [vmem:[%s1 + $0x10] sm:$0xf]
      %v4050 = vld [vmem:[%s1 + $0x14] sm:$0xf]
      %v4051 = vld [vmem:[%s1 + $0x18] sm:$0xf]
      %v4052 = vld [vmem:[%s1 + $0x1c] sm:$0xf]
      %v4053 = vld [vmem:[%s1 + $0x20] sm:$0xf]
      %v4063 = vunpack.c.l.b16 %v4045
      %v4064 = vunpack.c.l.b16 %v4046
      %v4065 = vunpack.c.l.b16 %v4047
      %v4066 = vunpack.c.l.b16 %v4048
      %v4067 = vunpack.c.l.b16 %v4049
      %v4068 = vunpack.c.l.b16 %v4050
      %v4069 = vunpack.c.l.b16 %v4051
      %v4070 = vunpack.c.l.b16 %v4052
      %v4071 = vunpack.c.l.b16 %v4053
      %v4072 = vpack.c.b16 %v4064, %v4063
      %v4073 = vpack.c.b16 %v4066, %v4065
      %v4074 = vpack.c.b16 %v4068, %v4067
      %v4075 = vpack.c.b16 %v4070, %v4069
      %v4076 = vpack.c.b16 %v4071, %v4071
      %vm4081 = vcmask 588800
      %v4082 = vsel %vm4081, %v4014, 0
      %v4084 = vsel %vm4081, %v4016, 0
      %v4086 = vsel %vm4081, %v4018, 0
      %v4088 = vsel %vm4081, %v4020, 0
      %v4090 = vsel %vm4081, %v4022, 0
      %v4092 = vsel %vm4081, %v4024, 0
      %v4094 = vsel %vm4081, %v4026, 0
      %v4096 = vsel %vm4081, %v4028, 0
      %v4098 = vsel %vm4081, %v4030, 0
      %v4100 = vsel %vm4081, %v4032, 0
      %v4102 = vsel %vm4081, %v4034, 0
      %v4104 = vsel %vm4081, %v4036, 0
      %v4106 = vsel %vm4081, %v4038, 0
      %v4108 = vsel %vm4081, %v4040, 0
      %v4110 = vsel %vm4081, %v4042, 0
      %v4112 = vsel %vm4081, %v4044, 0
      %vm4114 = vcmask 1043456
      %v4116 = vsel %vm4114, %v4076, 0
      %4118 = vmatpush.bf16.msra.mxu0 0
      %4119 = vmatpush.bf16.msra.mxu0 0
      %4120 = vmatpush.bf16.msra.mxu0 0
      %4121 = vmatpush.bf16.msra.mxu0 %v4116
      %4122 = vmatpush.bf16.msra.mxu0 %v4075
      %4123 = vmatpush.bf16.msra.mxu0 %v4074
      %4124 = vmatpush.bf16.msra.mxu0 %v4073
      %4125 = vmatpush.bf16.msra.mxu0 %v4072
      %4126 = vmatmul.bf16.gmra.mxu0 %v4082
      %v4127 = vpop.f32.mrf.mxu0
      %v4128 = vadd.f32 0.0, %v4127
      %v4129 = vpop.f32.mrf.mxu0
      %v4130 = vadd.f32 0.0, %v4129
      %4131 = vmatmul.bf16.gmra.mxu0 %v4084
      %v4132 = vpop.f32.mrf.mxu0
      %v4133 = vadd.f32 0.0, %v4132
      %v4134 = vpop.f32.mrf.mxu0
      %v4135 = vadd.f32 0.0, %v4134
      %4136 = vmatmul.bf16.gmra.mxu0 %v4086
      %v4137 = vpop.f32.mrf.mxu0
      %v4138 = vadd.f32 0.0, %v4137
      %v4139 = vpop.f32.mrf.mxu0
      %v4140 = vadd.f32 0.0, %v4139
      %4141 = vmatmul.bf16.gmra.mxu0 %v4088
      %v4142 = vpop.f32.mrf.mxu0
      %v4143 = vadd.f32 0.0, %v4142
      %v4144 = vpop.f32.mrf.mxu0
      %v4145 = vadd.f32 0.0, %v4144
      %4146 = vmatmul.bf16.gmra.mxu0 %v4090
      %v4147 = vpop.f32.mrf.mxu0
      %v4148 = vadd.f32 0.0, %v4147
      %v4149 = vpop.f32.mrf.mxu0
      %v4150 = vadd.f32 0.0, %v4149
      %4151 = vmatmul.bf16.gmra.mxu0 %v4092
      %v4152 = vpop.f32.mrf.mxu0
      %v4153 = vadd.f32 0.0, %v4152
      %v4154 = vpop.f32.mrf.mxu0
      %v4155 = vadd.f32 0.0, %v4154
      %4156 = vmatmul.bf16.gmra.mxu0 %v4094
      %v4157 = vpop.f32.mrf.mxu0
      %v4158 = vadd.f32 0.0, %v4157
      %v4159 = vpop.f32.mrf.mxu0
      %v4160 = vadd.f32 0.0, %v4159
      %4161 = vmatmul.bf16.gmra.mxu0 %v4096
      %v4162 = vpop.f32.mrf.mxu0
      %v4163 = vadd.f32 0.0, %v4162
      %v4164 = vpop.f32.mrf.mxu0
      %v4165 = vadd.f32 0.0, %v4164
      %4166 = vmatmul.bf16.gmra.mxu0 %v4098
      %v4167 = vpop.f32.mrf.mxu0
      %v4168 = vadd.f32 0.0, %v4167
      %v4169 = vpop.f32.mrf.mxu0
      %v4170 = vadd.f32 0.0, %v4169
      %4171 = vmatmul.bf16.gmra.mxu0 %v4100
      %v4172 = vpop.f32.mrf.mxu0
      %v4173 = vadd.f32 0.0, %v4172
      %v4174 = vpop.f32.mrf.mxu0
      %v4175 = vadd.f32 0.0, %v4174
      %4176 = vmatmul.bf16.gmra.mxu0 %v4102
      %v4177 = vpop.f32.mrf.mxu0
      %v4178 = vadd.f32 0.0, %v4177
      %v4179 = vpop.f32.mrf.mxu0
      %v4180 = vadd.f32 0.0, %v4179
      %4181 = vmatmul.bf16.gmra.mxu0 %v4104
      %v4182 = vpop.f32.mrf.mxu0
      %v4183 = vadd.f32 0.0, %v4182
      %v4184 = vpop.f32.mrf.mxu0
      %v4185 = vadd.f32 0.0, %v4184
      %4186 = vmatmul.bf16.gmra.mxu0 %v4106
      %v4187 = vpop.f32.mrf.mxu0
      %v4188 = vadd.f32 0.0, %v4187
      %v4189 = vpop.f32.mrf.mxu0
      %v4190 = vadd.f32 0.0, %v4189
      %4191 = vmatmul.bf16.gmra.mxu0 %v4108
      %v4192 = vpop.f32.mrf.mxu0
      %v4193 = vadd.f32 0.0, %v4192
      %v4194 = vpop.f32.mrf.mxu0
      %v4195 = vadd.f32 0.0, %v4194
      %4196 = vmatmul.bf16.gmra.mxu0 %v4110
      %v4197 = vpop.f32.mrf.mxu0
      %v4198 = vadd.f32 0.0, %v4197
      %v4199 = vpop.f32.mrf.mxu0
      %v4200 = vadd.f32 0.0, %v4199
      %4201 = vmatmul.bf16.gmra.mxu0 %v4112
      %v4202 = vpop.f32.mrf.mxu0
      %v4203 = vadd.f32 0.0, %v4202
      %v4204 = vpop.f32.mrf.mxu0
      %v4205 = vadd.f32 0.0, %v4204
      %4206 = vdwg.mxu0
      %v4207 = vperm.slane %v1197, 0
      %v4208 = vmul.f32 %v4128, %v4207
      %v4209 = vmul.f32 %v4130, %v4207
      %v4210 = vmul.f32 %v4133, %v4207
      %v4211 = vmul.f32 %v4135, %v4207
      %v4212 = vmul.f32 %v4138, %v4207
      %v4213 = vmul.f32 %v4140, %v4207
      %v4214 = vmul.f32 %v4143, %v4207
      %v4215 = vmul.f32 %v4145, %v4207
      %v4216 = vmul.f32 %v4148, %v4207
      %v4217 = vmul.f32 %v4150, %v4207
      %v4218 = vmul.f32 %v4153, %v4207
      %v4219 = vmul.f32 %v4155, %v4207
      %v4220 = vmul.f32 %v4158, %v4207
      %v4221 = vmul.f32 %v4160, %v4207
      %v4222 = vmul.f32 %v4163, %v4207
      %v4223 = vmul.f32 %v4165, %v4207
      %v4224 = vmul.f32 %v4168, %v4207
      %v4225 = vmul.f32 %v4170, %v4207
      %v4226 = vmul.f32 %v4173, %v4207
      %v4227 = vmul.f32 %v4175, %v4207
      %v4228 = vmul.f32 %v4178, %v4207
      %v4229 = vmul.f32 %v4180, %v4207
      %v4230 = vmul.f32 %v4183, %v4207
      %v4231 = vmul.f32 %v4185, %v4207
      %v4232 = vmul.f32 %v4188, %v4207
      %v4233 = vmul.f32 %v4190, %v4207
      %v4234 = vmul.f32 %v4193, %v4207
      %v4235 = vmul.f32 %v4195, %v4207
      %v4236 = vmul.f32 %v4198, %v4207
      %v4237 = vmul.f32 %v4200, %v4207
      %v4238 = vmul.f32 %v4203, %v4207
      %v4239 = vmul.f32 %v4205, %v4207
      %v4240 = vperm.slane %v1197, 1
      %v4241 = vadd.f32 %v4208, %v4240
      %v4242 = vadd.f32 %v4209, %v4240
      %v4243 = vadd.f32 %v4210, %v4240
      %v4244 = vadd.f32 %v4211, %v4240
      %v4245 = vadd.f32 %v4212, %v4240
      %v4246 = vadd.f32 %v4213, %v4240
      %v4247 = vadd.f32 %v4214, %v4240
      %v4248 = vadd.f32 %v4215, %v4240
      %v4249 = vadd.f32 %v4216, %v4240
      %v4250 = vadd.f32 %v4217, %v4240
      %v4251 = vadd.f32 %v4218, %v4240
      %v4252 = vadd.f32 %v4219, %v4240
      %v4253 = vadd.f32 %v4220, %v4240
      %v4254 = vadd.f32 %v4221, %v4240
      %v4255 = vadd.f32 %v4222, %v4240
      %v4256 = vadd.f32 %v4223, %v4240
      %v4257 = vadd.f32 %v4224, %v4240
      %v4258 = vadd.f32 %v4225, %v4240
      %v4259 = vadd.f32 %v4226, %v4240
      %v4260 = vadd.f32 %v4227, %v4240
      %v4261 = vadd.f32 %v4228, %v4240
      %v4262 = vadd.f32 %v4229, %v4240
      %v4263 = vadd.f32 %v4230, %v4240
      %v4264 = vadd.f32 %v4231, %v4240
      %v4265 = vadd.f32 %v4232, %v4240
      %v4266 = vadd.f32 %v4233, %v4240
      %v4267 = vadd.f32 %v4234, %v4240
      %v4268 = vadd.f32 %v4235, %v4240
      %v4269 = vadd.f32 %v4236, %v4240
      %v4270 = vadd.f32 %v4237, %v4240
      %v4271 = vadd.f32 %v4238, %v4240
      %v4272 = vadd.f32 %v4239, %v4240
      %v4273 = vmax.f32 %v4241, 0.0
      %v4274 = vmax.f32 %v4242, 0.0
      %v4275 = vmax.f32 %v4243, 0.0
      %v4276 = vmax.f32 %v4244, 0.0
      %v4277 = vmax.f32 %v4245, 0.0
      %v4278 = vmax.f32 %v4246, 0.0
      %v4279 = vmax.f32 %v4247, 0.0
      %v4280 = vmax.f32 %v4248, 0.0
      %v4281 = vmax.f32 %v4249, 0.0
      %v4282 = vmax.f32 %v4250, 0.0
      %v4283 = vmax.f32 %v4251, 0.0
      %v4284 = vmax.f32 %v4252, 0.0
      %v4285 = vmax.f32 %v4253, 0.0
      %v4286 = vmax.f32 %v4254, 0.0
      %v4287 = vmax.f32 %v4255, 0.0
      %v4288 = vmax.f32 %v4256, 0.0
      %v4289 = vmax.f32 %v4257, 0.0
      %v4290 = vmax.f32 %v4258, 0.0
      %v4291 = vmax.f32 %v4259, 0.0
      %v4292 = vmax.f32 %v4260, 0.0
      %v4293 = vmax.f32 %v4261, 0.0
      %v4294 = vmax.f32 %v4262, 0.0
      %v4295 = vmax.f32 %v4263, 0.0
      %v4296 = vmax.f32 %v4264, 0.0
      %v4297 = vmax.f32 %v4265, 0.0
      %v4298 = vmax.f32 %v4266, 0.0
      %v4299 = vmax.f32 %v4267, 0.0
      %v4300 = vmax.f32 %v4268, 0.0
      %v4301 = vmax.f32 %v4269, 0.0
      %v4302 = vmax.f32 %v4270, 0.0
      %v4303 = vmax.f32 %v4271, 0.0
      %v4304 = vmax.f32 %v4272, 0.0
      %v4305 = vperm.slane %v1197, 2
      %4307 = vrot.lane.b32.xlu0 %v4305, 32
      %v4308 = vpop.permute.xlu0 %4307
      %v4310 = vmul.f32 %v4128, %v4308
      %v4311 = vmul.f32 %v4130, %v4308
      %v4312 = vmul.f32 %v4133, %v4308
      %v4313 = vmul.f32 %v4135, %v4308
      %v4314 = vmul.f32 %v4138, %v4308
      %v4315 = vmul.f32 %v4140, %v4308
      %v4316 = vmul.f32 %v4143, %v4308
      %v4317 = vmul.f32 %v4145, %v4308
      %v4318 = vmul.f32 %v4148, %v4308
      %v4319 = vmul.f32 %v4150, %v4308
      %v4320 = vmul.f32 %v4153, %v4308
      %v4321 = vmul.f32 %v4155, %v4308
      %v4322 = vmul.f32 %v4158, %v4308
      %v4323 = vmul.f32 %v4160, %v4308
      %v4324 = vmul.f32 %v4163, %v4308
      %v4325 = vmul.f32 %v4165, %v4308
      %v4326 = vmul.f32 %v4168, %v4308
      %v4327 = vmul.f32 %v4170, %v4308
      %v4328 = vmul.f32 %v4173, %v4308
      %v4329 = vmul.f32 %v4175, %v4308
      %v4330 = vmul.f32 %v4178, %v4308
      %v4331 = vmul.f32 %v4180, %v4308
      %v4332 = vmul.f32 %v4183, %v4308
      %v4333 = vmul.f32 %v4185, %v4308
      %v4334 = vmul.f32 %v4188, %v4308
      %v4335 = vmul.f32 %v4190, %v4308
      %v4336 = vmul.f32 %v4193, %v4308
      %v4337 = vmul.f32 %v4195, %v4308
      %v4338 = vmul.f32 %v4198, %v4308
      %v4339 = vmul.f32 %v4200, %v4308
      %v4340 = vmul.f32 %v4203, %v4308
      %v4341 = vmul.f32 %v4205, %v4308
      %v4342 = vperm.slane %v1197, 3
      %4344 = vrot.lane.b32.xlu0 %v4342, 32
      %v4345 = vpop.permute.xlu0 %4344
      %v4347 = vadd.f32 %v4310, %v4345
      %v4348 = vadd.f32 %v4311, %v4345
      %v4349 = vadd.f32 %v4312, %v4345
      %v4350 = vadd.f32 %v4313, %v4345
      %v4351 = vadd.f32 %v4314, %v4345
      %v4352 = vadd.f32 %v4315, %v4345
      %v4353 = vadd.f32 %v4316, %v4345
      %v4354 = vadd.f32 %v4317, %v4345
      %v4355 = vadd.f32 %v4318, %v4345
      %v4356 = vadd.f32 %v4319, %v4345
      %v4357 = vadd.f32 %v4320, %v4345
      %v4358 = vadd.f32 %v4321, %v4345
      %v4359 = vadd.f32 %v4322, %v4345
      %v4360 = vadd.f32 %v4323, %v4345
      %v4361 = vadd.f32 %v4324, %v4345
      %v4362 = vadd.f32 %v4325, %v4345
      %v4363 = vadd.f32 %v4326, %v4345
      %v4364 = vadd.f32 %v4327, %v4345
      %v4365 = vadd.f32 %v4328, %v4345
      %v4366 = vadd.f32 %v4329, %v4345
      %v4367 = vadd.f32 %v4330, %v4345
      %v4368 = vadd.f32 %v4331, %v4345
      %v4369 = vadd.f32 %v4332, %v4345
      %v4370 = vadd.f32 %v4333, %v4345
      %v4371 = vadd.f32 %v4334, %v4345
      %v4372 = vadd.f32 %v4335, %v4345
      %v4373 = vadd.f32 %v4336, %v4345
      %v4374 = vadd.f32 %v4337, %v4345
      %v4375 = vadd.f32 %v4338, %v4345
      %v4376 = vadd.f32 %v4339, %v4345
      %v4377 = vadd.f32 %v4340, %v4345
      %v4378 = vadd.f32 %v4341, %v4345
      %v4379 = vpack.c.bf16 %v4273, %v4273
      %v4380 = vpack.c.bf16 %v4274, %v4274
      %v4381 = vpack.c.bf16 %v4275, %v4275
      %v4382 = vpack.c.bf16 %v4276, %v4276
      %v4383 = vpack.c.bf16 %v4277, %v4277
      %v4384 = vpack.c.bf16 %v4278, %v4278
      %v4385 = vpack.c.bf16 %v4279, %v4279
      %v4386 = vpack.c.bf16 %v4280, %v4280
      %v4387 = vpack.c.bf16 %v4281, %v4281
      %v4388 = vpack.c.bf16 %v4282, %v4282
      %v4389 = vpack.c.bf16 %v4283, %v4283
      %v4390 = vpack.c.bf16 %v4284, %v4284
      %v4391 = vpack.c.bf16 %v4285, %v4285
      %v4392 = vpack.c.bf16 %v4286, %v4286
      %v4393 = vpack.c.bf16 %v4287, %v4287
      %v4394 = vpack.c.bf16 %v4288, %v4288
      %v4395 = vpack.c.bf16 %v4289, %v4289
      %v4396 = vpack.c.bf16 %v4290, %v4290
      %v4397 = vpack.c.bf16 %v4291, %v4291
      %v4398 = vpack.c.bf16 %v4292, %v4292
      %v4399 = vpack.c.bf16 %v4293, %v4293
      %v4400 = vpack.c.bf16 %v4294, %v4294
      %v4401 = vpack.c.bf16 %v4295, %v4295
      %v4402 = vpack.c.bf16 %v4296, %v4296
      %v4403 = vpack.c.bf16 %v4297, %v4297
      %v4404 = vpack.c.bf16 %v4298, %v4298
      %v4405 = vpack.c.bf16 %v4299, %v4299
      %v4406 = vpack.c.bf16 %v4300, %v4300
      %v4407 = vpack.c.bf16 %v4301, %v4301
      %v4408 = vpack.c.bf16 %v4302, %v4302
      %v4409 = vpack.c.bf16 %v4303, %v4303
      %v4410 = vpack.c.bf16 %v4304, %v4304
      %v4412 = vshrl.u32 %v4379, 16
      %v4414 = vrot.slane %v4412, 7
      %v4415 = vshll.u32 %v4379, 16
      %v4417 = vor.u32 %v4414, %v4415
      %v4418 = vrot.slane %v4414, 4
      %v4420 = vshrl.u32 %v4380, 16
      %v4422 = vrot.slane %v4420, 7
      %v4423 = vshll.u32 %v4380, 16
      %v4425 = vor.u32 %v4422, %v4423
      %v4426 = vsel %vm343, %v4418, %v4425
      %v4427 = vrot.slane %v4422, 4
      %v4429 = vshrl.u32 %v4381, 16
      %v4431 = vrot.slane %v4429, 7
      %v4432 = vshll.u32 %v4381, 16
      %v4434 = vor.u32 %v4431, %v4432
      %v4435 = vrot.slane %v4431, 4
      %v4437 = vshrl.u32 %v4382, 16
      %v4439 = vrot.slane %v4437, 7
      %v4440 = vshll.u32 %v4382, 16
      %v4442 = vor.u32 %v4439, %v4440
      %v4443 = vsel %vm343, %v4435, %v4442
      %v4444 = vrot.slane %v4439, 4
      %v4446 = vshrl.u32 %v4383, 16
      %v4448 = vrot.slane %v4446, 7
      %v4449 = vshll.u32 %v4383, 16
      %v4451 = vor.u32 %v4448, %v4449
      %v4452 = vrot.slane %v4448, 4
      %v4454 = vshrl.u32 %v4384, 16
      %v4456 = vrot.slane %v4454, 7
      %v4457 = vshll.u32 %v4384, 16
      %v4459 = vor.u32 %v4456, %v4457
      %v4460 = vsel %vm343, %v4452, %v4459
      %v4461 = vrot.slane %v4456, 4
      %v4463 = vshrl.u32 %v4385, 16
      %v4465 = vrot.slane %v4463, 7
      %v4466 = vshll.u32 %v4385, 16
      %v4468 = vor.u32 %v4465, %v4466
      %v4469 = vrot.slane %v4465, 4
      %v4471 = vshrl.u32 %v4386, 16
      %v4473 = vrot.slane %v4471, 7
      %v4474 = vshll.u32 %v4386, 16
      %v4476 = vor.u32 %v4473, %v4474
      %v4477 = vsel %vm343, %v4469, %v4476
      %v4478 = vrot.slane %v4473, 4
      %v4480 = vshrl.u32 %v4387, 16
      %v4482 = vrot.slane %v4480, 7
      %v4483 = vshll.u32 %v4387, 16
      %v4485 = vor.u32 %v4482, %v4483
      %v4486 = vrot.slane %v4482, 4
      %v4488 = vshrl.u32 %v4388, 16
      %v4490 = vrot.slane %v4488, 7
      %v4491 = vshll.u32 %v4388, 16
      %v4493 = vor.u32 %v4490, %v4491
      %v4494 = vsel %vm343, %v4486, %v4493
      %v4495 = vrot.slane %v4490, 4
      %v4497 = vshrl.u32 %v4389, 16
      %v4499 = vrot.slane %v4497, 7
      %v4500 = vshll.u32 %v4389, 16
      %v4502 = vor.u32 %v4499, %v4500
      %v4503 = vrot.slane %v4499, 4
      %v4505 = vshrl.u32 %v4390, 16
      %v4507 = vrot.slane %v4505, 7
      %v4508 = vshll.u32 %v4390, 16
      %v4510 = vor.u32 %v4507, %v4508
      %v4511 = vsel %vm343, %v4503, %v4510
      %v4512 = vrot.slane %v4507, 4
      %v4514 = vshrl.u32 %v4391, 16
      %v4516 = vrot.slane %v4514, 7
      %v4517 = vshll.u32 %v4391, 16
      %v4519 = vor.u32 %v4516, %v4517
      %v4520 = vrot.slane %v4516, 4
      %v4522 = vshrl.u32 %v4392, 16
      %v4524 = vrot.slane %v4522, 7
      %v4525 = vshll.u32 %v4392, 16
      %v4527 = vor.u32 %v4524, %v4525
      %v4528 = vsel %vm343, %v4520, %v4527
      %v4529 = vrot.slane %v4524, 4
      %v4531 = vshrl.u32 %v4393, 16
      %v4533 = vrot.slane %v4531, 7
      %v4534 = vshll.u32 %v4393, 16
      %v4536 = vor.u32 %v4533, %v4534
      %v4537 = vrot.slane %v4533, 4
      %v4539 = vshrl.u32 %v4394, 16
      %v4541 = vrot.slane %v4539, 7
      %v4542 = vshll.u32 %v4394, 16
      %v4544 = vor.u32 %v4541, %v4542
      %v4545 = vsel %vm343, %v4537, %v4544
      %v4546 = vrot.slane %v4541, 4
      %v4548 = vshrl.u32 %v4395, 16
      %v4550 = vrot.slane %v4548, 7
      %v4551 = vshll.u32 %v4395, 16
      %v4553 = vor.u32 %v4550, %v4551
      %v4554 = vrot.slane %v4550, 4
      %v4556 = vshrl.u32 %v4396, 16
      %v4558 = vrot.slane %v4556, 7
      %v4559 = vshll.u32 %v4396, 16
      %v4561 = vor.u32 %v4558, %v4559
      %v4562 = vsel %vm343, %v4554, %v4561
      %v4563 = vrot.slane %v4558, 4
      %v4565 = vshrl.u32 %v4397, 16
      %v4567 = vrot.slane %v4565, 7
      %v4568 = vshll.u32 %v4397, 16
      %v4570 = vor.u32 %v4567, %v4568
      %v4571 = vrot.slane %v4567, 4
      %v4573 = vshrl.u32 %v4398, 16
      %v4575 = vrot.slane %v4573, 7
      %v4576 = vshll.u32 %v4398, 16
      %v4578 = vor.u32 %v4575, %v4576
      %v4579 = vsel %vm343, %v4571, %v4578
      %v4580 = vrot.slane %v4575, 4
      %v4582 = vshrl.u32 %v4399, 16
      %v4584 = vrot.slane %v4582, 7
      %v4585 = vshll.u32 %v4399, 16
      %v4587 = vor.u32 %v4584, %v4585
      %v4588 = vrot.slane %v4584, 4
      %v4590 = vshrl.u32 %v4400, 16
      %v4592 = vrot.slane %v4590, 7
      %v4593 = vshll.u32 %v4400, 16
      %v4595 = vor.u32 %v4592, %v4593
      %v4596 = vsel %vm343, %v4588, %v4595
      %v4597 = vrot.slane %v4592, 4
      %v4599 = vshrl.u32 %v4401, 16
      %v4601 = vrot.slane %v4599, 7
      %v4602 = vshll.u32 %v4401, 16
      %v4604 = vor.u32 %v4601, %v4602
      %v4605 = vrot.slane %v4601, 4
      %v4607 = vshrl.u32 %v4402, 16
      %v4609 = vrot.slane %v4607, 7
      %v4610 = vshll.u32 %v4402, 16
      %v4612 = vor.u32 %v4609, %v4610
      %v4613 = vsel %vm343, %v4605, %v4612
      %v4614 = vrot.slane %v4609, 4
      %v4616 = vshrl.u32 %v4403, 16
      %v4618 = vrot.slane %v4616, 7
      %v4619 = vshll.u32 %v4403, 16
      %v4621 = vor.u32 %v4618, %v4619
      %v4622 = vrot.slane %v4618, 4
      %v4624 = vshrl.u32 %v4404, 16
      %v4626 = vrot.slane %v4624, 7
      %v4627 = vshll.u32 %v4404, 16
      %v4629 = vor.u32 %v4626, %v4627
      %v4630 = vsel %vm343, %v4622, %v4629
      %v4631 = vrot.slane %v4626, 4
      %v4633 = vshrl.u32 %v4405, 16
      %v4635 = vrot.slane %v4633, 7
      %v4636 = vshll.u32 %v4405, 16
      %v4638 = vor.u32 %v4635, %v4636
      %v4639 = vrot.slane %v4635, 4
      %v4641 = vshrl.u32 %v4406, 16
      %v4643 = vrot.slane %v4641, 7
      %v4644 = vshll.u32 %v4406, 16
      %v4646 = vor.u32 %v4643, %v4644
      %v4647 = vsel %vm343, %v4639, %v4646
      %v4648 = vrot.slane %v4643, 4
      %v4650 = vshrl.u32 %v4407, 16
      %v4652 = vrot.slane %v4650, 7
      %v4653 = vshll.u32 %v4407, 16
      %v4655 = vor.u32 %v4652, %v4653
      %v4656 = vrot.slane %v4652, 4
      %v4658 = vshrl.u32 %v4408, 16
      %v4660 = vrot.slane %v4658, 7
      %v4661 = vshll.u32 %v4408, 16
      %v4663 = vor.u32 %v4660, %v4661
      %v4664 = vsel %vm343, %v4656, %v4663
      %v4665 = vrot.slane %v4660, 4
      %v4667 = vshrl.u32 %v4409, 16
      %v4669 = vrot.slane %v4667, 7
      %v4670 = vshll.u32 %v4409, 16
      %v4672 = vor.u32 %v4669, %v4670
      %v4673 = vrot.slane %v4669, 4
      %v4675 = vshrl.u32 %v4410, 16
      %v4677 = vrot.slane %v4675, 7
      %v4678 = vshll.u32 %v4410, 16
      %v4680 = vor.u32 %v4677, %v4678
      %v4681 = vsel %vm343, %v4673, %v4680
      %v4682 = vrot.slane %v4677, 4
      %v4731 = vld [vmem:[%s785] sm:$0xf]
      %v4732 = vsel %vm665, %v4417, %v4731
      %4733 = vst [vmem:[%s785] sm:$0xf] %v4732
      %4734 = vst.msk [vmem:[%s785 + $0x4] sm:$0xf] %vm199, %v4426
      %v4735 = vld [vmem:[%s785 + $0x8] sm:$0x1]
      %v4736 = vsel %vm211, %v4427, %v4735
      %4737 = vst [vmem:[%s785 + $0x8] sm:$0x1] %v4736
      %v4738 = vld [vmem:[%s785 + $0xc] sm:$0xf]
      %v4739 = vsel %vm665, %v4434, %v4738
      %4740 = vst [vmem:[%s785 + $0xc] sm:$0xf] %v4739
      %4741 = vst.msk [vmem:[%s785 + $0x10] sm:$0xf] %vm199, %v4443
      %v4742 = vld [vmem:[%s785 + $0x14] sm:$0x1]
      %v4743 = vsel %vm211, %v4444, %v4742
      %4744 = vst [vmem:[%s785 + $0x14] sm:$0x1] %v4743
      %v4745 = vld [vmem:[%s785 + $0x18] sm:$0xf]
      %v4746 = vsel %vm665, %v4451, %v4745
      %4747 = vst [vmem:[%s785 + $0x18] sm:$0xf] %v4746
      %4748 = vst.msk [vmem:[%s785 + $0x1c] sm:$0xf] %vm199, %v4460
      %v4749 = vld [vmem:[%s785 + $0x20] sm:$0x1]
      %v4750 = vsel %vm211, %v4461, %v4749
      %4751 = vst [vmem:[%s785 + $0x20] sm:$0x1] %v4750
      %v4752 = vld [vmem:[%s785 + $0x24] sm:$0xf]
      %v4753 = vsel %vm665, %v4468, %v4752
      %4754 = vst [vmem:[%s785 + $0x24] sm:$0xf] %v4753
      %4755 = vst.msk [vmem:[%s785 + $0x28] sm:$0xf] %vm199, %v4477
      %v4756 = vld [vmem:[%s785 + $0x2c] sm:$0x1]
      %v4757 = vsel %vm211, %v4478, %v4756
      %4758 = vst [vmem:[%s785 + $0x2c] sm:$0x1] %v4757
      %v4759 = vld [vmem:[%s785 + $0x30] sm:$0xf]
      %v4760 = vsel %vm665, %v4485, %v4759
      %4761 = vst [vmem:[%s785 + $0x30] sm:$0xf] %v4760
      %4762 = vst.msk [vmem:[%s785 + $0x34] sm:$0xf] %vm199, %v4494
      %v4763 = vld [vmem:[%s785 + $0x38] sm:$0x1]
      %v4764 = vsel %vm211, %v4495, %v4763
      %4765 = vst [vmem:[%s785 + $0x38] sm:$0x1] %v4764
      %v4766 = vld [vmem:[%s785 + $0x3c] sm:$0xf]
      %v4767 = vsel %vm665, %v4502, %v4766
      %4768 = vst [vmem:[%s785 + $0x3c] sm:$0xf] %v4767
      %4769 = vst.msk [vmem:[%s785 + $0x40] sm:$0xf] %vm199, %v4511
      %v4770 = vld [vmem:[%s785 + $0x44] sm:$0x1]
      %v4771 = vsel %vm211, %v4512, %v4770
      %4772 = vst [vmem:[%s785 + $0x44] sm:$0x1] %v4771
      %v4773 = vld [vmem:[%s785 + $0x48] sm:$0xf]
      %v4774 = vsel %vm665, %v4519, %v4773
      %4775 = vst [vmem:[%s785 + $0x48] sm:$0xf] %v4774
      %4776 = vst.msk [vmem:[%s785 + $0x4c] sm:$0xf] %vm199, %v4528
      %v4777 = vld [vmem:[%s785 + $0x50] sm:$0x1]
      %v4778 = vsel %vm211, %v4529, %v4777
      %4779 = vst [vmem:[%s785 + $0x50] sm:$0x1] %v4778
      %v4780 = vld [vmem:[%s785 + $0x54] sm:$0xf]
      %v4781 = vsel %vm665, %v4536, %v4780
      %4782 = vst [vmem:[%s785 + $0x54] sm:$0xf] %v4781
      %4783 = vst.msk [vmem:[%s785 + $0x58] sm:$0xf] %vm199, %v4545
      %v4784 = vld [vmem:[%s785 + $0x5c] sm:$0x1]
      %v4785 = vsel %vm211, %v4546, %v4784
      %4786 = vst [vmem:[%s785 + $0x5c] sm:$0x1] %v4785
      %v4787 = vld [vmem:[%s785 + $0x60] sm:$0xf]
      %v4788 = vsel %vm665, %v4553, %v4787
      %4789 = vst [vmem:[%s785 + $0x60] sm:$0xf] %v4788
      %4790 = vst.msk [vmem:[%s785 + $0x64] sm:$0xf] %vm199, %v4562
      %v4791 = vld [vmem:[%s785 + $0x68] sm:$0x1]
      %v4792 = vsel %vm211, %v4563, %v4791
      %4793 = vst [vmem:[%s785 + $0x68] sm:$0x1] %v4792
      %v4794 = vld [vmem:[%s785 + $0x6c] sm:$0xf]
      %v4795 = vsel %vm665, %v4570, %v4794
      %4796 = vst [vmem:[%s785 + $0x6c] sm:$0xf] %v4795
      %4797 = vst.msk [vmem:[%s785 + $0x70] sm:$0xf] %vm199, %v4579
      %v4798 = vld [vmem:[%s785 + $0x74] sm:$0x1]
      %v4799 = vsel %vm211, %v4580, %v4798
      %4800 = vst [vmem:[%s785 + $0x74] sm:$0x1] %v4799
      %v4801 = vld [vmem:[%s785 + $0x78] sm:$0xf]
      %v4802 = vsel %vm665, %v4587, %v4801
      %4803 = vst [vmem:[%s785 + $0x78] sm:$0xf] %v4802
      %4804 = vst.msk [vmem:[%s785 + $0x7c] sm:$0xf] %vm199, %v4596
      %v4805 = vld [vmem:[%s785 + $0x80] sm:$0x1]
      %v4806 = vsel %vm211, %v4597, %v4805
      %4807 = vst [vmem:[%s785 + $0x80] sm:$0x1] %v4806
      %v4808 = vld [vmem:[%s785 + $0x84] sm:$0xf]
      %v4809 = vsel %vm665, %v4604, %v4808
      %4810 = vst [vmem:[%s785 + $0x84] sm:$0xf] %v4809
      %4811 = vst.msk [vmem:[%s785 + $0x88] sm:$0xf] %vm199, %v4613
      %v4812 = vld [vmem:[%s785 + $0x8c] sm:$0x1]
      %v4813 = vsel %vm211, %v4614, %v4812
      %4814 = vst [vmem:[%s785 + $0x8c] sm:$0x1] %v4813
      %v4815 = vld [vmem:[%s785 + $0x90] sm:$0xf]
      %v4816 = vsel %vm665, %v4621, %v4815
      %4817 = vst [vmem:[%s785 + $0x90] sm:$0xf] %v4816
      %4818 = vst.msk [vmem:[%s785 + $0x94] sm:$0xf] %vm199, %v4630
      %v4819 = vld [vmem:[%s785 + $0x98] sm:$0x1]
      %v4820 = vsel %vm211, %v4631, %v4819
      %4821 = vst [vmem:[%s785 + $0x98] sm:$0x1] %v4820
      %v4822 = vld [vmem:[%s785 + $0x9c] sm:$0xf]
      %v4823 = vsel %vm665, %v4638, %v4822
      %4824 = vst [vmem:[%s785 + $0x9c] sm:$0xf] %v4823
      %4825 = vst.msk [vmem:[%s785 + $0xa0] sm:$0xf] %vm199, %v4647
      %v4826 = vld [vmem:[%s785 + $0xa4] sm:$0x1]
      %v4827 = vsel %vm211, %v4648, %v4826
      %4828 = vst [vmem:[%s785 + $0xa4] sm:$0x1] %v4827
      %v4829 = vld [vmem:[%s785 + $0xa8] sm:$0xf]
      %v4830 = vsel %vm665, %v4655, %v4829
      %4831 = vst [vmem:[%s785 + $0xa8] sm:$0xf] %v4830
      %4832 = vst.msk [vmem:[%s785 + $0xac] sm:$0xf] %vm199, %v4664
      %v4833 = vld [vmem:[%s785 + $0xb0] sm:$0x1]
      %v4834 = vsel %vm211, %v4665, %v4833
      %4835 = vst [vmem:[%s785 + $0xb0] sm:$0x1] %v4834
      %v4836 = vld [vmem:[%s785 + $0xb4] sm:$0xf]
      %v4837 = vsel %vm665, %v4672, %v4836
      %4838 = vst [vmem:[%s785 + $0xb4] sm:$0xf] %v4837
      %4839 = vst.msk [vmem:[%s785 + $0xb8] sm:$0xf] %vm199, %v4681
      %v4840 = vld [vmem:[%s785 + $0xbc] sm:$0x1]
      %v4841 = vsel %vm211, %v4682, %v4840
      %4842 = vst [vmem:[%s785 + $0xbc] sm:$0x1] %v4841
      %4843 = vrot.lane.b32.xlu0 %v4417, 120
      %v4844 = vpop.permute.xlu0 %4843
      %4845 = vrot.lane.b32.xlu0 %v4426, 120
      %v4846 = vpop.permute.xlu0 %4845
      %4847 = vrot.lane.b32.xlu0 %v4427, 120
      %v4848 = vpop.permute.xlu0 %4847
      %4849 = vrot.lane.b32.xlu0 %v4434, 120
      %v4850 = vpop.permute.xlu0 %4849
      %4851 = vrot.lane.b32.xlu0 %v4443, 120
      %v4852 = vpop.permute.xlu0 %4851
      %4853 = vrot.lane.b32.xlu0 %v4444, 120
      %v4854 = vpop.permute.xlu0 %4853
      %4855 = vrot.lane.b32.xlu0 %v4451, 120
      %v4856 = vpop.permute.xlu0 %4855
      %4857 = vrot.lane.b32.xlu0 %v4460, 120
      %v4858 = vpop.permute.xlu0 %4857
      %4859 = vrot.lane.b32.xlu0 %v4461, 120
      %v4860 = vpop.permute.xlu0 %4859
      %4861 = vrot.lane.b32.xlu0 %v4468, 120
      %v4862 = vpop.permute.xlu0 %4861
      %4863 = vrot.lane.b32.xlu0 %v4477, 120
      %v4864 = vpop.permute.xlu0 %4863
      %4865 = vrot.lane.b32.xlu0 %v4478, 120
      %v4866 = vpop.permute.xlu0 %4865
      %4867 = vrot.lane.b32.xlu0 %v4485, 120
      %v4868 = vpop.permute.xlu0 %4867
      %4869 = vrot.lane.b32.xlu0 %v4494, 120
      %v4870 = vpop.permute.xlu0 %4869
      %4871 = vrot.lane.b32.xlu0 %v4495, 120
      %v4872 = vpop.permute.xlu0 %4871
      %4873 = vrot.lane.b32.xlu0 %v4502, 120
      %v4874 = vpop.permute.xlu0 %4873
      %4875 = vrot.lane.b32.xlu0 %v4511, 120
      %v4876 = vpop.permute.xlu0 %4875
      %4877 = vrot.lane.b32.xlu0 %v4512, 120
      %v4878 = vpop.permute.xlu0 %4877
      %4879 = vrot.lane.b32.xlu0 %v4519, 120
      %v4880 = vpop.permute.xlu0 %4879
      %4881 = vrot.lane.b32.xlu0 %v4528, 120
      %v4882 = vpop.permute.xlu0 %4881
      %4883 = vrot.lane.b32.xlu0 %v4529, 120
      %v4884 = vpop.permute.xlu0 %4883
      %4885 = vrot.lane.b32.xlu0 %v4536, 120
      %v4886 = vpop.permute.xlu0 %4885
      %4887 = vrot.lane.b32.xlu0 %v4545, 120
      %v4888 = vpop.permute.xlu0 %4887
      %4889 = vrot.lane.b32.xlu0 %v4546, 120
      %v4890 = vpop.permute.xlu0 %4889
      %4891 = vrot.lane.b32.xlu0 %v4553, 120
      %v4892 = vpop.permute.xlu0 %4891
      %4893 = vrot.lane.b32.xlu0 %v4562, 120
      %v4894 = vpop.permute.xlu0 %4893
      %4895 = vrot.lane.b32.xlu0 %v4563, 120
      %v4896 = vpop.permute.xlu0 %4895
      %4897 = vrot.lane.b32.xlu0 %v4570, 120
      %v4898 = vpop.permute.xlu0 %4897
      %4899 = vrot.lane.b32.xlu0 %v4579, 120
      %v4900 = vpop.permute.xlu0 %4899
      %4901 = vrot.lane.b32.xlu0 %v4580, 120
      %v4902 = vpop.permute.xlu0 %4901
      %4903 = vrot.lane.b32.xlu0 %v4587, 120
      %v4904 = vpop.permute.xlu0 %4903
      %4905 = vrot.lane.b32.xlu0 %v4596, 120
      %v4906 = vpop.permute.xlu0 %4905
      %4907 = vrot.lane.b32.xlu0 %v4597, 120
      %v4908 = vpop.permute.xlu0 %4907
      %4909 = vrot.lane.b32.xlu0 %v4604, 120
      %v4910 = vpop.permute.xlu0 %4909
      %4911 = vrot.lane.b32.xlu0 %v4613, 120
      %v4912 = vpop.permute.xlu0 %4911
      %4913 = vrot.lane.b32.xlu0 %v4614, 120
      %v4914 = vpop.permute.xlu0 %4913
      %4915 = vrot.lane.b32.xlu0 %v4621, 120
      %v4916 = vpop.permute.xlu0 %4915
      %4917 = vrot.lane.b32.xlu0 %v4630, 120
      %v4918 = vpop.permute.xlu0 %4917
      %4919 = vrot.lane.b32.xlu0 %v4631, 120
      %v4920 = vpop.permute.xlu0 %4919
      %4921 = vrot.lane.b32.xlu0 %v4638, 120
      %v4922 = vpop.permute.xlu0 %4921
      %4923 = vrot.lane.b32.xlu0 %v4647, 120
      %v4924 = vpop.permute.xlu0 %4923
      %4925 = vrot.lane.b32.xlu0 %v4648, 120
      %v4926 = vpop.permute.xlu0 %4925
      %4927 = vrot.lane.b32.xlu0 %v4655, 120
      %v4928 = vpop.permute.xlu0 %4927
      %4929 = vrot.lane.b32.xlu0 %v4664, 120
      %v4930 = vpop.permute.xlu0 %4929
      %4931 = vrot.lane.b32.xlu0 %v4665, 120
      %v4932 = vpop.permute.xlu0 %4931
      %4933 = vrot.lane.b32.xlu0 %v4672, 120
      %v4934 = vpop.permute.xlu0 %4933
      %4935 = vrot.lane.b32.xlu0 %v4681, 120
      %v4936 = vpop.permute.xlu0 %4935
      %4937 = vrot.lane.b32.xlu0 %v4682, 120
      %v4938 = vpop.permute.xlu0 %4937
      %v4987 = vld [vmem:[%s890] sm:$0xf]
      %v4988 = vsel %vm665, %v4844, %v4987
      %4989 = vst [vmem:[%s890] sm:$0xf] %v4988
      %4990 = vst.msk [vmem:[%s890 + $0x4] sm:$0xf] %vm199, %v4846
      %v4991 = vld [vmem:[%s890 + $0x8] sm:$0x1]
      %v4992 = vsel %vm211, %v4848, %v4991
      %4993 = vst [vmem:[%s890 + $0x8] sm:$0x1] %v4992
      %v4994 = vld [vmem:[%s890 + $0xc] sm:$0xf]
      %v4995 = vsel %vm665, %v4850, %v4994
      %4996 = vst [vmem:[%s890 + $0xc] sm:$0xf] %v4995
      %4997 = vst.msk [vmem:[%s890 + $0x10] sm:$0xf] %vm199, %v4852
      %v4998 = vld [vmem:[%s890 + $0x14] sm:$0x1]
      %v4999 = vsel %vm211, %v4854, %v4998
      %5000 = vst [vmem:[%s890 + $0x14] sm:$0x1] %v4999
      %v5001 = vld [vmem:[%s890 + $0x18] sm:$0xf]
      %v5002 = vsel %vm665, %v4856, %v5001
      %5003 = vst [vmem:[%s890 + $0x18] sm:$0xf] %v5002
      %5004 = vst.msk [vmem:[%s890 + $0x1c] sm:$0xf] %vm199, %v4858
      %v5005 = vld [vmem:[%s890 + $0x20] sm:$0x1]
      %v5006 = vsel %vm211, %v4860, %v5005
      %5007 = vst [vmem:[%s890 + $0x20] sm:$0x1] %v5006
      %v5008 = vld [vmem:[%s890 + $0x24] sm:$0xf]
      %v5009 = vsel %vm665, %v4862, %v5008
      %5010 = vst [vmem:[%s890 + $0x24] sm:$0xf] %v5009
      %5011 = vst.msk [vmem:[%s890 + $0x28] sm:$0xf] %vm199, %v4864
      %v5012 = vld [vmem:[%s890 + $0x2c] sm:$0x1]
      %v5013 = vsel %vm211, %v4866, %v5012
      %5014 = vst [vmem:[%s890 + $0x2c] sm:$0x1] %v5013
      %v5015 = vld [vmem:[%s890 + $0x30] sm:$0xf]
      %v5016 = vsel %vm665, %v4868, %v5015
      %5017 = vst [vmem:[%s890 + $0x30] sm:$0xf] %v5016
      %5018 = vst.msk [vmem:[%s890 + $0x34] sm:$0xf] %vm199, %v4870
      %v5019 = vld [vmem:[%s890 + $0x38] sm:$0x1]
      %v5020 = vsel %vm211, %v4872, %v5019
      %5021 = vst [vmem:[%s890 + $0x38] sm:$0x1] %v5020
      %v5022 = vld [vmem:[%s890 + $0x3c] sm:$0xf]
      %v5023 = vsel %vm665, %v4874, %v5022
      %5024 = vst [vmem:[%s890 + $0x3c] sm:$0xf] %v5023
      %5025 = vst.msk [vmem:[%s890 + $0x40] sm:$0xf] %vm199, %v4876
      %v5026 = vld [vmem:[%s890 + $0x44] sm:$0x1]
      %v5027 = vsel %vm211, %v4878, %v5026
      %5028 = vst [vmem:[%s890 + $0x44] sm:$0x1] %v5027
      %v5029 = vld [vmem:[%s890 + $0x48] sm:$0xf]
      %v5030 = vsel %vm665, %v4880, %v5029
      %5031 = vst [vmem:[%s890 + $0x48] sm:$0xf] %v5030
      %5032 = vst.msk [vmem:[%s890 + $0x4c] sm:$0xf] %vm199, %v4882
      %v5033 = vld [vmem:[%s890 + $0x50] sm:$0x1]
      %v5034 = vsel %vm211, %v4884, %v5033
      %5035 = vst [vmem:[%s890 + $0x50] sm:$0x1] %v5034
      %v5036 = vld [vmem:[%s890 + $0x54] sm:$0xf]
      %v5037 = vsel %vm665, %v4886, %v5036
      %5038 = vst [vmem:[%s890 + $0x54] sm:$0xf] %v5037
      %5039 = vst.msk [vmem:[%s890 + $0x58] sm:$0xf] %vm199, %v4888
      %v5040 = vld [vmem:[%s890 + $0x5c] sm:$0x1]
      %v5041 = vsel %vm211, %v4890, %v5040
      %5042 = vst [vmem:[%s890 + $0x5c] sm:$0x1] %v5041
      %v5043 = vld [vmem:[%s890 + $0x60] sm:$0xf]
      %v5044 = vsel %vm665, %v4892, %v5043
      %5045 = vst [vmem:[%s890 + $0x60] sm:$0xf] %v5044
      %5046 = vst.msk [vmem:[%s890 + $0x64] sm:$0xf] %vm199, %v4894
      %v5047 = vld [vmem:[%s890 + $0x68] sm:$0x1]
      %v5048 = vsel %vm211, %v4896, %v5047
      %5049 = vst [vmem:[%s890 + $0x68] sm:$0x1] %v5048
      %v5050 = vld [vmem:[%s890 + $0x6c] sm:$0xf]
      %v5051 = vsel %vm665, %v4898, %v5050
      %5052 = vst [vmem:[%s890 + $0x6c] sm:$0xf] %v5051
      %5053 = vst.msk [vmem:[%s890 + $0x70] sm:$0xf] %vm199, %v4900
      %v5054 = vld [vmem:[%s890 + $0x74] sm:$0x1]
      %v5055 = vsel %vm211, %v4902, %v5054
      %5056 = vst [vmem:[%s890 + $0x74] sm:$0x1] %v5055
      %v5057 = vld [vmem:[%s890 + $0x78] sm:$0xf]
      %v5058 = vsel %vm665, %v4904, %v5057
      %5059 = vst [vmem:[%s890 + $0x78] sm:$0xf] %v5058
      %5060 = vst.msk [vmem:[%s890 + $0x7c] sm:$0xf] %vm199, %v4906
      %v5061 = vld [vmem:[%s890 + $0x80] sm:$0x1]
      %v5062 = vsel %vm211, %v4908, %v5061
      %5063 = vst [vmem:[%s890 + $0x80] sm:$0x1] %v5062
      %v5064 = vld [vmem:[%s890 + $0x84] sm:$0xf]
      %v5065 = vsel %vm665, %v4910, %v5064
      %5066 = vst [vmem:[%s890 + $0x84] sm:$0xf] %v5065
      %5067 = vst.msk [vmem:[%s890 + $0x88] sm:$0xf] %vm199, %v4912
      %v5068 = vld [vmem:[%s890 + $0x8c] sm:$0x1]
      %v5069 = vsel %vm211, %v4914, %v5068
      %5070 = vst [vmem:[%s890 + $0x8c] sm:$0x1] %v5069
      %v5071 = vld [vmem:[%s890 + $0x90] sm:$0xf]
      %v5072 = vsel %vm665, %v4916, %v5071
      %5073 = vst [vmem:[%s890 + $0x90] sm:$0xf] %v5072
      %5074 = vst.msk [vmem:[%s890 + $0x94] sm:$0xf] %vm199, %v4918
      %v5075 = vld [vmem:[%s890 + $0x98] sm:$0x1]
      %v5076 = vsel %vm211, %v4920, %v5075
      %5077 = vst [vmem:[%s890 + $0x98] sm:$0x1] %v5076
      %v5078 = vld [vmem:[%s890 + $0x9c] sm:$0xf]
      %v5079 = vsel %vm665, %v4922, %v5078
      %5080 = vst [vmem:[%s890 + $0x9c] sm:$0xf] %v5079
      %5081 = vst.msk [vmem:[%s890 + $0xa0] sm:$0xf] %vm199, %v4924
      %v5082 = vld [vmem:[%s890 + $0xa4] sm:$0x1]
      %v5083 = vsel %vm211, %v4926, %v5082
      %5084 = vst [vmem:[%s890 + $0xa4] sm:$0x1] %v5083
      %v5085 = vld [vmem:[%s890 + $0xa8] sm:$0xf]
      %v5086 = vsel %vm665, %v4928, %v5085
      %5087 = vst [vmem:[%s890 + $0xa8] sm:$0xf] %v5086
      %5088 = vst.msk [vmem:[%s890 + $0xac] sm:$0xf] %vm199, %v4930
      %v5089 = vld [vmem:[%s890 + $0xb0] sm:$0x1]
      %v5090 = vsel %vm211, %v4932, %v5089
      %5091 = vst [vmem:[%s890 + $0xb0] sm:$0x1] %v5090
      %v5092 = vld [vmem:[%s890 + $0xb4] sm:$0xf]
      %v5093 = vsel %vm665, %v4934, %v5092
      %5094 = vst [vmem:[%s890 + $0xb4] sm:$0xf] %v5093
      %5095 = vst.msk [vmem:[%s890 + $0xb8] sm:$0xf] %vm199, %v4936
      %v5096 = vld [vmem:[%s890 + $0xbc] sm:$0x1]
      %v5097 = vsel %vm211, %v4938, %v5096
      %5098 = vst [vmem:[%s890 + $0xbc] sm:$0x1] %v5097
      %5099 = vrot.lane.b32.xlu0 %v4417, 112
      %v5100 = vpop.permute.xlu0 %5099
      %5101 = vrot.lane.b32.xlu0 %v4426, 112
      %v5102 = vpop.permute.xlu0 %5101
      %5103 = vrot.lane.b32.xlu0 %v4427, 112
      %v5104 = vpop.permute.xlu0 %5103
      %5105 = vrot.lane.b32.xlu0 %v4434, 112
      %v5106 = vpop.permute.xlu0 %5105
      %5107 = vrot.lane.b32.xlu0 %v4443, 112
      %v5108 = vpop.permute.xlu0 %5107
      %5109 = vrot.lane.b32.xlu0 %v4444, 112
      %v5110 = vpop.permute.xlu0 %5109
      %5111 = vrot.lane.b32.xlu0 %v4451, 112
      %v5112 = vpop.permute.xlu0 %5111
      %5113 = vrot.lane.b32.xlu0 %v4460, 112
      %v5114 = vpop.permute.xlu0 %5113
      %5115 = vrot.lane.b32.xlu0 %v4461, 112
      %v5116 = vpop.permute.xlu0 %5115
      %5117 = vrot.lane.b32.xlu0 %v4468, 112
      %v5118 = vpop.permute.xlu0 %5117
      %5119 = vrot.lane.b32.xlu0 %v4477, 112
      %v5120 = vpop.permute.xlu0 %5119
      %5121 = vrot.lane.b32.xlu0 %v4478, 112
      %v5122 = vpop.permute.xlu0 %5121
      %5123 = vrot.lane.b32.xlu0 %v4485, 112
      %v5124 = vpop.permute.xlu0 %5123
      %5125 = vrot.lane.b32.xlu0 %v4494, 112
      %v5126 = vpop.permute.xlu0 %5125
      %5127 = vrot.lane.b32.xlu0 %v4495, 112
      %v5128 = vpop.permute.xlu0 %5127
      %5129 = vrot.lane.b32.xlu0 %v4502, 112
      %v5130 = vpop.permute.xlu0 %5129
      %5131 = vrot.lane.b32.xlu0 %v4511, 112
      %v5132 = vpop.permute.xlu0 %5131
      %5133 = vrot.lane.b32.xlu0 %v4512, 112
      %v5134 = vpop.permute.xlu0 %5133
      %5135 = vrot.lane.b32.xlu0 %v4519, 112
      %v5136 = vpop.permute.xlu0 %5135
      %5137 = vrot.lane.b32.xlu0 %v4528, 112
      %v5138 = vpop.permute.xlu0 %5137
      %5139 = vrot.lane.b32.xlu0 %v4529, 112
      %v5140 = vpop.permute.xlu0 %5139
      %5141 = vrot.lane.b32.xlu0 %v4536, 112
      %v5142 = vpop.permute.xlu0 %5141
      %5143 = vrot.lane.b32.xlu0 %v4545, 112
      %v5144 = vpop.permute.xlu0 %5143
      %5145 = vrot.lane.b32.xlu0 %v4546, 112
      %v5146 = vpop.permute.xlu0 %5145
      %5147 = vrot.lane.b32.xlu0 %v4553, 112
      %v5148 = vpop.permute.xlu0 %5147
      %5149 = vrot.lane.b32.xlu0 %v4562, 112
      %v5150 = vpop.permute.xlu0 %5149
      %5151 = vrot.lane.b32.xlu0 %v4563, 112
      %v5152 = vpop.permute.xlu0 %5151
      %5153 = vrot.lane.b32.xlu0 %v4570, 112
      %v5154 = vpop.permute.xlu0 %5153
      %5155 = vrot.lane.b32.xlu0 %v4579, 112
      %v5156 = vpop.permute.xlu0 %5155
      %5157 = vrot.lane.b32.xlu0 %v4580, 112
      %v5158 = vpop.permute.xlu0 %5157
      %5159 = vrot.lane.b32.xlu0 %v4587, 112
      %v5160 = vpop.permute.xlu0 %5159
      %5161 = vrot.lane.b32.xlu0 %v4596, 112
      %v5162 = vpop.permute.xlu0 %5161
      %5163 = vrot.lane.b32.xlu0 %v4597, 112
      %v5164 = vpop.permute.xlu0 %5163
      %5165 = vrot.lane.b32.xlu0 %v4604, 112
      %v5166 = vpop.permute.xlu0 %5165
      %5167 = vrot.lane.b32.xlu0 %v4613, 112
      %v5168 = vpop.permute.xlu0 %5167
      %5169 = vrot.lane.b32.xlu0 %v4614, 112
      %v5170 = vpop.permute.xlu0 %5169
      %5171 = vrot.lane.b32.xlu0 %v4621, 112
      %v5172 = vpop.permute.xlu0 %5171
      %5173 = vrot.lane.b32.xlu0 %v4630, 112
      %v5174 = vpop.permute.xlu0 %5173
      %5175 = vrot.lane.b32.xlu0 %v4631, 112
      %v5176 = vpop.permute.xlu0 %5175
      %5177 = vrot.lane.b32.xlu0 %v4638, 112
      %v5178 = vpop.permute.xlu0 %5177
      %5179 = vrot.lane.b32.xlu0 %v4647, 112
      %v5180 = vpop.permute.xlu0 %5179
      %5181 = vrot.lane.b32.xlu0 %v4648, 112
      %v5182 = vpop.permute.xlu0 %5181
      %5183 = vrot.lane.b32.xlu0 %v4655, 112
      %v5184 = vpop.permute.xlu0 %5183
      %5185 = vrot.lane.b32.xlu0 %v4664, 112
      %v5186 = vpop.permute.xlu0 %5185
      %5187 = vrot.lane.b32.xlu0 %v4665, 112
      %v5188 = vpop.permute.xlu0 %5187
      %5189 = vrot.lane.b32.xlu0 %v4672, 112
      %v5190 = vpop.permute.xlu0 %5189
      %5191 = vrot.lane.b32.xlu0 %v4681, 112
      %v5192 = vpop.permute.xlu0 %5191
      %5193 = vrot.lane.b32.xlu0 %v4682, 112
      %v5194 = vpop.permute.xlu0 %5193
      %v5243 = vld [vmem:[%s995] sm:$0xf]
      %v5244 = vsel %vm665, %v5100, %v5243
      %5245 = vst [vmem:[%s995] sm:$0xf] %v5244
      %5246 = vst.msk [vmem:[%s995 + $0x4] sm:$0xf] %vm199, %v5102
      %v5247 = vld [vmem:[%s995 + $0x8] sm:$0x1]
      %v5248 = vsel %vm211, %v5104, %v5247
      %5249 = vst [vmem:[%s995 + $0x8] sm:$0x1] %v5248
      %v5250 = vld [vmem:[%s995 + $0xc] sm:$0xf]
      %v5251 = vsel %vm665, %v5106, %v5250
      %5252 = vst [vmem:[%s995 + $0xc] sm:$0xf] %v5251
      %5253 = vst.msk [vmem:[%s995 + $0x10] sm:$0xf] %vm199, %v5108
      %v5254 = vld [vmem:[%s995 + $0x14] sm:$0x1]
      %v5255 = vsel %vm211, %v5110, %v5254
      %5256 = vst [vmem:[%s995 + $0x14] sm:$0x1] %v5255
      %v5257 = vld [vmem:[%s995 + $0x18] sm:$0xf]
      %v5258 = vsel %vm665, %v5112, %v5257
      %5259 = vst [vmem:[%s995 + $0x18] sm:$0xf] %v5258
      %5260 = vst.msk [vmem:[%s995 + $0x1c] sm:$0xf] %vm199, %v5114
      %v5261 = vld [vmem:[%s995 + $0x20] sm:$0x1]
      %v5262 = vsel %vm211, %v5116, %v5261
      %5263 = vst [vmem:[%s995 + $0x20] sm:$0x1] %v5262
      %v5264 = vld [vmem:[%s995 + $0x24] sm:$0xf]
      %v5265 = vsel %vm665, %v5118, %v5264
      %5266 = vst [vmem:[%s995 + $0x24] sm:$0xf] %v5265
      %5267 = vst.msk [vmem:[%s995 + $0x28] sm:$0xf] %vm199, %v5120
      %v5268 = vld [vmem:[%s995 + $0x2c] sm:$0x1]
      %v5269 = vsel %vm211, %v5122, %v5268
      %5270 = vst [vmem:[%s995 + $0x2c] sm:$0x1] %v5269
      %v5271 = vld [vmem:[%s995 + $0x30] sm:$0xf]
      %v5272 = vsel %vm665, %v5124, %v5271
      %5273 = vst [vmem:[%s995 + $0x30] sm:$0xf] %v5272
      %5274 = vst.msk [vmem:[%s995 + $0x34] sm:$0xf] %vm199, %v5126
      %v5275 = vld [vmem:[%s995 + $0x38] sm:$0x1]
      %v5276 = vsel %vm211, %v5128, %v5275
      %5277 = vst [vmem:[%s995 + $0x38] sm:$0x1] %v5276
      %v5278 = vld [vmem:[%s995 + $0x3c] sm:$0xf]
      %v5279 = vsel %vm665, %v5130, %v5278
      %5280 = vst [vmem:[%s995 + $0x3c] sm:$0xf] %v5279
      %5281 = vst.msk [vmem:[%s995 + $0x40] sm:$0xf] %vm199, %v5132
      %v5282 = vld [vmem:[%s995 + $0x44] sm:$0x1]
      %v5283 = vsel %vm211, %v5134, %v5282
      %5284 = vst [vmem:[%s995 + $0x44] sm:$0x1] %v5283
      %v5285 = vld [vmem:[%s995 + $0x48] sm:$0xf]
      %v5286 = vsel %vm665, %v5136, %v5285
      %5287 = vst [vmem:[%s995 + $0x48] sm:$0xf] %v5286
      %5288 = vst.msk [vmem:[%s995 + $0x4c] sm:$0xf] %vm199, %v5138
      %v5289 = vld [vmem:[%s995 + $0x50] sm:$0x1]
      %v5290 = vsel %vm211, %v5140, %v5289
      %5291 = vst [vmem:[%s995 + $0x50] sm:$0x1] %v5290
      %v5292 = vld [vmem:[%s995 + $0x54] sm:$0xf]
      %v5293 = vsel %vm665, %v5142, %v5292
      %5294 = vst [vmem:[%s995 + $0x54] sm:$0xf] %v5293
      %5295 = vst.msk [vmem:[%s995 + $0x58] sm:$0xf] %vm199, %v5144
      %v5296 = vld [vmem:[%s995 + $0x5c] sm:$0x1]
      %v5297 = vsel %vm211, %v5146, %v5296
      %5298 = vst [vmem:[%s995 + $0x5c] sm:$0x1] %v5297
      %v5299 = vld [vmem:[%s995 + $0x60] sm:$0xf]
      %v5300 = vsel %vm665, %v5148, %v5299
      %5301 = vst [vmem:[%s995 + $0x60] sm:$0xf] %v5300
      %5302 = vst.msk [vmem:[%s995 + $0x64] sm:$0xf] %vm199, %v5150
      %v5303 = vld [vmem:[%s995 + $0x68] sm:$0x1]
      %v5304 = vsel %vm211, %v5152, %v5303
      %5305 = vst [vmem:[%s995 + $0x68] sm:$0x1] %v5304
      %v5306 = vld [vmem:[%s995 + $0x6c] sm:$0xf]
      %v5307 = vsel %vm665, %v5154, %v5306
      %5308 = vst [vmem:[%s995 + $0x6c] sm:$0xf] %v5307
      %5309 = vst.msk [vmem:[%s995 + $0x70] sm:$0xf] %vm199, %v5156
      %v5310 = vld [vmem:[%s995 + $0x74] sm:$0x1]
      %v5311 = vsel %vm211, %v5158, %v5310
      %5312 = vst [vmem:[%s995 + $0x74] sm:$0x1] %v5311
      %v5313 = vld [vmem:[%s995 + $0x78] sm:$0xf]
      %v5314 = vsel %vm665, %v5160, %v5313
      %5315 = vst [vmem:[%s995 + $0x78] sm:$0xf] %v5314
      %5316 = vst.msk [vmem:[%s995 + $0x7c] sm:$0xf] %vm199, %v5162
      %v5317 = vld [vmem:[%s995 + $0x80] sm:$0x1]
      %v5318 = vsel %vm211, %v5164, %v5317
      %5319 = vst [vmem:[%s995 + $0x80] sm:$0x1] %v5318
      %v5320 = vld [vmem:[%s995 + $0x84] sm:$0xf]
      %v5321 = vsel %vm665, %v5166, %v5320
      %5322 = vst [vmem:[%s995 + $0x84] sm:$0xf] %v5321
      %5323 = vst.msk [vmem:[%s995 + $0x88] sm:$0xf] %vm199, %v5168
      %v5324 = vld [vmem:[%s995 + $0x8c] sm:$0x1]
      %v5325 = vsel %vm211, %v5170, %v5324
      %5326 = vst [vmem:[%s995 + $0x8c] sm:$0x1] %v5325
      %v5327 = vld [vmem:[%s995 + $0x90] sm:$0xf]
      %v5328 = vsel %vm665, %v5172, %v5327
      %5329 = vst [vmem:[%s995 + $0x90] sm:$0xf] %v5328
      %5330 = vst.msk [vmem:[%s995 + $0x94] sm:$0xf] %vm199, %v5174
      %v5331 = vld [vmem:[%s995 + $0x98] sm:$0x1]
      %v5332 = vsel %vm211, %v5176, %v5331
      %5333 = vst [vmem:[%s995 + $0x98] sm:$0x1] %v5332
      %v5334 = vld [vmem:[%s995 + $0x9c] sm:$0xf]
      %v5335 = vsel %vm665, %v5178, %v5334
      %5336 = vst [vmem:[%s995 + $0x9c] sm:$0xf] %v5335
      %5337 = vst.msk [vmem:[%s995 + $0xa0] sm:$0xf] %vm199, %v5180
      %v5338 = vld [vmem:[%s995 + $0xa4] sm:$0x1]
      %v5339 = vsel %vm211, %v5182, %v5338
      %5340 = vst [vmem:[%s995 + $0xa4] sm:$0x1] %v5339
      %v5341 = vld [vmem:[%s995 + $0xa8] sm:$0xf]
      %v5342 = vsel %vm665, %v5184, %v5341
      %5343 = vst [vmem:[%s995 + $0xa8] sm:$0xf] %v5342
      %5344 = vst.msk [vmem:[%s995 + $0xac] sm:$0xf] %vm199, %v5186
      %v5345 = vld [vmem:[%s995 + $0xb0] sm:$0x1]
      %v5346 = vsel %vm211, %v5188, %v5345
      %5347 = vst [vmem:[%s995 + $0xb0] sm:$0x1] %v5346
      %v5348 = vld [vmem:[%s995 + $0xb4] sm:$0xf]
      %v5349 = vsel %vm665, %v5190, %v5348
      %5350 = vst [vmem:[%s995 + $0xb4] sm:$0xf] %v5349
      %5351 = vst.msk [vmem:[%s995 + $0xb8] sm:$0xf] %vm199, %v5192
      %v5352 = vld [vmem:[%s995 + $0xbc] sm:$0x1]
      %v5353 = vsel %vm211, %v5194, %v5352
      %5354 = vst [vmem:[%s995 + $0xbc] sm:$0x1] %v5353
      %5355 = vrot.lane.b32.xlu0 %v4417, 104
      %v5356 = vpop.permute.xlu0 %5355
      %5357 = vrot.lane.b32.xlu0 %v4426, 104
      %v5358 = vpop.permute.xlu0 %5357
      %5359 = vrot.lane.b32.xlu0 %v4427, 104
      %v5360 = vpop.permute.xlu0 %5359
      %5361 = vrot.lane.b32.xlu0 %v4434, 104
      %v5362 = vpop.permute.xlu0 %5361
      %5363 = vrot.lane.b32.xlu0 %v4443, 104
      %v5364 = vpop.permute.xlu0 %5363
      %5365 = vrot.lane.b32.xlu0 %v4444, 104
      %v5366 = vpop.permute.xlu0 %5365
      %5367 = vrot.lane.b32.xlu0 %v4451, 104
      %v5368 = vpop.permute.xlu0 %5367
      %5369 = vrot.lane.b32.xlu0 %v4460, 104
      %v5370 = vpop.permute.xlu0 %5369
      %5371 = vrot.lane.b32.xlu0 %v4461, 104
      %v5372 = vpop.permute.xlu0 %5371
      %5373 = vrot.lane.b32.xlu0 %v4468, 104
      %v5374 = vpop.permute.xlu0 %5373
      %5375 = vrot.lane.b32.xlu0 %v4477, 104
      %v5376 = vpop.permute.xlu0 %5375
      %5377 = vrot.lane.b32.xlu0 %v4478, 104
      %v5378 = vpop.permute.xlu0 %5377
      %5379 = vrot.lane.b32.xlu0 %v4485, 104
      %v5380 = vpop.permute.xlu0 %5379
      %5381 = vrot.lane.b32.xlu0 %v4494, 104
      %v5382 = vpop.permute.xlu0 %5381
      %5383 = vrot.lane.b32.xlu0 %v4495, 104
      %v5384 = vpop.permute.xlu0 %5383
      %5385 = vrot.lane.b32.xlu0 %v4502, 104
      %v5386 = vpop.permute.xlu0 %5385
      %5387 = vrot.lane.b32.xlu0 %v4511, 104
      %v5388 = vpop.permute.xlu0 %5387
      %5389 = vrot.lane.b32.xlu0 %v4512, 104
      %v5390 = vpop.permute.xlu0 %5389
      %5391 = vrot.lane.b32.xlu0 %v4519, 104
      %v5392 = vpop.permute.xlu0 %5391
      %5393 = vrot.lane.b32.xlu0 %v4528, 104
      %v5394 = vpop.permute.xlu0 %5393
      %5395 = vrot.lane.b32.xlu0 %v4529, 104
      %v5396 = vpop.permute.xlu0 %5395
      %5397 = vrot.lane.b32.xlu0 %v4536, 104
      %v5398 = vpop.permute.xlu0 %5397
      %5399 = vrot.lane.b32.xlu0 %v4545, 104
      %v5400 = vpop.permute.xlu0 %5399
      %5401 = vrot.lane.b32.xlu0 %v4546, 104
      %v5402 = vpop.permute.xlu0 %5401
      %5403 = vrot.lane.b32.xlu0 %v4553, 104
      %v5404 = vpop.permute.xlu0 %5403
      %5405 = vrot.lane.b32.xlu0 %v4562, 104
      %v5406 = vpop.permute.xlu0 %5405
      %5407 = vrot.lane.b32.xlu0 %v4563, 104
      %v5408 = vpop.permute.xlu0 %5407
      %5409 = vrot.lane.b32.xlu0 %v4570, 104
      %v5410 = vpop.permute.xlu0 %5409
      %5411 = vrot.lane.b32.xlu0 %v4579, 104
      %v5412 = vpop.permute.xlu0 %5411
      %5413 = vrot.lane.b32.xlu0 %v4580, 104
      %v5414 = vpop.permute.xlu0 %5413
      %5415 = vrot.lane.b32.xlu0 %v4587, 104
      %v5416 = vpop.permute.xlu0 %5415
      %5417 = vrot.lane.b32.xlu0 %v4596, 104
      %v5418 = vpop.permute.xlu0 %5417
      %5419 = vrot.lane.b32.xlu0 %v4597, 104
      %v5420 = vpop.permute.xlu0 %5419
      %5421 = vrot.lane.b32.xlu0 %v4604, 104
      %v5422 = vpop.permute.xlu0 %5421
      %5423 = vrot.lane.b32.xlu0 %v4613, 104
      %v5424 = vpop.permute.xlu0 %5423
      %5425 = vrot.lane.b32.xlu0 %v4614, 104
      %v5426 = vpop.permute.xlu0 %5425
      %5427 = vrot.lane.b32.xlu0 %v4621, 104
      %v5428 = vpop.permute.xlu0 %5427
      %5429 = vrot.lane.b32.xlu0 %v4630, 104
      %v5430 = vpop.permute.xlu0 %5429
      %5431 = vrot.lane.b32.xlu0 %v4631, 104
      %v5432 = vpop.permute.xlu0 %5431
      %5433 = vrot.lane.b32.xlu0 %v4638, 104
      %v5434 = vpop.permute.xlu0 %5433
      %5435 = vrot.lane.b32.xlu0 %v4647, 104
      %v5436 = vpop.permute.xlu0 %5435
      %5437 = vrot.lane.b32.xlu0 %v4648, 104
      %v5438 = vpop.permute.xlu0 %5437
      %5439 = vrot.lane.b32.xlu0 %v4655, 104
      %v5440 = vpop.permute.xlu0 %5439
      %5441 = vrot.lane.b32.xlu0 %v4664, 104
      %v5442 = vpop.permute.xlu0 %5441
      %5443 = vrot.lane.b32.xlu0 %v4665, 104
      %v5444 = vpop.permute.xlu0 %5443
      %5445 = vrot.lane.b32.xlu0 %v4672, 104
      %v5446 = vpop.permute.xlu0 %5445
      %5447 = vrot.lane.b32.xlu0 %v4681, 104
      %v5448 = vpop.permute.xlu0 %5447
      %5449 = vrot.lane.b32.xlu0 %v4682, 104
      %v5450 = vpop.permute.xlu0 %5449
      %v5499 = vld [vmem:[%s1100] sm:$0xf]
      %v5500 = vsel %vm665, %v5356, %v5499
      %5501 = vst [vmem:[%s1100] sm:$0xf] %v5500
      %5502 = vst.msk [vmem:[%s1100 + $0x4] sm:$0xf] %vm199, %v5358
      %v5503 = vld [vmem:[%s1100 + $0x8] sm:$0x1]
      %v5504 = vsel %vm211, %v5360, %v5503
      %5505 = vst [vmem:[%s1100 + $0x8] sm:$0x1] %v5504
      %v5506 = vld [vmem:[%s1100 + $0xc] sm:$0xf]
      %v5507 = vsel %vm665, %v5362, %v5506
      %5508 = vst [vmem:[%s1100 + $0xc] sm:$0xf] %v5507
      %5509 = vst.msk [vmem:[%s1100 + $0x10] sm:$0xf] %vm199, %v5364
      %v5510 = vld [vmem:[%s1100 + $0x14] sm:$0x1]
      %v5511 = vsel %vm211, %v5366, %v5510
      %5512 = vst [vmem:[%s1100 + $0x14] sm:$0x1] %v5511
      %v5513 = vld [vmem:[%s1100 + $0x18] sm:$0xf]
      %v5514 = vsel %vm665, %v5368, %v5513
      %5515 = vst [vmem:[%s1100 + $0x18] sm:$0xf] %v5514
      %5516 = vst.msk [vmem:[%s1100 + $0x1c] sm:$0xf] %vm199, %v5370
      %v5517 = vld [vmem:[%s1100 + $0x20] sm:$0x1]
      %v5518 = vsel %vm211, %v5372, %v5517
      %5519 = vst [vmem:[%s1100 + $0x20] sm:$0x1] %v5518
      %v5520 = vld [vmem:[%s1100 + $0x24] sm:$0xf]
      %v5521 = vsel %vm665, %v5374, %v5520
      %5522 = vst [vmem:[%s1100 + $0x24] sm:$0xf] %v5521
      %5523 = vst.msk [vmem:[%s1100 + $0x28] sm:$0xf] %vm199, %v5376
      %v5524 = vld [vmem:[%s1100 + $0x2c] sm:$0x1]
      %v5525 = vsel %vm211, %v5378, %v5524
      %5526 = vst [vmem:[%s1100 + $0x2c] sm:$0x1] %v5525
      %v5527 = vld [vmem:[%s1100 + $0x30] sm:$0xf]
      %v5528 = vsel %vm665, %v5380, %v5527
      %5529 = vst [vmem:[%s1100 + $0x30] sm:$0xf] %v5528
      %5530 = vst.msk [vmem:[%s1100 + $0x34] sm:$0xf] %vm199, %v5382
      %v5531 = vld [vmem:[%s1100 + $0x38] sm:$0x1]
      %v5532 = vsel %vm211, %v5384, %v5531
      %5533 = vst [vmem:[%s1100 + $0x38] sm:$0x1] %v5532
      %v5534 = vld [vmem:[%s1100 + $0x3c] sm:$0xf]
      %v5535 = vsel %vm665, %v5386, %v5534
      %5536 = vst [vmem:[%s1100 + $0x3c] sm:$0xf] %v5535
      %5537 = vst.msk [vmem:[%s1100 + $0x40] sm:$0xf] %vm199, %v5388
      %v5538 = vld [vmem:[%s1100 + $0x44] sm:$0x1]
      %v5539 = vsel %vm211, %v5390, %v5538
      %5540 = vst [vmem:[%s1100 + $0x44] sm:$0x1] %v5539
      %v5541 = vld [vmem:[%s1100 + $0x48] sm:$0xf]
      %v5542 = vsel %vm665, %v5392, %v5541
      %5543 = vst [vmem:[%s1100 + $0x48] sm:$0xf] %v5542
      %5544 = vst.msk [vmem:[%s1100 + $0x4c] sm:$0xf] %vm199, %v5394
      %v5545 = vld [vmem:[%s1100 + $0x50] sm:$0x1]
      %v5546 = vsel %vm211, %v5396, %v5545
      %5547 = vst [vmem:[%s1100 + $0x50] sm:$0x1] %v5546
      %v5548 = vld [vmem:[%s1100 + $0x54] sm:$0xf]
      %v5549 = vsel %vm665, %v5398, %v5548
      %5550 = vst [vmem:[%s1100 + $0x54] sm:$0xf] %v5549
      %5551 = vst.msk [vmem:[%s1100 + $0x58] sm:$0xf] %vm199, %v5400
      %v5552 = vld [vmem:[%s1100 + $0x5c] sm:$0x1]
      %v5553 = vsel %vm211, %v5402, %v5552
      %5554 = vst [vmem:[%s1100 + $0x5c] sm:$0x1] %v5553
      %v5555 = vld [vmem:[%s1100 + $0x60] sm:$0xf]
      %v5556 = vsel %vm665, %v5404, %v5555
      %5557 = vst [vmem:[%s1100 + $0x60] sm:$0xf] %v5556
      %5558 = vst.msk [vmem:[%s1100 + $0x64] sm:$0xf] %vm199, %v5406
      %v5559 = vld [vmem:[%s1100 + $0x68] sm:$0x1]
      %v5560 = vsel %vm211, %v5408, %v5559
      %5561 = vst [vmem:[%s1100 + $0x68] sm:$0x1] %v5560
      %v5562 = vld [vmem:[%s1100 + $0x6c] sm:$0xf]
      %v5563 = vsel %vm665, %v5410, %v5562
      %5564 = vst [vmem:[%s1100 + $0x6c] sm:$0xf] %v5563
      %5565 = vst.msk [vmem:[%s1100 + $0x70] sm:$0xf] %vm199, %v5412
      %v5566 = vld [vmem:[%s1100 + $0x74] sm:$0x1]
      %v5567 = vsel %vm211, %v5414, %v5566
      %5568 = vst [vmem:[%s1100 + $0x74] sm:$0x1] %v5567
      %v5569 = vld [vmem:[%s1100 + $0x78] sm:$0xf]
      %v5570 = vsel %vm665, %v5416, %v5569
      %5571 = vst [vmem:[%s1100 + $0x78] sm:$0xf] %v5570
      %5572 = vst.msk [vmem:[%s1100 + $0x7c] sm:$0xf] %vm199, %v5418
      %v5573 = vld [vmem:[%s1100 + $0x80] sm:$0x1]
      %v5574 = vsel %vm211, %v5420, %v5573
      %5575 = vst [vmem:[%s1100 + $0x80] sm:$0x1] %v5574
      %v5576 = vld [vmem:[%s1100 + $0x84] sm:$0xf]
      %v5577 = vsel %vm665, %v5422, %v5576
      %5578 = vst [vmem:[%s1100 + $0x84] sm:$0xf] %v5577
      %5579 = vst.msk [vmem:[%s1100 + $0x88] sm:$0xf] %vm199, %v5424
      %v5580 = vld [vmem:[%s1100 + $0x8c] sm:$0x1]
      %v5581 = vsel %vm211, %v5426, %v5580
      %5582 = vst [vmem:[%s1100 + $0x8c] sm:$0x1] %v5581
      %v5583 = vld [vmem:[%s1100 + $0x90] sm:$0xf]
      %v5584 = vsel %vm665, %v5428, %v5583
      %5585 = vst [vmem:[%s1100 + $0x90] sm:$0xf] %v5584
      %5586 = vst.msk [vmem:[%s1100 + $0x94] sm:$0xf] %vm199, %v5430
      %v5587 = vld [vmem:[%s1100 + $0x98] sm:$0x1]
      %v5588 = vsel %vm211, %v5432, %v5587
      %5589 = vst [vmem:[%s1100 + $0x98] sm:$0x1] %v5588
      %v5590 = vld [vmem:[%s1100 + $0x9c] sm:$0xf]
      %v5591 = vsel %vm665, %v5434, %v5590
      %5592 = vst [vmem:[%s1100 + $0x9c] sm:$0xf] %v5591
      %5593 = vst.msk [vmem:[%s1100 + $0xa0] sm:$0xf] %vm199, %v5436
      %v5594 = vld [vmem:[%s1100 + $0xa4] sm:$0x1]
      %v5595 = vsel %vm211, %v5438, %v5594
      %5596 = vst [vmem:[%s1100 + $0xa4] sm:$0x1] %v5595
      %v5597 = vld [vmem:[%s1100 + $0xa8] sm:$0xf]
      %v5598 = vsel %vm665, %v5440, %v5597
      %5599 = vst [vmem:[%s1100 + $0xa8] sm:$0xf] %v5598
      %5600 = vst.msk [vmem:[%s1100 + $0xac] sm:$0xf] %vm199, %v5442
      %v5601 = vld [vmem:[%s1100 + $0xb0] sm:$0x1]
      %v5602 = vsel %vm211, %v5444, %v5601
      %5603 = vst [vmem:[%s1100 + $0xb0] sm:$0x1] %v5602
      %v5604 = vld [vmem:[%s1100 + $0xb4] sm:$0xf]
      %v5605 = vsel %vm665, %v5446, %v5604
      %5606 = vst [vmem:[%s1100 + $0xb4] sm:$0xf] %v5605
      %5607 = vst.msk [vmem:[%s1100 + $0xb8] sm:$0xf] %vm199, %v5448
      %v5608 = vld [vmem:[%s1100 + $0xbc] sm:$0x1]
      %v5609 = vsel %vm211, %v5450, %v5608
      %5610 = vst [vmem:[%s1100 + $0xbc] sm:$0x1] %v5609
      %v5611 = vld [vmem:[%s785] sm:$0xf]
      %v5612 = vld [vmem:[%s785 + $0x4] sm:$0xf]
      %v5613 = vld [vmem:[%s785 + $0x8] sm:$0x1]
      %v5614 = vld [vmem:[%s785 + $0xc] sm:$0xf]
      %v5615 = vld [vmem:[%s785 + $0x10] sm:$0xf]
      %v5616 = vld [vmem:[%s785 + $0x14] sm:$0x1]
      %v5617 = vld [vmem:[%s785 + $0x18] sm:$0xf]
      %v5618 = vld [vmem:[%s785 + $0x1c] sm:$0xf]
      %v5619 = vld [vmem:[%s785 + $0x20] sm:$0x1]
      %v5620 = vld [vmem:[%s785 + $0x24] sm:$0xf]
      %v5621 = vld [vmem:[%s785 + $0x28] sm:$0xf]
      %v5622 = vld [vmem:[%s785 + $0x2c] sm:$0x1]
      %v5623 = vld [vmem:[%s785 + $0x30] sm:$0xf]
      %v5624 = vld [vmem:[%s785 + $0x34] sm:$0xf]
      %v5625 = vld [vmem:[%s785 + $0x38] sm:$0x1]
      %v5626 = vld [vmem:[%s785 + $0x3c] sm:$0xf]
      %v5627 = vld [vmem:[%s785 + $0x40] sm:$0xf]
      %v5628 = vld [vmem:[%s785 + $0x44] sm:$0x1]
      %v5629 = vld [vmem:[%s785 + $0x48] sm:$0xf]
      %v5630 = vld [vmem:[%s785 + $0x4c] sm:$0xf]
      %v5631 = vld [vmem:[%s785 + $0x50] sm:$0x1]
      %v5632 = vld [vmem:[%s785 + $0x54] sm:$0xf]
      %v5633 = vld [vmem:[%s785 + $0x58] sm:$0xf]
      %v5634 = vld [vmem:[%s785 + $0x5c] sm:$0x1]
      %v5635 = vld [vmem:[%s785 + $0x60] sm:$0xf]
      %v5636 = vld [vmem:[%s785 + $0x64] sm:$0xf]
      %v5637 = vld [vmem:[%s785 + $0x68] sm:$0x1]
      %v5638 = vld [vmem:[%s785 + $0x6c] sm:$0xf]
      %v5639 = vld [vmem:[%s785 + $0x70] sm:$0xf]
      %v5640 = vld [vmem:[%s785 + $0x74] sm:$0x1]
      %v5641 = vld [vmem:[%s785 + $0x78] sm:$0xf]
      %v5642 = vld [vmem:[%s785 + $0x7c] sm:$0xf]
      %v5643 = vld [vmem:[%s785 + $0x80] sm:$0x1]
      %v5644 = vld [vmem:[%s785 + $0x84] sm:$0xf]
      %v5645 = vld [vmem:[%s785 + $0x88] sm:$0xf]
      %v5646 = vld [vmem:[%s785 + $0x8c] sm:$0x1]
      %v5647 = vld [vmem:[%s785 + $0x90] sm:$0xf]
      %v5648 = vld [vmem:[%s785 + $0x94] sm:$0xf]
      %v5649 = vld [vmem:[%s785 + $0x98] sm:$0x1]
      %v5650 = vld [vmem:[%s785 + $0x9c] sm:$0xf]
      %v5651 = vld [vmem:[%s785 + $0xa0] sm:$0xf]
      %v5652 = vld [vmem:[%s785 + $0xa4] sm:$0x1]
      %v5653 = vld [vmem:[%s785 + $0xa8] sm:$0xf]
      %v5654 = vld [vmem:[%s785 + $0xac] sm:$0xf]
      %v5655 = vld [vmem:[%s785 + $0xb0] sm:$0x1]
      %v5656 = vld [vmem:[%s785 + $0xb4] sm:$0xf]
      %v5657 = vld [vmem:[%s785 + $0xb8] sm:$0xf]
      %v5658 = vld [vmem:[%s785 + $0xbc] sm:$0x1]
      %v5660 = vshrl.u32 %v5611, 16
      %v5662 = vrot.slane %v5660, 4
      %v5663 = vshll.u32 %v5611, 16
      %v5665 = vrot.slane %v5663, 5
      %v5666 = vor.u32 %v5662, %v5665
      %v5667 = vrot.slane %v5666, 4
      %v5669 = vshll.u32 %v5612, 16
      %v5671 = vrot.slane %v5669, 5
      %v5672 = vsel %vm1248, %v5667, %v5671
      %v5673 = vshrl.u32 %v5612, 16
      %v5675 = vrot.slane %v5673, 4
      %v5676 = vor.u32 %v5675, %v5671
      %v5677 = vrot.slane %v5676, 4
      %v5679 = vshll.u32 %v5613, 16
      %v5681 = vrot.slane %v5679, 5
      %v5682 = vsel %vm1248, %v5677, %v5681
      %v5684 = vshrl.u32 %v5614, 16
      %v5686 = vrot.slane %v5684, 4
      %v5687 = vshll.u32 %v5614, 16
      %v5689 = vrot.slane %v5687, 5
      %v5690 = vor.u32 %v5686, %v5689
      %v5691 = vrot.slane %v5690, 4
      %v5693 = vshll.u32 %v5615, 16
      %v5695 = vrot.slane %v5693, 5
      %v5696 = vsel %vm1248, %v5691, %v5695
      %v5697 = vshrl.u32 %v5615, 16
      %v5699 = vrot.slane %v5697, 4
      %v5700 = vor.u32 %v5699, %v5695
      %v5701 = vrot.slane %v5700, 4
      %v5703 = vshll.u32 %v5616, 16
      %v5705 = vrot.slane %v5703, 5
      %v5706 = vsel %vm1248, %v5701, %v5705
      %v5708 = vshrl.u32 %v5617, 16
      %v5710 = vrot.slane %v5708, 4
      %v5711 = vshll.u32 %v5617, 16
      %v5713 = vrot.slane %v5711, 5
      %v5714 = vor.u32 %v5710, %v5713
      %v5715 = vrot.slane %v5714, 4
      %v5717 = vshll.u32 %v5618, 16
      %v5719 = vrot.slane %v5717, 5
      %v5720 = vsel %vm1248, %v5715, %v5719
      %v5721 = vshrl.u32 %v5618, 16
      %v5723 = vrot.slane %v5721, 4
      %v5724 = vor.u32 %v5723, %v5719
      %v5725 = vrot.slane %v5724, 4
      %v5727 = vshll.u32 %v5619, 16
      %v5729 = vrot.slane %v5727, 5
      %v5730 = vsel %vm1248, %v5725, %v5729
      %v5732 = vshrl.u32 %v5620, 16
      %v5734 = vrot.slane %v5732, 4
      %v5735 = vshll.u32 %v5620, 16
      %v5737 = vrot.slane %v5735, 5
      %v5738 = vor.u32 %v5734, %v5737
      %v5739 = vrot.slane %v5738, 4
      %v5741 = vshll.u32 %v5621, 16
      %v5743 = vrot.slane %v5741, 5
      %v5744 = vsel %vm1248, %v5739, %v5743
      %v5745 = vshrl.u32 %v5621, 16
      %v5747 = vrot.slane %v5745, 4
      %v5748 = vor.u32 %v5747, %v5743
      %v5749 = vrot.slane %v5748, 4
      %v5751 = vshll.u32 %v5622, 16
      %v5753 = vrot.slane %v5751, 5
      %v5754 = vsel %vm1248, %v5749, %v5753
      %v5756 = vshrl.u32 %v5623, 16
      %v5758 = vrot.slane %v5756, 4
      %v5759 = vshll.u32 %v5623, 16
      %v5761 = vrot.slane %v5759, 5
      %v5762 = vor.u32 %v5758, %v5761
      %v5763 = vrot.slane %v5762, 4
      %v5765 = vshll.u32 %v5624, 16
      %v5767 = vrot.slane %v5765, 5
      %v5768 = vsel %vm1248, %v5763, %v5767
      %v5769 = vshrl.u32 %v5624, 16
      %v5771 = vrot.slane %v5769, 4
      %v5772 = vor.u32 %v5771, %v5767
      %v5773 = vrot.slane %v5772, 4
      %v5775 = vshll.u32 %v5625, 16
      %v5777 = vrot.slane %v5775, 5
      %v5778 = vsel %vm1248, %v5773, %v5777
      %v5780 = vshrl.u32 %v5626, 16
      %v5782 = vrot.slane %v5780, 4
      %v5783 = vshll.u32 %v5626, 16
      %v5785 = vrot.slane %v5783, 5
      %v5786 = vor.u32 %v5782, %v5785
      %v5787 = vrot.slane %v5786, 4
      %v5789 = vshll.u32 %v5627, 16
      %v5791 = vrot.slane %v5789, 5
      %v5792 = vsel %vm1248, %v5787, %v5791
      %v5793 = vshrl.u32 %v5627, 16
      %v5795 = vrot.slane %v5793, 4
      %v5796 = vor.u32 %v5795, %v5791
      %v5797 = vrot.slane %v5796, 4
      %v5799 = vshll.u32 %v5628, 16
      %v5801 = vrot.slane %v5799, 5
      %v5802 = vsel %vm1248, %v5797, %v5801
      %v5804 = vshrl.u32 %v5629, 16
      %v5806 = vrot.slane %v5804, 4
      %v5807 = vshll.u32 %v5629, 16
      %v5809 = vrot.slane %v5807, 5
      %v5810 = vor.u32 %v5806, %v5809
      %v5811 = vrot.slane %v5810, 4
      %v5813 = vshll.u32 %v5630, 16
      %v5815 = vrot.slane %v5813, 5
      %v5816 = vsel %vm1248, %v5811, %v5815
      %v5817 = vshrl.u32 %v5630, 16
      %v5819 = vrot.slane %v5817, 4
      %v5820 = vor.u32 %v5819, %v5815
      %v5821 = vrot.slane %v5820, 4
      %v5823 = vshll.u32 %v5631, 16
      %v5825 = vrot.slane %v5823, 5
      %v5826 = vsel %vm1248, %v5821, %v5825
      %v5828 = vshrl.u32 %v5632, 16
      %v5830 = vrot.slane %v5828, 4
      %v5831 = vshll.u32 %v5632, 16
      %v5833 = vrot.slane %v5831, 5
      %v5834 = vor.u32 %v5830, %v5833
      %v5835 = vrot.slane %v5834, 4
      %v5837 = vshll.u32 %v5633, 16
      %v5839 = vrot.slane %v5837, 5
      %v5840 = vsel %vm1248, %v5835, %v5839
      %v5841 = vshrl.u32 %v5633, 16
      %v5843 = vrot.slane %v5841, 4
      %v5844 = vor.u32 %v5843, %v5839
      %v5845 = vrot.slane %v5844, 4
      %v5847 = vshll.u32 %v5634, 16
      %v5849 = vrot.slane %v5847, 5
      %v5850 = vsel %vm1248, %v5845, %v5849
      %v5852 = vshrl.u32 %v5635, 16
      %v5854 = vrot.slane %v5852, 4
      %v5855 = vshll.u32 %v5635, 16
      %v5857 = vrot.slane %v5855, 5
      %v5858 = vor.u32 %v5854, %v5857
      %v5859 = vrot.slane %v5858, 4
      %v5861 = vshll.u32 %v5636, 16
      %v5863 = vrot.slane %v5861, 5
      %v5864 = vsel %vm1248, %v5859, %v5863
      %v5865 = vshrl.u32 %v5636, 16
      %v5867 = vrot.slane %v5865, 4
      %v5868 = vor.u32 %v5867, %v5863
      %v5869 = vrot.slane %v5868, 4
      %v5871 = vshll.u32 %v5637, 16
      %v5873 = vrot.slane %v5871, 5
      %v5874 = vsel %vm1248, %v5869, %v5873
      %v5876 = vshrl.u32 %v5638, 16
      %v5878 = vrot.slane %v5876, 4
      %v5879 = vshll.u32 %v5638, 16
      %v5881 = vrot.slane %v5879, 5
      %v5882 = vor.u32 %v5878, %v5881
      %v5883 = vrot.slane %v5882, 4
      %v5885 = vshll.u32 %v5639, 16
      %v5887 = vrot.slane %v5885, 5
      %v5888 = vsel %vm1248, %v5883, %v5887
      %v5889 = vshrl.u32 %v5639, 16
      %v5891 = vrot.slane %v5889, 4
      %v5892 = vor.u32 %v5891, %v5887
      %v5893 = vrot.slane %v5892, 4
      %v5895 = vshll.u32 %v5640, 16
      %v5897 = vrot.slane %v5895, 5
      %v5898 = vsel %vm1248, %v5893, %v5897
      %v5900 = vshrl.u32 %v5641, 16
      %v5902 = vrot.slane %v5900, 4
      %v5903 = vshll.u32 %v5641, 16
      %v5905 = vrot.slane %v5903, 5
      %v5906 = vor.u32 %v5902, %v5905
      %v5907 = vrot.slane %v5906, 4
      %v5909 = vshll.u32 %v5642, 16
      %v5911 = vrot.slane %v5909, 5
      %v5912 = vsel %vm1248, %v5907, %v5911
      %v5913 = vshrl.u32 %v5642, 16
      %v5915 = vrot.slane %v5913, 4
      %v5916 = vor.u32 %v5915, %v5911
      %v5917 = vrot.slane %v5916, 4
      %v5919 = vshll.u32 %v5643, 16
      %v5921 = vrot.slane %v5919, 5
      %v5922 = vsel %vm1248, %v5917, %v5921
      %v5924 = vshrl.u32 %v5644, 16
      %v5926 = vrot.slane %v5924, 4
      %v5927 = vshll.u32 %v5644, 16
      %v5929 = vrot.slane %v5927, 5
      %v5930 = vor.u32 %v5926, %v5929
      %v5931 = vrot.slane %v5930, 4
      %v5933 = vshll.u32 %v5645, 16
      %v5935 = vrot.slane %v5933, 5
      %v5936 = vsel %vm1248, %v5931, %v5935
      %v5937 = vshrl.u32 %v5645, 16
      %v5939 = vrot.slane %v5937, 4
      %v5940 = vor.u32 %v5939, %v5935
      %v5941 = vrot.slane %v5940, 4
      %v5943 = vshll.u32 %v5646, 16
      %v5945 = vrot.slane %v5943, 5
      %v5946 = vsel %vm1248, %v5941, %v5945
      %v5948 = vshrl.u32 %v5647, 16
      %v5950 = vrot.slane %v5948, 4
      %v5951 = vshll.u32 %v5647, 16
      %v5953 = vrot.slane %v5951, 5
      %v5954 = vor.u32 %v5950, %v5953
      %v5955 = vrot.slane %v5954, 4
      %v5957 = vshll.u32 %v5648, 16
      %v5959 = vrot.slane %v5957, 5
      %v5960 = vsel %vm1248, %v5955, %v5959
      %v5961 = vshrl.u32 %v5648, 16
      %v5963 = vrot.slane %v5961, 4
      %v5964 = vor.u32 %v5963, %v5959
      %v5965 = vrot.slane %v5964, 4
      %v5967 = vshll.u32 %v5649, 16
      %v5969 = vrot.slane %v5967, 5
      %v5970 = vsel %vm1248, %v5965, %v5969
      %v5972 = vshrl.u32 %v5650, 16
      %v5974 = vrot.slane %v5972, 4
      %v5975 = vshll.u32 %v5650, 16
      %v5977 = vrot.slane %v5975, 5
      %v5978 = vor.u32 %v5974, %v5977
      %v5979 = vrot.slane %v5978, 4
      %v5981 = vshll.u32 %v5651, 16
      %v5983 = vrot.slane %v5981, 5
      %v5984 = vsel %vm1248, %v5979, %v5983
      %v5985 = vshrl.u32 %v5651, 16
      %v5987 = vrot.slane %v5985, 4
      %v5988 = vor.u32 %v5987, %v5983
      %v5989 = vrot.slane %v5988, 4
      %v5991 = vshll.u32 %v5652, 16
      %v5993 = vrot.slane %v5991, 5
      %v5994 = vsel %vm1248, %v5989, %v5993
      %v5996 = vshrl.u32 %v5653, 16
      %v5998 = vrot.slane %v5996, 4
      %v5999 = vshll.u32 %v5653, 16
      %v6001 = vrot.slane %v5999, 5
      %v6002 = vor.u32 %v5998, %v6001
      %v6003 = vrot.slane %v6002, 4
      %v6005 = vshll.u32 %v5654, 16
      %v6007 = vrot.slane %v6005, 5
      %v6008 = vsel %vm1248, %v6003, %v6007
      %v6009 = vshrl.u32 %v5654, 16
      %v6011 = vrot.slane %v6009, 4
      %v6012 = vor.u32 %v6011, %v6007
      %v6013 = vrot.slane %v6012, 4
      %v6015 = vshll.u32 %v5655, 16
      %v6017 = vrot.slane %v6015, 5
      %v6018 = vsel %vm1248, %v6013, %v6017
      %v6020 = vshrl.u32 %v5656, 16
      %v6022 = vrot.slane %v6020, 4
      %v6023 = vshll.u32 %v5656, 16
      %v6025 = vrot.slane %v6023, 5
      %v6026 = vor.u32 %v6022, %v6025
      %v6027 = vrot.slane %v6026, 4
      %v6029 = vshll.u32 %v5657, 16
      %v6031 = vrot.slane %v6029, 5
      %v6032 = vsel %vm1248, %v6027, %v6031
      %v6033 = vshrl.u32 %v5657, 16
      %v6035 = vrot.slane %v6033, 4
      %v6036 = vor.u32 %v6035, %v6031
      %v6037 = vrot.slane %v6036, 4
      %v6039 = vshll.u32 %v5658, 16
      %v6041 = vrot.slane %v6039, 5
      %v6042 = vsel %vm1248, %v6037, %v6041
      %v6043 = vld [vmem:[%s785] sm:$0xe]
      %v6044 = vld [vmem:[%s785 + $0xc] sm:$0xe]
      %v6045 = vld [vmem:[%s785 + $0x18] sm:$0xe]
      %v6046 = vld [vmem:[%s785 + $0x24] sm:$0xe]
      %v6047 = vld [vmem:[%s785 + $0x30] sm:$0xe]
      %v6048 = vld [vmem:[%s785 + $0x3c] sm:$0xe]
      %v6049 = vld [vmem:[%s785 + $0x48] sm:$0xe]
      %v6050 = vld [vmem:[%s785 + $0x54] sm:$0xe]
      %v6051 = vld [vmem:[%s785 + $0x60] sm:$0xe]
      %v6052 = vld [vmem:[%s785 + $0x6c] sm:$0xe]
      %v6053 = vld [vmem:[%s785 + $0x78] sm:$0xe]
      %v6054 = vld [vmem:[%s785 + $0x84] sm:$0xe]
      %v6055 = vld [vmem:[%s785 + $0x90] sm:$0xe]
      %v6056 = vld [vmem:[%s785 + $0x9c] sm:$0xe]
      %v6057 = vld [vmem:[%s785 + $0xa8] sm:$0xe]
      %v6058 = vld [vmem:[%s785 + $0xb4] sm:$0xe]
      %v6107 = vrot.slane %v6043, 5
      %v6108 = vrot.slane %v6107, 4
      %v6109 = vrot.slane %v5612, 5
      %v6110 = vsel %vm1699, %v6108, %v6109
      %v6111 = vrot.slane %v6109, 4
      %v6112 = vrot.slane %v5613, 5
      %v6113 = vsel %vm1699, %v6111, %v6112
      %v6114 = vrot.slane %v6044, 5
      %v6115 = vrot.slane %v6114, 4
      %v6116 = vrot.slane %v5615, 5
      %v6117 = vsel %vm1699, %v6115, %v6116
      %v6118 = vrot.slane %v6116, 4
      %v6119 = vrot.slane %v5616, 5
      %v6120 = vsel %vm1699, %v6118, %v6119
      %v6121 = vrot.slane %v6045, 5
      %v6122 = vrot.slane %v6121, 4
      %v6123 = vrot.slane %v5618, 5
      %v6124 = vsel %vm1699, %v6122, %v6123
      %v6125 = vrot.slane %v6123, 4
      %v6126 = vrot.slane %v5619, 5
      %v6127 = vsel %vm1699, %v6125, %v6126
      %v6128 = vrot.slane %v6046, 5
      %v6129 = vrot.slane %v6128, 4
      %v6130 = vrot.slane %v5621, 5
      %v6131 = vsel %vm1699, %v6129, %v6130
      %v6132 = vrot.slane %v6130, 4
      %v6133 = vrot.slane %v5622, 5
      %v6134 = vsel %vm1699, %v6132, %v6133
      %v6135 = vrot.slane %v6047, 5
      %v6136 = vrot.slane %v6135, 4
      %v6137 = vrot.slane %v5624, 5
      %v6138 = vsel %vm1699, %v6136, %v6137
      %v6139 = vrot.slane %v6137, 4
      %v6140 = vrot.slane %v5625, 5
      %v6141 = vsel %vm1699, %v6139, %v6140
      %v6142 = vrot.slane %v6048, 5
      %v6143 = vrot.slane %v6142, 4
      %v6144 = vrot.slane %v5627, 5
      %v6145 = vsel %vm1699, %v6143, %v6144
      %v6146 = vrot.slane %v6144, 4
      %v6147 = vrot.slane %v5628, 5
      %v6148 = vsel %vm1699, %v6146, %v6147
      %v6149 = vrot.slane %v6049, 5
      %v6150 = vrot.slane %v6149, 4
      %v6151 = vrot.slane %v5630, 5
      %v6152 = vsel %vm1699, %v6150, %v6151
      %v6153 = vrot.slane %v6151, 4
      %v6154 = vrot.slane %v5631, 5
      %v6155 = vsel %vm1699, %v6153, %v6154
      %v6156 = vrot.slane %v6050, 5
      %v6157 = vrot.slane %v6156, 4
      %v6158 = vrot.slane %v5633, 5
      %v6159 = vsel %vm1699, %v6157, %v6158
      %v6160 = vrot.slane %v6158, 4
      %v6161 = vrot.slane %v5634, 5
      %v6162 = vsel %vm1699, %v6160, %v6161
      %v6163 = vrot.slane %v6051, 5
      %v6164 = vrot.slane %v6163, 4
      %v6165 = vrot.slane %v5636, 5
      %v6166 = vsel %vm1699, %v6164, %v6165
      %v6167 = vrot.slane %v6165, 4
      %v6168 = vrot.slane %v5637, 5
      %v6169 = vsel %vm1699, %v6167, %v6168
      %v6170 = vrot.slane %v6052, 5
      %v6171 = vrot.slane %v6170, 4
      %v6172 = vrot.slane %v5639, 5
      %v6173 = vsel %vm1699, %v6171, %v6172
      %v6174 = vrot.slane %v6172, 4
      %v6175 = vrot.slane %v5640, 5
      %v6176 = vsel %vm1699, %v6174, %v6175
      %v6177 = vrot.slane %v6053, 5
      %v6178 = vrot.slane %v6177, 4
      %v6179 = vrot.slane %v5642, 5
      %v6180 = vsel %vm1699, %v6178, %v6179
      %v6181 = vrot.slane %v6179, 4
      %v6182 = vrot.slane %v5643, 5
      %v6183 = vsel %vm1699, %v6181, %v6182
      %v6184 = vrot.slane %v6054, 5
      %v6185 = vrot.slane %v6184, 4
      %v6186 = vrot.slane %v5645, 5
      %v6187 = vsel %vm1699, %v6185, %v6186
      %v6188 = vrot.slane %v6186, 4
      %v6189 = vrot.slane %v5646, 5
      %v6190 = vsel %vm1699, %v6188, %v6189
      %v6191 = vrot.slane %v6055, 5
      %v6192 = vrot.slane %v6191, 4
      %v6193 = vrot.slane %v5648, 5
      %v6194 = vsel %vm1699, %v6192, %v6193
      %v6195 = vrot.slane %v6193, 4
      %v6196 = vrot.slane %v5649, 5
      %v6197 = vsel %vm1699, %v6195, %v6196
      %v6198 = vrot.slane %v6056, 5
      %v6199 = vrot.slane %v6198, 4
      %v6200 = vrot.slane %v5651, 5
      %v6201 = vsel %vm1699, %v6199, %v6200
      %v6202 = vrot.slane %v6200, 4
      %v6203 = vrot.slane %v5652, 5
      %v6204 = vsel %vm1699, %v6202, %v6203
      %v6205 = vrot.slane %v6057, 5
      %v6206 = vrot.slane %v6205, 4
      %v6207 = vrot.slane %v5654, 5
      %v6208 = vsel %vm1699, %v6206, %v6207
      %v6209 = vrot.slane %v6207, 4
      %v6210 = vrot.slane %v5655, 5
      %v6211 = vsel %vm1699, %v6209, %v6210
      %v6212 = vrot.slane %v6058, 5
      %v6213 = vrot.slane %v6212, 4
      %v6214 = vrot.slane %v5657, 5
      %v6215 = vsel %vm1699, %v6213, %v6214
      %v6216 = vrot.slane %v6214, 4
      %v6217 = vrot.slane %v5658, 5
      %v6218 = vsel %vm1699, %v6216, %v6217
      %v6219 = vld [vmem:[%s890] sm:$0xf]
      %v6220 = vld [vmem:[%s890 + $0x4] sm:$0xf]
      %v6221 = vld [vmem:[%s890 + $0xc] sm:$0xf]
      %v6222 = vld [vmem:[%s890 + $0x10] sm:$0xf]
      %v6223 = vld [vmem:[%s890 + $0x18] sm:$0xf]
      %v6224 = vld [vmem:[%s890 + $0x1c] sm:$0xf]
      %v6225 = vld [vmem:[%s890 + $0x24] sm:$0xf]
      %v6226 = vld [vmem:[%s890 + $0x28] sm:$0xf]
      %v6227 = vld [vmem:[%s890 + $0x30] sm:$0xf]
      %v6228 = vld [vmem:[%s890 + $0x34] sm:$0xf]
      %v6229 = vld [vmem:[%s890 + $0x3c] sm:$0xf]
      %v6230 = vld [vmem:[%s890 + $0x40] sm:$0xf]
      %v6231 = vld [vmem:[%s890 + $0x48] sm:$0xf]
      %v6232 = vld [vmem:[%s890 + $0x4c] sm:$0xf]
      %v6233 = vld [vmem:[%s890 + $0x54] sm:$0xf]
      %v6234 = vld [vmem:[%s890 + $0x58] sm:$0xf]
      %v6235 = vld [vmem:[%s890 + $0x60] sm:$0xf]
      %v6236 = vld [vmem:[%s890 + $0x64] sm:$0xf]
      %v6237 = vld [vmem:[%s890 + $0x6c] sm:$0xf]
      %v6238 = vld [vmem:[%s890 + $0x70] sm:$0xf]
      %v6239 = vld [vmem:[%s890 + $0x78] sm:$0xf]
      %v6240 = vld [vmem:[%s890 + $0x7c] sm:$0xf]
      %v6241 = vld [vmem:[%s890 + $0x84] sm:$0xf]
      %v6242 = vld [vmem:[%s890 + $0x88] sm:$0xf]
      %v6243 = vld [vmem:[%s890 + $0x90] sm:$0xf]
      %v6244 = vld [vmem:[%s890 + $0x94] sm:$0xf]
      %v6245 = vld [vmem:[%s890 + $0x9c] sm:$0xf]
      %v6246 = vld [vmem:[%s890 + $0xa0] sm:$0xf]
      %v6247 = vld [vmem:[%s890 + $0xa8] sm:$0xf]
      %v6248 = vld [vmem:[%s890 + $0xac] sm:$0xf]
      %v6249 = vld [vmem:[%s890 + $0xb4] sm:$0xf]
      %v6250 = vld [vmem:[%s890 + $0xb8] sm:$0xf]
      %v6251 = vld [vmem:[%s890 + $0x8] sm:$0x1]
      %v6252 = vld [vmem:[%s890 + $0x14] sm:$0x1]
      %v6253 = vld [vmem:[%s890 + $0x20] sm:$0x1]
      %v6254 = vld [vmem:[%s890 + $0x2c] sm:$0x1]
      %v6255 = vld [vmem:[%s890 + $0x38] sm:$0x1]
      %v6256 = vld [vmem:[%s890 + $0x44] sm:$0x1]
      %v6257 = vld [vmem:[%s890 + $0x50] sm:$0x1]
      %v6258 = vld [vmem:[%s890 + $0x5c] sm:$0x1]
      %v6259 = vld [vmem:[%s890 + $0x68] sm:$0x1]
      %v6260 = vld [vmem:[%s890 + $0x74] sm:$0x1]
      %v6261 = vld [vmem:[%s890 + $0x80] sm:$0x1]
      %v6262 = vld [vmem:[%s890 + $0x8c] sm:$0x1]
      %v6263 = vld [vmem:[%s890 + $0x98] sm:$0x1]
      %v6264 = vld [vmem:[%s890 + $0xa4] sm:$0x1]
      %v6265 = vld [vmem:[%s890 + $0xb0] sm:$0x1]
      %v6266 = vld [vmem:[%s890 + $0xbc] sm:$0x1]
      %v6268 = vshrl.u32 %v6219, 16
      %v6270 = vrot.slane %v6268, 4
      %v6271 = vshll.u32 %v6219, 16
      %v6273 = vrot.slane %v6271, 5
      %v6274 = vor.u32 %v6270, %v6273
      %v6275 = vrot.slane %v6274, 4
      %v6277 = vshll.u32 %v6220, 16
      %v6279 = vrot.slane %v6277, 5
      %v6280 = vsel %vm1248, %v6275, %v6279
      %v6281 = vshrl.u32 %v6220, 16
      %v6283 = vrot.slane %v6281, 4
      %v6284 = vor.u32 %v6283, %v6279
      %v6285 = vrot.slane %v6284, 4
      %v6287 = vshll.u32 %v6251, 16
      %v6289 = vrot.slane %v6287, 5
      %v6290 = vsel %vm1248, %v6285, %v6289
      %v6292 = vshrl.u32 %v6221, 16
      %v6294 = vrot.slane %v6292, 4
      %v6295 = vshll.u32 %v6221, 16
      %v6297 = vrot.slane %v6295, 5
      %v6298 = vor.u32 %v6294, %v6297
      %v6299 = vrot.slane %v6298, 4
      %v6301 = vshll.u32 %v6222, 16
      %v6303 = vrot.slane %v6301, 5
      %v6304 = vsel %vm1248, %v6299, %v6303
      %v6305 = vshrl.u32 %v6222, 16
      %v6307 = vrot.slane %v6305, 4
      %v6308 = vor.u32 %v6307, %v6303
      %v6309 = vrot.slane %v6308, 4
      %v6311 = vshll.u32 %v6252, 16
      %v6313 = vrot.slane %v6311, 5
      %v6314 = vsel %vm1248, %v6309, %v6313
      %v6316 = vshrl.u32 %v6223, 16
      %v6318 = vrot.slane %v6316, 4
      %v6319 = vshll.u32 %v6223, 16
      %v6321 = vrot.slane %v6319, 5
      %v6322 = vor.u32 %v6318, %v6321
      %v6323 = vrot.slane %v6322, 4
      %v6325 = vshll.u32 %v6224, 16
      %v6327 = vrot.slane %v6325, 5
      %v6328 = vsel %vm1248, %v6323, %v6327
      %v6329 = vshrl.u32 %v6224, 16
      %v6331 = vrot.slane %v6329, 4
      %v6332 = vor.u32 %v6331, %v6327
      %v6333 = vrot.slane %v6332, 4
      %v6335 = vshll.u32 %v6253, 16
      %v6337 = vrot.slane %v6335, 5
      %v6338 = vsel %vm1248, %v6333, %v6337
      %v6340 = vshrl.u32 %v6225, 16
      %v6342 = vrot.slane %v6340, 4
      %v6343 = vshll.u32 %v6225, 16
      %v6345 = vrot.slane %v6343, 5
      %v6346 = vor.u32 %v6342, %v6345
      %v6347 = vrot.slane %v6346, 4
      %v6349 = vshll.u32 %v6226, 16
      %v6351 = vrot.slane %v6349, 5
      %v6352 = vsel %vm1248, %v6347, %v6351
      %v6353 = vshrl.u32 %v6226, 16
      %v6355 = vrot.slane %v6353, 4
      %v6356 = vor.u32 %v6355, %v6351
      %v6357 = vrot.slane %v6356, 4
      %v6359 = vshll.u32 %v6254, 16
      %v6361 = vrot.slane %v6359, 5
      %v6362 = vsel %vm1248, %v6357, %v6361
      %v6364 = vshrl.u32 %v6227, 16
      %v6366 = vrot.slane %v6364, 4
      %v6367 = vshll.u32 %v6227, 16
      %v6369 = vrot.slane %v6367, 5
      %v6370 = vor.u32 %v6366, %v6369
      %v6371 = vrot.slane %v6370, 4
      %v6373 = vshll.u32 %v6228, 16
      %v6375 = vrot.slane %v6373, 5
      %v6376 = vsel %vm1248, %v6371, %v6375
      %v6377 = vshrl.u32 %v6228, 16
      %v6379 = vrot.slane %v6377, 4
      %v6380 = vor.u32 %v6379, %v6375
      %v6381 = vrot.slane %v6380, 4
      %v6383 = vshll.u32 %v6255, 16
      %v6385 = vrot.slane %v6383, 5
      %v6386 = vsel %vm1248, %v6381, %v6385
      %v6388 = vshrl.u32 %v6229, 16
      %v6390 = vrot.slane %v6388, 4
      %v6391 = vshll.u32 %v6229, 16
      %v6393 = vrot.slane %v6391, 5
      %v6394 = vor.u32 %v6390, %v6393
      %v6395 = vrot.slane %v6394, 4
      %v6397 = vshll.u32 %v6230, 16
      %v6399 = vrot.slane %v6397, 5
      %v6400 = vsel %vm1248, %v6395, %v6399
      %v6401 = vshrl.u32 %v6230, 16
      %v6403 = vrot.slane %v6401, 4
      %v6404 = vor.u32 %v6403, %v6399
      %v6405 = vrot.slane %v6404, 4
      %v6407 = vshll.u32 %v6256, 16
      %v6409 = vrot.slane %v6407, 5
      %v6410 = vsel %vm1248, %v6405, %v6409
      %v6412 = vshrl.u32 %v6231, 16
      %v6414 = vrot.slane %v6412, 4
      %v6415 = vshll.u32 %v6231, 16
      %v6417 = vrot.slane %v6415, 5
      %v6418 = vor.u32 %v6414, %v6417
      %v6419 = vrot.slane %v6418, 4
      %v6421 = vshll.u32 %v6232, 16
      %v6423 = vrot.slane %v6421, 5
      %v6424 = vsel %vm1248, %v6419, %v6423
      %v6425 = vshrl.u32 %v6232, 16
      %v6427 = vrot.slane %v6425, 4
      %v6428 = vor.u32 %v6427, %v6423
      %v6429 = vrot.slane %v6428, 4
      %v6431 = vshll.u32 %v6257, 16
      %v6433 = vrot.slane %v6431, 5
      %v6434 = vsel %vm1248, %v6429, %v6433
      %v6436 = vshrl.u32 %v6233, 16
      %v6438 = vrot.slane %v6436, 4
      %v6439 = vshll.u32 %v6233, 16
      %v6441 = vrot.slane %v6439, 5
      %v6442 = vor.u32 %v6438, %v6441
      %v6443 = vrot.slane %v6442, 4
      %v6445 = vshll.u32 %v6234, 16
      %v6447 = vrot.slane %v6445, 5
      %v6448 = vsel %vm1248, %v6443, %v6447
      %v6449 = vshrl.u32 %v6234, 16
      %v6451 = vrot.slane %v6449, 4
      %v6452 = vor.u32 %v6451, %v6447
      %v6453 = vrot.slane %v6452, 4
      %v6455 = vshll.u32 %v6258, 16
      %v6457 = vrot.slane %v6455, 5
      %v6458 = vsel %vm1248, %v6453, %v6457
      %v6460 = vshrl.u32 %v6235, 16
      %v6462 = vrot.slane %v6460, 4
      %v6463 = vshll.u32 %v6235, 16
      %v6465 = vrot.slane %v6463, 5
      %v6466 = vor.u32 %v6462, %v6465
      %v6467 = vrot.slane %v6466, 4
      %v6469 = vshll.u32 %v6236, 16
      %v6471 = vrot.slane %v6469, 5
      %v6472 = vsel %vm1248, %v6467, %v6471
      %v6473 = vshrl.u32 %v6236, 16
      %v6475 = vrot.slane %v6473, 4
      %v6476 = vor.u32 %v6475, %v6471
      %v6477 = vrot.slane %v6476, 4
      %v6479 = vshll.u32 %v6259, 16
      %v6481 = vrot.slane %v6479, 5
      %v6482 = vsel %vm1248, %v6477, %v6481
      %v6484 = vshrl.u32 %v6237, 16
      %v6486 = vrot.slane %v6484, 4
      %v6487 = vshll.u32 %v6237, 16
      %v6489 = vrot.slane %v6487, 5
      %v6490 = vor.u32 %v6486, %v6489
      %v6491 = vrot.slane %v6490, 4
      %v6493 = vshll.u32 %v6238, 16
      %v6495 = vrot.slane %v6493, 5
      %v6496 = vsel %vm1248, %v6491, %v6495
      %v6497 = vshrl.u32 %v6238, 16
      %v6499 = vrot.slane %v6497, 4
      %v6500 = vor.u32 %v6499, %v6495
      %v6501 = vrot.slane %v6500, 4
      %v6503 = vshll.u32 %v6260, 16
      %v6505 = vrot.slane %v6503, 5
      %v6506 = vsel %vm1248, %v6501, %v6505
      %v6508 = vshrl.u32 %v6239, 16
      %v6510 = vrot.slane %v6508, 4
      %v6511 = vshll.u32 %v6239, 16
      %v6513 = vrot.slane %v6511, 5
      %v6514 = vor.u32 %v6510, %v6513
      %v6515 = vrot.slane %v6514, 4
      %v6517 = vshll.u32 %v6240, 16
      %v6519 = vrot.slane %v6517, 5
      %v6520 = vsel %vm1248, %v6515, %v6519
      %v6521 = vshrl.u32 %v6240, 16
      %v6523 = vrot.slane %v6521, 4
      %v6524 = vor.u32 %v6523, %v6519
      %v6525 = vrot.slane %v6524, 4
      %v6527 = vshll.u32 %v6261, 16
      %v6529 = vrot.slane %v6527, 5
      %v6530 = vsel %vm1248, %v6525, %v6529
      %v6532 = vshrl.u32 %v6241, 16
      %v6534 = vrot.slane %v6532, 4
      %v6535 = vshll.u32 %v6241, 16
      %v6537 = vrot.slane %v6535, 5
      %v6538 = vor.u32 %v6534, %v6537
      %v6539 = vrot.slane %v6538, 4
      %v6541 = vshll.u32 %v6242, 16
      %v6543 = vrot.slane %v6541, 5
      %v6544 = vsel %vm1248, %v6539, %v6543
      %v6545 = vshrl.u32 %v6242, 16
      %v6547 = vrot.slane %v6545, 4
      %v6548 = vor.u32 %v6547, %v6543
      %v6549 = vrot.slane %v6548, 4
      %v6551 = vshll.u32 %v6262, 16
      %v6553 = vrot.slane %v6551, 5
      %v6554 = vsel %vm1248, %v6549, %v6553
      %v6556 = vshrl.u32 %v6243, 16
      %v6558 = vrot.slane %v6556, 4
      %v6559 = vshll.u32 %v6243, 16
      %v6561 = vrot.slane %v6559, 5
      %v6562 = vor.u32 %v6558, %v6561
      %v6563 = vrot.slane %v6562, 4
      %v6565 = vshll.u32 %v6244, 16
      %v6567 = vrot.slane %v6565, 5
      %v6568 = vsel %vm1248, %v6563, %v6567
      %v6569 = vshrl.u32 %v6244, 16
      %v6571 = vrot.slane %v6569, 4
      %v6572 = vor.u32 %v6571, %v6567
      %v6573 = vrot.slane %v6572, 4
      %v6575 = vshll.u32 %v6263, 16
      %v6577 = vrot.slane %v6575, 5
      %v6578 = vsel %vm1248, %v6573, %v6577
      %v6580 = vshrl.u32 %v6245, 16
      %v6582 = vrot.slane %v6580, 4
      %v6583 = vshll.u32 %v6245, 16
      %v6585 = vrot.slane %v6583, 5
      %v6586 = vor.u32 %v6582, %v6585
      %v6587 = vrot.slane %v6586, 4
      %v6589 = vshll.u32 %v6246, 16
      %v6591 = vrot.slane %v6589, 5
      %v6592 = vsel %vm1248, %v6587, %v6591
      %v6593 = vshrl.u32 %v6246, 16
      %v6595 = vrot.slane %v6593, 4
      %v6596 = vor.u32 %v6595, %v6591
      %v6597 = vrot.slane %v6596, 4
      %v6599 = vshll.u32 %v6264, 16
      %v6601 = vrot.slane %v6599, 5
      %v6602 = vsel %vm1248, %v6597, %v6601
      %v6604 = vshrl.u32 %v6247, 16
      %v6606 = vrot.slane %v6604, 4
      %v6607 = vshll.u32 %v6247, 16
      %v6609 = vrot.slane %v6607, 5
      %v6610 = vor.u32 %v6606, %v6609
      %v6611 = vrot.slane %v6610, 4
      %v6613 = vshll.u32 %v6248, 16
      %v6615 = vrot.slane %v6613, 5
      %v6616 = vsel %vm1248, %v6611, %v6615
      %v6617 = vshrl.u32 %v6248, 16
      %v6619 = vrot.slane %v6617, 4
      %v6620 = vor.u32 %v6619, %v6615
      %v6621 = vrot.slane %v6620, 4
      %v6623 = vshll.u32 %v6265, 16
      %v6625 = vrot.slane %v6623, 5
      %v6626 = vsel %vm1248, %v6621, %v6625
      %v6628 = vshrl.u32 %v6249, 16
      %v6630 = vrot.slane %v6628, 4
      %v6631 = vshll.u32 %v6249, 16
      %v6633 = vrot.slane %v6631, 5
      %v6634 = vor.u32 %v6630, %v6633
      %v6635 = vrot.slane %v6634, 4
      %v6637 = vshll.u32 %v6250, 16
      %v6639 = vrot.slane %v6637, 5
      %v6640 = vsel %vm1248, %v6635, %v6639
      %v6641 = vshrl.u32 %v6250, 16
      %v6643 = vrot.slane %v6641, 4
      %v6644 = vor.u32 %v6643, %v6639
      %v6645 = vrot.slane %v6644, 4
      %v6647 = vshll.u32 %v6266, 16
      %v6649 = vrot.slane %v6647, 5
      %v6650 = vsel %vm1248, %v6645, %v6649
      %s6651 = scalar_lea.vmem [#allocation3], 24
      %v6652 = vld [vmem:[%s6651] sm:$0xf]
      %v6653 = vld [vmem:[%s6651 + $0x4] sm:$0xf]
      %v6654 = vld [vmem:[%s6651 + $0x8] sm:$0x1]
      %v6655 = vld [vmem:[%s6651 + $0xc] sm:$0xf]
      %v6656 = vld [vmem:[%s6651 + $0x10] sm:$0xf]
      %v6657 = vld [vmem:[%s6651 + $0x14] sm:$0x1]
      %v6658 = vld [vmem:[%s6651 + $0x18] sm:$0xf]
      %v6659 = vld [vmem:[%s6651 + $0x1c] sm:$0xf]
      %v6660 = vld [vmem:[%s6651 + $0x20] sm:$0x1]
      %v6661 = vld [vmem:[%s6651 + $0x24] sm:$0xf]
      %v6662 = vld [vmem:[%s6651 + $0x28] sm:$0xf]
      %v6663 = vld [vmem:[%s6651 + $0x2c] sm:$0x1]
      %v6664 = vld [vmem:[%s6651 + $0x30] sm:$0xf]
      %v6665 = vld [vmem:[%s6651 + $0x34] sm:$0xf]
      %v6666 = vld [vmem:[%s6651 + $0x38] sm:$0x1]
      %v6667 = vld [vmem:[%s6651 + $0x3c] sm:$0xf]
      %v6668 = vld [vmem:[%s6651 + $0x40] sm:$0xf]
      %v6669 = vld [vmem:[%s6651 + $0x44] sm:$0x1]
      %v6670 = vld [vmem:[%s6651 + $0x48] sm:$0xf]
      %v6671 = vld [vmem:[%s6651 + $0x4c] sm:$0xf]
      %v6672 = vld [vmem:[%s6651 + $0x50] sm:$0x1]
      %v6673 = vld [vmem:[%s6651 + $0x54] sm:$0xf]
      %v6674 = vld [vmem:[%s6651 + $0x58] sm:$0xf]
      %v6675 = vld [vmem:[%s6651 + $0x5c] sm:$0x1]
      %v6676 = vld [vmem:[%s6651 + $0x60] sm:$0xf]
      %v6677 = vld [vmem:[%s6651 + $0x64] sm:$0xf]
      %v6678 = vld [vmem:[%s6651 + $0x68] sm:$0x1]
      %v6679 = vld [vmem:[%s6651 + $0x6c] sm:$0xf]
      %v6680 = vld [vmem:[%s6651 + $0x70] sm:$0xf]
      %v6681 = vld [vmem:[%s6651 + $0x74] sm:$0x1]
      %v6682 = vld [vmem:[%s6651 + $0x78] sm:$0xf]
      %v6683 = vld [vmem:[%s6651 + $0x7c] sm:$0xf]
      %v6684 = vld [vmem:[%s6651 + $0x80] sm:$0x1]
      %v6685 = vld [vmem:[%s6651 + $0x84] sm:$0xf]
      %v6686 = vld [vmem:[%s6651 + $0x88] sm:$0xf]
      %v6687 = vld [vmem:[%s6651 + $0x8c] sm:$0x1]
      %v6688 = vld [vmem:[%s6651 + $0x90] sm:$0xf]
      %v6689 = vld [vmem:[%s6651 + $0x94] sm:$0xf]
      %v6690 = vld [vmem:[%s6651 + $0x98] sm:$0x1]
      %v6691 = vld [vmem:[%s6651 + $0x9c] sm:$0xf]
      %v6692 = vld [vmem:[%s6651 + $0xa0] sm:$0xf]
      %v6693 = vld [vmem:[%s6651 + $0xa4] sm:$0x1]
      %v6694 = vld [vmem:[%s6651 + $0xa8] sm:$0xf]
      %v6695 = vld [vmem:[%s6651 + $0xac] sm:$0xf]
      %v6696 = vld [vmem:[%s6651 + $0xb0] sm:$0x1]
      %v6697 = vld [vmem:[%s6651 + $0xb4] sm:$0xf]
      %v6698 = vld [vmem:[%s6651 + $0xb8] sm:$0xf]
      %v6699 = vld [vmem:[%s6651 + $0xbc] sm:$0x1]
      %v6701 = vshrl.u32 %v6652, 16
      %v6703 = vrot.slane %v6701, 4
      %v6704 = vshll.u32 %v6652, 16
      %v6706 = vrot.slane %v6704, 5
      %v6707 = vor.u32 %v6703, %v6706
      %v6708 = vrot.slane %v6707, 4
      %v6710 = vshll.u32 %v6653, 16
      %v6712 = vrot.slane %v6710, 5
      %v6713 = vsel %vm1248, %v6708, %v6712
      %v6714 = vshrl.u32 %v6653, 16
      %v6716 = vrot.slane %v6714, 4
      %v6717 = vor.u32 %v6716, %v6712
      %v6718 = vrot.slane %v6717, 4
      %v6720 = vshll.u32 %v6654, 16
      %v6722 = vrot.slane %v6720, 5
      %v6723 = vsel %vm1248, %v6718, %v6722
      %v6725 = vshrl.u32 %v6655, 16
      %v6727 = vrot.slane %v6725, 4
      %v6728 = vshll.u32 %v6655, 16
      %v6730 = vrot.slane %v6728, 5
      %v6731 = vor.u32 %v6727, %v6730
      %v6732 = vrot.slane %v6731, 4
      %v6734 = vshll.u32 %v6656, 16
      %v6736 = vrot.slane %v6734, 5
      %v6737 = vsel %vm1248, %v6732, %v6736
      %v6738 = vshrl.u32 %v6656, 16
      %v6740 = vrot.slane %v6738, 4
      %v6741 = vor.u32 %v6740, %v6736
      %v6742 = vrot.slane %v6741, 4
      %v6744 = vshll.u32 %v6657, 16
      %v6746 = vrot.slane %v6744, 5
      %v6747 = vsel %vm1248, %v6742, %v6746
      %v6749 = vshrl.u32 %v6658, 16
      %v6751 = vrot.slane %v6749, 4
      %v6752 = vshll.u32 %v6658, 16
      %v6754 = vrot.slane %v6752, 5
      %v6755 = vor.u32 %v6751, %v6754
      %v6756 = vrot.slane %v6755, 4
      %v6758 = vshll.u32 %v6659, 16
      %v6760 = vrot.slane %v6758, 5
      %v6761 = vsel %vm1248, %v6756, %v6760
      %v6762 = vshrl.u32 %v6659, 16
      %v6764 = vrot.slane %v6762, 4
      %v6765 = vor.u32 %v6764, %v6760
      %v6766 = vrot.slane %v6765, 4
      %v6768 = vshll.u32 %v6660, 16
      %v6770 = vrot.slane %v6768, 5
      %v6771 = vsel %vm1248, %v6766, %v6770
      %v6773 = vshrl.u32 %v6661, 16
      %v6775 = vrot.slane %v6773, 4
      %v6776 = vshll.u32 %v6661, 16
      %v6778 = vrot.slane %v6776, 5
      %v6779 = vor.u32 %v6775, %v6778
      %v6780 = vrot.slane %v6779, 4
      %v6782 = vshll.u32 %v6662, 16
      %v6784 = vrot.slane %v6782, 5
      %v6785 = vsel %vm1248, %v6780, %v6784
      %v6786 = vshrl.u32 %v6662, 16
      %v6788 = vrot.slane %v6786, 4
      %v6789 = vor.u32 %v6788, %v6784
      %v6790 = vrot.slane %v6789, 4
      %v6792 = vshll.u32 %v6663, 16
      %v6794 = vrot.slane %v6792, 5
      %v6795 = vsel %vm1248, %v6790, %v6794
      %v6797 = vshrl.u32 %v6664, 16
      %v6799 = vrot.slane %v6797, 4
      %v6800 = vshll.u32 %v6664, 16
      %v6802 = vrot.slane %v6800, 5
      %v6803 = vor.u32 %v6799, %v6802
      %v6804 = vrot.slane %v6803, 4
      %v6806 = vshll.u32 %v6665, 16
      %v6808 = vrot.slane %v6806, 5
      %v6809 = vsel %vm1248, %v6804, %v6808
      %v6810 = vshrl.u32 %v6665, 16
      %v6812 = vrot.slane %v6810, 4
      %v6813 = vor.u32 %v6812, %v6808
      %v6814 = vrot.slane %v6813, 4
      %v6816 = vshll.u32 %v6666, 16
      %v6818 = vrot.slane %v6816, 5
      %v6819 = vsel %vm1248, %v6814, %v6818
      %v6821 = vshrl.u32 %v6667, 16
      %v6823 = vrot.slane %v6821, 4
      %v6824 = vshll.u32 %v6667, 16
      %v6826 = vrot.slane %v6824, 5
      %v6827 = vor.u32 %v6823, %v6826
      %v6828 = vrot.slane %v6827, 4
      %v6830 = vshll.u32 %v6668, 16
      %v6832 = vrot.slane %v6830, 5
      %v6833 = vsel %vm1248, %v6828, %v6832
      %v6834 = vshrl.u32 %v6668, 16
      %v6836 = vrot.slane %v6834, 4
      %v6837 = vor.u32 %v6836, %v6832
      %v6838 = vrot.slane %v6837, 4
      %v6840 = vshll.u32 %v6669, 16
      %v6842 = vrot.slane %v6840, 5
      %v6843 = vsel %vm1248, %v6838, %v6842
      %v6845 = vshrl.u32 %v6670, 16
      %v6847 = vrot.slane %v6845, 4
      %v6848 = vshll.u32 %v6670, 16
      %v6850 = vrot.slane %v6848, 5
      %v6851 = vor.u32 %v6847, %v6850
      %v6852 = vrot.slane %v6851, 4
      %v6854 = vshll.u32 %v6671, 16
      %v6856 = vrot.slane %v6854, 5
      %v6857 = vsel %vm1248, %v6852, %v6856
      %v6858 = vshrl.u32 %v6671, 16
      %v6860 = vrot.slane %v6858, 4
      %v6861 = vor.u32 %v6860, %v6856
      %v6862 = vrot.slane %v6861, 4
      %v6864 = vshll.u32 %v6672, 16
      %v6866 = vrot.slane %v6864, 5
      %v6867 = vsel %vm1248, %v6862, %v6866
      %v6869 = vshrl.u32 %v6673, 16
      %v6871 = vrot.slane %v6869, 4
      %v6872 = vshll.u32 %v6673, 16
      %v6874 = vrot.slane %v6872, 5
      %v6875 = vor.u32 %v6871, %v6874
      %v6876 = vrot.slane %v6875, 4
      %v6878 = vshll.u32 %v6674, 16
      %v6880 = vrot.slane %v6878, 5
      %v6881 = vsel %vm1248, %v6876, %v6880
      %v6882 = vshrl.u32 %v6674, 16
      %v6884 = vrot.slane %v6882, 4
      %v6885 = vor.u32 %v6884, %v6880
      %v6886 = vrot.slane %v6885, 4
      %v6888 = vshll.u32 %v6675, 16
      %v6890 = vrot.slane %v6888, 5
      %v6891 = vsel %vm1248, %v6886, %v6890
      %v6893 = vshrl.u32 %v6676, 16
      %v6895 = vrot.slane %v6893, 4
      %v6896 = vshll.u32 %v6676, 16
      %v6898 = vrot.slane %v6896, 5
      %v6899 = vor.u32 %v6895, %v6898
      %v6900 = vrot.slane %v6899, 4
      %v6902 = vshll.u32 %v6677, 16
      %v6904 = vrot.slane %v6902, 5
      %v6905 = vsel %vm1248, %v6900, %v6904
      %v6906 = vshrl.u32 %v6677, 16
      %v6908 = vrot.slane %v6906, 4
      %v6909 = vor.u32 %v6908, %v6904
      %v6910 = vrot.slane %v6909, 4
      %v6912 = vshll.u32 %v6678, 16
      %v6914 = vrot.slane %v6912, 5
      %v6915 = vsel %vm1248, %v6910, %v6914
      %v6917 = vshrl.u32 %v6679, 16
      %v6919 = vrot.slane %v6917, 4
      %v6920 = vshll.u32 %v6679, 16
      %v6922 = vrot.slane %v6920, 5
      %v6923 = vor.u32 %v6919, %v6922
      %v6924 = vrot.slane %v6923, 4
      %v6926 = vshll.u32 %v6680, 16
      %v6928 = vrot.slane %v6926, 5
      %v6929 = vsel %vm1248, %v6924, %v6928
      %v6930 = vshrl.u32 %v6680, 16
      %v6932 = vrot.slane %v6930, 4
      %v6933 = vor.u32 %v6932, %v6928
      %v6934 = vrot.slane %v6933, 4
      %v6936 = vshll.u32 %v6681, 16
      %v6938 = vrot.slane %v6936, 5
      %v6939 = vsel %vm1248, %v6934, %v6938
      %v6941 = vshrl.u32 %v6682, 16
      %v6943 = vrot.slane %v6941, 4
      %v6944 = vshll.u32 %v6682, 16
      %v6946 = vrot.slane %v6944, 5
      %v6947 = vor.u32 %v6943, %v6946
      %v6948 = vrot.slane %v6947, 4
      %v6950 = vshll.u32 %v6683, 16
      %v6952 = vrot.slane %v6950, 5
      %v6953 = vsel %vm1248, %v6948, %v6952
      %v6954 = vshrl.u32 %v6683, 16
      %v6956 = vrot.slane %v6954, 4
      %v6957 = vor.u32 %v6956, %v6952
      %v6958 = vrot.slane %v6957, 4
      %v6960 = vshll.u32 %v6684, 16
      %v6962 = vrot.slane %v6960, 5
      %v6963 = vsel %vm1248, %v6958, %v6962
      %v6965 = vshrl.u32 %v6685, 16
      %v6967 = vrot.slane %v6965, 4
      %v6968 = vshll.u32 %v6685, 16
      %v6970 = vrot.slane %v6968, 5
      %v6971 = vor.u32 %v6967, %v6970
      %v6972 = vrot.slane %v6971, 4
      %v6974 = vshll.u32 %v6686, 16
      %v6976 = vrot.slane %v6974, 5
      %v6977 = vsel %vm1248, %v6972, %v6976
      %v6978 = vshrl.u32 %v6686, 16
      %v6980 = vrot.slane %v6978, 4
      %v6981 = vor.u32 %v6980, %v6976
      %v6982 = vrot.slane %v6981, 4
      %v6984 = vshll.u32 %v6687, 16
      %v6986 = vrot.slane %v6984, 5
      %v6987 = vsel %vm1248, %v6982, %v6986
      %v6989 = vshrl.u32 %v6688, 16
      %v6991 = vrot.slane %v6989, 4
      %v6992 = vshll.u32 %v6688, 16
      %v6994 = vrot.slane %v6992, 5
      %v6995 = vor.u32 %v6991, %v6994
      %v6996 = vrot.slane %v6995, 4
      %v6998 = vshll.u32 %v6689, 16
      %v7000 = vrot.slane %v6998, 5
      %v7001 = vsel %vm1248, %v6996, %v7000
      %v7002 = vshrl.u32 %v6689, 16
      %v7004 = vrot.slane %v7002, 4
      %v7005 = vor.u32 %v7004, %v7000
      %v7006 = vrot.slane %v7005, 4
      %v7008 = vshll.u32 %v6690, 16
      %v7010 = vrot.slane %v7008, 5
      %v7011 = vsel %vm1248, %v7006, %v7010
      %v7013 = vshrl.u32 %v6691, 16
      %v7015 = vrot.slane %v7013, 4
      %v7016 = vshll.u32 %v6691, 16
      %v7018 = vrot.slane %v7016, 5
      %v7019 = vor.u32 %v7015, %v7018
      %v7020 = vrot.slane %v7019, 4
      %v7022 = vshll.u32 %v6692, 16
      %v7024 = vrot.slane %v7022, 5
      %v7025 = vsel %vm1248, %v7020, %v7024
      %v7026 = vshrl.u32 %v6692, 16
      %v7028 = vrot.slane %v7026, 4
      %v7029 = vor.u32 %v7028, %v7024
      %v7030 = vrot.slane %v7029, 4
      %v7032 = vshll.u32 %v6693, 16
      %v7034 = vrot.slane %v7032, 5
      %v7035 = vsel %vm1248, %v7030, %v7034
      %v7037 = vshrl.u32 %v6694, 16
      %v7039 = vrot.slane %v7037, 4
      %v7040 = vshll.u32 %v6694, 16
      %v7042 = vrot.slane %v7040, 5
      %v7043 = vor.u32 %v7039, %v7042
      %v7044 = vrot.slane %v7043, 4
      %v7046 = vshll.u32 %v6695, 16
      %v7048 = vrot.slane %v7046, 5
      %v7049 = vsel %vm1248, %v7044, %v7048
      %v7050 = vshrl.u32 %v6695, 16
      %v7052 = vrot.slane %v7050, 4
      %v7053 = vor.u32 %v7052, %v7048
      %v7054 = vrot.slane %v7053, 4
      %v7056 = vshll.u32 %v6696, 16
      %v7058 = vrot.slane %v7056, 5
      %v7059 = vsel %vm1248, %v7054, %v7058
      %v7061 = vshrl.u32 %v6697, 16
      %v7063 = vrot.slane %v7061, 4
      %v7064 = vshll.u32 %v6697, 16
      %v7066 = vrot.slane %v7064, 5
      %v7067 = vor.u32 %v7063, %v7066
      %v7068 = vrot.slane %v7067, 4
      %v7070 = vshll.u32 %v6698, 16
      %v7072 = vrot.slane %v7070, 5
      %v7073 = vsel %vm1248, %v7068, %v7072
      %v7074 = vshrl.u32 %v6698, 16
      %v7076 = vrot.slane %v7074, 4
      %v7077 = vor.u32 %v7076, %v7072
      %v7078 = vrot.slane %v7077, 4
      %v7080 = vshll.u32 %v6699, 16
      %v7082 = vrot.slane %v7080, 5
      %v7083 = vsel %vm1248, %v7078, %v7082
      %v7084 = vld [vmem:[%s6651] sm:$0xe]
      %v7085 = vld [vmem:[%s6651 + $0xc] sm:$0xe]
      %v7086 = vld [vmem:[%s6651 + $0x18] sm:$0xe]
      %v7087 = vld [vmem:[%s6651 + $0x24] sm:$0xe]
      %v7088 = vld [vmem:[%s6651 + $0x30] sm:$0xe]
      %v7089 = vld [vmem:[%s6651 + $0x3c] sm:$0xe]
      %v7090 = vld [vmem:[%s6651 + $0x48] sm:$0xe]
      %v7091 = vld [vmem:[%s6651 + $0x54] sm:$0xe]
      %v7092 = vld [vmem:[%s6651 + $0x60] sm:$0xe]
      %v7093 = vld [vmem:[%s6651 + $0x6c] sm:$0xe]
      %v7094 = vld [vmem:[%s6651 + $0x78] sm:$0xe]
      %v7095 = vld [vmem:[%s6651 + $0x84] sm:$0xe]
      %v7096 = vld [vmem:[%s6651 + $0x90] sm:$0xe]
      %v7097 = vld [vmem:[%s6651 + $0x9c] sm:$0xe]
      %v7098 = vld [vmem:[%s6651 + $0xa8] sm:$0xe]
      %v7099 = vld [vmem:[%s6651 + $0xb4] sm:$0xe]
      %v7148 = vrot.slane %v7084, 5
      %v7149 = vrot.slane %v7148, 4
      %v7150 = vrot.slane %v6653, 5
      %v7151 = vsel %vm1699, %v7149, %v7150
      %v7152 = vrot.slane %v7150, 4
      %v7153 = vrot.slane %v6654, 5
      %v7154 = vsel %vm1699, %v7152, %v7153
      %v7155 = vrot.slane %v7085, 5
      %v7156 = vrot.slane %v7155, 4
      %v7157 = vrot.slane %v6656, 5
      %v7158 = vsel %vm1699, %v7156, %v7157
      %v7159 = vrot.slane %v7157, 4
      %v7160 = vrot.slane %v6657, 5
      %v7161 = vsel %vm1699, %v7159, %v7160
      %v7162 = vrot.slane %v7086, 5
      %v7163 = vrot.slane %v7162, 4
      %v7164 = vrot.slane %v6659, 5
      %v7165 = vsel %vm1699, %v7163, %v7164
      %v7166 = vrot.slane %v7164, 4
      %v7167 = vrot.slane %v6660, 5
      %v7168 = vsel %vm1699, %v7166, %v7167
      %v7169 = vrot.slane %v7087, 5
      %v7170 = vrot.slane %v7169, 4
      %v7171 = vrot.slane %v6662, 5
      %v7172 = vsel %vm1699, %v7170, %v7171
      %v7173 = vrot.slane %v7171, 4
      %v7174 = vrot.slane %v6663, 5
      %v7175 = vsel %vm1699, %v7173, %v7174
      %v7176 = vrot.slane %v7088, 5
      %v7177 = vrot.slane %v7176, 4
      %v7178 = vrot.slane %v6665, 5
      %v7179 = vsel %vm1699, %v7177, %v7178
      %v7180 = vrot.slane %v7178, 4
      %v7181 = vrot.slane %v6666, 5
      %v7182 = vsel %vm1699, %v7180, %v7181
      %v7183 = vrot.slane %v7089, 5
      %v7184 = vrot.slane %v7183, 4
      %v7185 = vrot.slane %v6668, 5
      %v7186 = vsel %vm1699, %v7184, %v7185
      %v7187 = vrot.slane %v7185, 4
      %v7188 = vrot.slane %v6669, 5
      %v7189 = vsel %vm1699, %v7187, %v7188
      %v7190 = vrot.slane %v7090, 5
      %v7191 = vrot.slane %v7190, 4
      %v7192 = vrot.slane %v6671, 5
      %v7193 = vsel %vm1699, %v7191, %v7192
      %v7194 = vrot.slane %v7192, 4
      %v7195 = vrot.slane %v6672, 5
      %v7196 = vsel %vm1699, %v7194, %v7195
      %v7197 = vrot.slane %v7091, 5
      %v7198 = vrot.slane %v7197, 4
      %v7199 = vrot.slane %v6674, 5
      %v7200 = vsel %vm1699, %v7198, %v7199
      %v7201 = vrot.slane %v7199, 4
      %v7202 = vrot.slane %v6675, 5
      %v7203 = vsel %vm1699, %v7201, %v7202
      %v7204 = vrot.slane %v7092, 5
      %v7205 = vrot.slane %v7204, 4
      %v7206 = vrot.slane %v6677, 5
      %v7207 = vsel %vm1699, %v7205, %v7206
      %v7208 = vrot.slane %v7206, 4
      %v7209 = vrot.slane %v6678, 5
      %v7210 = vsel %vm1699, %v7208, %v7209
      %v7211 = vrot.slane %v7093, 5
      %v7212 = vrot.slane %v7211, 4
      %v7213 = vrot.slane %v6680, 5
      %v7214 = vsel %vm1699, %v7212, %v7213
      %v7215 = vrot.slane %v7213, 4
      %v7216 = vrot.slane %v6681, 5
      %v7217 = vsel %vm1699, %v7215, %v7216
      %v7218 = vrot.slane %v7094, 5
      %v7219 = vrot.slane %v7218, 4
      %v7220 = vrot.slane %v6683, 5
      %v7221 = vsel %vm1699, %v7219, %v7220
      %v7222 = vrot.slane %v7220, 4
      %v7223 = vrot.slane %v6684, 5
      %v7224 = vsel %vm1699, %v7222, %v7223
      %v7225 = vrot.slane %v7095, 5
      %v7226 = vrot.slane %v7225, 4
      %v7227 = vrot.slane %v6686, 5
      %v7228 = vsel %vm1699, %v7226, %v7227
      %v7229 = vrot.slane %v7227, 4
      %v7230 = vrot.slane %v6687, 5
      %v7231 = vsel %vm1699, %v7229, %v7230
      %v7232 = vrot.slane %v7096, 5
      %v7233 = vrot.slane %v7232, 4
      %v7234 = vrot.slane %v6689, 5
      %v7235 = vsel %vm1699, %v7233, %v7234
      %v7236 = vrot.slane %v7234, 4
      %v7237 = vrot.slane %v6690, 5
      %v7238 = vsel %vm1699, %v7236, %v7237
      %v7239 = vrot.slane %v7097, 5
      %v7240 = vrot.slane %v7239, 4
      %v7241 = vrot.slane %v6692, 5
      %v7242 = vsel %vm1699, %v7240, %v7241
      %v7243 = vrot.slane %v7241, 4
      %v7244 = vrot.slane %v6693, 5
      %v7245 = vsel %vm1699, %v7243, %v7244
      %v7246 = vrot.slane %v7098, 5
      %v7247 = vrot.slane %v7246, 4
      %v7248 = vrot.slane %v6695, 5
      %v7249 = vsel %vm1699, %v7247, %v7248
      %v7250 = vrot.slane %v7248, 4
      %v7251 = vrot.slane %v6696, 5
      %v7252 = vsel %vm1699, %v7250, %v7251
      %v7253 = vrot.slane %v7099, 5
      %v7254 = vrot.slane %v7253, 4
      %v7255 = vrot.slane %v6698, 5
      %v7256 = vsel %vm1699, %v7254, %v7255
      %v7257 = vrot.slane %v7255, 4
      %v7258 = vrot.slane %v6699, 5
      %v7259 = vsel %vm1699, %v7257, %v7258
      %s7260 = scalar_lea.vmem [#allocation3], 240
      %v7261 = vld [vmem:[%s7260] sm:$0xf]
      %v7262 = vld [vmem:[%s7260 + $0x4] sm:$0xf]
      %v7263 = vld [vmem:[%s7260 + $0xc] sm:$0xf]
      %v7264 = vld [vmem:[%s7260 + $0x10] sm:$0xf]
      %v7265 = vld [vmem:[%s7260 + $0x18] sm:$0xf]
      %v7266 = vld [vmem:[%s7260 + $0x1c] sm:$0xf]
      %v7267 = vld [vmem:[%s7260 + $0x24] sm:$0xf]
      %v7268 = vld [vmem:[%s7260 + $0x28] sm:$0xf]
      %v7269 = vld [vmem:[%s7260 + $0x30] sm:$0xf]
      %v7270 = vld [vmem:[%s7260 + $0x34] sm:$0xf]
      %v7271 = vld [vmem:[%s7260 + $0x3c] sm:$0xf]
      %v7272 = vld [vmem:[%s7260 + $0x40] sm:$0xf]
      %v7273 = vld [vmem:[%s7260 + $0x48] sm:$0xf]
      %v7274 = vld [vmem:[%s7260 + $0x4c] sm:$0xf]
      %v7275 = vld [vmem:[%s7260 + $0x54] sm:$0xf]
      %v7276 = vld [vmem:[%s7260 + $0x58] sm:$0xf]
      %v7277 = vld [vmem:[%s7260 + $0x60] sm:$0xf]
      %v7278 = vld [vmem:[%s7260 + $0x64] sm:$0xf]
      %v7279 = vld [vmem:[%s7260 + $0x6c] sm:$0xf]
      %v7280 = vld [vmem:[%s7260 + $0x70] sm:$0xf]
      %v7281 = vld [vmem:[%s7260 + $0x78] sm:$0xf]
      %v7282 = vld [vmem:[%s7260 + $0x7c] sm:$0xf]
      %v7283 = vld [vmem:[%s7260 + $0x84] sm:$0xf]
      %v7284 = vld [vmem:[%s7260 + $0x88] sm:$0xf]
      %v7285 = vld [vmem:[%s7260 + $0x90] sm:$0xf]
      %v7286 = vld [vmem:[%s7260 + $0x94] sm:$0xf]
      %v7287 = vld [vmem:[%s7260 + $0x9c] sm:$0xf]
      %v7288 = vld [vmem:[%s7260 + $0xa0] sm:$0xf]
      %v7289 = vld [vmem:[%s7260 + $0xa8] sm:$0xf]
      %v7290 = vld [vmem:[%s7260 + $0xac] sm:$0xf]
      %v7291 = vld [vmem:[%s7260 + $0xb4] sm:$0xf]
      %v7292 = vld [vmem:[%s7260 + $0xb8] sm:$0xf]
      %v7293 = vld [vmem:[%s7260 + $0x8] sm:$0x1]
      %v7294 = vld [vmem:[%s7260 + $0x14] sm:$0x1]
      %v7295 = vld [vmem:[%s7260 + $0x20] sm:$0x1]
      %v7296 = vld [vmem:[%s7260 + $0x2c] sm:$0x1]
      %v7297 = vld [vmem:[%s7260 + $0x38] sm:$0x1]
      %v7298 = vld [vmem:[%s7260 + $0x44] sm:$0x1]
      %v7299 = vld [vmem:[%s7260 + $0x50] sm:$0x1]
      %v7300 = vld [vmem:[%s7260 + $0x5c] sm:$0x1]
      %v7301 = vld [vmem:[%s7260 + $0x68] sm:$0x1]
      %v7302 = vld [vmem:[%s7260 + $0x74] sm:$0x1]
      %v7303 = vld [vmem:[%s7260 + $0x80] sm:$0x1]
      %v7304 = vld [vmem:[%s7260 + $0x8c] sm:$0x1]
      %v7305 = vld [vmem:[%s7260 + $0x98] sm:$0x1]
      %v7306 = vld [vmem:[%s7260 + $0xa4] sm:$0x1]
      %v7307 = vld [vmem:[%s7260 + $0xb0] sm:$0x1]
      %v7308 = vld [vmem:[%s7260 + $0xbc] sm:$0x1]
      %v7310 = vshrl.u32 %v7261, 16
      %v7312 = vrot.slane %v7310, 4
      %v7313 = vshll.u32 %v7261, 16
      %v7315 = vrot.slane %v7313, 5
      %v7316 = vor.u32 %v7312, %v7315
      %v7317 = vrot.slane %v7316, 4
      %v7319 = vshll.u32 %v7262, 16
      %v7321 = vrot.slane %v7319, 5
      %v7322 = vsel %vm1248, %v7317, %v7321
      %v7323 = vshrl.u32 %v7262, 16
      %v7325 = vrot.slane %v7323, 4
      %v7326 = vor.u32 %v7325, %v7321
      %v7327 = vrot.slane %v7326, 4
      %v7329 = vshll.u32 %v7293, 16
      %v7331 = vrot.slane %v7329, 5
      %v7332 = vsel %vm1248, %v7327, %v7331
      %v7334 = vshrl.u32 %v7263, 16
      %v7336 = vrot.slane %v7334, 4
      %v7337 = vshll.u32 %v7263, 16
      %v7339 = vrot.slane %v7337, 5
      %v7340 = vor.u32 %v7336, %v7339
      %v7341 = vrot.slane %v7340, 4
      %v7343 = vshll.u32 %v7264, 16
      %v7345 = vrot.slane %v7343, 5
      %v7346 = vsel %vm1248, %v7341, %v7345
      %v7347 = vshrl.u32 %v7264, 16
      %v7349 = vrot.slane %v7347, 4
      %v7350 = vor.u32 %v7349, %v7345
      %v7351 = vrot.slane %v7350, 4
      %v7353 = vshll.u32 %v7294, 16
      %v7355 = vrot.slane %v7353, 5
      %v7356 = vsel %vm1248, %v7351, %v7355
      %v7358 = vshrl.u32 %v7265, 16
      %v7360 = vrot.slane %v7358, 4
      %v7361 = vshll.u32 %v7265, 16
      %v7363 = vrot.slane %v7361, 5
      %v7364 = vor.u32 %v7360, %v7363
      %v7365 = vrot.slane %v7364, 4
      %v7367 = vshll.u32 %v7266, 16
      %v7369 = vrot.slane %v7367, 5
      %v7370 = vsel %vm1248, %v7365, %v7369
      %v7371 = vshrl.u32 %v7266, 16
      %v7373 = vrot.slane %v7371, 4
      %v7374 = vor.u32 %v7373, %v7369
      %v7375 = vrot.slane %v7374, 4
      %v7377 = vshll.u32 %v7295, 16
      %v7379 = vrot.slane %v7377, 5
      %v7380 = vsel %vm1248, %v7375, %v7379
      %v7382 = vshrl.u32 %v7267, 16
      %v7384 = vrot.slane %v7382, 4
      %v7385 = vshll.u32 %v7267, 16
      %v7387 = vrot.slane %v7385, 5
      %v7388 = vor.u32 %v7384, %v7387
      %v7389 = vrot.slane %v7388, 4
      %v7391 = vshll.u32 %v7268, 16
      %v7393 = vrot.slane %v7391, 5
      %v7394 = vsel %vm1248, %v7389, %v7393
      %v7395 = vshrl.u32 %v7268, 16
      %v7397 = vrot.slane %v7395, 4
      %v7398 = vor.u32 %v7397, %v7393
      %v7399 = vrot.slane %v7398, 4
      %v7401 = vshll.u32 %v7296, 16
      %v7403 = vrot.slane %v7401, 5
      %v7404 = vsel %vm1248, %v7399, %v7403
      %v7406 = vshrl.u32 %v7269, 16
      %v7408 = vrot.slane %v7406, 4
      %v7409 = vshll.u32 %v7269, 16
      %v7411 = vrot.slane %v7409, 5
      %v7412 = vor.u32 %v7408, %v7411
      %v7413 = vrot.slane %v7412, 4
      %v7415 = vshll.u32 %v7270, 16
      %v7417 = vrot.slane %v7415, 5
      %v7418 = vsel %vm1248, %v7413, %v7417
      %v7419 = vshrl.u32 %v7270, 16
      %v7421 = vrot.slane %v7419, 4
      %v7422 = vor.u32 %v7421, %v7417
      %v7423 = vrot.slane %v7422, 4
      %v7425 = vshll.u32 %v7297, 16
      %v7427 = vrot.slane %v7425, 5
      %v7428 = vsel %vm1248, %v7423, %v7427
      %v7430 = vshrl.u32 %v7271, 16
      %v7432 = vrot.slane %v7430, 4
      %v7433 = vshll.u32 %v7271, 16
      %v7435 = vrot.slane %v7433, 5
      %v7436 = vor.u32 %v7432, %v7435
      %v7437 = vrot.slane %v7436, 4
      %v7439 = vshll.u32 %v7272, 16
      %v7441 = vrot.slane %v7439, 5
      %v7442 = vsel %vm1248, %v7437, %v7441
      %v7443 = vshrl.u32 %v7272, 16
      %v7445 = vrot.slane %v7443, 4
      %v7446 = vor.u32 %v7445, %v7441
      %v7447 = vrot.slane %v7446, 4
      %v7449 = vshll.u32 %v7298, 16
      %v7451 = vrot.slane %v7449, 5
      %v7452 = vsel %vm1248, %v7447, %v7451
      %v7454 = vshrl.u32 %v7273, 16
      %v7456 = vrot.slane %v7454, 4
      %v7457 = vshll.u32 %v7273, 16
      %v7459 = vrot.slane %v7457, 5
      %v7460 = vor.u32 %v7456, %v7459
      %v7461 = vrot.slane %v7460, 4
      %v7463 = vshll.u32 %v7274, 16
      %v7465 = vrot.slane %v7463, 5
      %v7466 = vsel %vm1248, %v7461, %v7465
      %v7467 = vshrl.u32 %v7274, 16
      %v7469 = vrot.slane %v7467, 4
      %v7470 = vor.u32 %v7469, %v7465
      %v7471 = vrot.slane %v7470, 4
      %v7473 = vshll.u32 %v7299, 16
      %v7475 = vrot.slane %v7473, 5
      %v7476 = vsel %vm1248, %v7471, %v7475
      %v7478 = vshrl.u32 %v7275, 16
      %v7480 = vrot.slane %v7478, 4
      %v7481 = vshll.u32 %v7275, 16
      %v7483 = vrot.slane %v7481, 5
      %v7484 = vor.u32 %v7480, %v7483
      %v7485 = vrot.slane %v7484, 4
      %v7487 = vshll.u32 %v7276, 16
      %v7489 = vrot.slane %v7487, 5
      %v7490 = vsel %vm1248, %v7485, %v7489
      %v7491 = vshrl.u32 %v7276, 16
      %v7493 = vrot.slane %v7491, 4
      %v7494 = vor.u32 %v7493, %v7489
      %v7495 = vrot.slane %v7494, 4
      %v7497 = vshll.u32 %v7300, 16
      %v7499 = vrot.slane %v7497, 5
      %v7500 = vsel %vm1248, %v7495, %v7499
      %v7502 = vshrl.u32 %v7277, 16
      %v7504 = vrot.slane %v7502, 4
      %v7505 = vshll.u32 %v7277, 16
      %v7507 = vrot.slane %v7505, 5
      %v7508 = vor.u32 %v7504, %v7507
      %v7509 = vrot.slane %v7508, 4
      %v7511 = vshll.u32 %v7278, 16
      %v7513 = vrot.slane %v7511, 5
      %v7514 = vsel %vm1248, %v7509, %v7513
      %v7515 = vshrl.u32 %v7278, 16
      %v7517 = vrot.slane %v7515, 4
      %v7518 = vor.u32 %v7517, %v7513
      %v7519 = vrot.slane %v7518, 4
      %v7521 = vshll.u32 %v7301, 16
      %v7523 = vrot.slane %v7521, 5
      %v7524 = vsel %vm1248, %v7519, %v7523
      %v7526 = vshrl.u32 %v7279, 16
      %v7528 = vrot.slane %v7526, 4
      %v7529 = vshll.u32 %v7279, 16
      %v7531 = vrot.slane %v7529, 5
      %v7532 = vor.u32 %v7528, %v7531
      %v7533 = vrot.slane %v7532, 4
      %v7535 = vshll.u32 %v7280, 16
      %v7537 = vrot.slane %v7535, 5
      %v7538 = vsel %vm1248, %v7533, %v7537
      %v7539 = vshrl.u32 %v7280, 16
      %v7541 = vrot.slane %v7539, 4
      %v7542 = vor.u32 %v7541, %v7537
      %v7543 = vrot.slane %v7542, 4
      %v7545 = vshll.u32 %v7302, 16
      %v7547 = vrot.slane %v7545, 5
      %v7548 = vsel %vm1248, %v7543, %v7547
      %v7550 = vshrl.u32 %v7281, 16
      %v7552 = vrot.slane %v7550, 4
      %v7553 = vshll.u32 %v7281, 16
      %v7555 = vrot.slane %v7553, 5
      %v7556 = vor.u32 %v7552, %v7555
      %v7557 = vrot.slane %v7556, 4
      %v7559 = vshll.u32 %v7282, 16
      %v7561 = vrot.slane %v7559, 5
      %v7562 = vsel %vm1248, %v7557, %v7561
      %v7563 = vshrl.u32 %v7282, 16
      %v7565 = vrot.slane %v7563, 4
      %v7566 = vor.u32 %v7565, %v7561
      %v7567 = vrot.slane %v7566, 4
      %v7569 = vshll.u32 %v7303, 16
      %v7571 = vrot.slane %v7569, 5
      %v7572 = vsel %vm1248, %v7567, %v7571
      %v7574 = vshrl.u32 %v7283, 16
      %v7576 = vrot.slane %v7574, 4
      %v7577 = vshll.u32 %v7283, 16
      %v7579 = vrot.slane %v7577, 5
      %v7580 = vor.u32 %v7576, %v7579
      %v7581 = vrot.slane %v7580, 4
      %v7583 = vshll.u32 %v7284, 16
      %v7585 = vrot.slane %v7583, 5
      %v7586 = vsel %vm1248, %v7581, %v7585
      %v7587 = vshrl.u32 %v7284, 16
      %v7589 = vrot.slane %v7587, 4
      %v7590 = vor.u32 %v7589, %v7585
      %v7591 = vrot.slane %v7590, 4
      %v7593 = vshll.u32 %v7304, 16
      %v7595 = vrot.slane %v7593, 5
      %v7596 = vsel %vm1248, %v7591, %v7595
      %v7598 = vshrl.u32 %v7285, 16
      %v7600 = vrot.slane %v7598, 4
      %v7601 = vshll.u32 %v7285, 16
      %v7603 = vrot.slane %v7601, 5
      %v7604 = vor.u32 %v7600, %v7603
      %v7605 = vrot.slane %v7604, 4
      %v7607 = vshll.u32 %v7286, 16
      %v7609 = vrot.slane %v7607, 5
      %v7610 = vsel %vm1248, %v7605, %v7609
      %v7611 = vshrl.u32 %v7286, 16
      %v7613 = vrot.slane %v7611, 4
      %v7614 = vor.u32 %v7613, %v7609
      %v7615 = vrot.slane %v7614, 4
      %v7617 = vshll.u32 %v7305, 16
      %v7619 = vrot.slane %v7617, 5
      %v7620 = vsel %vm1248, %v7615, %v7619
      %v7622 = vshrl.u32 %v7287, 16
      %v7624 = vrot.slane %v7622, 4
      %v7625 = vshll.u32 %v7287, 16
      %v7627 = vrot.slane %v7625, 5
      %v7628 = vor.u32 %v7624, %v7627
      %v7629 = vrot.slane %v7628, 4
      %v7631 = vshll.u32 %v7288, 16
      %v7633 = vrot.slane %v7631, 5
      %v7634 = vsel %vm1248, %v7629, %v7633
      %v7635 = vshrl.u32 %v7288, 16
      %v7637 = vrot.slane %v7635, 4
      %v7638 = vor.u32 %v7637, %v7633
      %v7639 = vrot.slane %v7638, 4
      %v7641 = vshll.u32 %v7306, 16
      %v7643 = vrot.slane %v7641, 5
      %v7644 = vsel %vm1248, %v7639, %v7643
      %v7646 = vshrl.u32 %v7289, 16
      %v7648 = vrot.slane %v7646, 4
      %v7649 = vshll.u32 %v7289, 16
      %v7651 = vrot.slane %v7649, 5
      %v7652 = vor.u32 %v7648, %v7651
      %v7653 = vrot.slane %v7652, 4
      %v7655 = vshll.u32 %v7290, 16
      %v7657 = vrot.slane %v7655, 5
      %v7658 = vsel %vm1248, %v7653, %v7657
      %v7659 = vshrl.u32 %v7290, 16
      %v7661 = vrot.slane %v7659, 4
      %v7662 = vor.u32 %v7661, %v7657
      %v7663 = vrot.slane %v7662, 4
      %v7665 = vshll.u32 %v7307, 16
      %v7667 = vrot.slane %v7665, 5
      %v7668 = vsel %vm1248, %v7663, %v7667
      %v7670 = vshrl.u32 %v7291, 16
      %v7672 = vrot.slane %v7670, 4
      %v7673 = vshll.u32 %v7291, 16
      %v7675 = vrot.slane %v7673, 5
      %v7676 = vor.u32 %v7672, %v7675
      %v7677 = vrot.slane %v7676, 4
      %v7679 = vshll.u32 %v7292, 16
      %v7681 = vrot.slane %v7679, 5
      %v7682 = vsel %vm1248, %v7677, %v7681
      %v7683 = vshrl.u32 %v7292, 16
      %v7685 = vrot.slane %v7683, 4
      %v7686 = vor.u32 %v7685, %v7681
      %v7687 = vrot.slane %v7686, 4
      %v7689 = vshll.u32 %v7308, 16
      %v7691 = vrot.slane %v7689, 5
      %v7692 = vsel %vm1248, %v7687, %v7691
      %v7693 = vld [vmem:[%s987] sm:$0xf]
      %v7694 = vld [vmem:[%s987 + $0x4] sm:$0xf]
      %v7695 = vld [vmem:[%s987 + $0x8] sm:$0x1]
      %v7696 = vld [vmem:[%s987 + $0xc] sm:$0xf]
      %v7697 = vld [vmem:[%s987 + $0x10] sm:$0xf]
      %v7698 = vld [vmem:[%s987 + $0x14] sm:$0x1]
      %v7699 = vld [vmem:[%s987 + $0x18] sm:$0xf]
      %v7700 = vld [vmem:[%s987 + $0x1c] sm:$0xf]
      %v7701 = vld [vmem:[%s987 + $0x20] sm:$0x1]
      %v7702 = vld [vmem:[%s987 + $0x24] sm:$0xf]
      %v7703 = vld [vmem:[%s987 + $0x28] sm:$0xf]
      %v7704 = vld [vmem:[%s987 + $0x2c] sm:$0x1]
      %v7705 = vld [vmem:[%s987 + $0x30] sm:$0xf]
      %v7706 = vld [vmem:[%s987 + $0x34] sm:$0xf]
      %v7707 = vld [vmem:[%s987 + $0x38] sm:$0x1]
      %v7708 = vld [vmem:[%s987 + $0x3c] sm:$0xf]
      %v7709 = vld [vmem:[%s987 + $0x40] sm:$0xf]
      %v7710 = vld [vmem:[%s987 + $0x44] sm:$0x1]
      %v7711 = vld [vmem:[%s987 + $0x48] sm:$0xf]
      %v7712 = vld [vmem:[%s987 + $0x4c] sm:$0xf]
      %v7713 = vld [vmem:[%s987 + $0x50] sm:$0x1]
      %v7714 = vld [vmem:[%s987 + $0x54] sm:$0xf]
      %v7715 = vld [vmem:[%s987 + $0x58] sm:$0xf]
      %v7716 = vld [vmem:[%s987 + $0x5c] sm:$0x1]
      %v7717 = vld [vmem:[%s987 + $0x60] sm:$0xf]
      %v7718 = vld [vmem:[%s987 + $0x64] sm:$0xf]
      %v7719 = vld [vmem:[%s987 + $0x68] sm:$0x1]
      %v7720 = vld [vmem:[%s987 + $0x6c] sm:$0xf]
      %v7721 = vld [vmem:[%s987 + $0x70] sm:$0xf]
      %v7722 = vld [vmem:[%s987 + $0x74] sm:$0x1]
      %v7723 = vld [vmem:[%s987 + $0x78] sm:$0xf]
      %v7724 = vld [vmem:[%s987 + $0x7c] sm:$0xf]
      %v7725 = vld [vmem:[%s987 + $0x80] sm:$0x1]
      %v7726 = vld [vmem:[%s987 + $0x84] sm:$0xf]
      %v7727 = vld [vmem:[%s987 + $0x88] sm:$0xf]
      %v7728 = vld [vmem:[%s987 + $0x8c] sm:$0x1]
      %v7729 = vld [vmem:[%s987 + $0x90] sm:$0xf]
      %v7730 = vld [vmem:[%s987 + $0x94] sm:$0xf]
      %v7731 = vld [vmem:[%s987 + $0x98] sm:$0x1]
      %v7732 = vld [vmem:[%s987 + $0x9c] sm:$0xf]
      %v7733 = vld [vmem:[%s987 + $0xa0] sm:$0xf]
      %v7734 = vld [vmem:[%s987 + $0xa4] sm:$0x1]
      %v7735 = vld [vmem:[%s987 + $0xa8] sm:$0xf]
      %v7736 = vld [vmem:[%s987 + $0xac] sm:$0xf]
      %v7737 = vld [vmem:[%s987 + $0xb0] sm:$0x1]
      %v7738 = vld [vmem:[%s987 + $0xb4] sm:$0xf]
      %v7739 = vld [vmem:[%s987 + $0xb8] sm:$0xf]
      %v7740 = vld [vmem:[%s987 + $0xbc] sm:$0x1]
      %v7742 = vshrl.u32 %v7693, 16
      %v7744 = vrot.slane %v7742, 4
      %v7745 = vshll.u32 %v7693, 16
      %v7747 = vrot.slane %v7745, 5
      %v7748 = vor.u32 %v7744, %v7747
      %v7749 = vrot.slane %v7748, 4
      %v7751 = vshll.u32 %v7694, 16
      %v7753 = vrot.slane %v7751, 5
      %v7754 = vsel %vm1248, %v7749, %v7753
      %v7755 = vshrl.u32 %v7694, 16
      %v7757 = vrot.slane %v7755, 4
      %v7758 = vor.u32 %v7757, %v7753
      %v7759 = vrot.slane %v7758, 4
      %v7761 = vshll.u32 %v7695, 16
      %v7763 = vrot.slane %v7761, 5
      %v7764 = vsel %vm1248, %v7759, %v7763
      %v7766 = vshrl.u32 %v7696, 16
      %v7768 = vrot.slane %v7766, 4
      %v7769 = vshll.u32 %v7696, 16
      %v7771 = vrot.slane %v7769, 5
      %v7772 = vor.u32 %v7768, %v7771
      %v7773 = vrot.slane %v7772, 4
      %v7775 = vshll.u32 %v7697, 16
      %v7777 = vrot.slane %v7775, 5
      %v7778 = vsel %vm1248, %v7773, %v7777
      %v7779 = vshrl.u32 %v7697, 16
      %v7781 = vrot.slane %v7779, 4
      %v7782 = vor.u32 %v7781, %v7777
      %v7783 = vrot.slane %v7782, 4
      %v7785 = vshll.u32 %v7698, 16
      %v7787 = vrot.slane %v7785, 5
      %v7788 = vsel %vm1248, %v7783, %v7787
      %v7790 = vshrl.u32 %v7699, 16
      %v7792 = vrot.slane %v7790, 4
      %v7793 = vshll.u32 %v7699, 16
      %v7795 = vrot.slane %v7793, 5
      %v7796 = vor.u32 %v7792, %v7795
      %v7797 = vrot.slane %v7796, 4
      %v7799 = vshll.u32 %v7700, 16
      %v7801 = vrot.slane %v7799, 5
      %v7802 = vsel %vm1248, %v7797, %v7801
      %v7803 = vshrl.u32 %v7700, 16
      %v7805 = vrot.slane %v7803, 4
      %v7806 = vor.u32 %v7805, %v7801
      %v7807 = vrot.slane %v7806, 4
      %v7809 = vshll.u32 %v7701, 16
      %v7811 = vrot.slane %v7809, 5
      %v7812 = vsel %vm1248, %v7807, %v7811
      %v7814 = vshrl.u32 %v7702, 16
      %v7816 = vrot.slane %v7814, 4
      %v7817 = vshll.u32 %v7702, 16
      %v7819 = vrot.slane %v7817, 5
      %v7820 = vor.u32 %v7816, %v7819
      %v7821 = vrot.slane %v7820, 4
      %v7823 = vshll.u32 %v7703, 16
      %v7825 = vrot.slane %v7823, 5
      %v7826 = vsel %vm1248, %v7821, %v7825
      %v7827 = vshrl.u32 %v7703, 16
      %v7829 = vrot.slane %v7827, 4
      %v7830 = vor.u32 %v7829, %v7825
      %v7831 = vrot.slane %v7830, 4
      %v7833 = vshll.u32 %v7704, 16
      %v7835 = vrot.slane %v7833, 5
      %v7836 = vsel %vm1248, %v7831, %v7835
      %v7838 = vshrl.u32 %v7705, 16
      %v7840 = vrot.slane %v7838, 4
      %v7841 = vshll.u32 %v7705, 16
      %v7843 = vrot.slane %v7841, 5
      %v7844 = vor.u32 %v7840, %v7843
      %v7845 = vrot.slane %v7844, 4
      %v7847 = vshll.u32 %v7706, 16
      %v7849 = vrot.slane %v7847, 5
      %v7850 = vsel %vm1248, %v7845, %v7849
      %v7851 = vshrl.u32 %v7706, 16
      %v7853 = vrot.slane %v7851, 4
      %v7854 = vor.u32 %v7853, %v7849
      %v7855 = vrot.slane %v7854, 4
      %v7857 = vshll.u32 %v7707, 16
      %v7859 = vrot.slane %v7857, 5
      %v7860 = vsel %vm1248, %v7855, %v7859
      %v7862 = vshrl.u32 %v7708, 16
      %v7864 = vrot.slane %v7862, 4
      %v7865 = vshll.u32 %v7708, 16
      %v7867 = vrot.slane %v7865, 5
      %v7868 = vor.u32 %v7864, %v7867
      %v7869 = vrot.slane %v7868, 4
      %v7871 = vshll.u32 %v7709, 16
      %v7873 = vrot.slane %v7871, 5
      %v7874 = vsel %vm1248, %v7869, %v7873
      %v7875 = vshrl.u32 %v7709, 16
      %v7877 = vrot.slane %v7875, 4
      %v7878 = vor.u32 %v7877, %v7873
      %v7879 = vrot.slane %v7878, 4
      %v7881 = vshll.u32 %v7710, 16
      %v7883 = vrot.slane %v7881, 5
      %v7884 = vsel %vm1248, %v7879, %v7883
      %v7886 = vshrl.u32 %v7711, 16
      %v7888 = vrot.slane %v7886, 4
      %v7889 = vshll.u32 %v7711, 16
      %v7891 = vrot.slane %v7889, 5
      %v7892 = vor.u32 %v7888, %v7891
      %v7893 = vrot.slane %v7892, 4
      %v7895 = vshll.u32 %v7712, 16
      %v7897 = vrot.slane %v7895, 5
      %v7898 = vsel %vm1248, %v7893, %v7897
      %v7899 = vshrl.u32 %v7712, 16
      %v7901 = vrot.slane %v7899, 4
      %v7902 = vor.u32 %v7901, %v7897
      %v7903 = vrot.slane %v7902, 4
      %v7905 = vshll.u32 %v7713, 16
      %v7907 = vrot.slane %v7905, 5
      %v7908 = vsel %vm1248, %v7903, %v7907
      %v7910 = vshrl.u32 %v7714, 16
      %v7912 = vrot.slane %v7910, 4
      %v7913 = vshll.u32 %v7714, 16
      %v7915 = vrot.slane %v7913, 5
      %v7916 = vor.u32 %v7912, %v7915
      %v7917 = vrot.slane %v7916, 4
      %v7919 = vshll.u32 %v7715, 16
      %v7921 = vrot.slane %v7919, 5
      %v7922 = vsel %vm1248, %v7917, %v7921
      %v7923 = vshrl.u32 %v7715, 16
      %v7925 = vrot.slane %v7923, 4
      %v7926 = vor.u32 %v7925, %v7921
      %v7927 = vrot.slane %v7926, 4
      %v7929 = vshll.u32 %v7716, 16
      %v7931 = vrot.slane %v7929, 5
      %v7932 = vsel %vm1248, %v7927, %v7931
      %v7934 = vshrl.u32 %v7717, 16
      %v7936 = vrot.slane %v7934, 4
      %v7937 = vshll.u32 %v7717, 16
      %v7939 = vrot.slane %v7937, 5
      %v7940 = vor.u32 %v7936, %v7939
      %v7941 = vrot.slane %v7940, 4
      %v7943 = vshll.u32 %v7718, 16
      %v7945 = vrot.slane %v7943, 5
      %v7946 = vsel %vm1248, %v7941, %v7945
      %v7947 = vshrl.u32 %v7718, 16
      %v7949 = vrot.slane %v7947, 4
      %v7950 = vor.u32 %v7949, %v7945
      %v7951 = vrot.slane %v7950, 4
      %v7953 = vshll.u32 %v7719, 16
      %v7955 = vrot.slane %v7953, 5
      %v7956 = vsel %vm1248, %v7951, %v7955
      %v7958 = vshrl.u32 %v7720, 16
      %v7960 = vrot.slane %v7958, 4
      %v7961 = vshll.u32 %v7720, 16
      %v7963 = vrot.slane %v7961, 5
      %v7964 = vor.u32 %v7960, %v7963
      %v7965 = vrot.slane %v7964, 4
      %v7967 = vshll.u32 %v7721, 16
      %v7969 = vrot.slane %v7967, 5
      %v7970 = vsel %vm1248, %v7965, %v7969
      %v7971 = vshrl.u32 %v7721, 16
      %v7973 = vrot.slane %v7971, 4
      %v7974 = vor.u32 %v7973, %v7969
      %v7975 = vrot.slane %v7974, 4
      %v7977 = vshll.u32 %v7722, 16
      %v7979 = vrot.slane %v7977, 5
      %v7980 = vsel %vm1248, %v7975, %v7979
      %v7982 = vshrl.u32 %v7723, 16
      %v7984 = vrot.slane %v7982, 4
      %v7985 = vshll.u32 %v7723, 16
      %v7987 = vrot.slane %v7985, 5
      %v7988 = vor.u32 %v7984, %v7987
      %v7989 = vrot.slane %v7988, 4
      %v7991 = vshll.u32 %v7724, 16
      %v7993 = vrot.slane %v7991, 5
      %v7994 = vsel %vm1248, %v7989, %v7993
      %v7995 = vshrl.u32 %v7724, 16
      %v7997 = vrot.slane %v7995, 4
      %v7998 = vor.u32 %v7997, %v7993
      %v7999 = vrot.slane %v7998, 4
      %v8001 = vshll.u32 %v7725, 16
      %v8003 = vrot.slane %v8001, 5
      %v8004 = vsel %vm1248, %v7999, %v8003
      %v8006 = vshrl.u32 %v7726, 16
      %v8008 = vrot.slane %v8006, 4
      %v8009 = vshll.u32 %v7726, 16
      %v8011 = vrot.slane %v8009, 5
      %v8012 = vor.u32 %v8008, %v8011
      %v8013 = vrot.slane %v8012, 4
      %v8015 = vshll.u32 %v7727, 16
      %v8017 = vrot.slane %v8015, 5
      %v8018 = vsel %vm1248, %v8013, %v8017
      %v8019 = vshrl.u32 %v7727, 16
      %v8021 = vrot.slane %v8019, 4
      %v8022 = vor.u32 %v8021, %v8017
      %v8023 = vrot.slane %v8022, 4
      %v8025 = vshll.u32 %v7728, 16
      %v8027 = vrot.slane %v8025, 5
      %v8028 = vsel %vm1248, %v8023, %v8027
      %v8030 = vshrl.u32 %v7729, 16
      %v8032 = vrot.slane %v8030, 4
      %v8033 = vshll.u32 %v7729, 16
      %v8035 = vrot.slane %v8033, 5
      %v8036 = vor.u32 %v8032, %v8035
      %v8037 = vrot.slane %v8036, 4
      %v8039 = vshll.u32 %v7730, 16
      %v8041 = vrot.slane %v8039, 5
      %v8042 = vsel %vm1248, %v8037, %v8041
      %v8043 = vshrl.u32 %v7730, 16
      %v8045 = vrot.slane %v8043, 4
      %v8046 = vor.u32 %v8045, %v8041
      %v8047 = vrot.slane %v8046, 4
      %v8049 = vshll.u32 %v7731, 16
      %v8051 = vrot.slane %v8049, 5
      %v8052 = vsel %vm1248, %v8047, %v8051
      %v8054 = vshrl.u32 %v7732, 16
      %v8056 = vrot.slane %v8054, 4
      %v8057 = vshll.u32 %v7732, 16
      %v8059 = vrot.slane %v8057, 5
      %v8060 = vor.u32 %v8056, %v8059
      %v8061 = vrot.slane %v8060, 4
      %v8063 = vshll.u32 %v7733, 16
      %v8065 = vrot.slane %v8063, 5
      %v8066 = vsel %vm1248, %v8061, %v8065
      %v8067 = vshrl.u32 %v7733, 16
      %v8069 = vrot.slane %v8067, 4
      %v8070 = vor.u32 %v8069, %v8065
      %v8071 = vrot.slane %v8070, 4
      %v8073 = vshll.u32 %v7734, 16
      %v8075 = vrot.slane %v8073, 5
      %v8076 = vsel %vm1248, %v8071, %v8075
      %v8078 = vshrl.u32 %v7735, 16
      %v8080 = vrot.slane %v8078, 4
      %v8081 = vshll.u32 %v7735, 16
      %v8083 = vrot.slane %v8081, 5
      %v8084 = vor.u32 %v8080, %v8083
      %v8085 = vrot.slane %v8084, 4
      %v8087 = vshll.u32 %v7736, 16
      %v8089 = vrot.slane %v8087, 5
      %v8090 = vsel %vm1248, %v8085, %v8089
      %v8091 = vshrl.u32 %v7736, 16
      %v8093 = vrot.slane %v8091, 4
      %v8094 = vor.u32 %v8093, %v8089
      %v8095 = vrot.slane %v8094, 4
      %v8097 = vshll.u32 %v7737, 16
      %v8099 = vrot.slane %v8097, 5
      %v8100 = vsel %vm1248, %v8095, %v8099
      %v8102 = vshrl.u32 %v7738, 16
      %v8104 = vrot.slane %v8102, 4
      %v8105 = vshll.u32 %v7738, 16
      %v8107 = vrot.slane %v8105, 5
      %v8108 = vor.u32 %v8104, %v8107
      %v8109 = vrot.slane %v8108, 4
      %v8111 = vshll.u32 %v7739, 16
      %v8113 = vrot.slane %v8111, 5
      %v8114 = vsel %vm1248, %v8109, %v8113
      %v8115 = vshrl.u32 %v7739, 16
      %v8117 = vrot.slane %v8115, 4
      %v8118 = vor.u32 %v8117, %v8113
      %v8119 = vrot.slane %v8118, 4
      %v8121 = vshll.u32 %v7740, 16
      %v8123 = vrot.slane %v8121, 5
      %v8124 = vsel %vm1248, %v8119, %v8123
      %v8125 = vld [vmem:[%s987] sm:$0xe]
      %v8126 = vld [vmem:[%s987 + $0xc] sm:$0xe]
      %v8127 = vld [vmem:[%s987 + $0x18] sm:$0xe]
      %v8128 = vld [vmem:[%s987 + $0x24] sm:$0xe]
      %v8129 = vld [vmem:[%s987 + $0x30] sm:$0xe]
      %v8130 = vld [vmem:[%s987 + $0x3c] sm:$0xe]
      %v8131 = vld [vmem:[%s987 + $0x48] sm:$0xe]
      %v8132 = vld [vmem:[%s987 + $0x54] sm:$0xe]
      %v8133 = vld [vmem:[%s987 + $0x60] sm:$0xe]
      %v8134 = vld [vmem:[%s987 + $0x6c] sm:$0xe]
      %v8135 = vld [vmem:[%s987 + $0x78] sm:$0xe]
      %v8136 = vld [vmem:[%s987 + $0x84] sm:$0xe]
      %v8137 = vld [vmem:[%s987 + $0x90] sm:$0xe]
      %v8138 = vld [vmem:[%s987 + $0x9c] sm:$0xe]
      %v8139 = vld [vmem:[%s987 + $0xa8] sm:$0xe]
      %v8140 = vld [vmem:[%s987 + $0xb4] sm:$0xe]
      %v8189 = vrot.slane %v8125, 5
      %v8190 = vrot.slane %v8189, 4
      %v8191 = vrot.slane %v7694, 5
      %v8192 = vsel %vm1699, %v8190, %v8191
      %v8193 = vrot.slane %v8191, 4
      %v8194 = vrot.slane %v7695, 5
      %v8195 = vsel %vm1699, %v8193, %v8194
      %v8196 = vrot.slane %v8126, 5
      %v8197 = vrot.slane %v8196, 4
      %v8198 = vrot.slane %v7697, 5
      %v8199 = vsel %vm1699, %v8197, %v8198
      %v8200 = vrot.slane %v8198, 4
      %v8201 = vrot.slane %v7698, 5
      %v8202 = vsel %vm1699, %v8200, %v8201
      %v8203 = vrot.slane %v8127, 5
      %v8204 = vrot.slane %v8203, 4
      %v8205 = vrot.slane %v7700, 5
      %v8206 = vsel %vm1699, %v8204, %v8205
      %v8207 = vrot.slane %v8205, 4
      %v8208 = vrot.slane %v7701, 5
      %v8209 = vsel %vm1699, %v8207, %v8208
      %v8210 = vrot.slane %v8128, 5
      %v8211 = vrot.slane %v8210, 4
      %v8212 = vrot.slane %v7703, 5
      %v8213 = vsel %vm1699, %v8211, %v8212
      %v8214 = vrot.slane %v8212, 4
      %v8215 = vrot.slane %v7704, 5
      %v8216 = vsel %vm1699, %v8214, %v8215
      %v8217 = vrot.slane %v8129, 5
      %v8218 = vrot.slane %v8217, 4
      %v8219 = vrot.slane %v7706, 5
      %v8220 = vsel %vm1699, %v8218, %v8219
      %v8221 = vrot.slane %v8219, 4
      %v8222 = vrot.slane %v7707, 5
      %v8223 = vsel %vm1699, %v8221, %v8222
      %v8224 = vrot.slane %v8130, 5
      %v8225 = vrot.slane %v8224, 4
      %v8226 = vrot.slane %v7709, 5
      %v8227 = vsel %vm1699, %v8225, %v8226
      %v8228 = vrot.slane %v8226, 4
      %v8229 = vrot.slane %v7710, 5
      %v8230 = vsel %vm1699, %v8228, %v8229
      %v8231 = vrot.slane %v8131, 5
      %v8232 = vrot.slane %v8231, 4
      %v8233 = vrot.slane %v7712, 5
      %v8234 = vsel %vm1699, %v8232, %v8233
      %v8235 = vrot.slane %v8233, 4
      %v8236 = vrot.slane %v7713, 5
      %v8237 = vsel %vm1699, %v8235, %v8236
      %v8238 = vrot.slane %v8132, 5
      %v8239 = vrot.slane %v8238, 4
      %v8240 = vrot.slane %v7715, 5
      %v8241 = vsel %vm1699, %v8239, %v8240
      %v8242 = vrot.slane %v8240, 4
      %v8243 = vrot.slane %v7716, 5
      %v8244 = vsel %vm1699, %v8242, %v8243
      %v8245 = vrot.slane %v8133, 5
      %v8246 = vrot.slane %v8245, 4
      %v8247 = vrot.slane %v7718, 5
      %v8248 = vsel %vm1699, %v8246, %v8247
      %v8249 = vrot.slane %v8247, 4
      %v8250 = vrot.slane %v7719, 5
      %v8251 = vsel %vm1699, %v8249, %v8250
      %v8252 = vrot.slane %v8134, 5
      %v8253 = vrot.slane %v8252, 4
      %v8254 = vrot.slane %v7721, 5
      %v8255 = vsel %vm1699, %v8253, %v8254
      %v8256 = vrot.slane %v8254, 4
      %v8257 = vrot.slane %v7722, 5
      %v8258 = vsel %vm1699, %v8256, %v8257
      %v8259 = vrot.slane %v8135, 5
      %v8260 = vrot.slane %v8259, 4
      %v8261 = vrot.slane %v7724, 5
      %v8262 = vsel %vm1699, %v8260, %v8261
      %v8263 = vrot.slane %v8261, 4
      %v8264 = vrot.slane %v7725, 5
      %v8265 = vsel %vm1699, %v8263, %v8264
      %v8266 = vrot.slane %v8136, 5
      %v8267 = vrot.slane %v8266, 4
      %v8268 = vrot.slane %v7727, 5
      %v8269 = vsel %vm1699, %v8267, %v8268
      %v8270 = vrot.slane %v8268, 4
      %v8271 = vrot.slane %v7728, 5
      %v8272 = vsel %vm1699, %v8270, %v8271
      %v8273 = vrot.slane %v8137, 5
      %v8274 = vrot.slane %v8273, 4
      %v8275 = vrot.slane %v7730, 5
      %v8276 = vsel %vm1699, %v8274, %v8275
      %v8277 = vrot.slane %v8275, 4
      %v8278 = vrot.slane %v7731, 5
      %v8279 = vsel %vm1699, %v8277, %v8278
      %v8280 = vrot.slane %v8138, 5
      %v8281 = vrot.slane %v8280, 4
      %v8282 = vrot.slane %v7733, 5
      %v8283 = vsel %vm1699, %v8281, %v8282
      %v8284 = vrot.slane %v8282, 4
      %v8285 = vrot.slane %v7734, 5
      %v8286 = vsel %vm1699, %v8284, %v8285
      %v8287 = vrot.slane %v8139, 5
      %v8288 = vrot.slane %v8287, 4
      %v8289 = vrot.slane %v7736, 5
      %v8290 = vsel %vm1699, %v8288, %v8289
      %v8291 = vrot.slane %v8289, 4
      %v8292 = vrot.slane %v7737, 5
      %v8293 = vsel %vm1699, %v8291, %v8292
      %v8294 = vrot.slane %v8140, 5
      %v8295 = vrot.slane %v8294, 4
      %v8296 = vrot.slane %v7739, 5
      %v8297 = vsel %vm1699, %v8295, %v8296
      %v8298 = vrot.slane %v8296, 4
      %v8299 = vrot.slane %v7740, 5
      %v8300 = vsel %vm1699, %v8298, %v8299
      %v8301 = vld [vmem:[%s1092] sm:$0xf]
      %v8302 = vld [vmem:[%s1092 + $0x4] sm:$0xf]
      %v8303 = vld [vmem:[%s1092 + $0xc] sm:$0xf]
      %v8304 = vld [vmem:[%s1092 + $0x10] sm:$0xf]
      %v8305 = vld [vmem:[%s1092 + $0x18] sm:$0xf]
      %v8306 = vld [vmem:[%s1092 + $0x1c] sm:$0xf]
      %v8307 = vld [vmem:[%s1092 + $0x24] sm:$0xf]
      %v8308 = vld [vmem:[%s1092 + $0x28] sm:$0xf]
      %v8309 = vld [vmem:[%s1092 + $0x30] sm:$0xf]
      %v8310 = vld [vmem:[%s1092 + $0x34] sm:$0xf]
      %v8311 = vld [vmem:[%s1092 + $0x3c] sm:$0xf]
      %v8312 = vld [vmem:[%s1092 + $0x40] sm:$0xf]
      %v8313 = vld [vmem:[%s1092 + $0x48] sm:$0xf]
      %v8314 = vld [vmem:[%s1092 + $0x4c] sm:$0xf]
      %v8315 = vld [vmem:[%s1092 + $0x54] sm:$0xf]
      %v8316 = vld [vmem:[%s1092 + $0x58] sm:$0xf]
      %v8317 = vld [vmem:[%s1092 + $0x60] sm:$0xf]
      %v8318 = vld [vmem:[%s1092 + $0x64] sm:$0xf]
      %v8319 = vld [vmem:[%s1092 + $0x6c] sm:$0xf]
      %v8320 = vld [vmem:[%s1092 + $0x70] sm:$0xf]
      %v8321 = vld [vmem:[%s1092 + $0x78] sm:$0xf]
      %v8322 = vld [vmem:[%s1092 + $0x7c] sm:$0xf]
      %v8323 = vld [vmem:[%s1092 + $0x84] sm:$0xf]
      %v8324 = vld [vmem:[%s1092 + $0x88] sm:$0xf]
      %v8325 = vld [vmem:[%s1092 + $0x90] sm:$0xf]
      %v8326 = vld [vmem:[%s1092 + $0x94] sm:$0xf]
      %v8327 = vld [vmem:[%s1092 + $0x9c] sm:$0xf]
      %v8328 = vld [vmem:[%s1092 + $0xa0] sm:$0xf]
      %v8329 = vld [vmem:[%s1092 + $0xa8] sm:$0xf]
      %v8330 = vld [vmem:[%s1092 + $0xac] sm:$0xf]
      %v8331 = vld [vmem:[%s1092 + $0xb4] sm:$0xf]
      %v8332 = vld [vmem:[%s1092 + $0xb8] sm:$0xf]
      %v8333 = vld [vmem:[%s1092 + $0x8] sm:$0x1]
      %v8334 = vld [vmem:[%s1092 + $0x14] sm:$0x1]
      %v8335 = vld [vmem:[%s1092 + $0x20] sm:$0x1]
      %v8336 = vld [vmem:[%s1092 + $0x2c] sm:$0x1]
      %v8337 = vld [vmem:[%s1092 + $0x38] sm:$0x1]
      %v8338 = vld [vmem:[%s1092 + $0x44] sm:$0x1]
      %v8339 = vld [vmem:[%s1092 + $0x50] sm:$0x1]
      %v8340 = vld [vmem:[%s1092 + $0x5c] sm:$0x1]
      %v8341 = vld [vmem:[%s1092 + $0x68] sm:$0x1]
      %v8342 = vld [vmem:[%s1092 + $0x74] sm:$0x1]
      %v8343 = vld [vmem:[%s1092 + $0x80] sm:$0x1]
      %v8344 = vld [vmem:[%s1092 + $0x8c] sm:$0x1]
      %v8345 = vld [vmem:[%s1092 + $0x98] sm:$0x1]
      %v8346 = vld [vmem:[%s1092 + $0xa4] sm:$0x1]
      %v8347 = vld [vmem:[%s1092 + $0xb0] sm:$0x1]
      %v8348 = vld [vmem:[%s1092 + $0xbc] sm:$0x1]
      %v8350 = vshrl.u32 %v8301, 16
      %v8352 = vrot.slane %v8350, 4
      %v8353 = vshll.u32 %v8301, 16
      %v8355 = vrot.slane %v8353, 5
      %v8356 = vor.u32 %v8352, %v8355
      %v8357 = vrot.slane %v8356, 4
      %v8359 = vshll.u32 %v8302, 16
      %v8361 = vrot.slane %v8359, 5
      %v8362 = vsel %vm1248, %v8357, %v8361
      %v8363 = vshrl.u32 %v8302, 16
      %v8365 = vrot.slane %v8363, 4
      %v8366 = vor.u32 %v8365, %v8361
      %v8367 = vrot.slane %v8366, 4
      %v8369 = vshll.u32 %v8333, 16
      %v8371 = vrot.slane %v8369, 5
      %v8372 = vsel %vm1248, %v8367, %v8371
      %v8374 = vshrl.u32 %v8303, 16
      %v8376 = vrot.slane %v8374, 4
      %v8377 = vshll.u32 %v8303, 16
      %v8379 = vrot.slane %v8377, 5
      %v8380 = vor.u32 %v8376, %v8379
      %v8381 = vrot.slane %v8380, 4
      %v8383 = vshll.u32 %v8304, 16
      %v8385 = vrot.slane %v8383, 5
      %v8386 = vsel %vm1248, %v8381, %v8385
      %v8387 = vshrl.u32 %v8304, 16
      %v8389 = vrot.slane %v8387, 4
      %v8390 = vor.u32 %v8389, %v8385
      %v8391 = vrot.slane %v8390, 4
      %v8393 = vshll.u32 %v8334, 16
      %v8395 = vrot.slane %v8393, 5
      %v8396 = vsel %vm1248, %v8391, %v8395
      %v8398 = vshrl.u32 %v8305, 16
      %v8400 = vrot.slane %v8398, 4
      %v8401 = vshll.u32 %v8305, 16
      %v8403 = vrot.slane %v8401, 5
      %v8404 = vor.u32 %v8400, %v8403
      %v8405 = vrot.slane %v8404, 4
      %v8407 = vshll.u32 %v8306, 16
      %v8409 = vrot.slane %v8407, 5
      %v8410 = vsel %vm1248, %v8405, %v8409
      %v8411 = vshrl.u32 %v8306, 16
      %v8413 = vrot.slane %v8411, 4
      %v8414 = vor.u32 %v8413, %v8409
      %v8415 = vrot.slane %v8414, 4
      %v8417 = vshll.u32 %v8335, 16
      %v8419 = vrot.slane %v8417, 5
      %v8420 = vsel %vm1248, %v8415, %v8419
      %v8422 = vshrl.u32 %v8307, 16
      %v8424 = vrot.slane %v8422, 4
      %v8425 = vshll.u32 %v8307, 16
      %v8427 = vrot.slane %v8425, 5
      %v8428 = vor.u32 %v8424, %v8427
      %v8429 = vrot.slane %v8428, 4
      %v8431 = vshll.u32 %v8308, 16
      %v8433 = vrot.slane %v8431, 5
      %v8434 = vsel %vm1248, %v8429, %v8433
      %v8435 = vshrl.u32 %v8308, 16
      %v8437 = vrot.slane %v8435, 4
      %v8438 = vor.u32 %v8437, %v8433
      %v8439 = vrot.slane %v8438, 4
      %v8441 = vshll.u32 %v8336, 16
      %v8443 = vrot.slane %v8441, 5
      %v8444 = vsel %vm1248, %v8439, %v8443
      %v8446 = vshrl.u32 %v8309, 16
      %v8448 = vrot.slane %v8446, 4
      %v8449 = vshll.u32 %v8309, 16
      %v8451 = vrot.slane %v8449, 5
      %v8452 = vor.u32 %v8448, %v8451
      %v8453 = vrot.slane %v8452, 4
      %v8455 = vshll.u32 %v8310, 16
      %v8457 = vrot.slane %v8455, 5
      %v8458 = vsel %vm1248, %v8453, %v8457
      %v8459 = vshrl.u32 %v8310, 16
      %v8461 = vrot.slane %v8459, 4
      %v8462 = vor.u32 %v8461, %v8457
      %v8463 = vrot.slane %v8462, 4
      %v8465 = vshll.u32 %v8337, 16
      %v8467 = vrot.slane %v8465, 5
      %v8468 = vsel %vm1248, %v8463, %v8467
      %v8470 = vshrl.u32 %v8311, 16
      %v8472 = vrot.slane %v8470, 4
      %v8473 = vshll.u32 %v8311, 16
      %v8475 = vrot.slane %v8473, 5
      %v8476 = vor.u32 %v8472, %v8475
      %v8477 = vrot.slane %v8476, 4
      %v8479 = vshll.u32 %v8312, 16
      %v8481 = vrot.slane %v8479, 5
      %v8482 = vsel %vm1248, %v8477, %v8481
      %v8483 = vshrl.u32 %v8312, 16
      %v8485 = vrot.slane %v8483, 4
      %v8486 = vor.u32 %v8485, %v8481
      %v8487 = vrot.slane %v8486, 4
      %v8489 = vshll.u32 %v8338, 16
      %v8491 = vrot.slane %v8489, 5
      %v8492 = vsel %vm1248, %v8487, %v8491
      %v8494 = vshrl.u32 %v8313, 16
      %v8496 = vrot.slane %v8494, 4
      %v8497 = vshll.u32 %v8313, 16
      %v8499 = vrot.slane %v8497, 5
      %v8500 = vor.u32 %v8496, %v8499
      %v8501 = vrot.slane %v8500, 4
      %v8503 = vshll.u32 %v8314, 16
      %v8505 = vrot.slane %v8503, 5
      %v8506 = vsel %vm1248, %v8501, %v8505
      %v8507 = vshrl.u32 %v8314, 16
      %v8509 = vrot.slane %v8507, 4
      %v8510 = vor.u32 %v8509, %v8505
      %v8511 = vrot.slane %v8510, 4
      %v8513 = vshll.u32 %v8339, 16
      %v8515 = vrot.slane %v8513, 5
      %v8516 = vsel %vm1248, %v8511, %v8515
      %v8518 = vshrl.u32 %v8315, 16
      %v8520 = vrot.slane %v8518, 4
      %v8521 = vshll.u32 %v8315, 16
      %v8523 = vrot.slane %v8521, 5
      %v8524 = vor.u32 %v8520, %v8523
      %v8525 = vrot.slane %v8524, 4
      %v8527 = vshll.u32 %v8316, 16
      %v8529 = vrot.slane %v8527, 5
      %v8530 = vsel %vm1248, %v8525, %v8529
      %v8531 = vshrl.u32 %v8316, 16
      %v8533 = vrot.slane %v8531, 4
      %v8534 = vor.u32 %v8533, %v8529
      %v8535 = vrot.slane %v8534, 4
      %v8537 = vshll.u32 %v8340, 16
      %v8539 = vrot.slane %v8537, 5
      %v8540 = vsel %vm1248, %v8535, %v8539
      %v8542 = vshrl.u32 %v8317, 16
      %v8544 = vrot.slane %v8542, 4
      %v8545 = vshll.u32 %v8317, 16
      %v8547 = vrot.slane %v8545, 5
      %v8548 = vor.u32 %v8544, %v8547
      %v8549 = vrot.slane %v8548, 4
      %v8551 = vshll.u32 %v8318, 16
      %v8553 = vrot.slane %v8551, 5
      %v8554 = vsel %vm1248, %v8549, %v8553
      %v8555 = vshrl.u32 %v8318, 16
      %v8557 = vrot.slane %v8555, 4
      %v8558 = vor.u32 %v8557, %v8553
      %v8559 = vrot.slane %v8558, 4
      %v8561 = vshll.u32 %v8341, 16
      %v8563 = vrot.slane %v8561, 5
      %v8564 = vsel %vm1248, %v8559, %v8563
      %v8566 = vshrl.u32 %v8319, 16
      %v8568 = vrot.slane %v8566, 4
      %v8569 = vshll.u32 %v8319, 16
      %v8571 = vrot.slane %v8569, 5
      %v8572 = vor.u32 %v8568, %v8571
      %v8573 = vrot.slane %v8572, 4
      %v8575 = vshll.u32 %v8320, 16
      %v8577 = vrot.slane %v8575, 5
      %v8578 = vsel %vm1248, %v8573, %v8577
      %v8579 = vshrl.u32 %v8320, 16
      %v8581 = vrot.slane %v8579, 4
      %v8582 = vor.u32 %v8581, %v8577
      %v8583 = vrot.slane %v8582, 4
      %v8585 = vshll.u32 %v8342, 16
      %v8587 = vrot.slane %v8585, 5
      %v8588 = vsel %vm1248, %v8583, %v8587
      %v8590 = vshrl.u32 %v8321, 16
      %v8592 = vrot.slane %v8590, 4
      %v8593 = vshll.u32 %v8321, 16
      %v8595 = vrot.slane %v8593, 5
      %v8596 = vor.u32 %v8592, %v8595
      %v8597 = vrot.slane %v8596, 4
      %v8599 = vshll.u32 %v8322, 16
      %v8601 = vrot.slane %v8599, 5
      %v8602 = vsel %vm1248, %v8597, %v8601
      %v8603 = vshrl.u32 %v8322, 16
      %v8605 = vrot.slane %v8603, 4
      %v8606 = vor.u32 %v8605, %v8601
      %v8607 = vrot.slane %v8606, 4
      %v8609 = vshll.u32 %v8343, 16
      %v8611 = vrot.slane %v8609, 5
      %v8612 = vsel %vm1248, %v8607, %v8611
      %v8614 = vshrl.u32 %v8323, 16
      %v8616 = vrot.slane %v8614, 4
      %v8617 = vshll.u32 %v8323, 16
      %v8619 = vrot.slane %v8617, 5
      %v8620 = vor.u32 %v8616, %v8619
      %v8621 = vrot.slane %v8620, 4
      %v8623 = vshll.u32 %v8324, 16
      %v8625 = vrot.slane %v8623, 5
      %v8626 = vsel %vm1248, %v8621, %v8625
      %v8627 = vshrl.u32 %v8324, 16
      %v8629 = vrot.slane %v8627, 4
      %v8630 = vor.u32 %v8629, %v8625
      %v8631 = vrot.slane %v8630, 4
      %v8633 = vshll.u32 %v8344, 16
      %v8635 = vrot.slane %v8633, 5
      %v8636 = vsel %vm1248, %v8631, %v8635
      %v8638 = vshrl.u32 %v8325, 16
      %v8640 = vrot.slane %v8638, 4
      %v8641 = vshll.u32 %v8325, 16
      %v8643 = vrot.slane %v8641, 5
      %v8644 = vor.u32 %v8640, %v8643
      %v8645 = vrot.slane %v8644, 4
      %v8647 = vshll.u32 %v8326, 16
      %v8649 = vrot.slane %v8647, 5
      %v8650 = vsel %vm1248, %v8645, %v8649
      %v8651 = vshrl.u32 %v8326, 16
      %v8653 = vrot.slane %v8651, 4
      %v8654 = vor.u32 %v8653, %v8649
      %v8655 = vrot.slane %v8654, 4
      %v8657 = vshll.u32 %v8345, 16
      %v8659 = vrot.slane %v8657, 5
      %v8660 = vsel %vm1248, %v8655, %v8659
      %v8662 = vshrl.u32 %v8327, 16
      %v8664 = vrot.slane %v8662, 4
      %v8665 = vshll.u32 %v8327, 16
      %v8667 = vrot.slane %v8665, 5
      %v8668 = vor.u32 %v8664, %v8667
      %v8669 = vrot.slane %v8668, 4
      %v8671 = vshll.u32 %v8328, 16
      %v8673 = vrot.slane %v8671, 5
      %v8674 = vsel %vm1248, %v8669, %v8673
      %v8675 = vshrl.u32 %v8328, 16
      %v8677 = vrot.slane %v8675, 4
      %v8678 = vor.u32 %v8677, %v8673
      %v8679 = vrot.slane %v8678, 4
      %v8681 = vshll.u32 %v8346, 16
      %v8683 = vrot.slane %v8681, 5
      %v8684 = vsel %vm1248, %v8679, %v8683
      %v8686 = vshrl.u32 %v8329, 16
      %v8688 = vrot.slane %v8686, 4
      %v8689 = vshll.u32 %v8329, 16
      %v8691 = vrot.slane %v8689, 5
      %v8692 = vor.u32 %v8688, %v8691
      %v8693 = vrot.slane %v8692, 4
      %v8695 = vshll.u32 %v8330, 16
      %v8697 = vrot.slane %v8695, 5
      %v8698 = vsel %vm1248, %v8693, %v8697
      %v8699 = vshrl.u32 %v8330, 16
      %v8701 = vrot.slane %v8699, 4
      %v8702 = vor.u32 %v8701, %v8697
      %v8703 = vrot.slane %v8702, 4
      %v8705 = vshll.u32 %v8347, 16
      %v8707 = vrot.slane %v8705, 5
      %v8708 = vsel %vm1248, %v8703, %v8707
      %v8710 = vshrl.u32 %v8331, 16
      %v8712 = vrot.slane %v8710, 4
      %v8713 = vshll.u32 %v8331, 16
      %v8715 = vrot.slane %v8713, 5
      %v8716 = vor.u32 %v8712, %v8715
      %v8717 = vrot.slane %v8716, 4
      %v8719 = vshll.u32 %v8332, 16
      %v8721 = vrot.slane %v8719, 5
      %v8722 = vsel %vm1248, %v8717, %v8721
      %v8723 = vshrl.u32 %v8332, 16
      %v8725 = vrot.slane %v8723, 4
      %v8726 = vor.u32 %v8725, %v8721
      %v8727 = vrot.slane %v8726, 4
      %v8729 = vshll.u32 %v8348, 16
      %v8731 = vrot.slane %v8729, 5
      %v8732 = vsel %vm1248, %v8727, %v8731
      %v8733 = vld [vmem:[%s995] sm:$0xf]
      %v8734 = vld [vmem:[%s995 + $0x4] sm:$0xf]
      %v8735 = vld [vmem:[%s995 + $0x8] sm:$0x1]
      %v8736 = vld [vmem:[%s995 + $0xc] sm:$0xf]
      %v8737 = vld [vmem:[%s995 + $0x10] sm:$0xf]
      %v8738 = vld [vmem:[%s995 + $0x14] sm:$0x1]
      %v8739 = vld [vmem:[%s995 + $0x18] sm:$0xf]
      %v8740 = vld [vmem:[%s995 + $0x1c] sm:$0xf]
      %v8741 = vld [vmem:[%s995 + $0x20] sm:$0x1]
      %v8742 = vld [vmem:[%s995 + $0x24] sm:$0xf]
      %v8743 = vld [vmem:[%s995 + $0x28] sm:$0xf]
      %v8744 = vld [vmem:[%s995 + $0x2c] sm:$0x1]
      %v8745 = vld [vmem:[%s995 + $0x30] sm:$0xf]
      %v8746 = vld [vmem:[%s995 + $0x34] sm:$0xf]
      %v8747 = vld [vmem:[%s995 + $0x38] sm:$0x1]
      %v8748 = vld [vmem:[%s995 + $0x3c] sm:$0xf]
      %v8749 = vld [vmem:[%s995 + $0x40] sm:$0xf]
      %v8750 = vld [vmem:[%s995 + $0x44] sm:$0x1]
      %v8751 = vld [vmem:[%s995 + $0x48] sm:$0xf]
      %v8752 = vld [vmem:[%s995 + $0x4c] sm:$0xf]
      %v8753 = vld [vmem:[%s995 + $0x50] sm:$0x1]
      %v8754 = vld [vmem:[%s995 + $0x54] sm:$0xf]
      %v8755 = vld [vmem:[%s995 + $0x58] sm:$0xf]
      %v8756 = vld [vmem:[%s995 + $0x5c] sm:$0x1]
      %v8757 = vld [vmem:[%s995 + $0x60] sm:$0xf]
      %v8758 = vld [vmem:[%s995 + $0x64] sm:$0xf]
      %v8759 = vld [vmem:[%s995 + $0x68] sm:$0x1]
      %v8760 = vld [vmem:[%s995 + $0x6c] sm:$0xf]
      %v8761 = vld [vmem:[%s995 + $0x70] sm:$0xf]
      %v8762 = vld [vmem:[%s995 + $0x74] sm:$0x1]
      %v8763 = vld [vmem:[%s995 + $0x78] sm:$0xf]
      %v8764 = vld [vmem:[%s995 + $0x7c] sm:$0xf]
      %v8765 = vld [vmem:[%s995 + $0x80] sm:$0x1]
      %v8766 = vld [vmem:[%s995 + $0x84] sm:$0xf]
      %v8767 = vld [vmem:[%s995 + $0x88] sm:$0xf]
      %v8768 = vld [vmem:[%s995 + $0x8c] sm:$0x1]
      %v8769 = vld [vmem:[%s995 + $0x90] sm:$0xf]
      %v8770 = vld [vmem:[%s995 + $0x94] sm:$0xf]
      %v8771 = vld [vmem:[%s995 + $0x98] sm:$0x1]
      %v8772 = vld [vmem:[%s995 + $0x9c] sm:$0xf]
      %v8773 = vld [vmem:[%s995 + $0xa0] sm:$0xf]
      %v8774 = vld [vmem:[%s995 + $0xa4] sm:$0x1]
      %v8775 = vld [vmem:[%s995 + $0xa8] sm:$0xf]
      %v8776 = vld [vmem:[%s995 + $0xac] sm:$0xf]
      %v8777 = vld [vmem:[%s995 + $0xb0] sm:$0x1]
      %v8778 = vld [vmem:[%s995 + $0xb4] sm:$0xf]
      %v8779 = vld [vmem:[%s995 + $0xb8] sm:$0xf]
      %v8780 = vld [vmem:[%s995 + $0xbc] sm:$0x1]
      %v8782 = vshrl.u32 %v8733, 16
      %v8784 = vrot.slane %v8782, 4
      %v8785 = vshll.u32 %v8733, 16
      %v8787 = vrot.slane %v8785, 5
      %v8788 = vor.u32 %v8784, %v8787
      %v8789 = vrot.slane %v8788, 4
      %v8791 = vshll.u32 %v8734, 16
      %v8793 = vrot.slane %v8791, 5
      %v8794 = vsel %vm1248, %v8789, %v8793
      %v8795 = vshrl.u32 %v8734, 16
      %v8797 = vrot.slane %v8795, 4
      %v8798 = vor.u32 %v8797, %v8793
      %v8799 = vrot.slane %v8798, 4
      %v8801 = vshll.u32 %v8735, 16
      %v8803 = vrot.slane %v8801, 5
      %v8804 = vsel %vm1248, %v8799, %v8803
      %v8806 = vshrl.u32 %v8736, 16
      %v8808 = vrot.slane %v8806, 4
      %v8809 = vshll.u32 %v8736, 16
      %v8811 = vrot.slane %v8809, 5
      %v8812 = vor.u32 %v8808, %v8811
      %v8813 = vrot.slane %v8812, 4
      %v8815 = vshll.u32 %v8737, 16
      %v8817 = vrot.slane %v8815, 5
      %v8818 = vsel %vm1248, %v8813, %v8817
      %v8819 = vshrl.u32 %v8737, 16
      %v8821 = vrot.slane %v8819, 4
      %v8822 = vor.u32 %v8821, %v8817
      %v8823 = vrot.slane %v8822, 4
      %v8825 = vshll.u32 %v8738, 16
      %v8827 = vrot.slane %v8825, 5
      %v8828 = vsel %vm1248, %v8823, %v8827
      %v8830 = vshrl.u32 %v8739, 16
      %v8832 = vrot.slane %v8830, 4
      %v8833 = vshll.u32 %v8739, 16
      %v8835 = vrot.slane %v8833, 5
      %v8836 = vor.u32 %v8832, %v8835
      %v8837 = vrot.slane %v8836, 4
      %v8839 = vshll.u32 %v8740, 16
      %v8841 = vrot.slane %v8839, 5
      %v8842 = vsel %vm1248, %v8837, %v8841
      %v8843 = vshrl.u32 %v8740, 16
      %v8845 = vrot.slane %v8843, 4
      %v8846 = vor.u32 %v8845, %v8841
      %v8847 = vrot.slane %v8846, 4
      %v8849 = vshll.u32 %v8741, 16
      %v8851 = vrot.slane %v8849, 5
      %v8852 = vsel %vm1248, %v8847, %v8851
      %v8854 = vshrl.u32 %v8742, 16
      %v8856 = vrot.slane %v8854, 4
      %v8857 = vshll.u32 %v8742, 16
      %v8859 = vrot.slane %v8857, 5
      %v8860 = vor.u32 %v8856, %v8859
      %v8861 = vrot.slane %v8860, 4
      %v8863 = vshll.u32 %v8743, 16
      %v8865 = vrot.slane %v8863, 5
      %v8866 = vsel %vm1248, %v8861, %v8865
      %v8867 = vshrl.u32 %v8743, 16
      %v8869 = vrot.slane %v8867, 4
      %v8870 = vor.u32 %v8869, %v8865
      %v8871 = vrot.slane %v8870, 4
      %v8873 = vshll.u32 %v8744, 16
      %v8875 = vrot.slane %v8873, 5
      %v8876 = vsel %vm1248, %v8871, %v8875
      %v8878 = vshrl.u32 %v8745, 16
      %v8880 = vrot.slane %v8878, 4
      %v8881 = vshll.u32 %v8745, 16
      %v8883 = vrot.slane %v8881, 5
      %v8884 = vor.u32 %v8880, %v8883
      %v8885 = vrot.slane %v8884, 4
      %v8887 = vshll.u32 %v8746, 16
      %v8889 = vrot.slane %v8887, 5
      %v8890 = vsel %vm1248, %v8885, %v8889
      %v8891 = vshrl.u32 %v8746, 16
      %v8893 = vrot.slane %v8891, 4
      %v8894 = vor.u32 %v8893, %v8889
      %v8895 = vrot.slane %v8894, 4
      %v8897 = vshll.u32 %v8747, 16
      %v8899 = vrot.slane %v8897, 5
      %v8900 = vsel %vm1248, %v8895, %v8899
      %v8902 = vshrl.u32 %v8748, 16
      %v8904 = vrot.slane %v8902, 4
      %v8905 = vshll.u32 %v8748, 16
      %v8907 = vrot.slane %v8905, 5
      %v8908 = vor.u32 %v8904, %v8907
      %v8909 = vrot.slane %v8908, 4
      %v8911 = vshll.u32 %v8749, 16
      %v8913 = vrot.slane %v8911, 5
      %v8914 = vsel %vm1248, %v8909, %v8913
      %v8915 = vshrl.u32 %v8749, 16
      %v8917 = vrot.slane %v8915, 4
      %v8918 = vor.u32 %v8917, %v8913
      %v8919 = vrot.slane %v8918, 4
      %v8921 = vshll.u32 %v8750, 16
      %v8923 = vrot.slane %v8921, 5
      %v8924 = vsel %vm1248, %v8919, %v8923
      %v8926 = vshrl.u32 %v8751, 16
      %v8928 = vrot.slane %v8926, 4
      %v8929 = vshll.u32 %v8751, 16
      %v8931 = vrot.slane %v8929, 5
      %v8932 = vor.u32 %v8928, %v8931
      %v8933 = vrot.slane %v8932, 4
      %v8935 = vshll.u32 %v8752, 16
      %v8937 = vrot.slane %v8935, 5
      %v8938 = vsel %vm1248, %v8933, %v8937
      %v8939 = vshrl.u32 %v8752, 16
      %v8941 = vrot.slane %v8939, 4
      %v8942 = vor.u32 %v8941, %v8937
      %v8943 = vrot.slane %v8942, 4
      %v8945 = vshll.u32 %v8753, 16
      %v8947 = vrot.slane %v8945, 5
      %v8948 = vsel %vm1248, %v8943, %v8947
      %v8950 = vshrl.u32 %v8754, 16
      %v8952 = vrot.slane %v8950, 4
      %v8953 = vshll.u32 %v8754, 16
      %v8955 = vrot.slane %v8953, 5
      %v8956 = vor.u32 %v8952, %v8955
      %v8957 = vrot.slane %v8956, 4
      %v8959 = vshll.u32 %v8755, 16
      %v8961 = vrot.slane %v8959, 5
      %v8962 = vsel %vm1248, %v8957, %v8961
      %v8963 = vshrl.u32 %v8755, 16
      %v8965 = vrot.slane %v8963, 4
      %v8966 = vor.u32 %v8965, %v8961
      %v8967 = vrot.slane %v8966, 4
      %v8969 = vshll.u32 %v8756, 16
      %v8971 = vrot.slane %v8969, 5
      %v8972 = vsel %vm1248, %v8967, %v8971
      %v8974 = vshrl.u32 %v8757, 16
      %v8976 = vrot.slane %v8974, 4
      %v8977 = vshll.u32 %v8757, 16
      %v8979 = vrot.slane %v8977, 5
      %v8980 = vor.u32 %v8976, %v8979
      %v8981 = vrot.slane %v8980, 4
      %v8983 = vshll.u32 %v8758, 16
      %v8985 = vrot.slane %v8983, 5
      %v8986 = vsel %vm1248, %v8981, %v8985
      %v8987 = vshrl.u32 %v8758, 16
      %v8989 = vrot.slane %v8987, 4
      %v8990 = vor.u32 %v8989, %v8985
      %v8991 = vrot.slane %v8990, 4
      %v8993 = vshll.u32 %v8759, 16
      %v8995 = vrot.slane %v8993, 5
      %v8996 = vsel %vm1248, %v8991, %v8995
      %v8998 = vshrl.u32 %v8760, 16
      %v9000 = vrot.slane %v8998, 4
      %v9001 = vshll.u32 %v8760, 16
      %v9003 = vrot.slane %v9001, 5
      %v9004 = vor.u32 %v9000, %v9003
      %v9005 = vrot.slane %v9004, 4
      %v9007 = vshll.u32 %v8761, 16
      %v9009 = vrot.slane %v9007, 5
      %v9010 = vsel %vm1248, %v9005, %v9009
      %v9011 = vshrl.u32 %v8761, 16
      %v9013 = vrot.slane %v9011, 4
      %v9014 = vor.u32 %v9013, %v9009
      %v9015 = vrot.slane %v9014, 4
      %v9017 = vshll.u32 %v8762, 16
      %v9019 = vrot.slane %v9017, 5
      %v9020 = vsel %vm1248, %v9015, %v9019
      %v9022 = vshrl.u32 %v8763, 16
      %v9024 = vrot.slane %v9022, 4
      %v9025 = vshll.u32 %v8763, 16
      %v9027 = vrot.slane %v9025, 5
      %v9028 = vor.u32 %v9024, %v9027
      %v9029 = vrot.slane %v9028, 4
      %v9031 = vshll.u32 %v8764, 16
      %v9033 = vrot.slane %v9031, 5
      %v9034 = vsel %vm1248, %v9029, %v9033
      %v9035 = vshrl.u32 %v8764, 16
      %v9037 = vrot.slane %v9035, 4
      %v9038 = vor.u32 %v9037, %v9033
      %v9039 = vrot.slane %v9038, 4
      %v9041 = vshll.u32 %v8765, 16
      %v9043 = vrot.slane %v9041, 5
      %v9044 = vsel %vm1248, %v9039, %v9043
      %v9046 = vshrl.u32 %v8766, 16
      %v9048 = vrot.slane %v9046, 4
      %v9049 = vshll.u32 %v8766, 16
      %v9051 = vrot.slane %v9049, 5
      %v9052 = vor.u32 %v9048, %v9051
      %v9053 = vrot.slane %v9052, 4
      %v9055 = vshll.u32 %v8767, 16
      %v9057 = vrot.slane %v9055, 5
      %v9058 = vsel %vm1248, %v9053, %v9057
      %v9059 = vshrl.u32 %v8767, 16
      %v9061 = vrot.slane %v9059, 4
      %v9062 = vor.u32 %v9061, %v9057
      %v9063 = vrot.slane %v9062, 4
      %v9065 = vshll.u32 %v8768, 16
      %v9067 = vrot.slane %v9065, 5
      %v9068 = vsel %vm1248, %v9063, %v9067
      %v9070 = vshrl.u32 %v8769, 16
      %v9072 = vrot.slane %v9070, 4
      %v9073 = vshll.u32 %v8769, 16
      %v9075 = vrot.slane %v9073, 5
      %v9076 = vor.u32 %v9072, %v9075
      %v9077 = vrot.slane %v9076, 4
      %v9079 = vshll.u32 %v8770, 16
      %v9081 = vrot.slane %v9079, 5
      %v9082 = vsel %vm1248, %v9077, %v9081
      %v9083 = vshrl.u32 %v8770, 16
      %v9085 = vrot.slane %v9083, 4
      %v9086 = vor.u32 %v9085, %v9081
      %v9087 = vrot.slane %v9086, 4
      %v9089 = vshll.u32 %v8771, 16
      %v9091 = vrot.slane %v9089, 5
      %v9092 = vsel %vm1248, %v9087, %v9091
      %v9094 = vshrl.u32 %v8772, 16
      %v9096 = vrot.slane %v9094, 4
      %v9097 = vshll.u32 %v8772, 16
      %v9099 = vrot.slane %v9097, 5
      %v9100 = vor.u32 %v9096, %v9099
      %v9101 = vrot.slane %v9100, 4
      %v9103 = vshll.u32 %v8773, 16
      %v9105 = vrot.slane %v9103, 5
      %v9106 = vsel %vm1248, %v9101, %v9105
      %v9107 = vshrl.u32 %v8773, 16
      %v9109 = vrot.slane %v9107, 4
      %v9110 = vor.u32 %v9109, %v9105
      %v9111 = vrot.slane %v9110, 4
      %v9113 = vshll.u32 %v8774, 16
      %v9115 = vrot.slane %v9113, 5
      %v9116 = vsel %vm1248, %v9111, %v9115
      %v9118 = vshrl.u32 %v8775, 16
      %v9120 = vrot.slane %v9118, 4
      %v9121 = vshll.u32 %v8775, 16
      %v9123 = vrot.slane %v9121, 5
      %v9124 = vor.u32 %v9120, %v9123
      %v9125 = vrot.slane %v9124, 4
      %v9127 = vshll.u32 %v8776, 16
      %v9129 = vrot.slane %v9127, 5
      %v9130 = vsel %vm1248, %v9125, %v9129
      %v9131 = vshrl.u32 %v8776, 16
      %v9133 = vrot.slane %v9131, 4
      %v9134 = vor.u32 %v9133, %v9129
      %v9135 = vrot.slane %v9134, 4
      %v9137 = vshll.u32 %v8777, 16
      %v9139 = vrot.slane %v9137, 5
      %v9140 = vsel %vm1248, %v9135, %v9139
      %v9142 = vshrl.u32 %v8778, 16
      %v9144 = vrot.slane %v9142, 4
      %v9145 = vshll.u32 %v8778, 16
      %v9147 = vrot.slane %v9145, 5
      %v9148 = vor.u32 %v9144, %v9147
      %v9149 = vrot.slane %v9148, 4
      %v9151 = vshll.u32 %v8779, 16
      %v9153 = vrot.slane %v9151, 5
      %v9154 = vsel %vm1248, %v9149, %v9153
      %v9155 = vshrl.u32 %v8779, 16
      %v9157 = vrot.slane %v9155, 4
      %v9158 = vor.u32 %v9157, %v9153
      %v9159 = vrot.slane %v9158, 4
      %v9161 = vshll.u32 %v8780, 16
      %v9163 = vrot.slane %v9161, 5
      %v9164 = vsel %vm1248, %v9159, %v9163
      %v9165 = vld [vmem:[%s995] sm:$0xe]
      %v9166 = vld [vmem:[%s995 + $0xc] sm:$0xe]
      %v9167 = vld [vmem:[%s995 + $0x18] sm:$0xe]
      %v9168 = vld [vmem:[%s995 + $0x24] sm:$0xe]
      %v9169 = vld [vmem:[%s995 + $0x30] sm:$0xe]
      %v9170 = vld [vmem:[%s995 + $0x3c] sm:$0xe]
      %v9171 = vld [vmem:[%s995 + $0x48] sm:$0xe]
      %v9172 = vld [vmem:[%s995 + $0x54] sm:$0xe]
      %v9173 = vld [vmem:[%s995 + $0x60] sm:$0xe]
      %v9174 = vld [vmem:[%s995 + $0x6c] sm:$0xe]
      %v9175 = vld [vmem:[%s995 + $0x78] sm:$0xe]
      %v9176 = vld [vmem:[%s995 + $0x84] sm:$0xe]
      %v9177 = vld [vmem:[%s995 + $0x90] sm:$0xe]
      %v9178 = vld [vmem:[%s995 + $0x9c] sm:$0xe]
      %v9179 = vld [vmem:[%s995 + $0xa8] sm:$0xe]
      %v9180 = vld [vmem:[%s995 + $0xb4] sm:$0xe]
      %v9229 = vrot.slane %v9165, 5
      %v9230 = vrot.slane %v9229, 4
      %v9231 = vrot.slane %v8734, 5
      %v9232 = vsel %vm1699, %v9230, %v9231
      %v9233 = vrot.slane %v9231, 4
      %v9234 = vrot.slane %v8735, 5
      %v9235 = vsel %vm1699, %v9233, %v9234
      %v9236 = vrot.slane %v9166, 5
      %v9237 = vrot.slane %v9236, 4
      %v9238 = vrot.slane %v8737, 5
      %v9239 = vsel %vm1699, %v9237, %v9238
      %v9240 = vrot.slane %v9238, 4
      %v9241 = vrot.slane %v8738, 5
      %v9242 = vsel %vm1699, %v9240, %v9241
      %v9243 = vrot.slane %v9167, 5
      %v9244 = vrot.slane %v9243, 4
      %v9245 = vrot.slane %v8740, 5
      %v9246 = vsel %vm1699, %v9244, %v9245
      %v9247 = vrot.slane %v9245, 4
      %v9248 = vrot.slane %v8741, 5
      %v9249 = vsel %vm1699, %v9247, %v9248
      %v9250 = vrot.slane %v9168, 5
      %v9251 = vrot.slane %v9250, 4
      %v9252 = vrot.slane %v8743, 5
      %v9253 = vsel %vm1699, %v9251, %v9252
      %v9254 = vrot.slane %v9252, 4
      %v9255 = vrot.slane %v8744, 5
      %v9256 = vsel %vm1699, %v9254, %v9255
      %v9257 = vrot.slane %v9169, 5
      %v9258 = vrot.slane %v9257, 4
      %v9259 = vrot.slane %v8746, 5
      %v9260 = vsel %vm1699, %v9258, %v9259
      %v9261 = vrot.slane %v9259, 4
      %v9262 = vrot.slane %v8747, 5
      %v9263 = vsel %vm1699, %v9261, %v9262
      %v9264 = vrot.slane %v9170, 5
      %v9265 = vrot.slane %v9264, 4
      %v9266 = vrot.slane %v8749, 5
      %v9267 = vsel %vm1699, %v9265, %v9266
      %v9268 = vrot.slane %v9266, 4
      %v9269 = vrot.slane %v8750, 5
      %v9270 = vsel %vm1699, %v9268, %v9269
      %v9271 = vrot.slane %v9171, 5
      %v9272 = vrot.slane %v9271, 4
      %v9273 = vrot.slane %v8752, 5
      %v9274 = vsel %vm1699, %v9272, %v9273
      %v9275 = vrot.slane %v9273, 4
      %v9276 = vrot.slane %v8753, 5
      %v9277 = vsel %vm1699, %v9275, %v9276
      %v9278 = vrot.slane %v9172, 5
      %v9279 = vrot.slane %v9278, 4
      %v9280 = vrot.slane %v8755, 5
      %v9281 = vsel %vm1699, %v9279, %v9280
      %v9282 = vrot.slane %v9280, 4
      %v9283 = vrot.slane %v8756, 5
      %v9284 = vsel %vm1699, %v9282, %v9283
      %v9285 = vrot.slane %v9173, 5
      %v9286 = vrot.slane %v9285, 4
      %v9287 = vrot.slane %v8758, 5
      %v9288 = vsel %vm1699, %v9286, %v9287
      %v9289 = vrot.slane %v9287, 4
      %v9290 = vrot.slane %v8759, 5
      %v9291 = vsel %vm1699, %v9289, %v9290
      %v9292 = vrot.slane %v9174, 5
      %v9293 = vrot.slane %v9292, 4
      %v9294 = vrot.slane %v8761, 5
      %v9295 = vsel %vm1699, %v9293, %v9294
      %v9296 = vrot.slane %v9294, 4
      %v9297 = vrot.slane %v8762, 5
      %v9298 = vsel %vm1699, %v9296, %v9297
      %v9299 = vrot.slane %v9175, 5
      %v9300 = vrot.slane %v9299, 4
      %v9301 = vrot.slane %v8764, 5
      %v9302 = vsel %vm1699, %v9300, %v9301
      %v9303 = vrot.slane %v9301, 4
      %v9304 = vrot.slane %v8765, 5
      %v9305 = vsel %vm1699, %v9303, %v9304
      %v9306 = vrot.slane %v9176, 5
      %v9307 = vrot.slane %v9306, 4
      %v9308 = vrot.slane %v8767, 5
      %v9309 = vsel %vm1699, %v9307, %v9308
      %v9310 = vrot.slane %v9308, 4
      %v9311 = vrot.slane %v8768, 5
      %v9312 = vsel %vm1699, %v9310, %v9311
      %v9313 = vrot.slane %v9177, 5
      %v9314 = vrot.slane %v9313, 4
      %v9315 = vrot.slane %v8770, 5
      %v9316 = vsel %vm1699, %v9314, %v9315
      %v9317 = vrot.slane %v9315, 4
      %v9318 = vrot.slane %v8771, 5
      %v9319 = vsel %vm1699, %v9317, %v9318
      %v9320 = vrot.slane %v9178, 5
      %v9321 = vrot.slane %v9320, 4
      %v9322 = vrot.slane %v8773, 5
      %v9323 = vsel %vm1699, %v9321, %v9322
      %v9324 = vrot.slane %v9322, 4
      %v9325 = vrot.slane %v8774, 5
      %v9326 = vsel %vm1699, %v9324, %v9325
      %v9327 = vrot.slane %v9179, 5
      %v9328 = vrot.slane %v9327, 4
      %v9329 = vrot.slane %v8776, 5
      %v9330 = vsel %vm1699, %v9328, %v9329
      %v9331 = vrot.slane %v9329, 4
      %v9332 = vrot.slane %v8777, 5
      %v9333 = vsel %vm1699, %v9331, %v9332
      %v9334 = vrot.slane %v9180, 5
      %v9335 = vrot.slane %v9334, 4
      %v9336 = vrot.slane %v8779, 5
      %v9337 = vsel %vm1699, %v9335, %v9336
      %v9338 = vrot.slane %v9336, 4
      %v9339 = vrot.slane %v8780, 5
      %v9340 = vsel %vm1699, %v9338, %v9339
      %v9341 = vld [vmem:[%s1100] sm:$0xf]
      %v9342 = vld [vmem:[%s1100 + $0x4] sm:$0xf]
      %v9343 = vld [vmem:[%s1100 + $0xc] sm:$0xf]
      %v9344 = vld [vmem:[%s1100 + $0x10] sm:$0xf]
      %v9345 = vld [vmem:[%s1100 + $0x18] sm:$0xf]
      %v9346 = vld [vmem:[%s1100 + $0x1c] sm:$0xf]
      %v9347 = vld [vmem:[%s1100 + $0x24] sm:$0xf]
      %v9348 = vld [vmem:[%s1100 + $0x28] sm:$0xf]
      %v9349 = vld [vmem:[%s1100 + $0x30] sm:$0xf]
      %v9350 = vld [vmem:[%s1100 + $0x34] sm:$0xf]
      %v9351 = vld [vmem:[%s1100 + $0x3c] sm:$0xf]
      %v9352 = vld [vmem:[%s1100 + $0x40] sm:$0xf]
      %v9353 = vld [vmem:[%s1100 + $0x48] sm:$0xf]
      %v9354 = vld [vmem:[%s1100 + $0x4c] sm:$0xf]
      %v9355 = vld [vmem:[%s1100 + $0x54] sm:$0xf]
      %v9356 = vld [vmem:[%s1100 + $0x58] sm:$0xf]
      %v9357 = vld [vmem:[%s1100 + $0x60] sm:$0xf]
      %v9358 = vld [vmem:[%s1100 + $0x64] sm:$0xf]
      %v9359 = vld [vmem:[%s1100 + $0x6c] sm:$0xf]
      %v9360 = vld [vmem:[%s1100 + $0x70] sm:$0xf]
      %v9361 = vld [vmem:[%s1100 + $0x78] sm:$0xf]
      %v9362 = vld [vmem:[%s1100 + $0x7c] sm:$0xf]
      %v9363 = vld [vmem:[%s1100 + $0x84] sm:$0xf]
      %v9364 = vld [vmem:[%s1100 + $0x88] sm:$0xf]
      %v9365 = vld [vmem:[%s1100 + $0x90] sm:$0xf]
      %v9366 = vld [vmem:[%s1100 + $0x94] sm:$0xf]
      %v9367 = vld [vmem:[%s1100 + $0x9c] sm:$0xf]
      %v9368 = vld [vmem:[%s1100 + $0xa0] sm:$0xf]
      %v9369 = vld [vmem:[%s1100 + $0xa8] sm:$0xf]
      %v9370 = vld [vmem:[%s1100 + $0xac] sm:$0xf]
      %v9371 = vld [vmem:[%s1100 + $0xb4] sm:$0xf]
      %v9372 = vld [vmem:[%s1100 + $0xb8] sm:$0xf]
      %v9373 = vld [vmem:[%s1100 + $0x8] sm:$0x1]
      %v9374 = vld [vmem:[%s1100 + $0x14] sm:$0x1]
      %v9375 = vld [vmem:[%s1100 + $0x20] sm:$0x1]
      %v9376 = vld [vmem:[%s1100 + $0x2c] sm:$0x1]
      %v9377 = vld [vmem:[%s1100 + $0x38] sm:$0x1]
      %v9378 = vld [vmem:[%s1100 + $0x44] sm:$0x1]
      %v9379 = vld [vmem:[%s1100 + $0x50] sm:$0x1]
      %v9380 = vld [vmem:[%s1100 + $0x5c] sm:$0x1]
      %v9381 = vld [vmem:[%s1100 + $0x68] sm:$0x1]
      %v9382 = vld [vmem:[%s1100 + $0x74] sm:$0x1]
      %v9383 = vld [vmem:[%s1100 + $0x80] sm:$0x1]
      %v9384 = vld [vmem:[%s1100 + $0x8c] sm:$0x1]
      %v9385 = vld [vmem:[%s1100 + $0x98] sm:$0x1]
      %v9386 = vld [vmem:[%s1100 + $0xa4] sm:$0x1]
      %v9387 = vld [vmem:[%s1100 + $0xb0] sm:$0x1]
      %v9388 = vld [vmem:[%s1100 + $0xbc] sm:$0x1]
      %v9390 = vshrl.u32 %v9341, 16
      %v9392 = vrot.slane %v9390, 4
      %v9393 = vshll.u32 %v9341, 16
      %v9395 = vrot.slane %v9393, 5
      %v9396 = vor.u32 %v9392, %v9395
      %v9397 = vrot.slane %v9396, 4
      %v9399 = vshll.u32 %v9342, 16
      %v9401 = vrot.slane %v9399, 5
      %v9402 = vsel %vm1248, %v9397, %v9401
      %v9403 = vshrl.u32 %v9342, 16
      %v9405 = vrot.slane %v9403, 4
      %v9406 = vor.u32 %v9405, %v9401
      %v9407 = vrot.slane %v9406, 4
      %v9409 = vshll.u32 %v9373, 16
      %v9411 = vrot.slane %v9409, 5
      %v9412 = vsel %vm1248, %v9407, %v9411
      %v9414 = vshrl.u32 %v9343, 16
      %v9416 = vrot.slane %v9414, 4
      %v9417 = vshll.u32 %v9343, 16
      %v9419 = vrot.slane %v9417, 5
      %v9420 = vor.u32 %v9416, %v9419
      %v9421 = vrot.slane %v9420, 4
      %v9423 = vshll.u32 %v9344, 16
      %v9425 = vrot.slane %v9423, 5
      %v9426 = vsel %vm1248, %v9421, %v9425
      %v9427 = vshrl.u32 %v9344, 16
      %v9429 = vrot.slane %v9427, 4
      %v9430 = vor.u32 %v9429, %v9425
      %v9431 = vrot.slane %v9430, 4
      %v9433 = vshll.u32 %v9374, 16
      %v9435 = vrot.slane %v9433, 5
      %v9436 = vsel %vm1248, %v9431, %v9435
      %v9438 = vshrl.u32 %v9345, 16
      %v9440 = vrot.slane %v9438, 4
      %v9441 = vshll.u32 %v9345, 16
      %v9443 = vrot.slane %v9441, 5
      %v9444 = vor.u32 %v9440, %v9443
      %v9445 = vrot.slane %v9444, 4
      %v9447 = vshll.u32 %v9346, 16
      %v9449 = vrot.slane %v9447, 5
      %v9450 = vsel %vm1248, %v9445, %v9449
      %v9451 = vshrl.u32 %v9346, 16
      %v9453 = vrot.slane %v9451, 4
      %v9454 = vor.u32 %v9453, %v9449
      %v9455 = vrot.slane %v9454, 4
      %v9457 = vshll.u32 %v9375, 16
      %v9459 = vrot.slane %v9457, 5
      %v9460 = vsel %vm1248, %v9455, %v9459
      %v9462 = vshrl.u32 %v9347, 16
      %v9464 = vrot.slane %v9462, 4
      %v9465 = vshll.u32 %v9347, 16
      %v9467 = vrot.slane %v9465, 5
      %v9468 = vor.u32 %v9464, %v9467
      %v9469 = vrot.slane %v9468, 4
      %v9471 = vshll.u32 %v9348, 16
      %v9473 = vrot.slane %v9471, 5
      %v9474 = vsel %vm1248, %v9469, %v9473
      %v9475 = vshrl.u32 %v9348, 16
      %v9477 = vrot.slane %v9475, 4
      %v9478 = vor.u32 %v9477, %v9473
      %v9479 = vrot.slane %v9478, 4
      %v9481 = vshll.u32 %v9376, 16
      %v9483 = vrot.slane %v9481, 5
      %v9484 = vsel %vm1248, %v9479, %v9483
      %v9486 = vshrl.u32 %v9349, 16
      %v9488 = vrot.slane %v9486, 4
      %v9489 = vshll.u32 %v9349, 16
      %v9491 = vrot.slane %v9489, 5
      %v9492 = vor.u32 %v9488, %v9491
      %v9493 = vrot.slane %v9492, 4
      %v9495 = vshll.u32 %v9350, 16
      %v9497 = vrot.slane %v9495, 5
      %v9498 = vsel %vm1248, %v9493, %v9497
      %v9499 = vshrl.u32 %v9350, 16
      %v9501 = vrot.slane %v9499, 4
      %v9502 = vor.u32 %v9501, %v9497
      %v9503 = vrot.slane %v9502, 4
      %v9505 = vshll.u32 %v9377, 16
      %v9507 = vrot.slane %v9505, 5
      %v9508 = vsel %vm1248, %v9503, %v9507
      %v9510 = vshrl.u32 %v9351, 16
      %v9512 = vrot.slane %v9510, 4
      %v9513 = vshll.u32 %v9351, 16
      %v9515 = vrot.slane %v9513, 5
      %v9516 = vor.u32 %v9512, %v9515
      %v9517 = vrot.slane %v9516, 4
      %v9519 = vshll.u32 %v9352, 16
      %v9521 = vrot.slane %v9519, 5
      %v9522 = vsel %vm1248, %v9517, %v9521
      %v9523 = vshrl.u32 %v9352, 16
      %v9525 = vrot.slane %v9523, 4
      %v9526 = vor.u32 %v9525, %v9521
      %v9527 = vrot.slane %v9526, 4
      %v9529 = vshll.u32 %v9378, 16
      %v9531 = vrot.slane %v9529, 5
      %v9532 = vsel %vm1248, %v9527, %v9531
      %v9534 = vshrl.u32 %v9353, 16
      %v9536 = vrot.slane %v9534, 4
      %v9537 = vshll.u32 %v9353, 16
      %v9539 = vrot.slane %v9537, 5
      %v9540 = vor.u32 %v9536, %v9539
      %v9541 = vrot.slane %v9540, 4
      %v9543 = vshll.u32 %v9354, 16
      %v9545 = vrot.slane %v9543, 5
      %v9546 = vsel %vm1248, %v9541, %v9545
      %v9547 = vshrl.u32 %v9354, 16
      %v9549 = vrot.slane %v9547, 4
      %v9550 = vor.u32 %v9549, %v9545
      %v9551 = vrot.slane %v9550, 4
      %v9553 = vshll.u32 %v9379, 16
      %v9555 = vrot.slane %v9553, 5
      %v9556 = vsel %vm1248, %v9551, %v9555
      %v9558 = vshrl.u32 %v9355, 16
      %v9560 = vrot.slane %v9558, 4
      %v9561 = vshll.u32 %v9355, 16
      %v9563 = vrot.slane %v9561, 5
      %v9564 = vor.u32 %v9560, %v9563
      %v9565 = vrot.slane %v9564, 4
      %v9567 = vshll.u32 %v9356, 16
      %v9569 = vrot.slane %v9567, 5
      %v9570 = vsel %vm1248, %v9565, %v9569
      %v9571 = vshrl.u32 %v9356, 16
      %v9573 = vrot.slane %v9571, 4
      %v9574 = vor.u32 %v9573, %v9569
      %v9575 = vrot.slane %v9574, 4
      %v9577 = vshll.u32 %v9380, 16
      %v9579 = vrot.slane %v9577, 5
      %v9580 = vsel %vm1248, %v9575, %v9579
      %v9582 = vshrl.u32 %v9357, 16
      %v9584 = vrot.slane %v9582, 4
      %v9585 = vshll.u32 %v9357, 16
      %v9587 = vrot.slane %v9585, 5
      %v9588 = vor.u32 %v9584, %v9587
      %v9589 = vrot.slane %v9588, 4
      %v9591 = vshll.u32 %v9358, 16
      %v9593 = vrot.slane %v9591, 5
      %v9594 = vsel %vm1248, %v9589, %v9593
      %v9595 = vshrl.u32 %v9358, 16
      %v9597 = vrot.slane %v9595, 4
      %v9598 = vor.u32 %v9597, %v9593
      %v9599 = vrot.slane %v9598, 4
      %v9601 = vshll.u32 %v9381, 16
      %v9603 = vrot.slane %v9601, 5
      %v9604 = vsel %vm1248, %v9599, %v9603
      %v9606 = vshrl.u32 %v9359, 16
      %v9608 = vrot.slane %v9606, 4
      %v9609 = vshll.u32 %v9359, 16
      %v9611 = vrot.slane %v9609, 5
      %v9612 = vor.u32 %v9608, %v9611
      %v9613 = vrot.slane %v9612, 4
      %v9615 = vshll.u32 %v9360, 16
      %v9617 = vrot.slane %v9615, 5
      %v9618 = vsel %vm1248, %v9613, %v9617
      %v9619 = vshrl.u32 %v9360, 16
      %v9621 = vrot.slane %v9619, 4
      %v9622 = vor.u32 %v9621, %v9617
      %v9623 = vrot.slane %v9622, 4
      %v9625 = vshll.u32 %v9382, 16
      %v9627 = vrot.slane %v9625, 5
      %v9628 = vsel %vm1248, %v9623, %v9627
      %v9630 = vshrl.u32 %v9361, 16
      %v9632 = vrot.slane %v9630, 4
      %v9633 = vshll.u32 %v9361, 16
      %v9635 = vrot.slane %v9633, 5
      %v9636 = vor.u32 %v9632, %v9635
      %v9637 = vrot.slane %v9636, 4
      %v9639 = vshll.u32 %v9362, 16
      %v9641 = vrot.slane %v9639, 5
      %v9642 = vsel %vm1248, %v9637, %v9641
      %v9643 = vshrl.u32 %v9362, 16
      %v9645 = vrot.slane %v9643, 4
      %v9646 = vor.u32 %v9645, %v9641
      %v9647 = vrot.slane %v9646, 4
      %v9649 = vshll.u32 %v9383, 16
      %v9651 = vrot.slane %v9649, 5
      %v9652 = vsel %vm1248, %v9647, %v9651
      %v9654 = vshrl.u32 %v9363, 16
      %v9656 = vrot.slane %v9654, 4
      %v9657 = vshll.u32 %v9363, 16
      %v9659 = vrot.slane %v9657, 5
      %v9660 = vor.u32 %v9656, %v9659
      %v9661 = vrot.slane %v9660, 4
      %v9663 = vshll.u32 %v9364, 16
      %v9665 = vrot.slane %v9663, 5
      %v9666 = vsel %vm1248, %v9661, %v9665
      %v9667 = vshrl.u32 %v9364, 16
      %v9669 = vrot.slane %v9667, 4
      %v9670 = vor.u32 %v9669, %v9665
      %v9671 = vrot.slane %v9670, 4
      %v9673 = vshll.u32 %v9384, 16
      %v9675 = vrot.slane %v9673, 5
      %v9676 = vsel %vm1248, %v9671, %v9675
      %v9678 = vshrl.u32 %v9365, 16
      %v9680 = vrot.slane %v9678, 4
      %v9681 = vshll.u32 %v9365, 16
      %v9683 = vrot.slane %v9681, 5
      %v9684 = vor.u32 %v9680, %v9683
      %v9685 = vrot.slane %v9684, 4
      %v9687 = vshll.u32 %v9366, 16
      %v9689 = vrot.slane %v9687, 5
      %v9690 = vsel %vm1248, %v9685, %v9689
      %v9691 = vshrl.u32 %v9366, 16
      %v9693 = vrot.slane %v9691, 4
      %v9694 = vor.u32 %v9693, %v9689
      %v9695 = vrot.slane %v9694, 4
      %v9697 = vshll.u32 %v9385, 16
      %v9699 = vrot.slane %v9697, 5
      %v9700 = vsel %vm1248, %v9695, %v9699
      %v9702 = vshrl.u32 %v9367, 16
      %v9704 = vrot.slane %v9702, 4
      %v9705 = vshll.u32 %v9367, 16
      %v9707 = vrot.slane %v9705, 5
      %v9708 = vor.u32 %v9704, %v9707
      %v9709 = vrot.slane %v9708, 4
      %v9711 = vshll.u32 %v9368, 16
      %v9713 = vrot.slane %v9711, 5
      %v9714 = vsel %vm1248, %v9709, %v9713
      %v9715 = vshrl.u32 %v9368, 16
      %v9717 = vrot.slane %v9715, 4
      %v9718 = vor.u32 %v9717, %v9713
      %v9719 = vrot.slane %v9718, 4
      %v9721 = vshll.u32 %v9386, 16
      %v9723 = vrot.slane %v9721, 5
      %v9724 = vsel %vm1248, %v9719, %v9723
      %v9726 = vshrl.u32 %v9369, 16
      %v9728 = vrot.slane %v9726, 4
      %v9729 = vshll.u32 %v9369, 16
      %v9731 = vrot.slane %v9729, 5
      %v9732 = vor.u32 %v9728, %v9731
      %v9733 = vrot.slane %v9732, 4
      %v9735 = vshll.u32 %v9370, 16
      %v9737 = vrot.slane %v9735, 5
      %v9738 = vsel %vm1248, %v9733, %v9737
      %v9739 = vshrl.u32 %v9370, 16
      %v9741 = vrot.slane %v9739, 4
      %v9742 = vor.u32 %v9741, %v9737
      %v9743 = vrot.slane %v9742, 4
      %v9745 = vshll.u32 %v9387, 16
      %v9747 = vrot.slane %v9745, 5
      %v9748 = vsel %vm1248, %v9743, %v9747
      %v9750 = vshrl.u32 %v9371, 16
      %v9752 = vrot.slane %v9750, 4
      %v9753 = vshll.u32 %v9371, 16
      %v9755 = vrot.slane %v9753, 5
      %v9756 = vor.u32 %v9752, %v9755
      %v9757 = vrot.slane %v9756, 4
      %v9759 = vshll.u32 %v9372, 16
      %v9761 = vrot.slane %v9759, 5
      %v9762 = vsel %vm1248, %v9757, %v9761
      %v9763 = vshrl.u32 %v9372, 16
      %v9765 = vrot.slane %v9763, 4
      %v9766 = vor.u32 %v9765, %v9761
      %v9767 = vrot.slane %v9766, 4
      %v9769 = vshll.u32 %v9388, 16
      %v9771 = vrot.slane %v9769, 5
      %v9772 = vsel %vm1248, %v9767, %v9771
      %v9773 = vunpack.c.l.b16 %v5672
      %v9774 = vunpack.c.l.b16 %v5682
      %v9775 = vunpack.c.l.b16 %v5696
      %v9776 = vunpack.c.l.b16 %v5706
      %v9777 = vunpack.c.l.b16 %v5720
      %v9778 = vunpack.c.l.b16 %v5730
      %v9779 = vunpack.c.l.b16 %v5744
      %v9780 = vunpack.c.l.b16 %v5754
      %v9781 = vunpack.c.l.b16 %v5768
      %v9782 = vunpack.c.l.b16 %v5778
      %v9783 = vunpack.c.l.b16 %v5792
      %v9784 = vunpack.c.l.b16 %v5802
      %v9785 = vunpack.c.l.b16 %v5816
      %v9786 = vunpack.c.l.b16 %v5826
      %v9787 = vunpack.c.l.b16 %v5840
      %v9788 = vunpack.c.l.b16 %v5850
      %v9789 = vunpack.c.l.b16 %v5864
      %v9790 = vunpack.c.l.b16 %v5874
      %v9791 = vunpack.c.l.b16 %v5888
      %v9792 = vunpack.c.l.b16 %v5898
      %v9793 = vunpack.c.l.b16 %v5912
      %v9794 = vunpack.c.l.b16 %v5922
      %v9795 = vunpack.c.l.b16 %v5936
      %v9796 = vunpack.c.l.b16 %v5946
      %v9797 = vunpack.c.l.b16 %v5960
      %v9798 = vunpack.c.l.b16 %v5970
      %v9799 = vunpack.c.l.b16 %v5984
      %v9800 = vunpack.c.l.b16 %v5994
      %v9801 = vunpack.c.l.b16 %v6008
      %v9802 = vunpack.c.l.b16 %v6018
      %v9803 = vunpack.c.l.b16 %v6032
      %v9804 = vunpack.c.l.b16 %v6042
      %v9805 = vpack.c.b16 %v9774, %v9773
      %v9806 = vpack.c.b16 %v9776, %v9775
      %v9807 = vpack.c.b16 %v9778, %v9777
      %v9808 = vpack.c.b16 %v9780, %v9779
      %v9809 = vpack.c.b16 %v9782, %v9781
      %v9810 = vpack.c.b16 %v9784, %v9783
      %v9811 = vpack.c.b16 %v9786, %v9785
      %v9812 = vpack.c.b16 %v9788, %v9787
      %v9813 = vpack.c.b16 %v9790, %v9789
      %v9814 = vpack.c.b16 %v9792, %v9791
      %v9815 = vpack.c.b16 %v9794, %v9793
      %v9816 = vpack.c.b16 %v9796, %v9795
      %v9817 = vpack.c.b16 %v9798, %v9797
      %v9818 = vpack.c.b16 %v9800, %v9799
      %v9819 = vpack.c.b16 %v9802, %v9801
      %v9820 = vpack.c.b16 %v9804, %v9803
      %v9821 = vunpack.c.l.b16 %v6110
      %v9822 = vunpack.c.l.b16 %v6113
      %v9823 = vunpack.c.l.b16 %v6117
      %v9824 = vunpack.c.l.b16 %v6120
      %v9825 = vunpack.c.l.b16 %v6124
      %v9826 = vunpack.c.l.b16 %v6127
      %v9827 = vunpack.c.l.b16 %v6131
      %v9828 = vunpack.c.l.b16 %v6134
      %v9829 = vunpack.c.l.b16 %v6138
      %v9830 = vunpack.c.l.b16 %v6141
      %v9831 = vunpack.c.l.b16 %v6145
      %v9832 = vunpack.c.l.b16 %v6148
      %v9833 = vunpack.c.l.b16 %v6152
      %v9834 = vunpack.c.l.b16 %v6155
      %v9835 = vunpack.c.l.b16 %v6159
      %v9836 = vunpack.c.l.b16 %v6162
      %v9837 = vunpack.c.l.b16 %v6166
      %v9838 = vunpack.c.l.b16 %v6169
      %v9839 = vunpack.c.l.b16 %v6173
      %v9840 = vunpack.c.l.b16 %v6176
      %v9841 = vunpack.c.l.b16 %v6180
      %v9842 = vunpack.c.l.b16 %v6183
      %v9843 = vunpack.c.l.b16 %v6187
      %v9844 = vunpack.c.l.b16 %v6190
      %v9845 = vunpack.c.l.b16 %v6194
      %v9846 = vunpack.c.l.b16 %v6197
      %v9847 = vunpack.c.l.b16 %v6201
      %v9848 = vunpack.c.l.b16 %v6204
      %v9849 = vunpack.c.l.b16 %v6208
      %v9850 = vunpack.c.l.b16 %v6211
      %v9851 = vunpack.c.l.b16 %v6215
      %v9852 = vunpack.c.l.b16 %v6218
      %v9853 = vpack.c.b16 %v9822, %v9821
      %v9854 = vpack.c.b16 %v9824, %v9823
      %v9855 = vpack.c.b16 %v9826, %v9825
      %v9856 = vpack.c.b16 %v9828, %v9827
      %v9857 = vpack.c.b16 %v9830, %v9829
      %v9858 = vpack.c.b16 %v9832, %v9831
      %v9859 = vpack.c.b16 %v9834, %v9833
      %v9860 = vpack.c.b16 %v9836, %v9835
      %v9861 = vpack.c.b16 %v9838, %v9837
      %v9862 = vpack.c.b16 %v9840, %v9839
      %v9863 = vpack.c.b16 %v9842, %v9841
      %v9864 = vpack.c.b16 %v9844, %v9843
      %v9865 = vpack.c.b16 %v9846, %v9845
      %v9866 = vpack.c.b16 %v9848, %v9847
      %v9867 = vpack.c.b16 %v9850, %v9849
      %v9868 = vpack.c.b16 %v9852, %v9851
      %9869 = vrot.lane.b32.xlu0 %v9853, 8
      %v9870 = vpop.permute.xlu0 %9869
      %9871 = vrot.lane.b32.xlu0 %v9854, 8
      %v9872 = vpop.permute.xlu0 %9871
      %9873 = vrot.lane.b32.xlu0 %v9855, 8
      %v9874 = vpop.permute.xlu0 %9873
      %9875 = vrot.lane.b32.xlu0 %v9856, 8
      %v9876 = vpop.permute.xlu0 %9875
      %9877 = vrot.lane.b32.xlu0 %v9857, 8
      %v9878 = vpop.permute.xlu0 %9877
      %9879 = vrot.lane.b32.xlu0 %v9858, 8
      %v9880 = vpop.permute.xlu0 %9879
      %9881 = vrot.lane.b32.xlu0 %v9859, 8
      %v9882 = vpop.permute.xlu0 %9881
      %9883 = vrot.lane.b32.xlu0 %v9860, 8
      %v9884 = vpop.permute.xlu0 %9883
      %9885 = vrot.lane.b32.xlu0 %v9861, 8
      %v9886 = vpop.permute.xlu0 %9885
      %9887 = vrot.lane.b32.xlu0 %v9862, 8
      %v9888 = vpop.permute.xlu0 %9887
      %9889 = vrot.lane.b32.xlu0 %v9863, 8
      %v9890 = vpop.permute.xlu0 %9889
      %9891 = vrot.lane.b32.xlu0 %v9864, 8
      %v9892 = vpop.permute.xlu0 %9891
      %9893 = vrot.lane.b32.xlu0 %v9865, 8
      %v9894 = vpop.permute.xlu0 %9893
      %9895 = vrot.lane.b32.xlu0 %v9866, 8
      %v9896 = vpop.permute.xlu0 %9895
      %9897 = vrot.lane.b32.xlu0 %v9867, 8
      %v9898 = vpop.permute.xlu0 %9897
      %9899 = vrot.lane.b32.xlu0 %v9868, 8
      %v9900 = vpop.permute.xlu0 %9899
      %v9933 = vunpack.c.l.b16 %v6219
      %v9934 = vunpack.c.l.b16 %v6220
      %v9935 = vunpack.c.l.b16 %v6221
      %v9936 = vunpack.c.l.b16 %v6222
      %v9937 = vunpack.c.l.b16 %v6223
      %v9938 = vunpack.c.l.b16 %v6224
      %v9939 = vunpack.c.l.b16 %v6225
      %v9940 = vunpack.c.l.b16 %v6226
      %v9941 = vunpack.c.l.b16 %v6227
      %v9942 = vunpack.c.l.b16 %v6228
      %v9943 = vunpack.c.l.b16 %v6229
      %v9944 = vunpack.c.l.b16 %v6230
      %v9945 = vunpack.c.l.b16 %v6231
      %v9946 = vunpack.c.l.b16 %v6232
      %v9947 = vunpack.c.l.b16 %v6233
      %v9948 = vunpack.c.l.b16 %v6234
      %v9949 = vunpack.c.l.b16 %v6235
      %v9950 = vunpack.c.l.b16 %v6236
      %v9951 = vunpack.c.l.b16 %v6237
      %v9952 = vunpack.c.l.b16 %v6238
      %v9953 = vunpack.c.l.b16 %v6239
      %v9954 = vunpack.c.l.b16 %v6240
      %v9955 = vunpack.c.l.b16 %v6241
      %v9956 = vunpack.c.l.b16 %v6242
      %v9957 = vunpack.c.l.b16 %v6243
      %v9958 = vunpack.c.l.b16 %v6244
      %v9959 = vunpack.c.l.b16 %v6245
      %v9960 = vunpack.c.l.b16 %v6246
      %v9961 = vunpack.c.l.b16 %v6247
      %v9962 = vunpack.c.l.b16 %v6248
      %v9963 = vunpack.c.l.b16 %v6249
      %v9964 = vunpack.c.l.b16 %v6250
      %v9965 = vpack.c.b16 %v9934, %v9933
      %v9966 = vpack.c.b16 %v9936, %v9935
      %v9967 = vpack.c.b16 %v9938, %v9937
      %v9968 = vpack.c.b16 %v9940, %v9939
      %v9969 = vpack.c.b16 %v9942, %v9941
      %v9970 = vpack.c.b16 %v9944, %v9943
      %v9971 = vpack.c.b16 %v9946, %v9945
      %v9972 = vpack.c.b16 %v9948, %v9947
      %v9973 = vpack.c.b16 %v9950, %v9949
      %v9974 = vpack.c.b16 %v9952, %v9951
      %v9975 = vpack.c.b16 %v9954, %v9953
      %v9976 = vpack.c.b16 %v9956, %v9955
      %v9977 = vpack.c.b16 %v9958, %v9957
      %v9978 = vpack.c.b16 %v9960, %v9959
      %v9979 = vpack.c.b16 %v9962, %v9961
      %v9980 = vpack.c.b16 %v9964, %v9963
      %9981 = vrot.lane.b32.xlu0 %v9965, 16
      %v9982 = vpop.permute.xlu0 %9981
      %9983 = vrot.lane.b32.xlu0 %v9966, 16
      %v9984 = vpop.permute.xlu0 %9983
      %9985 = vrot.lane.b32.xlu0 %v9967, 16
      %v9986 = vpop.permute.xlu0 %9985
      %9987 = vrot.lane.b32.xlu0 %v9968, 16
      %v9988 = vpop.permute.xlu0 %9987
      %9989 = vrot.lane.b32.xlu0 %v9969, 16
      %v9990 = vpop.permute.xlu0 %9989
      %9991 = vrot.lane.b32.xlu0 %v9970, 16
      %v9992 = vpop.permute.xlu0 %9991
      %9993 = vrot.lane.b32.xlu0 %v9971, 16
      %v9994 = vpop.permute.xlu0 %9993
      %9995 = vrot.lane.b32.xlu0 %v9972, 16
      %v9996 = vpop.permute.xlu0 %9995
      %9997 = vrot.lane.b32.xlu0 %v9973, 16
      %v9998 = vpop.permute.xlu0 %9997
      %9999 = vrot.lane.b32.xlu0 %v9974, 16
      %v10000 = vpop.permute.xlu0 %9999
      %10001 = vrot.lane.b32.xlu0 %v9975, 16
      %v10002 = vpop.permute.xlu0 %10001
      %10003 = vrot.lane.b32.xlu0 %v9976, 16
      %v10004 = vpop.permute.xlu0 %10003
      %10005 = vrot.lane.b32.xlu0 %v9977, 16
      %v10006 = vpop.permute.xlu0 %10005
      %10007 = vrot.lane.b32.xlu0 %v9978, 16
      %v10008 = vpop.permute.xlu0 %10007
      %10009 = vrot.lane.b32.xlu0 %v9979, 16
      %v10010 = vpop.permute.xlu0 %10009
      %10011 = vrot.lane.b32.xlu0 %v9980, 16
      %v10012 = vpop.permute.xlu0 %10011
      %v10013 = vunpack.c.l.b16 %v6280
      %v10014 = vunpack.c.l.b16 %v6290
      %v10015 = vunpack.c.l.b16 %v6304
      %v10016 = vunpack.c.l.b16 %v6314
      %v10017 = vunpack.c.l.b16 %v6328
      %v10018 = vunpack.c.l.b16 %v6338
      %v10019 = vunpack.c.l.b16 %v6352
      %v10020 = vunpack.c.l.b16 %v6362
      %v10021 = vunpack.c.l.b16 %v6376
      %v10022 = vunpack.c.l.b16 %v6386
      %v10023 = vunpack.c.l.b16 %v6400
      %v10024 = vunpack.c.l.b16 %v6410
      %v10025 = vunpack.c.l.b16 %v6424
      %v10026 = vunpack.c.l.b16 %v6434
      %v10027 = vunpack.c.l.b16 %v6448
      %v10028 = vunpack.c.l.b16 %v6458
      %v10029 = vunpack.c.l.b16 %v6472
      %v10030 = vunpack.c.l.b16 %v6482
      %v10031 = vunpack.c.l.b16 %v6496
      %v10032 = vunpack.c.l.b16 %v6506
      %v10033 = vunpack.c.l.b16 %v6520
      %v10034 = vunpack.c.l.b16 %v6530
      %v10035 = vunpack.c.l.b16 %v6544
      %v10036 = vunpack.c.l.b16 %v6554
      %v10037 = vunpack.c.l.b16 %v6568
      %v10038 = vunpack.c.l.b16 %v6578
      %v10039 = vunpack.c.l.b16 %v6592
      %v10040 = vunpack.c.l.b16 %v6602
      %v10041 = vunpack.c.l.b16 %v6616
      %v10042 = vunpack.c.l.b16 %v6626
      %v10043 = vunpack.c.l.b16 %v6640
      %v10044 = vunpack.c.l.b16 %v6650
      %v10045 = vpack.c.b16 %v10014, %v10013
      %v10046 = vpack.c.b16 %v10016, %v10015
      %v10047 = vpack.c.b16 %v10018, %v10017
      %v10048 = vpack.c.b16 %v10020, %v10019
      %v10049 = vpack.c.b16 %v10022, %v10021
      %v10050 = vpack.c.b16 %v10024, %v10023
      %v10051 = vpack.c.b16 %v10026, %v10025
      %v10052 = vpack.c.b16 %v10028, %v10027
      %v10053 = vpack.c.b16 %v10030, %v10029
      %v10054 = vpack.c.b16 %v10032, %v10031
      %v10055 = vpack.c.b16 %v10034, %v10033
      %v10056 = vpack.c.b16 %v10036, %v10035
      %v10057 = vpack.c.b16 %v10038, %v10037
      %v10058 = vpack.c.b16 %v10040, %v10039
      %v10059 = vpack.c.b16 %v10042, %v10041
      %v10060 = vpack.c.b16 %v10044, %v10043
      %10061 = vrot.lane.b32.xlu0 %v10045, 24
      %v10062 = vpop.permute.xlu0 %10061
      %10063 = vrot.lane.b32.xlu0 %v10046, 24
      %v10064 = vpop.permute.xlu0 %10063
      %10065 = vrot.lane.b32.xlu0 %v10047, 24
      %v10066 = vpop.permute.xlu0 %10065
      %10067 = vrot.lane.b32.xlu0 %v10048, 24
      %v10068 = vpop.permute.xlu0 %10067
      %10069 = vrot.lane.b32.xlu0 %v10049, 24
      %v10070 = vpop.permute.xlu0 %10069
      %10071 = vrot.lane.b32.xlu0 %v10050, 24
      %v10072 = vpop.permute.xlu0 %10071
      %10073 = vrot.lane.b32.xlu0 %v10051, 24
      %v10074 = vpop.permute.xlu0 %10073
      %10075 = vrot.lane.b32.xlu0 %v10052, 24
      %v10076 = vpop.permute.xlu0 %10075
      %10077 = vrot.lane.b32.xlu0 %v10053, 24
      %v10078 = vpop.permute.xlu0 %10077
      %10079 = vrot.lane.b32.xlu0 %v10054, 24
      %v10080 = vpop.permute.xlu0 %10079
      %10081 = vrot.lane.b32.xlu0 %v10055, 24
      %v10082 = vpop.permute.xlu0 %10081
      %10083 = vrot.lane.b32.xlu0 %v10056, 24
      %v10084 = vpop.permute.xlu0 %10083
      %10085 = vrot.lane.b32.xlu0 %v10057, 24
      %v10086 = vpop.permute.xlu0 %10085
      %10087 = vrot.lane.b32.xlu0 %v10058, 24
      %v10088 = vpop.permute.xlu0 %10087
      %10089 = vrot.lane.b32.xlu0 %v10059, 24
      %v10090 = vpop.permute.xlu0 %10089
      %10091 = vrot.lane.b32.xlu0 %v10060, 24
      %v10092 = vpop.permute.xlu0 %10091
      %v10093 = vunpack.c.l.b16 %v6713
      %v10094 = vunpack.c.l.b16 %v6723
      %v10095 = vunpack.c.l.b16 %v6737
      %v10096 = vunpack.c.l.b16 %v6747
      %v10097 = vunpack.c.l.b16 %v6761
      %v10098 = vunpack.c.l.b16 %v6771
      %v10099 = vunpack.c.l.b16 %v6785
      %v10100 = vunpack.c.l.b16 %v6795
      %v10101 = vunpack.c.l.b16 %v6809
      %v10102 = vunpack.c.l.b16 %v6819
      %v10103 = vunpack.c.l.b16 %v6833
      %v10104 = vunpack.c.l.b16 %v6843
      %v10105 = vunpack.c.l.b16 %v6857
      %v10106 = vunpack.c.l.b16 %v6867
      %v10107 = vunpack.c.l.b16 %v6881
      %v10108 = vunpack.c.l.b16 %v6891
      %v10109 = vunpack.c.l.b16 %v6905
      %v10110 = vunpack.c.l.b16 %v6915
      %v10111 = vunpack.c.l.b16 %v6929
      %v10112 = vunpack.c.l.b16 %v6939
      %v10113 = vunpack.c.l.b16 %v6953
      %v10114 = vunpack.c.l.b16 %v6963
      %v10115 = vunpack.c.l.b16 %v6977
      %v10116 = vunpack.c.l.b16 %v6987
      %v10117 = vunpack.c.l.b16 %v7001
      %v10118 = vunpack.c.l.b16 %v7011
      %v10119 = vunpack.c.l.b16 %v7025
      %v10120 = vunpack.c.l.b16 %v7035
      %v10121 = vunpack.c.l.b16 %v7049
      %v10122 = vunpack.c.l.b16 %v7059
      %v10123 = vunpack.c.l.b16 %v7073
      %v10124 = vunpack.c.l.b16 %v7083
      %v10125 = vpack.c.b16 %v10094, %v10093
      %v10126 = vpack.c.b16 %v10096, %v10095
      %v10127 = vpack.c.b16 %v10098, %v10097
      %v10128 = vpack.c.b16 %v10100, %v10099
      %v10129 = vpack.c.b16 %v10102, %v10101
      %v10130 = vpack.c.b16 %v10104, %v10103
      %v10131 = vpack.c.b16 %v10106, %v10105
      %v10132 = vpack.c.b16 %v10108, %v10107
      %v10133 = vpack.c.b16 %v10110, %v10109
      %v10134 = vpack.c.b16 %v10112, %v10111
      %v10135 = vpack.c.b16 %v10114, %v10113
      %v10136 = vpack.c.b16 %v10116, %v10115
      %v10137 = vpack.c.b16 %v10118, %v10117
      %v10138 = vpack.c.b16 %v10120, %v10119
      %v10139 = vpack.c.b16 %v10122, %v10121
      %v10140 = vpack.c.b16 %v10124, %v10123
      %10141 = vrot.lane.b32.xlu0 %v10125, 32
      %v10142 = vpop.permute.xlu0 %10141
      %10143 = vrot.lane.b32.xlu0 %v10126, 32
      %v10144 = vpop.permute.xlu0 %10143
      %10145 = vrot.lane.b32.xlu0 %v10127, 32
      %v10146 = vpop.permute.xlu0 %10145
      %10147 = vrot.lane.b32.xlu0 %v10128, 32
      %v10148 = vpop.permute.xlu0 %10147
      %10149 = vrot.lane.b32.xlu0 %v10129, 32
      %v10150 = vpop.permute.xlu0 %10149
      %10151 = vrot.lane.b32.xlu0 %v10130, 32
      %v10152 = vpop.permute.xlu0 %10151
      %10153 = vrot.lane.b32.xlu0 %v10131, 32
      %v10154 = vpop.permute.xlu0 %10153
      %10155 = vrot.lane.b32.xlu0 %v10132, 32
      %v10156 = vpop.permute.xlu0 %10155
      %10157 = vrot.lane.b32.xlu0 %v10133, 32
      %v10158 = vpop.permute.xlu0 %10157
      %10159 = vrot.lane.b32.xlu0 %v10134, 32
      %v10160 = vpop.permute.xlu0 %10159
      %10161 = vrot.lane.b32.xlu0 %v10135, 32
      %v10162 = vpop.permute.xlu0 %10161
      %10163 = vrot.lane.b32.xlu0 %v10136, 32
      %v10164 = vpop.permute.xlu0 %10163
      %10165 = vrot.lane.b32.xlu0 %v10137, 32
      %v10166 = vpop.permute.xlu0 %10165
      %10167 = vrot.lane.b32.xlu0 %v10138, 32
      %v10168 = vpop.permute.xlu0 %10167
      %10169 = vrot.lane.b32.xlu0 %v10139, 32
      %v10170 = vpop.permute.xlu0 %10169
      %10171 = vrot.lane.b32.xlu0 %v10140, 32
      %v10172 = vpop.permute.xlu0 %10171
      %v10173 = vunpack.c.l.b16 %v7151
      %v10174 = vunpack.c.l.b16 %v7154
      %v10175 = vunpack.c.l.b16 %v7158
      %v10176 = vunpack.c.l.b16 %v7161
      %v10177 = vunpack.c.l.b16 %v7165
      %v10178 = vunpack.c.l.b16 %v7168
      %v10179 = vunpack.c.l.b16 %v7172
      %v10180 = vunpack.c.l.b16 %v7175
      %v10181 = vunpack.c.l.b16 %v7179
      %v10182 = vunpack.c.l.b16 %v7182
      %v10183 = vunpack.c.l.b16 %v7186
      %v10184 = vunpack.c.l.b16 %v7189
      %v10185 = vunpack.c.l.b16 %v7193
      %v10186 = vunpack.c.l.b16 %v7196
      %v10187 = vunpack.c.l.b16 %v7200
      %v10188 = vunpack.c.l.b16 %v7203
      %v10189 = vunpack.c.l.b16 %v7207
      %v10190 = vunpack.c.l.b16 %v7210
      %v10191 = vunpack.c.l.b16 %v7214
      %v10192 = vunpack.c.l.b16 %v7217
      %v10193 = vunpack.c.l.b16 %v7221
      %v10194 = vunpack.c.l.b16 %v7224
      %v10195 = vunpack.c.l.b16 %v7228
      %v10196 = vunpack.c.l.b16 %v7231
      %v10197 = vunpack.c.l.b16 %v7235
      %v10198 = vunpack.c.l.b16 %v7238
      %v10199 = vunpack.c.l.b16 %v7242
      %v10200 = vunpack.c.l.b16 %v7245
      %v10201 = vunpack.c.l.b16 %v7249
      %v10202 = vunpack.c.l.b16 %v7252
      %v10203 = vunpack.c.l.b16 %v7256
      %v10204 = vunpack.c.l.b16 %v7259
      %v10205 = vpack.c.b16 %v10174, %v10173
      %v10206 = vpack.c.b16 %v10176, %v10175
      %v10207 = vpack.c.b16 %v10178, %v10177
      %v10208 = vpack.c.b16 %v10180, %v10179
      %v10209 = vpack.c.b16 %v10182, %v10181
      %v10210 = vpack.c.b16 %v10184, %v10183
      %v10211 = vpack.c.b16 %v10186, %v10185
      %v10212 = vpack.c.b16 %v10188, %v10187
      %v10213 = vpack.c.b16 %v10190, %v10189
      %v10214 = vpack.c.b16 %v10192, %v10191
      %v10215 = vpack.c.b16 %v10194, %v10193
      %v10216 = vpack.c.b16 %v10196, %v10195
      %v10217 = vpack.c.b16 %v10198, %v10197
      %v10218 = vpack.c.b16 %v10200, %v10199
      %v10219 = vpack.c.b16 %v10202, %v10201
      %v10220 = vpack.c.b16 %v10204, %v10203
      %10221 = vrot.lane.b32.xlu0 %v10205, 40
      %v10222 = vpop.permute.xlu0 %10221
      %10223 = vrot.lane.b32.xlu0 %v10206, 40
      %v10224 = vpop.permute.xlu0 %10223
      %10225 = vrot.lane.b32.xlu0 %v10207, 40
      %v10226 = vpop.permute.xlu0 %10225
      %10227 = vrot.lane.b32.xlu0 %v10208, 40
      %v10228 = vpop.permute.xlu0 %10227
      %10229 = vrot.lane.b32.xlu0 %v10209, 40
      %v10230 = vpop.permute.xlu0 %10229
      %10231 = vrot.lane.b32.xlu0 %v10210, 40
      %v10232 = vpop.permute.xlu0 %10231
      %10233 = vrot.lane.b32.xlu0 %v10211, 40
      %v10234 = vpop.permute.xlu0 %10233
      %10235 = vrot.lane.b32.xlu0 %v10212, 40
      %v10236 = vpop.permute.xlu0 %10235
      %10237 = vrot.lane.b32.xlu0 %v10213, 40
      %v10238 = vpop.permute.xlu0 %10237
      %10239 = vrot.lane.b32.xlu0 %v10214, 40
      %v10240 = vpop.permute.xlu0 %10239
      %10241 = vrot.lane.b32.xlu0 %v10215, 40
      %v10242 = vpop.permute.xlu0 %10241
      %10243 = vrot.lane.b32.xlu0 %v10216, 40
      %v10244 = vpop.permute.xlu0 %10243
      %10245 = vrot.lane.b32.xlu0 %v10217, 40
      %v10246 = vpop.permute.xlu0 %10245
      %10247 = vrot.lane.b32.xlu0 %v10218, 40
      %v10248 = vpop.permute.xlu0 %10247
      %10249 = vrot.lane.b32.xlu0 %v10219, 40
      %v10250 = vpop.permute.xlu0 %10249
      %10251 = vrot.lane.b32.xlu0 %v10220, 40
      %v10252 = vpop.permute.xlu0 %10251
      %v10285 = vunpack.c.l.b16 %v7261
      %v10286 = vunpack.c.l.b16 %v7262
      %v10287 = vunpack.c.l.b16 %v7263
      %v10288 = vunpack.c.l.b16 %v7264
      %v10289 = vunpack.c.l.b16 %v7265
      %v10290 = vunpack.c.l.b16 %v7266
      %v10291 = vunpack.c.l.b16 %v7267
      %v10292 = vunpack.c.l.b16 %v7268
      %v10293 = vunpack.c.l.b16 %v7269
      %v10294 = vunpack.c.l.b16 %v7270
      %v10295 = vunpack.c.l.b16 %v7271
      %v10296 = vunpack.c.l.b16 %v7272
      %v10297 = vunpack.c.l.b16 %v7273
      %v10298 = vunpack.c.l.b16 %v7274
      %v10299 = vunpack.c.l.b16 %v7275
      %v10300 = vunpack.c.l.b16 %v7276
      %v10301 = vunpack.c.l.b16 %v7277
      %v10302 = vunpack.c.l.b16 %v7278
      %v10303 = vunpack.c.l.b16 %v7279
      %v10304 = vunpack.c.l.b16 %v7280
      %v10305 = vunpack.c.l.b16 %v7281
      %v10306 = vunpack.c.l.b16 %v7282
      %v10307 = vunpack.c.l.b16 %v7283
      %v10308 = vunpack.c.l.b16 %v7284
      %v10309 = vunpack.c.l.b16 %v7285
      %v10310 = vunpack.c.l.b16 %v7286
      %v10311 = vunpack.c.l.b16 %v7287
      %v10312 = vunpack.c.l.b16 %v7288
      %v10313 = vunpack.c.l.b16 %v7289
      %v10314 = vunpack.c.l.b16 %v7290
      %v10315 = vunpack.c.l.b16 %v7291
      %v10316 = vunpack.c.l.b16 %v7292
      %v10317 = vpack.c.b16 %v10286, %v10285
      %v10318 = vpack.c.b16 %v10288, %v10287
      %v10319 = vpack.c.b16 %v10290, %v10289
      %v10320 = vpack.c.b16 %v10292, %v10291
      %v10321 = vpack.c.b16 %v10294, %v10293
      %v10322 = vpack.c.b16 %v10296, %v10295
      %v10323 = vpack.c.b16 %v10298, %v10297
      %v10324 = vpack.c.b16 %v10300, %v10299
      %v10325 = vpack.c.b16 %v10302, %v10301
      %v10326 = vpack.c.b16 %v10304, %v10303
      %v10327 = vpack.c.b16 %v10306, %v10305
      %v10328 = vpack.c.b16 %v10308, %v10307
      %v10329 = vpack.c.b16 %v10310, %v10309
      %v10330 = vpack.c.b16 %v10312, %v10311
      %v10331 = vpack.c.b16 %v10314, %v10313
      %v10332 = vpack.c.b16 %v10316, %v10315
      %10333 = vrot.lane.b32.xlu0 %v10317, 48
      %v10334 = vpop.permute.xlu0 %10333
      %10335 = vrot.lane.b32.xlu0 %v10318, 48
      %v10336 = vpop.permute.xlu0 %10335
      %10337 = vrot.lane.b32.xlu0 %v10319, 48
      %v10338 = vpop.permute.xlu0 %10337
      %10339 = vrot.lane.b32.xlu0 %v10320, 48
      %v10340 = vpop.permute.xlu0 %10339
      %10341 = vrot.lane.b32.xlu0 %v10321, 48
      %v10342 = vpop.permute.xlu0 %10341
      %10343 = vrot.lane.b32.xlu0 %v10322, 48
      %v10344 = vpop.permute.xlu0 %10343
      %10345 = vrot.lane.b32.xlu0 %v10323, 48
      %v10346 = vpop.permute.xlu0 %10345
      %10347 = vrot.lane.b32.xlu0 %v10324, 48
      %v10348 = vpop.permute.xlu0 %10347
      %10349 = vrot.lane.b32.xlu0 %v10325, 48
      %v10350 = vpop.permute.xlu0 %10349
      %10351 = vrot.lane.b32.xlu0 %v10326, 48
      %v10352 = vpop.permute.xlu0 %10351
      %10353 = vrot.lane.b32.xlu0 %v10327, 48
      %v10354 = vpop.permute.xlu0 %10353
      %10355 = vrot.lane.b32.xlu0 %v10328, 48
      %v10356 = vpop.permute.xlu0 %10355
      %10357 = vrot.lane.b32.xlu0 %v10329, 48
      %v10358 = vpop.permute.xlu0 %10357
      %10359 = vrot.lane.b32.xlu0 %v10330, 48
      %v10360 = vpop.permute.xlu0 %10359
      %10361 = vrot.lane.b32.xlu0 %v10331, 48
      %v10362 = vpop.permute.xlu0 %10361
      %10363 = vrot.lane.b32.xlu0 %v10332, 48
      %v10364 = vpop.permute.xlu0 %10363
      %v10365 = vunpack.c.l.b16 %v7322
      %v10366 = vunpack.c.l.b16 %v7332
      %v10367 = vunpack.c.l.b16 %v7346
      %v10368 = vunpack.c.l.b16 %v7356
      %v10369 = vunpack.c.l.b16 %v7370
      %v10370 = vunpack.c.l.b16 %v7380
      %v10371 = vunpack.c.l.b16 %v7394
      %v10372 = vunpack.c.l.b16 %v7404
      %v10373 = vunpack.c.l.b16 %v7418
      %v10374 = vunpack.c.l.b16 %v7428
      %v10375 = vunpack.c.l.b16 %v7442
      %v10376 = vunpack.c.l.b16 %v7452
      %v10377 = vunpack.c.l.b16 %v7466
      %v10378 = vunpack.c.l.b16 %v7476
      %v10379 = vunpack.c.l.b16 %v7490
      %v10380 = vunpack.c.l.b16 %v7500
      %v10381 = vunpack.c.l.b16 %v7514
      %v10382 = vunpack.c.l.b16 %v7524
      %v10383 = vunpack.c.l.b16 %v7538
      %v10384 = vunpack.c.l.b16 %v7548
      %v10385 = vunpack.c.l.b16 %v7562
      %v10386 = vunpack.c.l.b16 %v7572
      %v10387 = vunpack.c.l.b16 %v7586
      %v10388 = vunpack.c.l.b16 %v7596
      %v10389 = vunpack.c.l.b16 %v7610
      %v10390 = vunpack.c.l.b16 %v7620
      %v10391 = vunpack.c.l.b16 %v7634
      %v10392 = vunpack.c.l.b16 %v7644
      %v10393 = vunpack.c.l.b16 %v7658
      %v10394 = vunpack.c.l.b16 %v7668
      %v10395 = vunpack.c.l.b16 %v7682
      %v10396 = vunpack.c.l.b16 %v7692
      %v10397 = vpack.c.b16 %v10366, %v10365
      %v10398 = vpack.c.b16 %v10368, %v10367
      %v10399 = vpack.c.b16 %v10370, %v10369
      %v10400 = vpack.c.b16 %v10372, %v10371
      %v10401 = vpack.c.b16 %v10374, %v10373
      %v10402 = vpack.c.b16 %v10376, %v10375
      %v10403 = vpack.c.b16 %v10378, %v10377
      %v10404 = vpack.c.b16 %v10380, %v10379
      %v10405 = vpack.c.b16 %v10382, %v10381
      %v10406 = vpack.c.b16 %v10384, %v10383
      %v10407 = vpack.c.b16 %v10386, %v10385
      %v10408 = vpack.c.b16 %v10388, %v10387
      %v10409 = vpack.c.b16 %v10390, %v10389
      %v10410 = vpack.c.b16 %v10392, %v10391
      %v10411 = vpack.c.b16 %v10394, %v10393
      %v10412 = vpack.c.b16 %v10396, %v10395
      %10413 = vrot.lane.b32.xlu0 %v10397, 56
      %v10414 = vpop.permute.xlu0 %10413
      %10415 = vrot.lane.b32.xlu0 %v10398, 56
      %v10416 = vpop.permute.xlu0 %10415
      %10417 = vrot.lane.b32.xlu0 %v10399, 56
      %v10418 = vpop.permute.xlu0 %10417
      %10419 = vrot.lane.b32.xlu0 %v10400, 56
      %v10420 = vpop.permute.xlu0 %10419
      %10421 = vrot.lane.b32.xlu0 %v10401, 56
      %v10422 = vpop.permute.xlu0 %10421
      %10423 = vrot.lane.b32.xlu0 %v10402, 56
      %v10424 = vpop.permute.xlu0 %10423
      %10425 = vrot.lane.b32.xlu0 %v10403, 56
      %v10426 = vpop.permute.xlu0 %10425
      %10427 = vrot.lane.b32.xlu0 %v10404, 56
      %v10428 = vpop.permute.xlu0 %10427
      %10429 = vrot.lane.b32.xlu0 %v10405, 56
      %v10430 = vpop.permute.xlu0 %10429
      %10431 = vrot.lane.b32.xlu0 %v10406, 56
      %v10432 = vpop.permute.xlu0 %10431
      %10433 = vrot.lane.b32.xlu0 %v10407, 56
      %v10434 = vpop.permute.xlu0 %10433
      %10435 = vrot.lane.b32.xlu0 %v10408, 56
      %v10436 = vpop.permute.xlu0 %10435
      %10437 = vrot.lane.b32.xlu0 %v10409, 56
      %v10438 = vpop.permute.xlu0 %10437
      %10439 = vrot.lane.b32.xlu0 %v10410, 56
      %v10440 = vpop.permute.xlu0 %10439
      %10441 = vrot.lane.b32.xlu0 %v10411, 56
      %v10442 = vpop.permute.xlu0 %10441
      %10443 = vrot.lane.b32.xlu0 %v10412, 56
      %v10444 = vpop.permute.xlu0 %10443
      %v10445 = vunpack.c.l.b16 %v7754
      %v10446 = vunpack.c.l.b16 %v7764
      %v10447 = vunpack.c.l.b16 %v7778
      %v10448 = vunpack.c.l.b16 %v7788
      %v10449 = vunpack.c.l.b16 %v7802
      %v10450 = vunpack.c.l.b16 %v7812
      %v10451 = vunpack.c.l.b16 %v7826
      %v10452 = vunpack.c.l.b16 %v7836
      %v10453 = vunpack.c.l.b16 %v7850
      %v10454 = vunpack.c.l.b16 %v7860
      %v10455 = vunpack.c.l.b16 %v7874
      %v10456 = vunpack.c.l.b16 %v7884
      %v10457 = vunpack.c.l.b16 %v7898
      %v10458 = vunpack.c.l.b16 %v7908
      %v10459 = vunpack.c.l.b16 %v7922
      %v10460 = vunpack.c.l.b16 %v7932
      %v10461 = vunpack.c.l.b16 %v7946
      %v10462 = vunpack.c.l.b16 %v7956
      %v10463 = vunpack.c.l.b16 %v7970
      %v10464 = vunpack.c.l.b16 %v7980
      %v10465 = vunpack.c.l.b16 %v7994
      %v10466 = vunpack.c.l.b16 %v8004
      %v10467 = vunpack.c.l.b16 %v8018
      %v10468 = vunpack.c.l.b16 %v8028
      %v10469 = vunpack.c.l.b16 %v8042
      %v10470 = vunpack.c.l.b16 %v8052
      %v10471 = vunpack.c.l.b16 %v8066
      %v10472 = vunpack.c.l.b16 %v8076
      %v10473 = vunpack.c.l.b16 %v8090
      %v10474 = vunpack.c.l.b16 %v8100
      %v10475 = vunpack.c.l.b16 %v8114
      %v10476 = vunpack.c.l.b16 %v8124
      %v10477 = vpack.c.b16 %v10446, %v10445
      %v10478 = vpack.c.b16 %v10448, %v10447
      %v10479 = vpack.c.b16 %v10450, %v10449
      %v10480 = vpack.c.b16 %v10452, %v10451
      %v10481 = vpack.c.b16 %v10454, %v10453
      %v10482 = vpack.c.b16 %v10456, %v10455
      %v10483 = vpack.c.b16 %v10458, %v10457
      %v10484 = vpack.c.b16 %v10460, %v10459
      %v10485 = vpack.c.b16 %v10462, %v10461
      %v10486 = vpack.c.b16 %v10464, %v10463
      %v10487 = vpack.c.b16 %v10466, %v10465
      %v10488 = vpack.c.b16 %v10468, %v10467
      %v10489 = vpack.c.b16 %v10470, %v10469
      %v10490 = vpack.c.b16 %v10472, %v10471
      %v10491 = vpack.c.b16 %v10474, %v10473
      %v10492 = vpack.c.b16 %v10476, %v10475
      %10493 = vrot.lane.b32.xlu0 %v10477, 64
      %v10494 = vpop.permute.xlu0 %10493
      %10495 = vrot.lane.b32.xlu0 %v10478, 64
      %v10496 = vpop.permute.xlu0 %10495
      %10497 = vrot.lane.b32.xlu0 %v10479, 64
      %v10498 = vpop.permute.xlu0 %10497
      %10499 = vrot.lane.b32.xlu0 %v10480, 64
      %v10500 = vpop.permute.xlu0 %10499
      %10501 = vrot.lane.b32.xlu0 %v10481, 64
      %v10502 = vpop.permute.xlu0 %10501
      %10503 = vrot.lane.b32.xlu0 %v10482, 64
      %v10504 = vpop.permute.xlu0 %10503
      %10505 = vrot.lane.b32.xlu0 %v10483, 64
      %v10506 = vpop.permute.xlu0 %10505
      %10507 = vrot.lane.b32.xlu0 %v10484, 64
      %v10508 = vpop.permute.xlu0 %10507
      %10509 = vrot.lane.b32.xlu0 %v10485, 64
      %v10510 = vpop.permute.xlu0 %10509
      %10511 = vrot.lane.b32.xlu0 %v10486, 64
      %v10512 = vpop.permute.xlu0 %10511
      %10513 = vrot.lane.b32.xlu0 %v10487, 64
      %v10514 = vpop.permute.xlu0 %10513
      %10515 = vrot.lane.b32.xlu0 %v10488, 64
      %v10516 = vpop.permute.xlu0 %10515
      %10517 = vrot.lane.b32.xlu0 %v10489, 64
      %v10518 = vpop.permute.xlu0 %10517
      %10519 = vrot.lane.b32.xlu0 %v10490, 64
      %v10520 = vpop.permute.xlu0 %10519
      %10521 = vrot.lane.b32.xlu0 %v10491, 64
      %v10522 = vpop.permute.xlu0 %10521
      %10523 = vrot.lane.b32.xlu0 %v10492, 64
      %v10524 = vpop.permute.xlu0 %10523
      %v10525 = vunpack.c.l.b16 %v8192
      %v10526 = vunpack.c.l.b16 %v8195
      %v10527 = vunpack.c.l.b16 %v8199
      %v10528 = vunpack.c.l.b16 %v8202
      %v10529 = vunpack.c.l.b16 %v8206
      %v10530 = vunpack.c.l.b16 %v8209
      %v10531 = vunpack.c.l.b16 %v8213
      %v10532 = vunpack.c.l.b16 %v8216
      %v10533 = vunpack.c.l.b16 %v8220
      %v10534 = vunpack.c.l.b16 %v8223
      %v10535 = vunpack.c.l.b16 %v8227
      %v10536 = vunpack.c.l.b16 %v8230
      %v10537 = vunpack.c.l.b16 %v8234
      %v10538 = vunpack.c.l.b16 %v8237
      %v10539 = vunpack.c.l.b16 %v8241
      %v10540 = vunpack.c.l.b16 %v8244
      %v10541 = vunpack.c.l.b16 %v8248
      %v10542 = vunpack.c.l.b16 %v8251
      %v10543 = vunpack.c.l.b16 %v8255
      %v10544 = vunpack.c.l.b16 %v8258
      %v10545 = vunpack.c.l.b16 %v8262
      %v10546 = vunpack.c.l.b16 %v8265
      %v10547 = vunpack.c.l.b16 %v8269
      %v10548 = vunpack.c.l.b16 %v8272
      %v10549 = vunpack.c.l.b16 %v8276
      %v10550 = vunpack.c.l.b16 %v8279
      %v10551 = vunpack.c.l.b16 %v8283
      %v10552 = vunpack.c.l.b16 %v8286
      %v10553 = vunpack.c.l.b16 %v8290
      %v10554 = vunpack.c.l.b16 %v8293
      %v10555 = vunpack.c.l.b16 %v8297
      %v10556 = vunpack.c.l.b16 %v8300
      %v10557 = vpack.c.b16 %v10526, %v10525
      %v10558 = vpack.c.b16 %v10528, %v10527
      %v10559 = vpack.c.b16 %v10530, %v10529
      %v10560 = vpack.c.b16 %v10532, %v10531
      %v10561 = vpack.c.b16 %v10534, %v10533
      %v10562 = vpack.c.b16 %v10536, %v10535
      %v10563 = vpack.c.b16 %v10538, %v10537
      %v10564 = vpack.c.b16 %v10540, %v10539
      %v10565 = vpack.c.b16 %v10542, %v10541
      %v10566 = vpack.c.b16 %v10544, %v10543
      %v10567 = vpack.c.b16 %v10546, %v10545
      %v10568 = vpack.c.b16 %v10548, %v10547
      %v10569 = vpack.c.b16 %v10550, %v10549
      %v10570 = vpack.c.b16 %v10552, %v10551
      %v10571 = vpack.c.b16 %v10554, %v10553
      %v10572 = vpack.c.b16 %v10556, %v10555
      %10573 = vrot.lane.b32.xlu0 %v10557, 72
      %v10574 = vpop.permute.xlu0 %10573
      %10575 = vrot.lane.b32.xlu0 %v10558, 72
      %v10576 = vpop.permute.xlu0 %10575
      %10577 = vrot.lane.b32.xlu0 %v10559, 72
      %v10578 = vpop.permute.xlu0 %10577
      %10579 = vrot.lane.b32.xlu0 %v10560, 72
      %v10580 = vpop.permute.xlu0 %10579
      %10581 = vrot.lane.b32.xlu0 %v10561, 72
      %v10582 = vpop.permute.xlu0 %10581
      %10583 = vrot.lane.b32.xlu0 %v10562, 72
      %v10584 = vpop.permute.xlu0 %10583
      %10585 = vrot.lane.b32.xlu0 %v10563, 72
      %v10586 = vpop.permute.xlu0 %10585
      %10587 = vrot.lane.b32.xlu0 %v10564, 72
      %v10588 = vpop.permute.xlu0 %10587
      %10589 = vrot.lane.b32.xlu0 %v10565, 72
      %v10590 = vpop.permute.xlu0 %10589
      %10591 = vrot.lane.b32.xlu0 %v10566, 72
      %v10592 = vpop.permute.xlu0 %10591
      %10593 = vrot.lane.b32.xlu0 %v10567, 72
      %v10594 = vpop.permute.xlu0 %10593
      %10595 = vrot.lane.b32.xlu0 %v10568, 72
      %v10596 = vpop.permute.xlu0 %10595
      %10597 = vrot.lane.b32.xlu0 %v10569, 72
      %v10598 = vpop.permute.xlu0 %10597
      %10599 = vrot.lane.b32.xlu0 %v10570, 72
      %v10600 = vpop.permute.xlu0 %10599
      %10601 = vrot.lane.b32.xlu0 %v10571, 72
      %v10602 = vpop.permute.xlu0 %10601
      %10603 = vrot.lane.b32.xlu0 %v10572, 72
      %v10604 = vpop.permute.xlu0 %10603
      %v10637 = vunpack.c.l.b16 %v8301
      %v10638 = vunpack.c.l.b16 %v8302
      %v10639 = vunpack.c.l.b16 %v8303
      %v10640 = vunpack.c.l.b16 %v8304
      %v10641 = vunpack.c.l.b16 %v8305
      %v10642 = vunpack.c.l.b16 %v8306
      %v10643 = vunpack.c.l.b16 %v8307
      %v10644 = vunpack.c.l.b16 %v8308
      %v10645 = vunpack.c.l.b16 %v8309
      %v10646 = vunpack.c.l.b16 %v8310
      %v10647 = vunpack.c.l.b16 %v8311
      %v10648 = vunpack.c.l.b16 %v8312
      %v10649 = vunpack.c.l.b16 %v8313
      %v10650 = vunpack.c.l.b16 %v8314
      %v10651 = vunpack.c.l.b16 %v8315
      %v10652 = vunpack.c.l.b16 %v8316
      %v10653 = vunpack.c.l.b16 %v8317
      %v10654 = vunpack.c.l.b16 %v8318
      %v10655 = vunpack.c.l.b16 %v8319
      %v10656 = vunpack.c.l.b16 %v8320
      %v10657 = vunpack.c.l.b16 %v8321
      %v10658 = vunpack.c.l.b16 %v8322
      %v10659 = vunpack.c.l.b16 %v8323
      %v10660 = vunpack.c.l.b16 %v8324
      %v10661 = vunpack.c.l.b16 %v8325
      %v10662 = vunpack.c.l.b16 %v8326
      %v10663 = vunpack.c.l.b16 %v8327
      %v10664 = vunpack.c.l.b16 %v8328
      %v10665 = vunpack.c.l.b16 %v8329
      %v10666 = vunpack.c.l.b16 %v8330
      %v10667 = vunpack.c.l.b16 %v8331
      %v10668 = vunpack.c.l.b16 %v8332
      %v10669 = vpack.c.b16 %v10638, %v10637
      %v10670 = vpack.c.b16 %v10640, %v10639
      %v10671 = vpack.c.b16 %v10642, %v10641
      %v10672 = vpack.c.b16 %v10644, %v10643
      %v10673 = vpack.c.b16 %v10646, %v10645
      %v10674 = vpack.c.b16 %v10648, %v10647
      %v10675 = vpack.c.b16 %v10650, %v10649
      %v10676 = vpack.c.b16 %v10652, %v10651
      %v10677 = vpack.c.b16 %v10654, %v10653
      %v10678 = vpack.c.b16 %v10656, %v10655
      %v10679 = vpack.c.b16 %v10658, %v10657
      %v10680 = vpack.c.b16 %v10660, %v10659
      %v10681 = vpack.c.b16 %v10662, %v10661
      %v10682 = vpack.c.b16 %v10664, %v10663
      %v10683 = vpack.c.b16 %v10666, %v10665
      %v10684 = vpack.c.b16 %v10668, %v10667
      %10685 = vrot.lane.b32.xlu0 %v10669, 80
      %v10686 = vpop.permute.xlu0 %10685
      %10687 = vrot.lane.b32.xlu0 %v10670, 80
      %v10688 = vpop.permute.xlu0 %10687
      %10689 = vrot.lane.b32.xlu0 %v10671, 80
      %v10690 = vpop.permute.xlu0 %10689
      %10691 = vrot.lane.b32.xlu0 %v10672, 80
      %v10692 = vpop.permute.xlu0 %10691
      %10693 = vrot.lane.b32.xlu0 %v10673, 80
      %v10694 = vpop.permute.xlu0 %10693
      %10695 = vrot.lane.b32.xlu0 %v10674, 80
      %v10696 = vpop.permute.xlu0 %10695
      %10697 = vrot.lane.b32.xlu0 %v10675, 80
      %v10698 = vpop.permute.xlu0 %10697
      %10699 = vrot.lane.b32.xlu0 %v10676, 80
      %v10700 = vpop.permute.xlu0 %10699
      %10701 = vrot.lane.b32.xlu0 %v10677, 80
      %v10702 = vpop.permute.xlu0 %10701
      %10703 = vrot.lane.b32.xlu0 %v10678, 80
      %v10704 = vpop.permute.xlu0 %10703
      %10705 = vrot.lane.b32.xlu0 %v10679, 80
      %v10706 = vpop.permute.xlu0 %10705
      %10707 = vrot.lane.b32.xlu0 %v10680, 80
      %v10708 = vpop.permute.xlu0 %10707
      %10709 = vrot.lane.b32.xlu0 %v10681, 80
      %v10710 = vpop.permute.xlu0 %10709
      %10711 = vrot.lane.b32.xlu0 %v10682, 80
      %v10712 = vpop.permute.xlu0 %10711
      %10713 = vrot.lane.b32.xlu0 %v10683, 80
      %v10714 = vpop.permute.xlu0 %10713
      %10715 = vrot.lane.b32.xlu0 %v10684, 80
      %v10716 = vpop.permute.xlu0 %10715
      %v10717 = vunpack.c.l.b16 %v8362
      %v10718 = vunpack.c.l.b16 %v8372
      %v10719 = vunpack.c.l.b16 %v8386
      %v10720 = vunpack.c.l.b16 %v8396
      %v10721 = vunpack.c.l.b16 %v8410
      %v10722 = vunpack.c.l.b16 %v8420
      %v10723 = vunpack.c.l.b16 %v8434
      %v10724 = vunpack.c.l.b16 %v8444
      %v10725 = vunpack.c.l.b16 %v8458
      %v10726 = vunpack.c.l.b16 %v8468
      %v10727 = vunpack.c.l.b16 %v8482
      %v10728 = vunpack.c.l.b16 %v8492
      %v10729 = vunpack.c.l.b16 %v8506
      %v10730 = vunpack.c.l.b16 %v8516
      %v10731 = vunpack.c.l.b16 %v8530
      %v10732 = vunpack.c.l.b16 %v8540
      %v10733 = vunpack.c.l.b16 %v8554
      %v10734 = vunpack.c.l.b16 %v8564
      %v10735 = vunpack.c.l.b16 %v8578
      %v10736 = vunpack.c.l.b16 %v8588
      %v10737 = vunpack.c.l.b16 %v8602
      %v10738 = vunpack.c.l.b16 %v8612
      %v10739 = vunpack.c.l.b16 %v8626
      %v10740 = vunpack.c.l.b16 %v8636
      %v10741 = vunpack.c.l.b16 %v8650
      %v10742 = vunpack.c.l.b16 %v8660
      %v10743 = vunpack.c.l.b16 %v8674
      %v10744 = vunpack.c.l.b16 %v8684
      %v10745 = vunpack.c.l.b16 %v8698
      %v10746 = vunpack.c.l.b16 %v8708
      %v10747 = vunpack.c.l.b16 %v8722
      %v10748 = vunpack.c.l.b16 %v8732
      %v10749 = vpack.c.b16 %v10718, %v10717
      %v10750 = vpack.c.b16 %v10720, %v10719
      %v10751 = vpack.c.b16 %v10722, %v10721
      %v10752 = vpack.c.b16 %v10724, %v10723
      %v10753 = vpack.c.b16 %v10726, %v10725
      %v10754 = vpack.c.b16 %v10728, %v10727
      %v10755 = vpack.c.b16 %v10730, %v10729
      %v10756 = vpack.c.b16 %v10732, %v10731
      %v10757 = vpack.c.b16 %v10734, %v10733
      %v10758 = vpack.c.b16 %v10736, %v10735
      %v10759 = vpack.c.b16 %v10738, %v10737
      %v10760 = vpack.c.b16 %v10740, %v10739
      %v10761 = vpack.c.b16 %v10742, %v10741
      %v10762 = vpack.c.b16 %v10744, %v10743
      %v10763 = vpack.c.b16 %v10746, %v10745
      %v10764 = vpack.c.b16 %v10748, %v10747
      %10765 = vrot.lane.b32.xlu0 %v10749, 88
      %v10766 = vpop.permute.xlu0 %10765
      %10767 = vrot.lane.b32.xlu0 %v10750, 88
      %v10768 = vpop.permute.xlu0 %10767
      %10769 = vrot.lane.b32.xlu0 %v10751, 88
      %v10770 = vpop.permute.xlu0 %10769
      %10771 = vrot.lane.b32.xlu0 %v10752, 88
      %v10772 = vpop.permute.xlu0 %10771
      %10773 = vrot.lane.b32.xlu0 %v10753, 88
      %v10774 = vpop.permute.xlu0 %10773
      %10775 = vrot.lane.b32.xlu0 %v10754, 88
      %v10776 = vpop.permute.xlu0 %10775
      %10777 = vrot.lane.b32.xlu0 %v10755, 88
      %v10778 = vpop.permute.xlu0 %10777
      %10779 = vrot.lane.b32.xlu0 %v10756, 88
      %v10780 = vpop.permute.xlu0 %10779
      %10781 = vrot.lane.b32.xlu0 %v10757, 88
      %v10782 = vpop.permute.xlu0 %10781
      %10783 = vrot.lane.b32.xlu0 %v10758, 88
      %v10784 = vpop.permute.xlu0 %10783
      %10785 = vrot.lane.b32.xlu0 %v10759, 88
      %v10786 = vpop.permute.xlu0 %10785
      %10787 = vrot.lane.b32.xlu0 %v10760, 88
      %v10788 = vpop.permute.xlu0 %10787
      %10789 = vrot.lane.b32.xlu0 %v10761, 88
      %v10790 = vpop.permute.xlu0 %10789
      %10791 = vrot.lane.b32.xlu0 %v10762, 88
      %v10792 = vpop.permute.xlu0 %10791
      %10793 = vrot.lane.b32.xlu0 %v10763, 88
      %v10794 = vpop.permute.xlu0 %10793
      %10795 = vrot.lane.b32.xlu0 %v10764, 88
      %v10796 = vpop.permute.xlu0 %10795
      %v10797 = vunpack.c.l.b16 %v8794
      %v10798 = vunpack.c.l.b16 %v8804
      %v10799 = vunpack.c.l.b16 %v8818
      %v10800 = vunpack.c.l.b16 %v8828
      %v10801 = vunpack.c.l.b16 %v8842
      %v10802 = vunpack.c.l.b16 %v8852
      %v10803 = vunpack.c.l.b16 %v8866
      %v10804 = vunpack.c.l.b16 %v8876
      %v10805 = vunpack.c.l.b16 %v8890
      %v10806 = vunpack.c.l.b16 %v8900
      %v10807 = vunpack.c.l.b16 %v8914
      %v10808 = vunpack.c.l.b16 %v8924
      %v10809 = vunpack.c.l.b16 %v8938
      %v10810 = vunpack.c.l.b16 %v8948
      %v10811 = vunpack.c.l.b16 %v8962
      %v10812 = vunpack.c.l.b16 %v8972
      %v10813 = vunpack.c.l.b16 %v8986
      %v10814 = vunpack.c.l.b16 %v8996
      %v10815 = vunpack.c.l.b16 %v9010
      %v10816 = vunpack.c.l.b16 %v9020
      %v10817 = vunpack.c.l.b16 %v9034
      %v10818 = vunpack.c.l.b16 %v9044
      %v10819 = vunpack.c.l.b16 %v9058
      %v10820 = vunpack.c.l.b16 %v9068
      %v10821 = vunpack.c.l.b16 %v9082
      %v10822 = vunpack.c.l.b16 %v9092
      %v10823 = vunpack.c.l.b16 %v9106
      %v10824 = vunpack.c.l.b16 %v9116
      %v10825 = vunpack.c.l.b16 %v9130
      %v10826 = vunpack.c.l.b16 %v9140
      %v10827 = vunpack.c.l.b16 %v9154
      %v10828 = vunpack.c.l.b16 %v9164
      %v10829 = vpack.c.b16 %v10798, %v10797
      %v10830 = vpack.c.b16 %v10800, %v10799
      %v10831 = vpack.c.b16 %v10802, %v10801
      %v10832 = vpack.c.b16 %v10804, %v10803
      %v10833 = vpack.c.b16 %v10806, %v10805
      %v10834 = vpack.c.b16 %v10808, %v10807
      %v10835 = vpack.c.b16 %v10810, %v10809
      %v10836 = vpack.c.b16 %v10812, %v10811
      %v10837 = vpack.c.b16 %v10814, %v10813
      %v10838 = vpack.c.b16 %v10816, %v10815
      %v10839 = vpack.c.b16 %v10818, %v10817
      %v10840 = vpack.c.b16 %v10820, %v10819
      %v10841 = vpack.c.b16 %v10822, %v10821
      %v10842 = vpack.c.b16 %v10824, %v10823
      %v10843 = vpack.c.b16 %v10826, %v10825
      %v10844 = vpack.c.b16 %v10828, %v10827
      %10845 = vrot.lane.b32.xlu0 %v10829, 96
      %v10846 = vpop.permute.xlu0 %10845
      %10847 = vrot.lane.b32.xlu0 %v10830, 96
      %v10848 = vpop.permute.xlu0 %10847
      %10849 = vrot.lane.b32.xlu0 %v10831, 96
      %v10850 = vpop.permute.xlu0 %10849
      %10851 = vrot.lane.b32.xlu0 %v10832, 96
      %v10852 = vpop.permute.xlu0 %10851
      %10853 = vrot.lane.b32.xlu0 %v10833, 96
      %v10854 = vpop.permute.xlu0 %10853
      %10855 = vrot.lane.b32.xlu0 %v10834, 96
      %v10856 = vpop.permute.xlu0 %10855
      %10857 = vrot.lane.b32.xlu0 %v10835, 96
      %v10858 = vpop.permute.xlu0 %10857
      %10859 = vrot.lane.b32.xlu0 %v10836, 96
      %v10860 = vpop.permute.xlu0 %10859
      %10861 = vrot.lane.b32.xlu0 %v10837, 96
      %v10862 = vpop.permute.xlu0 %10861
      %10863 = vrot.lane.b32.xlu0 %v10838, 96
      %v10864 = vpop.permute.xlu0 %10863
      %10865 = vrot.lane.b32.xlu0 %v10839, 96
      %v10866 = vpop.permute.xlu0 %10865
      %10867 = vrot.lane.b32.xlu0 %v10840, 96
      %v10868 = vpop.permute.xlu0 %10867
      %10869 = vrot.lane.b32.xlu0 %v10841, 96
      %v10870 = vpop.permute.xlu0 %10869
      %10871 = vrot.lane.b32.xlu0 %v10842, 96
      %v10872 = vpop.permute.xlu0 %10871
      %10873 = vrot.lane.b32.xlu0 %v10843, 96
      %v10874 = vpop.permute.xlu0 %10873
      %10875 = vrot.lane.b32.xlu0 %v10844, 96
      %v10876 = vpop.permute.xlu0 %10875
      %v10877 = vunpack.c.l.b16 %v9232
      %v10878 = vunpack.c.l.b16 %v9235
      %v10879 = vunpack.c.l.b16 %v9239
      %v10880 = vunpack.c.l.b16 %v9242
      %v10881 = vunpack.c.l.b16 %v9246
      %v10882 = vunpack.c.l.b16 %v9249
      %v10883 = vunpack.c.l.b16 %v9253
      %v10884 = vunpack.c.l.b16 %v9256
      %v10885 = vunpack.c.l.b16 %v9260
      %v10886 = vunpack.c.l.b16 %v9263
      %v10887 = vunpack.c.l.b16 %v9267
      %v10888 = vunpack.c.l.b16 %v9270
      %v10889 = vunpack.c.l.b16 %v9274
      %v10890 = vunpack.c.l.b16 %v9277
      %v10891 = vunpack.c.l.b16 %v9281
      %v10892 = vunpack.c.l.b16 %v9284
      %v10893 = vunpack.c.l.b16 %v9288
      %v10894 = vunpack.c.l.b16 %v9291
      %v10895 = vunpack.c.l.b16 %v9295
      %v10896 = vunpack.c.l.b16 %v9298
      %v10897 = vunpack.c.l.b16 %v9302
      %v10898 = vunpack.c.l.b16 %v9305
      %v10899 = vunpack.c.l.b16 %v9309
      %v10900 = vunpack.c.l.b16 %v9312
      %v10901 = vunpack.c.l.b16 %v9316
      %v10902 = vunpack.c.l.b16 %v9319
      %v10903 = vunpack.c.l.b16 %v9323
      %v10904 = vunpack.c.l.b16 %v9326
      %v10905 = vunpack.c.l.b16 %v9330
      %v10906 = vunpack.c.l.b16 %v9333
      %v10907 = vunpack.c.l.b16 %v9337
      %v10908 = vunpack.c.l.b16 %v9340
      %v10909 = vpack.c.b16 %v10878, %v10877
      %v10910 = vpack.c.b16 %v10880, %v10879
      %v10911 = vpack.c.b16 %v10882, %v10881
      %v10912 = vpack.c.b16 %v10884, %v10883
      %v10913 = vpack.c.b16 %v10886, %v10885
      %v10914 = vpack.c.b16 %v10888, %v10887
      %v10915 = vpack.c.b16 %v10890, %v10889
      %v10916 = vpack.c.b16 %v10892, %v10891
      %v10917 = vpack.c.b16 %v10894, %v10893
      %v10918 = vpack.c.b16 %v10896, %v10895
      %v10919 = vpack.c.b16 %v10898, %v10897
      %v10920 = vpack.c.b16 %v10900, %v10899
      %v10921 = vpack.c.b16 %v10902, %v10901
      %v10922 = vpack.c.b16 %v10904, %v10903
      %v10923 = vpack.c.b16 %v10906, %v10905
      %v10924 = vpack.c.b16 %v10908, %v10907
      %10925 = vrot.lane.b32.xlu0 %v10909, 104
      %v10926 = vpop.permute.xlu0 %10925
      %10927 = vrot.lane.b32.xlu0 %v10910, 104
      %v10928 = vpop.permute.xlu0 %10927
      %10929 = vrot.lane.b32.xlu0 %v10911, 104
      %v10930 = vpop.permute.xlu0 %10929
      %10931 = vrot.lane.b32.xlu0 %v10912, 104
      %v10932 = vpop.permute.xlu0 %10931
      %10933 = vrot.lane.b32.xlu0 %v10913, 104
      %v10934 = vpop.permute.xlu0 %10933
      %10935 = vrot.lane.b32.xlu0 %v10914, 104
      %v10936 = vpop.permute.xlu0 %10935
      %10937 = vrot.lane.b32.xlu0 %v10915, 104
      %v10938 = vpop.permute.xlu0 %10937
      %10939 = vrot.lane.b32.xlu0 %v10916, 104
      %v10940 = vpop.permute.xlu0 %10939
      %10941 = vrot.lane.b32.xlu0 %v10917, 104
      %v10942 = vpop.permute.xlu0 %10941
      %10943 = vrot.lane.b32.xlu0 %v10918, 104
      %v10944 = vpop.permute.xlu0 %10943
      %10945 = vrot.lane.b32.xlu0 %v10919, 104
      %v10946 = vpop.permute.xlu0 %10945
      %10947 = vrot.lane.b32.xlu0 %v10920, 104
      %v10948 = vpop.permute.xlu0 %10947
      %10949 = vrot.lane.b32.xlu0 %v10921, 104
      %v10950 = vpop.permute.xlu0 %10949
      %10951 = vrot.lane.b32.xlu0 %v10922, 104
      %v10952 = vpop.permute.xlu0 %10951
      %10953 = vrot.lane.b32.xlu0 %v10923, 104
      %v10954 = vpop.permute.xlu0 %10953
      %10955 = vrot.lane.b32.xlu0 %v10924, 104
      %v10956 = vpop.permute.xlu0 %10955
      %v10989 = vunpack.c.l.b16 %v9341
      %v10990 = vunpack.c.l.b16 %v9342
      %v10991 = vunpack.c.l.b16 %v9343
      %v10992 = vunpack.c.l.b16 %v9344
      %v10993 = vunpack.c.l.b16 %v9345
      %v10994 = vunpack.c.l.b16 %v9346
      %v10995 = vunpack.c.l.b16 %v9347
      %v10996 = vunpack.c.l.b16 %v9348
      %v10997 = vunpack.c.l.b16 %v9349
      %v10998 = vunpack.c.l.b16 %v9350
      %v10999 = vunpack.c.l.b16 %v9351
      %v11000 = vunpack.c.l.b16 %v9352
      %v11001 = vunpack.c.l.b16 %v9353
      %v11002 = vunpack.c.l.b16 %v9354
      %v11003 = vunpack.c.l.b16 %v9355
      %v11004 = vunpack.c.l.b16 %v9356
      %v11005 = vunpack.c.l.b16 %v9357
      %v11006 = vunpack.c.l.b16 %v9358
      %v11007 = vunpack.c.l.b16 %v9359
      %v11008 = vunpack.c.l.b16 %v9360
      %v11009 = vunpack.c.l.b16 %v9361
      %v11010 = vunpack.c.l.b16 %v9362
      %v11011 = vunpack.c.l.b16 %v9363
      %v11012 = vunpack.c.l.b16 %v9364
      %v11013 = vunpack.c.l.b16 %v9365
      %v11014 = vunpack.c.l.b16 %v9366
      %v11015 = vunpack.c.l.b16 %v9367
      %v11016 = vunpack.c.l.b16 %v9368
      %v11017 = vunpack.c.l.b16 %v9369
      %v11018 = vunpack.c.l.b16 %v9370
      %v11019 = vunpack.c.l.b16 %v9371
      %v11020 = vunpack.c.l.b16 %v9372
      %v11021 = vpack.c.b16 %v10990, %v10989
      %v11022 = vpack.c.b16 %v10992, %v10991
      %v11023 = vpack.c.b16 %v10994, %v10993
      %v11024 = vpack.c.b16 %v10996, %v10995
      %v11025 = vpack.c.b16 %v10998, %v10997
      %v11026 = vpack.c.b16 %v11000, %v10999
      %v11027 = vpack.c.b16 %v11002, %v11001
      %v11028 = vpack.c.b16 %v11004, %v11003
      %v11029 = vpack.c.b16 %v11006, %v11005
      %v11030 = vpack.c.b16 %v11008, %v11007
      %v11031 = vpack.c.b16 %v11010, %v11009
      %v11032 = vpack.c.b16 %v11012, %v11011
      %v11033 = vpack.c.b16 %v11014, %v11013
      %v11034 = vpack.c.b16 %v11016, %v11015
      %v11035 = vpack.c.b16 %v11018, %v11017
      %v11036 = vpack.c.b16 %v11020, %v11019
      %11037 = vrot.lane.b32.xlu0 %v11021, 112
      %v11038 = vpop.permute.xlu0 %11037
      %11039 = vrot.lane.b32.xlu0 %v11022, 112
      %v11040 = vpop.permute.xlu0 %11039
      %11041 = vrot.lane.b32.xlu0 %v11023, 112
      %v11042 = vpop.permute.xlu0 %11041
      %11043 = vrot.lane.b32.xlu0 %v11024, 112
      %v11044 = vpop.permute.xlu0 %11043
      %11045 = vrot.lane.b32.xlu0 %v11025, 112
      %v11046 = vpop.permute.xlu0 %11045
      %11047 = vrot.lane.b32.xlu0 %v11026, 112
      %v11048 = vpop.permute.xlu0 %11047
      %11049 = vrot.lane.b32.xlu0 %v11027, 112
      %v11050 = vpop.permute.xlu0 %11049
      %11051 = vrot.lane.b32.xlu0 %v11028, 112
      %v11052 = vpop.permute.xlu0 %11051
      %11053 = vrot.lane.b32.xlu0 %v11029, 112
      %v11054 = vpop.permute.xlu0 %11053
      %11055 = vrot.lane.b32.xlu0 %v11030, 112
      %v11056 = vpop.permute.xlu0 %11055
      %11057 = vrot.lane.b32.xlu0 %v11031, 112
      %v11058 = vpop.permute.xlu0 %11057
      %11059 = vrot.lane.b32.xlu0 %v11032, 112
      %v11060 = vpop.permute.xlu0 %11059
      %11061 = vrot.lane.b32.xlu0 %v11033, 112
      %v11062 = vpop.permute.xlu0 %11061
      %11063 = vrot.lane.b32.xlu0 %v11034, 112
      %v11064 = vpop.permute.xlu0 %11063
      %11065 = vrot.lane.b32.xlu0 %v11035, 112
      %v11066 = vpop.permute.xlu0 %11065
      %11067 = vrot.lane.b32.xlu0 %v11036, 112
      %v11068 = vpop.permute.xlu0 %11067
      %v11069 = vunpack.c.l.b16 %v9402
      %v11070 = vunpack.c.l.b16 %v9412
      %v11071 = vunpack.c.l.b16 %v9426
      %v11072 = vunpack.c.l.b16 %v9436
      %v11073 = vunpack.c.l.b16 %v9450
      %v11074 = vunpack.c.l.b16 %v9460
      %v11075 = vunpack.c.l.b16 %v9474
      %v11076 = vunpack.c.l.b16 %v9484
      %v11077 = vunpack.c.l.b16 %v9498
      %v11078 = vunpack.c.l.b16 %v9508
      %v11079 = vunpack.c.l.b16 %v9522
      %v11080 = vunpack.c.l.b16 %v9532
      %v11081 = vunpack.c.l.b16 %v9546
      %v11082 = vunpack.c.l.b16 %v9556
      %v11083 = vunpack.c.l.b16 %v9570
      %v11084 = vunpack.c.l.b16 %v9580
      %v11085 = vunpack.c.l.b16 %v9594
      %v11086 = vunpack.c.l.b16 %v9604
      %v11087 = vunpack.c.l.b16 %v9618
      %v11088 = vunpack.c.l.b16 %v9628
      %v11089 = vunpack.c.l.b16 %v9642
      %v11090 = vunpack.c.l.b16 %v9652
      %v11091 = vunpack.c.l.b16 %v9666
      %v11092 = vunpack.c.l.b16 %v9676
      %v11093 = vunpack.c.l.b16 %v9690
      %v11094 = vunpack.c.l.b16 %v9700
      %v11095 = vunpack.c.l.b16 %v9714
      %v11096 = vunpack.c.l.b16 %v9724
      %v11097 = vunpack.c.l.b16 %v9738
      %v11098 = vunpack.c.l.b16 %v9748
      %v11099 = vunpack.c.l.b16 %v9762
      %v11100 = vunpack.c.l.b16 %v9772
      %v11101 = vpack.c.b16 %v11070, %v11069
      %v11102 = vpack.c.b16 %v11072, %v11071
      %v11103 = vpack.c.b16 %v11074, %v11073
      %v11104 = vpack.c.b16 %v11076, %v11075
      %v11105 = vpack.c.b16 %v11078, %v11077
      %v11106 = vpack.c.b16 %v11080, %v11079
      %v11107 = vpack.c.b16 %v11082, %v11081
      %v11108 = vpack.c.b16 %v11084, %v11083
      %v11109 = vpack.c.b16 %v11086, %v11085
      %v11110 = vpack.c.b16 %v11088, %v11087
      %v11111 = vpack.c.b16 %v11090, %v11089
      %v11112 = vpack.c.b16 %v11092, %v11091
      %v11113 = vpack.c.b16 %v11094, %v11093
      %v11114 = vpack.c.b16 %v11096, %v11095
      %v11115 = vpack.c.b16 %v11098, %v11097
      %v11116 = vpack.c.b16 %v11100, %v11099
      %11117 = vrot.lane.b32.xlu0 %v11101, 120
      %v11118 = vpop.permute.xlu0 %11117
      %11119 = vrot.lane.b32.xlu0 %v11102, 120
      %v11120 = vpop.permute.xlu0 %11119
      %11121 = vrot.lane.b32.xlu0 %v11103, 120
      %v11122 = vpop.permute.xlu0 %11121
      %11123 = vrot.lane.b32.xlu0 %v11104, 120
      %v11124 = vpop.permute.xlu0 %11123
      %11125 = vrot.lane.b32.xlu0 %v11105, 120
      %v11126 = vpop.permute.xlu0 %11125
      %11127 = vrot.lane.b32.xlu0 %v11106, 120
      %v11128 = vpop.permute.xlu0 %11127
      %11129 = vrot.lane.b32.xlu0 %v11107, 120
      %v11130 = vpop.permute.xlu0 %11129
      %11131 = vrot.lane.b32.xlu0 %v11108, 120
      %v11132 = vpop.permute.xlu0 %11131
      %11133 = vrot.lane.b32.xlu0 %v11109, 120
      %v11134 = vpop.permute.xlu0 %11133
      %11135 = vrot.lane.b32.xlu0 %v11110, 120
      %v11136 = vpop.permute.xlu0 %11135
      %11137 = vrot.lane.b32.xlu0 %v11111, 120
      %v11138 = vpop.permute.xlu0 %11137
      %11139 = vrot.lane.b32.xlu0 %v11112, 120
      %v11140 = vpop.permute.xlu0 %11139
      %11141 = vrot.lane.b32.xlu0 %v11113, 120
      %v11142 = vpop.permute.xlu0 %11141
      %11143 = vrot.lane.b32.xlu0 %v11114, 120
      %v11144 = vpop.permute.xlu0 %11143
      %11145 = vrot.lane.b32.xlu0 %v11115, 120
      %v11146 = vpop.permute.xlu0 %11145
      %11147 = vrot.lane.b32.xlu0 %v11116, 120
      %v11148 = vpop.permute.xlu0 %11147
      %v11151 = vsel %vm3765, %v9805, %v9870
      %v11154 = vsel %vm3765, %v9806, %v9872
      %v11157 = vsel %vm3765, %v9807, %v9874
      %v11160 = vsel %vm3765, %v9808, %v9876
      %v11163 = vsel %vm3765, %v9809, %v9878
      %v11166 = vsel %vm3765, %v9810, %v9880
      %v11169 = vsel %vm3765, %v9811, %v9882
      %v11172 = vsel %vm3765, %v9812, %v9884
      %v11175 = vsel %vm3765, %v9813, %v9886
      %v11178 = vsel %vm3765, %v9814, %v9888
      %v11181 = vsel %vm3765, %v9815, %v9890
      %v11184 = vsel %vm3765, %v9816, %v9892
      %v11187 = vsel %vm3765, %v9817, %v9894
      %v11190 = vsel %vm3765, %v9818, %v9896
      %v11193 = vsel %vm3765, %v9819, %v9898
      %v11196 = vsel %vm3765, %v9820, %v9900
      %v11198 = vsel %vm3814, %v11151, %v9982
      %v11200 = vsel %vm3814, %v11154, %v9984
      %v11202 = vsel %vm3814, %v11157, %v9986
      %v11204 = vsel %vm3814, %v11160, %v9988
      %v11206 = vsel %vm3814, %v11163, %v9990
      %v11208 = vsel %vm3814, %v11166, %v9992
      %v11210 = vsel %vm3814, %v11169, %v9994
      %v11212 = vsel %vm3814, %v11172, %v9996
      %v11214 = vsel %vm3814, %v11175, %v9998
      %v11216 = vsel %vm3814, %v11178, %v10000
      %v11218 = vsel %vm3814, %v11181, %v10002
      %v11220 = vsel %vm3814, %v11184, %v10004
      %v11222 = vsel %vm3814, %v11187, %v10006
      %v11224 = vsel %vm3814, %v11190, %v10008
      %v11226 = vsel %vm3814, %v11193, %v10010
      %v11228 = vsel %vm3814, %v11196, %v10012
      %v11230 = vsel %vm3847, %v11198, %v10062
      %v11232 = vsel %vm3847, %v11200, %v10064
      %v11234 = vsel %vm3847, %v11202, %v10066
      %v11236 = vsel %vm3847, %v11204, %v10068
      %v11238 = vsel %vm3847, %v11206, %v10070
      %v11240 = vsel %vm3847, %v11208, %v10072
      %v11242 = vsel %vm3847, %v11210, %v10074
      %v11244 = vsel %vm3847, %v11212, %v10076
      %v11246 = vsel %vm3847, %v11214, %v10078
      %v11248 = vsel %vm3847, %v11216, %v10080
      %v11250 = vsel %vm3847, %v11218, %v10082
      %v11252 = vsel %vm3847, %v11220, %v10084
      %v11254 = vsel %vm3847, %v11222, %v10086
      %v11256 = vsel %vm3847, %v11224, %v10088
      %v11258 = vsel %vm3847, %v11226, %v10090
      %v11260 = vsel %vm3847, %v11228, %v10092
      %v11262 = vsel %vm3880, %v11230, %v10142
      %v11264 = vsel %vm3880, %v11232, %v10144
      %v11266 = vsel %vm3880, %v11234, %v10146
      %v11268 = vsel %vm3880, %v11236, %v10148
      %v11270 = vsel %vm3880, %v11238, %v10150
      %v11272 = vsel %vm3880, %v11240, %v10152
      %v11274 = vsel %vm3880, %v11242, %v10154
      %v11276 = vsel %vm3880, %v11244, %v10156
      %v11278 = vsel %vm3880, %v11246, %v10158
      %v11280 = vsel %vm3880, %v11248, %v10160
      %v11282 = vsel %vm3880, %v11250, %v10162
      %v11284 = vsel %vm3880, %v11252, %v10164
      %v11286 = vsel %vm3880, %v11254, %v10166
      %v11288 = vsel %vm3880, %v11256, %v10168
      %v11290 = vsel %vm3880, %v11258, %v10170
      %v11292 = vsel %vm3880, %v11260, %v10172
      %v11294 = vsel %vm3913, %v11262, %v10222
      %v11296 = vsel %vm3913, %v11264, %v10224
      %v11298 = vsel %vm3913, %v11266, %v10226
      %v11300 = vsel %vm3913, %v11268, %v10228
      %v11302 = vsel %vm3913, %v11270, %v10230
      %v11304 = vsel %vm3913, %v11272, %v10232
      %v11306 = vsel %vm3913, %v11274, %v10234
      %v11308 = vsel %vm3913, %v11276, %v10236
      %v11310 = vsel %vm3913, %v11278, %v10238
      %v11312 = vsel %vm3913, %v11280, %v10240
      %v11314 = vsel %vm3913, %v11282, %v10242
      %v11316 = vsel %vm3913, %v11284, %v10244
      %v11318 = vsel %vm3913, %v11286, %v10246
      %v11320 = vsel %vm3913, %v11288, %v10248
      %v11322 = vsel %vm3913, %v11290, %v10250
      %v11324 = vsel %vm3913, %v11292, %v10252
      %v11326 = vsel %vm3946, %v11294, %v10334
      %v11328 = vsel %vm3946, %v11296, %v10336
      %v11330 = vsel %vm3946, %v11298, %v10338
      %v11332 = vsel %vm3946, %v11300, %v10340
      %v11334 = vsel %vm3946, %v11302, %v10342
      %v11336 = vsel %vm3946, %v11304, %v10344
      %v11338 = vsel %vm3946, %v11306, %v10346
      %v11340 = vsel %vm3946, %v11308, %v10348
      %v11342 = vsel %vm3946, %v11310, %v10350
      %v11344 = vsel %vm3946, %v11312, %v10352
      %v11346 = vsel %vm3946, %v11314, %v10354
      %v11348 = vsel %vm3946, %v11316, %v10356
      %v11350 = vsel %vm3946, %v11318, %v10358
      %v11352 = vsel %vm3946, %v11320, %v10360
      %v11354 = vsel %vm3946, %v11322, %v10362
      %v11356 = vsel %vm3946, %v11324, %v10364
      %v11358 = vsel %vm3979, %v11326, %v10414
      %v11360 = vsel %vm3979, %v11328, %v10416
      %v11362 = vsel %vm3979, %v11330, %v10418
      %v11364 = vsel %vm3979, %v11332, %v10420
      %v11366 = vsel %vm3979, %v11334, %v10422
      %v11368 = vsel %vm3979, %v11336, %v10424
      %v11370 = vsel %vm3979, %v11338, %v10426
      %v11372 = vsel %vm3979, %v11340, %v10428
      %v11374 = vsel %vm3979, %v11342, %v10430
      %v11376 = vsel %vm3979, %v11344, %v10432
      %v11378 = vsel %vm3979, %v11346, %v10434
      %v11380 = vsel %vm3979, %v11348, %v10436
      %v11382 = vsel %vm3979, %v11350, %v10438
      %v11384 = vsel %vm3979, %v11352, %v10440
      %v11386 = vsel %vm3979, %v11354, %v10442
      %v11388 = vsel %vm3979, %v11356, %v10444
      %v11390 = vsel %vm4012, %v11358, %v10494
      %v11392 = vsel %vm4012, %v11360, %v10496
      %v11394 = vsel %vm4012, %v11362, %v10498
      %v11396 = vsel %vm4012, %v11364, %v10500
      %v11398 = vsel %vm4012, %v11366, %v10502
      %v11400 = vsel %vm4012, %v11368, %v10504
      %v11402 = vsel %vm4012, %v11370, %v10506
      %v11404 = vsel %vm4012, %v11372, %v10508
      %v11406 = vsel %vm4012, %v11374, %v10510
      %v11408 = vsel %vm4012, %v11376, %v10512
      %v11410 = vsel %vm4012, %v11378, %v10514
      %v11412 = vsel %vm4012, %v11380, %v10516
      %v11414 = vsel %vm4012, %v11382, %v10518
      %v11416 = vsel %vm4012, %v11384, %v10520
      %v11418 = vsel %vm4012, %v11386, %v10522
      %v11420 = vsel %vm4012, %v11388, %v10524
      %v11422 = vsel %vm4081, %v11390, %v10574
      %v11424 = vsel %vm4081, %v11392, %v10576
      %v11426 = vsel %vm4081, %v11394, %v10578
      %v11428 = vsel %vm4081, %v11396, %v10580
      %v11430 = vsel %vm4081, %v11398, %v10582
      %v11432 = vsel %vm4081, %v11400, %v10584
      %v11434 = vsel %vm4081, %v11402, %v10586
      %v11436 = vsel %vm4081, %v11404, %v10588
      %v11438 = vsel %vm4081, %v11406, %v10590
      %v11440 = vsel %vm4081, %v11408, %v10592
      %v11442 = vsel %vm4081, %v11410, %v10594
      %v11444 = vsel %vm4081, %v11412, %v10596
      %v11446 = vsel %vm4081, %v11414, %v10598
      %v11448 = vsel %vm4081, %v11416, %v10600
      %v11450 = vsel %vm4081, %v11418, %v10602
      %v11452 = vsel %vm4081, %v11420, %v10604
      %vm11453 = vcmask 654336
      %v11455 = vsel %vm11453, %v11422, %v10686
      %v11457 = vsel %vm11453, %v11424, %v10688
      %v11459 = vsel %vm11453, %v11426, %v10690
      %v11461 = vsel %vm11453, %v11428, %v10692
      %v11463 = vsel %vm11453, %v11430, %v10694
      %v11465 = vsel %vm11453, %v11432, %v10696
      %v11467 = vsel %vm11453, %v11434, %v10698
      %v11469 = vsel %vm11453, %v11436, %v10700
      %v11471 = vsel %vm11453, %v11438, %v10702
      %v11473 = vsel %vm11453, %v11440, %v10704
      %v11475 = vsel %vm11453, %v11442, %v10706
      %v11477 = vsel %vm11453, %v11444, %v10708
      %v11479 = vsel %vm11453, %v11446, %v10710
      %v11481 = vsel %vm11453, %v11448, %v10712
      %v11483 = vsel %vm11453, %v11450, %v10714
      %v11485 = vsel %vm11453, %v11452, %v10716
      %vm11486 = vcmask 719872
      %v11488 = vsel %vm11486, %v11455, %v10766
      %v11490 = vsel %vm11486, %v11457, %v10768
      %v11492 = vsel %vm11486, %v11459, %v10770
      %v11494 = vsel %vm11486, %v11461, %v10772
      %v11496 = vsel %vm11486, %v11463, %v10774
      %v11498 = vsel %vm11486, %v11465, %v10776
      %v11500 = vsel %vm11486, %v11467, %v10778
      %v11502 = vsel %vm11486, %v11469, %v10780
      %v11504 = vsel %vm11486, %v11471, %v10782
      %v11506 = vsel %vm11486, %v11473, %v10784
      %v11508 = vsel %vm11486, %v11475, %v10786
      %v11510 = vsel %vm11486, %v11477, %v10788
      %v11512 = vsel %vm11486, %v11479, %v10790
      %v11514 = vsel %vm11486, %v11481, %v10792
      %v11516 = vsel %vm11486, %v11483, %v10794
      %v11518 = vsel %vm11486, %v11485, %v10796
      %vm11519 = vcmask 785408
      %v11521 = vsel %vm11519, %v11488, %v10846
      %v11523 = vsel %vm11519, %v11490, %v10848
      %v11525 = vsel %vm11519, %v11492, %v10850
      %v11527 = vsel %vm11519, %v11494, %v10852
      %v11529 = vsel %vm11519, %v11496, %v10854
      %v11531 = vsel %vm11519, %v11498, %v10856
      %v11533 = vsel %vm11519, %v11500, %v10858
      %v11535 = vsel %vm11519, %v11502, %v10860
      %v11537 = vsel %vm11519, %v11504, %v10862
      %v11539 = vsel %vm11519, %v11506, %v10864
      %v11541 = vsel %vm11519, %v11508, %v10866
      %v11543 = vsel %vm11519, %v11510, %v10868
      %v11545 = vsel %vm11519, %v11512, %v10870
      %v11547 = vsel %vm11519, %v11514, %v10872
      %v11549 = vsel %vm11519, %v11516, %v10874
      %v11551 = vsel %vm11519, %v11518, %v10876
      %vm11552 = vcmask 850944
      %v11554 = vsel %vm11552, %v11521, %v10926
      %v11556 = vsel %vm11552, %v11523, %v10928
      %v11558 = vsel %vm11552, %v11525, %v10930
      %v11560 = vsel %vm11552, %v11527, %v10932
      %v11562 = vsel %vm11552, %v11529, %v10934
      %v11564 = vsel %vm11552, %v11531, %v10936
      %v11566 = vsel %vm11552, %v11533, %v10938
      %v11568 = vsel %vm11552, %v11535, %v10940
      %v11570 = vsel %vm11552, %v11537, %v10942
      %v11572 = vsel %vm11552, %v11539, %v10944
      %v11574 = vsel %vm11552, %v11541, %v10946
      %v11576 = vsel %vm11552, %v11543, %v10948
      %v11578 = vsel %vm11552, %v11545, %v10950
      %v11580 = vsel %vm11552, %v11547, %v10952
      %v11582 = vsel %vm11552, %v11549, %v10954
      %v11584 = vsel %vm11552, %v11551, %v10956
      %vm11585 = vcmask 916480
      %v11587 = vsel %vm11585, %v11554, %v11038
      %v11589 = vsel %vm11585, %v11556, %v11040
      %v11591 = vsel %vm11585, %v11558, %v11042
      %v11593 = vsel %vm11585, %v11560, %v11044
      %v11595 = vsel %vm11585, %v11562, %v11046
      %v11597 = vsel %vm11585, %v11564, %v11048
      %v11599 = vsel %vm11585, %v11566, %v11050
      %v11601 = vsel %vm11585, %v11568, %v11052
      %v11603 = vsel %vm11585, %v11570, %v11054
      %v11605 = vsel %vm11585, %v11572, %v11056
      %v11607 = vsel %vm11585, %v11574, %v11058
      %v11609 = vsel %vm11585, %v11576, %v11060
      %v11611 = vsel %vm11585, %v11578, %v11062
      %v11613 = vsel %vm11585, %v11580, %v11064
      %v11615 = vsel %vm11585, %v11582, %v11066
      %v11617 = vsel %vm11585, %v11584, %v11068
      %vm11618 = vcmask 982016
      %v11620 = vsel %vm11618, %v11587, %v11118
      %v11623 = vsel %vm11618, %v11589, %v11120
      %v11626 = vsel %vm11618, %v11591, %v11122
      %v11629 = vsel %vm11618, %v11593, %v11124
      %v11632 = vsel %vm11618, %v11595, %v11126
      %v11635 = vsel %vm11618, %v11597, %v11128
      %v11638 = vsel %vm11618, %v11599, %v11130
      %v11641 = vsel %vm11618, %v11601, %v11132
      %v11644 = vsel %vm11618, %v11603, %v11134
      %v11647 = vsel %vm11618, %v11605, %v11136
      %v11650 = vsel %vm11618, %v11607, %v11138
      %v11653 = vsel %vm11618, %v11609, %v11140
      %v11656 = vsel %vm11618, %v11611, %v11142
      %v11659 = vsel %vm11618, %v11613, %v11144
      %v11662 = vsel %vm11618, %v11615, %v11146
      %v11665 = vsel %vm11618, %v11617, %v11148
      %v11667 = vld [vmem:[%s2] sm:$0xf]
      %v11668 = vld [vmem:[%s2 + $0x4] sm:$0xf]
      %v11669 = vld [vmem:[%s2 + $0x8] sm:$0xf]
      %v11670 = vld [vmem:[%s2 + $0xc] sm:$0xf]
      %v11671 = vld [vmem:[%s2 + $0x10] sm:$0xf]
      %v11672 = vld [vmem:[%s2 + $0x14] sm:$0xf]
      %v11673 = vld [vmem:[%s2 + $0x18] sm:$0xf]
      %v11674 = vld [vmem:[%s2 + $0x1c] sm:$0xf]
      %v11675 = vld [vmem:[%s2 + $0x20] sm:$0xf]
      %v11676 = vld [vmem:[%s2 + $0x24] sm:$0xf]
      %v11677 = vld [vmem:[%s2 + $0x28] sm:$0xf]
      %v11678 = vld [vmem:[%s2 + $0x2c] sm:$0xf]
      %v11679 = vld [vmem:[%s2 + $0x30] sm:$0xf]
      %v11680 = vld [vmem:[%s2 + $0x34] sm:$0xf]
      %v11681 = vld [vmem:[%s2 + $0x38] sm:$0xf]
      %v11682 = vld [vmem:[%s2 + $0x3c] sm:$0xf]
      %v11699 = vunpack.c.l.b16 %v11667
      %v11700 = vunpack.c.l.b16 %v11668
      %v11701 = vunpack.c.l.b16 %v11669
      %v11702 = vunpack.c.l.b16 %v11670
      %v11703 = vunpack.c.l.b16 %v11671
      %v11704 = vunpack.c.l.b16 %v11672
      %v11705 = vunpack.c.l.b16 %v11673
      %v11706 = vunpack.c.l.b16 %v11674
      %v11707 = vunpack.c.l.b16 %v11675
      %v11708 = vunpack.c.l.b16 %v11676
      %v11709 = vunpack.c.l.b16 %v11677
      %v11710 = vunpack.c.l.b16 %v11678
      %v11711 = vunpack.c.l.b16 %v11679
      %v11712 = vunpack.c.l.b16 %v11680
      %v11713 = vunpack.c.l.b16 %v11681
      %v11714 = vunpack.c.l.b16 %v11682
      %v11715 = vpack.c.b16 %v11700, %v11699
      %v11716 = vpack.c.b16 %v11702, %v11701
      %v11717 = vpack.c.b16 %v11704, %v11703
      %v11718 = vpack.c.b16 %v11706, %v11705
      %v11719 = vpack.c.b16 %v11708, %v11707
      %v11720 = vpack.c.b16 %v11710, %v11709
      %v11721 = vpack.c.b16 %v11712, %v11711
      %v11722 = vpack.c.b16 %v11714, %v11713
      %11731 = vmatpush.bf16.msra.mxu0 %v11722
      %11732 = vmatpush.bf16.msra.mxu0 %v11721
      %11733 = vmatpush.bf16.msra.mxu0 %v11720
      %11734 = vmatpush.bf16.msra.mxu0 %v11719
      %11735 = vmatpush.bf16.msra.mxu0 %v11718
      %11736 = vmatpush.bf16.msra.mxu0 %v11717
      %11737 = vmatpush.bf16.msra.mxu0 %v11716
      %11738 = vmatpush.bf16.msra.mxu0 %v11715
      %11739 = vmatmul.bf16.gmra.mxu0 %v11620
      %v11740 = vpop.f32.mrf.mxu0
      %v11741 = vadd.f32 0.0, %v11740
      %v11742 = vpop.f32.mrf.mxu0
      %v11743 = vadd.f32 0.0, %v11742
      %11744 = vmatmul.bf16.gmra.mxu0 %v11623
      %v11745 = vpop.f32.mrf.mxu0
      %v11746 = vadd.f32 0.0, %v11745
      %v11747 = vpop.f32.mrf.mxu0
      %v11748 = vadd.f32 0.0, %v11747
      %11749 = vmatmul.bf16.gmra.mxu0 %v11626
      %v11750 = vpop.f32.mrf.mxu0
      %v11751 = vadd.f32 0.0, %v11750
      %v11752 = vpop.f32.mrf.mxu0
      %v11753 = vadd.f32 0.0, %v11752
      %11754 = vmatmul.bf16.gmra.mxu0 %v11629
      %v11755 = vpop.f32.mrf.mxu0
      %v11756 = vadd.f32 0.0, %v11755
      %v11757 = vpop.f32.mrf.mxu0
      %v11758 = vadd.f32 0.0, %v11757
      %11759 = vmatmul.bf16.gmra.mxu0 %v11632
      %v11760 = vpop.f32.mrf.mxu0
      %v11761 = vadd.f32 0.0, %v11760
      %v11762 = vpop.f32.mrf.mxu0
      %v11763 = vadd.f32 0.0, %v11762
      %11764 = vmatmul.bf16.gmra.mxu0 %v11635
      %v11765 = vpop.f32.mrf.mxu0
      %v11766 = vadd.f32 0.0, %v11765
      %v11767 = vpop.f32.mrf.mxu0
      %v11768 = vadd.f32 0.0, %v11767
      %11769 = vmatmul.bf16.gmra.mxu0 %v11638
      %v11770 = vpop.f32.mrf.mxu0
      %v11771 = vadd.f32 0.0, %v11770
      %v11772 = vpop.f32.mrf.mxu0
      %v11773 = vadd.f32 0.0, %v11772
      %11774 = vmatmul.bf16.gmra.mxu0 %v11641
      %v11775 = vpop.f32.mrf.mxu0
      %v11776 = vadd.f32 0.0, %v11775
      %v11777 = vpop.f32.mrf.mxu0
      %v11778 = vadd.f32 0.0, %v11777
      %11779 = vmatmul.bf16.gmra.mxu0 %v11644
      %v11780 = vpop.f32.mrf.mxu0
      %v11781 = vadd.f32 0.0, %v11780
      %v11782 = vpop.f32.mrf.mxu0
      %v11783 = vadd.f32 0.0, %v11782
      %11784 = vmatmul.bf16.gmra.mxu0 %v11647
      %v11785 = vpop.f32.mrf.mxu0
      %v11786 = vadd.f32 0.0, %v11785
      %v11787 = vpop.f32.mrf.mxu0
      %v11788 = vadd.f32 0.0, %v11787
      %11789 = vmatmul.bf16.gmra.mxu0 %v11650
      %v11790 = vpop.f32.mrf.mxu0
      %v11791 = vadd.f32 0.0, %v11790
      %v11792 = vpop.f32.mrf.mxu0
      %v11793 = vadd.f32 0.0, %v11792
      %11794 = vmatmul.bf16.gmra.mxu0 %v11653
      %v11795 = vpop.f32.mrf.mxu0
      %v11796 = vadd.f32 0.0, %v11795
      %v11797 = vpop.f32.mrf.mxu0
      %v11798 = vadd.f32 0.0, %v11797
      %11799 = vmatmul.bf16.gmra.mxu0 %v11656
      %v11800 = vpop.f32.mrf.mxu0
      %v11801 = vadd.f32 0.0, %v11800
      %v11802 = vpop.f32.mrf.mxu0
      %v11803 = vadd.f32 0.0, %v11802
      %11804 = vmatmul.bf16.gmra.mxu0 %v11659
      %v11805 = vpop.f32.mrf.mxu0
      %v11806 = vadd.f32 0.0, %v11805
      %v11807 = vpop.f32.mrf.mxu0
      %v11808 = vadd.f32 0.0, %v11807
      %11809 = vmatmul.bf16.gmra.mxu0 %v11662
      %v11810 = vpop.f32.mrf.mxu0
      %v11811 = vadd.f32 0.0, %v11810
      %v11812 = vpop.f32.mrf.mxu0
      %v11813 = vadd.f32 0.0, %v11812
      %11814 = vmatmul.bf16.gmra.mxu0 %v11665
      %v11815 = vpop.f32.mrf.mxu0
      %v11816 = vadd.f32 0.0, %v11815
      %v11817 = vpop.f32.mrf.mxu0
      %v11818 = vadd.f32 0.0, %v11817
      %11819 = vdwg.mxu0
      %v11820 = vperm.slane %v1197, 4
      %v11821 = vmul.f32 %v11741, %v11820
      %v11822 = vmul.f32 %v11743, %v11820
      %v11823 = vmul.f32 %v11746, %v11820
      %v11824 = vmul.f32 %v11748, %v11820
      %v11825 = vmul.f32 %v11751, %v11820
      %v11826 = vmul.f32 %v11753, %v11820
      %v11827 = vmul.f32 %v11756, %v11820
      %v11828 = vmul.f32 %v11758, %v11820
      %v11829 = vmul.f32 %v11761, %v11820
      %v11830 = vmul.f32 %v11763, %v11820
      %v11831 = vmul.f32 %v11766, %v11820
      %v11832 = vmul.f32 %v11768, %v11820
      %v11833 = vmul.f32 %v11771, %v11820
      %v11834 = vmul.f32 %v11773, %v11820
      %v11835 = vmul.f32 %v11776, %v11820
      %v11836 = vmul.f32 %v11778, %v11820
      %v11837 = vmul.f32 %v11781, %v11820
      %v11838 = vmul.f32 %v11783, %v11820
      %v11839 = vmul.f32 %v11786, %v11820
      %v11840 = vmul.f32 %v11788, %v11820
      %v11841 = vmul.f32 %v11791, %v11820
      %v11842 = vmul.f32 %v11793, %v11820
      %v11843 = vmul.f32 %v11796, %v11820
      %v11844 = vmul.f32 %v11798, %v11820
      %v11845 = vmul.f32 %v11801, %v11820
      %v11846 = vmul.f32 %v11803, %v11820
      %v11847 = vmul.f32 %v11806, %v11820
      %v11848 = vmul.f32 %v11808, %v11820
      %v11849 = vmul.f32 %v11811, %v11820
      %v11850 = vmul.f32 %v11813, %v11820
      %v11851 = vmul.f32 %v11816, %v11820
      %v11852 = vmul.f32 %v11818, %v11820
      %v11853 = vperm.slane %v1197, 5
      %v11854 = vadd.f32 %v11821, %v11853
      %v11855 = vadd.f32 %v11822, %v11853
      %v11856 = vadd.f32 %v11823, %v11853
      %v11857 = vadd.f32 %v11824, %v11853
      %v11858 = vadd.f32 %v11825, %v11853
      %v11859 = vadd.f32 %v11826, %v11853
      %v11860 = vadd.f32 %v11827, %v11853
      %v11861 = vadd.f32 %v11828, %v11853
      %v11862 = vadd.f32 %v11829, %v11853
      %v11863 = vadd.f32 %v11830, %v11853
      %v11864 = vadd.f32 %v11831, %v11853
      %v11865 = vadd.f32 %v11832, %v11853
      %v11866 = vadd.f32 %v11833, %v11853
      %v11867 = vadd.f32 %v11834, %v11853
      %v11868 = vadd.f32 %v11835, %v11853
      %v11869 = vadd.f32 %v11836, %v11853
      %v11870 = vadd.f32 %v11837, %v11853
      %v11871 = vadd.f32 %v11838, %v11853
      %v11872 = vadd.f32 %v11839, %v11853
      %v11873 = vadd.f32 %v11840, %v11853
      %v11874 = vadd.f32 %v11841, %v11853
      %v11875 = vadd.f32 %v11842, %v11853
      %v11876 = vadd.f32 %v11843, %v11853
      %v11877 = vadd.f32 %v11844, %v11853
      %v11878 = vadd.f32 %v11845, %v11853
      %v11879 = vadd.f32 %v11846, %v11853
      %v11880 = vadd.f32 %v11847, %v11853
      %v11881 = vadd.f32 %v11848, %v11853
      %v11882 = vadd.f32 %v11849, %v11853
      %v11883 = vadd.f32 %v11850, %v11853
      %v11884 = vadd.f32 %v11851, %v11853
      %v11885 = vadd.f32 %v11852, %v11853
      %11918 = vrot.lane.b32.xlu0 %v4347, 96
      %v11919 = vpop.permute.xlu0 %11918
      %11920 = vrot.lane.b32.xlu0 %v4348, 96
      %v11921 = vpop.permute.xlu0 %11920
      %11922 = vrot.lane.b32.xlu0 %v4349, 96
      %v11923 = vpop.permute.xlu0 %11922
      %11924 = vrot.lane.b32.xlu0 %v4350, 96
      %v11925 = vpop.permute.xlu0 %11924
      %11926 = vrot.lane.b32.xlu0 %v4351, 96
      %v11927 = vpop.permute.xlu0 %11926
      %11928 = vrot.lane.b32.xlu0 %v4352, 96
      %v11929 = vpop.permute.xlu0 %11928
      %11930 = vrot.lane.b32.xlu0 %v4353, 96
      %v11931 = vpop.permute.xlu0 %11930
      %11932 = vrot.lane.b32.xlu0 %v4354, 96
      %v11933 = vpop.permute.xlu0 %11932
      %11934 = vrot.lane.b32.xlu0 %v4355, 96
      %v11935 = vpop.permute.xlu0 %11934
      %11936 = vrot.lane.b32.xlu0 %v4356, 96
      %v11937 = vpop.permute.xlu0 %11936
      %11938 = vrot.lane.b32.xlu0 %v4357, 96
      %v11939 = vpop.permute.xlu0 %11938
      %11940 = vrot.lane.b32.xlu0 %v4358, 96
      %v11941 = vpop.permute.xlu0 %11940
      %11942 = vrot.lane.b32.xlu0 %v4359, 96
      %v11943 = vpop.permute.xlu0 %11942
      %11944 = vrot.lane.b32.xlu0 %v4360, 96
      %v11945 = vpop.permute.xlu0 %11944
      %11946 = vrot.lane.b32.xlu0 %v4361, 96
      %v11947 = vpop.permute.xlu0 %11946
      %11948 = vrot.lane.b32.xlu0 %v4362, 96
      %v11949 = vpop.permute.xlu0 %11948
      %11950 = vrot.lane.b32.xlu0 %v4363, 96
      %v11951 = vpop.permute.xlu0 %11950
      %11952 = vrot.lane.b32.xlu0 %v4364, 96
      %v11953 = vpop.permute.xlu0 %11952
      %11954 = vrot.lane.b32.xlu0 %v4365, 96
      %v11955 = vpop.permute.xlu0 %11954
      %11956 = vrot.lane.b32.xlu0 %v4366, 96
      %v11957 = vpop.permute.xlu0 %11956
      %11958 = vrot.lane.b32.xlu0 %v4367, 96
      %v11959 = vpop.permute.xlu0 %11958
      %11960 = vrot.lane.b32.xlu0 %v4368, 96
      %v11961 = vpop.permute.xlu0 %11960
      %11962 = vrot.lane.b32.xlu0 %v4369, 96
      %v11963 = vpop.permute.xlu0 %11962
      %11964 = vrot.lane.b32.xlu0 %v4370, 96
      %v11965 = vpop.permute.xlu0 %11964
      %11966 = vrot.lane.b32.xlu0 %v4371, 96
      %v11967 = vpop.permute.xlu0 %11966
      %11968 = vrot.lane.b32.xlu0 %v4372, 96
      %v11969 = vpop.permute.xlu0 %11968
      %11970 = vrot.lane.b32.xlu0 %v4373, 96
      %v11971 = vpop.permute.xlu0 %11970
      %11972 = vrot.lane.b32.xlu0 %v4374, 96
      %v11973 = vpop.permute.xlu0 %11972
      %11974 = vrot.lane.b32.xlu0 %v4375, 96
      %v11975 = vpop.permute.xlu0 %11974
      %11976 = vrot.lane.b32.xlu0 %v4376, 96
      %v11977 = vpop.permute.xlu0 %11976
      %11978 = vrot.lane.b32.xlu0 %v4377, 96
      %v11979 = vpop.permute.xlu0 %11978
      %11980 = vrot.lane.b32.xlu0 %v4378, 96
      %v11981 = vpop.permute.xlu0 %11980
      %v12014 = vadd.f32 %v11854, %v11919
      %v12015 = vadd.f32 %v11855, %v11921
      %v12016 = vadd.f32 %v11856, %v11923
      %v12017 = vadd.f32 %v11857, %v11925
      %v12018 = vadd.f32 %v11858, %v11927
      %v12019 = vadd.f32 %v11859, %v11929
      %v12020 = vadd.f32 %v11860, %v11931
      %v12021 = vadd.f32 %v11861, %v11933
      %v12022 = vadd.f32 %v11862, %v11935
      %v12023 = vadd.f32 %v11863, %v11937
      %v12024 = vadd.f32 %v11864, %v11939
      %v12025 = vadd.f32 %v11865, %v11941
      %v12026 = vadd.f32 %v11866, %v11943
      %v12027 = vadd.f32 %v11867, %v11945
      %v12028 = vadd.f32 %v11868, %v11947
      %v12029 = vadd.f32 %v11869, %v11949
      %v12030 = vadd.f32 %v11870, %v11951
      %v12031 = vadd.f32 %v11871, %v11953
      %v12032 = vadd.f32 %v11872, %v11955
      %v12033 = vadd.f32 %v11873, %v11957
      %v12034 = vadd.f32 %v11874, %v11959
      %v12035 = vadd.f32 %v11875, %v11961
      %v12036 = vadd.f32 %v11876, %v11963
      %v12037 = vadd.f32 %v11877, %v11965
      %v12038 = vadd.f32 %v11878, %v11967
      %v12039 = vadd.f32 %v11879, %v11969
      %v12040 = vadd.f32 %v11880, %v11971
      %v12041 = vadd.f32 %v11881, %v11973
      %v12042 = vadd.f32 %v11882, %v11975
      %v12043 = vadd.f32 %v11883, %v11977
      %v12044 = vadd.f32 %v11884, %v11979
      %v12045 = vadd.f32 %v11885, %v11981
      %v12046 = vmax.f32 %v12014, 0.0
      %v12047 = vmax.f32 %v12015, 0.0
      %v12048 = vmax.f32 %v12016, 0.0
      %v12049 = vmax.f32 %v12017, 0.0
      %v12050 = vmax.f32 %v12018, 0.0
      %v12051 = vmax.f32 %v12019, 0.0
      %v12052 = vmax.f32 %v12020, 0.0
      %v12053 = vmax.f32 %v12021, 0.0
      %v12054 = vmax.f32 %v12022, 0.0
      %v12055 = vmax.f32 %v12023, 0.0
      %v12056 = vmax.f32 %v12024, 0.0
      %v12057 = vmax.f32 %v12025, 0.0
      %v12058 = vmax.f32 %v12026, 0.0
      %v12059 = vmax.f32 %v12027, 0.0
      %v12060 = vmax.f32 %v12028, 0.0
      %v12061 = vmax.f32 %v12029, 0.0
      %v12062 = vmax.f32 %v12030, 0.0
      %v12063 = vmax.f32 %v12031, 0.0
      %v12064 = vmax.f32 %v12032, 0.0
      %v12065 = vmax.f32 %v12033, 0.0
      %v12066 = vmax.f32 %v12034, 0.0
      %v12067 = vmax.f32 %v12035, 0.0
      %v12068 = vmax.f32 %v12036, 0.0
      %v12069 = vmax.f32 %v12037, 0.0
      %v12070 = vmax.f32 %v12038, 0.0
      %v12071 = vmax.f32 %v12039, 0.0
      %v12072 = vmax.f32 %v12040, 0.0
      %v12073 = vmax.f32 %v12041, 0.0
      %v12074 = vmax.f32 %v12042, 0.0
      %v12075 = vmax.f32 %v12043, 0.0
      %v12076 = vmax.f32 %v12044, 0.0
      %v12077 = vmax.f32 %v12045, 0.0
      %12078 = vst.msk [vmem:[%s197] sm:$0xff] %vm3880, %v12046
      %12079 = vst.msk [vmem:[%s197 + $0x8] sm:$0xff] %vm3880, %v12047
      %12080 = vst.msk [vmem:[%s197 + $0x10] sm:$0xff] %vm3880, %v12048
      %12081 = vst.msk [vmem:[%s197 + $0x18] sm:$0xff] %vm3880, %v12049
      %12082 = vst.msk [vmem:[%s197 + $0x20] sm:$0xff] %vm3880, %v12050
      %12083 = vst.msk [vmem:[%s197 + $0x28] sm:$0xff] %vm3880, %v12051
      %12084 = vst.msk [vmem:[%s197 + $0x30] sm:$0xff] %vm3880, %v12052
      %12085 = vst.msk [vmem:[%s197 + $0x38] sm:$0xff] %vm3880, %v12053
      %12086 = vst.msk [vmem:[%s197 + $0x40] sm:$0xff] %vm3880, %v12054
      %12087 = vst.msk [vmem:[%s197 + $0x48] sm:$0xff] %vm3880, %v12055
      %12088 = vst.msk [vmem:[%s197 + $0x50] sm:$0xff] %vm3880, %v12056
      %12089 = vst.msk [vmem:[%s197 + $0x58] sm:$0xff] %vm3880, %v12057
      %12090 = vst.msk [vmem:[%s197 + $0x60] sm:$0xff] %vm3880, %v12058
      %12091 = vst.msk [vmem:[%s197 + $0x68] sm:$0xff] %vm3880, %v12059
      %12092 = vst.msk [vmem:[%s197 + $0x70] sm:$0xff] %vm3880, %v12060
      %12093 = vst.msk [vmem:[%s197 + $0x78] sm:$0xff] %vm3880, %v12061
      %12094 = vst.msk [vmem:[%s197 + $0x80] sm:$0xff] %vm3880, %v12062
      %12095 = vst.msk [vmem:[%s197 + $0x88] sm:$0xff] %vm3880, %v12063
      %12096 = vst.msk [vmem:[%s197 + $0x90] sm:$0xff] %vm3880, %v12064
      %12097 = vst.msk [vmem:[%s197 + $0x98] sm:$0xff] %vm3880, %v12065
      %12098 = vst.msk [vmem:[%s197 + $0xa0] sm:$0xff] %vm3880, %v12066
      %12099 = vst.msk [vmem:[%s197 + $0xa8] sm:$0xff] %vm3880, %v12067
      %12100 = vst.msk [vmem:[%s197 + $0xb0] sm:$0xff] %vm3880, %v12068
      %12101 = vst.msk [vmem:[%s197 + $0xb8] sm:$0xff] %vm3880, %v12069
      %12102 = vst.msk [vmem:[%s197 + $0xc0] sm:$0xff] %vm3880, %v12070
      %12103 = vst.msk [vmem:[%s197 + $0xc8] sm:$0xff] %vm3880, %v12071
      %12104 = vst.msk [vmem:[%s197 + $0xd0] sm:$0xff] %vm3880, %v12072
      %12105 = vst.msk [vmem:[%s197 + $0xd8] sm:$0xff] %vm3880, %v12073
      %12106 = vst.msk [vmem:[%s197 + $0xe0] sm:$0xff] %vm3880, %v12074
      %12107 = vst.msk [vmem:[%s197 + $0xe8] sm:$0xff] %vm3880, %v12075
      %12108 = vst.msk [vmem:[%s197 + $0xf0] sm:$0xff] %vm3880, %v12076
      %12109 = vst.msk [vmem:[%s197 + $0xf8] sm:$0xff] %vm3880, %v12077
      %p12110 = scmp.lt.s32.totalorder %s15, 1
      %s12111 = scalar_select %p12110, %s15, 1
      %s12112 = smul.addr %s12111, 32
      %s12113 = smul.addr %s12112, 8
      %s12114 = scalar_lea.vmem %s4, %s12113
      // Predicated region
      $region37: #{up_project_forward.1} parent=35 // pred_check
        %p12115 = pneg %p122
      $region38: #{up_project_forward.1} parent=35 // pred_check_branch
        %12117 = sbr.rel (%p12115) target = $region40
      $region39: #{up_project_forward.1} parent=35 // pred_region
        _
      $region40: #{up_project_forward.1} parent=35 // pred_fallthru
        _
    $region36: #{up_project_forward.1} parent=5 // pred_fallthru
      _
    %p12118 = scmp.le.s32.totalorder 2, %s10
    // Predicated region
    $region41: #{up_project_forward.1} parent=5 // pred_check
      %p12119 = pneg %p12118
    $region42: #{up_project_forward.1} parent=5 // pred_check_branch
      %12121 = sbr.rel (%p12119) target = $region44
    $region43: #{up_project_forward.1} parent=5 // pred_region
      %s12122 = ssub.s32 %s10, 2
      // Predicated region
      $region45: #{up_project_forward.1} parent=43 // pred_check
        %p12123 = pneg %p128
      $region46: #{up_project_forward.1} parent=43 // pred_check_branch
        %12125 = sbr.rel (%p12123) target = $region48
      $region47: #{up_project_forward.1} parent=43 // pred_region
        %p12126 = scmp.lt.s32.totalorder %s16, 1
        %s12127 = scalar_select %p12126, %s16, 1
        %s12128 = smul.addr %s12127, 32
        %s12129 = smul.addr %s12128, 8
        %s12130 = scalar_lea.vmem %s4, %s12129
      $region48: #{up_project_forward.1} parent=43 // pred_fallthru
        _
    $region44: #{up_project_forward.1} parent=5 // pred_fallthru
      _
  $region6: #{up_project_forward.1} parent=0 // loop_footer
    %s14 = sadd.s32 1, %s10
  $region7: #{up_project_forward.1} parent=0 // loop_footer_branch
    %9 = sbr.rel target = $region3
  $region8: #{up_project_forward.1} parent=0 // loop_exit
    _

</llo_original>
